<compile_context>
chip_gen: v6e
topology: v6e:2x2x1
jax: 0.10.0
libtpu: 0.0.40
codegen_flags: <defaults>
</compile_context>

<pallas_src>
import functools
import math

import numpy as np
import jax
import jax.numpy as jnp
from jax.experimental import pallas as pl
from jax.experimental.pallas import tpu as pltpu

EPS = 1e-5  # PyTorch BatchNorm2d default eps.

_VMEM = pl.BlockSpec(memory_space=pltpu.MemorySpace.VMEM)
_CORNERS = ((0, 0), (0, 1), (1, 0), (1, 1))


# ------------------------- compile-time constant tables ----------------------

@functools.lru_cache(maxsize=None)
def _tables(n):
    """Constants encoding all spatial structure (16x16 input, as in the module).

    Returns:
      (a1n, a1h, a1w): int32 (4*n*64, 9) gather indices building layer-1 im2col
          patches from the zero-padded (n,18,18) input.  Rows are ordered
          (pool-corner, n, ph, pw) so MaxPool2d(2) is a max over four contiguous,
          128-aligned row blocks; columns are (kh, kw).
      g2: f32 (n*64, 9*n*64) one-hot matrix:  y2 = g2 @ vstack_k(p1 @ W2_k)
          implements the 3x3 / pad=1 conv on the 8x8 grid (all-zero entries
          where a tap falls into the zero padding).
      g3: f32 (4, n*25, 9*n*64): same for layer 3 (3x3 / pad=2 conv, 8x8 -> 10x10),
          one slab per 2x2 pooling corner so the pool is again a max of four
          equal-size blocks and the BatchNorm batch statistics stay exact.
    """
    m8 = n * 64  # rows of an (n, 8, 8) raster

    # ---- layer-1 im2col gather (conv 3x3, pad=1, on the 16x16 input) ----------
    a1n = np.zeros((4 * m8, 9), np.int32)
    a1h = np.zeros((4 * m8, 9), np.int32)
    a1w = np.zeros((4 * m8, 9), np.int32)
    r = 0
    for a, b in _CORNERS:
        for nn in range(n):
            for ph in range(8):
                for pw in range(8):
                    for k in range(9):
                        kh, kw = divmod(k, 3)
                        a1n[r, k] = nn
                        a1h[r, k] = 2 * ph + a + kh  # padded-input coordinates
                        a1w[r, k] = 2 * pw + b + kw
                    r += 1

    def idx8(nn, h, w):
        return nn * 64 + h * 8 + w

    # ---- layer-2 gather matrix (conv 3x3, pad=1, on the 8x8 grid) -------------
    g2 = np.zeros((m8, 9 * m8), np.float32)
    for nn in range(n):
        for h in range(8):
            for w in range(8):
                for k in range(9):
                    kh, kw = divmod(k, 3)
                    hi, wi = h + kh - 1, w + kw - 1
                    if 0 <= hi < 8 and 0 <= wi < 8:
                        g2[idx8(nn, h, w), k * m8 + idx8(nn, hi, wi)] = 1.0

    # ---- layer-3 gather matrices (conv 3x3, pad=2, 8x8 -> 10x10, per corner) --
    m3 = n * 25
    g3 = np.zeros((4, m3, 9 * m8), np.float32)
    for c, (a, b) in enumerate(_CORNERS):
        for nn in range(n):
            for ph in range(5):
                for pw in range(5):
                    for k in range(9):
                        kh, kw = divmod(k, 3)
                        hi = 2 * ph + a + kh - 2
                        wi = 2 * pw + b + kw - 2
                        if 0 <= hi < 8 and 0 <= wi < 8:
                            g3[c, nn * 25 + ph * 5 + pw,
                               k * m8 + idx8(nn, hi, wi)] = 1.0

    return (a1n, a1h, a1w), g2, g3


# --------------------------------- kernel ------------------------------------

def _encoder_kernel(a1_ref, w1_ref, w2_ref, w3_ref, g2_ref, g3_ref,
                    gam_ref, bet_ref, o_ref):
    """Whole-encoder forward; single grid point, everything VMEM-resident.

    Conv biases are omitted on purpose: a per-channel constant added before
    train-mode BatchNorm is exactly cancelled by the mean subtraction.
    """
    f32 = jnp.float32
    m8 = g2_ref.shape[0]  # rows of an (n, 8, 8) raster (128 for n=2)

    def bn_relu(y, mean, var, layer):
        inv = jax.lax.rsqrt(var + EPS)
        return jnp.maximum((y - mean) * inv * gam_ref[layer] + bet_ref[layer], 0.0)

    # ---- layer 1: conv(1->16, 3x3, pad=1) + BN + ReLU + MaxPool2d(2) ----------
    y1 = jnp.dot(a1_ref[...], w1_ref[...], preferred_element_type=f32)  # (4*m8,16)
    mu1 = jnp.mean(y1, axis=0, keepdims=True)
    var1 = jnp.mean(jnp.square(y1 - mu1), axis=0, keepdims=True)        # biased
    z1 = bn_relu(y1, mu1, var1, 0)
    # Rows are grouped by 2x2 pooling corner -> the pool is a max of four
    # contiguous, 128-aligned row blocks; result rows are an (n, 8, 8) raster.
    p1 = jnp.maximum(jnp.maximum(z1[0 * m8:1 * m8], z1[1 * m8:2 * m8]),
                     jnp.maximum(z1[2 * m8:3 * m8], z1[3 * m8:4 * m8]))  # (m8,16)

    # ---- layer 2: conv(16->16, 3x3, pad=1) + BN + ReLU ------------------------
    v2stk = jnp.concatenate(
        [jnp.dot(p1, w2_ref[k], preferred_element_type=f32) for k in range(9)],
        axis=0)                                                          # (9*m8,16)
    y2 = jnp.dot(g2_ref[...], v2stk, preferred_element_type=f32)        # (m8,16)
    mu2 = jnp.mean(y2, axis=0, keepdims=True)
    var2 = jnp.mean(jnp.square(y2 - mu2), axis=0, keepdims=True)
    z2 = bn_relu(y2, mu2, var2, 1)

    # ---- layer 3: conv(16->16, 3x3, pad=2) + BN + ReLU + MaxPool2d(2) ---------
    v3stk = jnp.concatenate(
        [jnp.dot(z2, w3_ref[k], preferred_element_type=f32) for k in range(9)],
        axis=0)                                                          # (9*m8,16)
    y3 = [jnp.dot(g3_ref[c], v3stk, preferred_element_type=f32) for c in range(4)]
    # Exact pre-pool batch statistics: the 4 corner groups are equal-size and
    # together cover every conv-output position exactly once.
    mu3 = (jnp.mean(y3[0], axis=0, keepdims=True)
           + jnp.mean(y3[1], axis=0, keepdims=True)
           + jnp.mean(y3[2], axis=0, keepdims=True)
           + jnp.mean(y3[3], axis=0, keepdims=True)) * 0.25
    var3 = (jnp.mean(jnp.square(y3[0] - mu3), axis=0, keepdims=True)
            + jnp.mean(jnp.square(y3[1] - mu3), axis=0, keepdims=True)
            + jnp.mean(jnp.square(y3[2] - mu3), axis=0, keepdims=True)
            + jnp.mean(jnp.square(y3[3] - mu3), axis=0, keepdims=True)) * 0.25
    z3 = [bn_relu(y, mu3, var3, 2) for y in y3]
    o_ref[...] = jnp.maximum(jnp.maximum(z3[0], z3[1]), jnp.maximum(z3[2], z3[3]))


# ------------------------------ public wrapper --------------------------------

def encoder_forward(x_nchw, params):
    """NCHW f32 -> NCHW f32.  The whole encoder is a single pallas_call."""
    n, cin, h, w = x_nchw.shape
    assert (cin, h, w) == (1, 16, 16), "constant tables assume the module's 1x16x16 input"
    (a1n, a1h, a1w), g2, g3 = _tables(n)

    # Only wrapper-side glue: zero-pad the raw input and gather the layer-1
    # im2col patches (512x9 f32 = 18 KiB; Cin=1 so there is no duplication blow-up).
    xp = jnp.pad(x_nchw.reshape(n, 16, 16).astype(jnp.float32),
                 ((0, 0), (1, 1), (1, 1)))
    a1 = xp[a1n, a1h, a1w]                                   # (4*n*64, 9)

    out = pl.pallas_call(
        _encoder_kernel,
        out_shape=jax.ShapeDtypeStruct((n * 25, 16), jnp.float32),
        in_specs=[_VMEM] * 8,
        out_specs=_VMEM,
    )(a1, params["w1"], params["w2"], params["w3"],
      jnp.asarray(g2), jnp.asarray(g3), params["gamma"], params["beta"])

    # Kernel output rows are an (n, 5, 5) raster with channels last.
    return jnp.transpose(out.reshape(n, 5, 5, 16), (0, 3, 1, 2))


# -------------------------------- parameters ----------------------------------

def init_params(key):
    """PyTorch-style init: Conv2d weight ~ U(+-1/sqrt(fan_in)); BN gamma=1, beta=0.
    Conv biases are omitted (exactly cancelled by train-mode BatchNorm)."""
    k1, k2, k3 = jax.random.split(key, 3)

    def unif(k, shape, fan_in):
        bound = 1.0 / math.sqrt(fan_in)
        return jax.random.uniform(k, shape, jnp.float32, -bound, bound)

    return {
        # conv weights stored tap-major: w[k, cin, cout] with k = kh*3 + kw
        "w1": unif(k1, (9, 16), 9 * 1),        # cin == 1 squeezed
        "w2": unif(k2, (9, 16, 16), 9 * 16),
        "w3": unif(k3, (9, 16, 16), 9 * 16),
        "gamma": jnp.ones((3, 16), jnp.float32),   # rows: layers 1..3
        "beta": jnp.zeros((3, 16), jnp.float32),
    }


# --------------------------- pure-XLA reference --------------------------------

def _reference_forward(x_nchw, params):
    """Independent reference: lax.conv + explicit train-mode BN + reduce_window."""
    def conv(x_nhwc, w_taps, pad):
        cin = x_nhwc.shape[-1]
        w_hwio = w_taps.reshape(3, 3, cin, 16)
        return jax.lax.conv_general_dilated(
            x_nhwc, w_hwio, window_strides=(1, 1),
            padding=((pad, pad), (pad, pad)),
            dimension_numbers=("NHWC", "HWIO", "NHWC"))

    def bn_relu(y, layer):
        mu = jnp.mean(y, axis=(0, 1, 2), keepdims=True)
        var = jnp.mean(jnp.square(y - mu), axis=(0, 1, 2), keepdims=True)
        z = (y - mu) * jax.lax.rsqrt(var + EPS)
        return jnp.maximum(z * params["gamma"][layer] + params["beta"][layer], 0.0)

    def pool(z):
        return jax.lax.reduce_window(z, -jnp.inf, jax.lax.max,
                                     (1, 2, 2, 1), (1, 2, 2, 1), "VALID")

    x = jnp.transpose(x_nchw.astype(jnp.float32), (0, 2, 3, 1))
    x = pool(bn_relu(conv(x, params["w1"].reshape(9, 1, 16), 1), 0))
    x = bn_relu(conv(x, params["w2"], 1), 1)
    x = pool(bn_relu(conv(x, params["w3"], 2), 2))
    return jnp.transpose(x, (0, 3, 1, 2))


# ----------------------------------- main --------------------------------------

if __name__ == "__main__":
    key = jax.random.PRNGKey(0)
    params = init_params(key)
    x = jax.random.normal(jax.random.fold_in(key, 999), (2, 1, 16, 16), jnp.float32)

    fwd = jax.jit(lambda xx: encoder_forward(xx, params))
    y = jax.block_until_ready(fwd(x))

    # 16x16 -> pool -> 8x8 -> conv(pad=2) -> 10x10 -> pool -> 5x5, 16 channels.
    assert y.shape == (2, 16, 5, 5), y.shape
    assert bool(jnp.all(y >= 0.0))  # ReLU followed by max-pool => non-negative

    # Correctness check vs. an independent XLA reference (default f32 matmul
    # precision on both sides, hence the loose-ish tolerance).
    y_ref = jax.block_until_ready(
        jax.jit(lambda xx: _reference_forward(xx, params))(x))
    np.testing.assert_allclose(np.asarray(y), np.asarray(y_ref),
                               rtol=5e-2, atol=5e-2)

    print("KERNEL_OK")
</pallas_src>

<mosaic_0001>
module attributes {stable_mosaic.version = 11 : i64} {
  func.func @_encoder_kernel(%arg0: memref<512x9xf32, #tpu.memory_space<vmem>>, %arg1: memref<9x16xf32, #tpu.memory_space<vmem>>, %arg2: memref<9x16x16xf32, #tpu.memory_space<vmem>>, %arg3: memref<9x16x16xf32, #tpu.memory_space<vmem>>, %arg4: memref<128x1152xf32, #tpu.memory_space<vmem>>, %arg5: memref<4x50x1152xf32, #tpu.memory_space<vmem>>, %arg6: memref<3x16xf32, #tpu.memory_space<vmem>>, %arg7: memref<3x16xf32, #tpu.memory_space<vmem>>, %arg8: memref<50x16xf32, #tpu.memory_space<vmem>>) attributes {dimension_semantics = [], scalar_prefetch = 0 : i64, scratch_operands = 0 : i64, tpu.core_type = #tpu.core_type<tc>} {
    %c0 = arith.constant 0 : index
    %c0_0 = arith.constant 0 : index
    %0 = vector.load %arg0[%c0, %c0_0] : memref<512x9xf32, #tpu.memory_space<vmem>>, vector<512x9xf32>
    %c0_1 = arith.constant 0 : index
    %c0_2 = arith.constant 0 : index
    %1 = vector.load %arg1[%c0_1, %c0_2] : memref<9x16xf32, #tpu.memory_space<vmem>>, vector<9x16xf32>
    %cst = arith.constant dense<0.000000e+00> : vector<512x16xf32>
    %2 = tpu.matmul %0, %1, %cst {dimension_numbers = #tpu.dot_dimension_numbers<[1], [0], [0], [1], [0, 0, 1, 1], [], []>} : vector<512x9xf32>, vector<9x16xf32>, vector<512x16xf32> -> vector<512x16xf32>
    %cst_3 = arith.constant dense<0.000000e+00> : vector<16xf32>
    %3 = vector.multi_reduction <add>, %2, %cst_3 [0] : vector<512x16xf32> to vector<16xf32>
    %4 = vector.shape_cast %3 : vector<16xf32> to vector<1x16xf32>
    %cst_4 = arith.constant 5.120000e+02 : f32
    %5 = vector.broadcast %cst_4 : f32 to vector<1x16xf32>
    %6 = arith.divf %4, %5 : vector<1x16xf32>
    %7 = vector.broadcast %6 : vector<1x16xf32> to vector<512x16xf32>
    %8 = arith.subf %2, %7 : vector<512x16xf32>
    %9 = arith.mulf %8, %8 : vector<512x16xf32>
    %cst_5 = arith.constant dense<0.000000e+00> : vector<16xf32>
    %10 = vector.multi_reduction <add>, %9, %cst_5 [0] : vector<512x16xf32> to vector<16xf32>
    %11 = vector.shape_cast %10 : vector<16xf32> to vector<1x16xf32>
    %cst_6 = arith.constant 5.120000e+02 : f32
    %12 = vector.broadcast %cst_6 : f32 to vector<1x16xf32>
    %13 = arith.divf %11, %12 : vector<1x16xf32>
    %cst_7 = arith.constant 9.99999974E-6 : f32
    %14 = vector.broadcast %cst_7 : f32 to vector<1x16xf32>
    %15 = arith.addf %13, %14 : vector<1x16xf32>
    %16 = math.rsqrt %15 : vector<1x16xf32>
    %17 = vector.broadcast %6 : vector<1x16xf32> to vector<512x16xf32>
    %18 = arith.subf %2, %17 : vector<512x16xf32>
    %19 = vector.broadcast %16 : vector<1x16xf32> to vector<512x16xf32>
    %20 = arith.mulf %18, %19 : vector<512x16xf32>
    %c0_8 = arith.constant 0 : index
    %c0_9 = arith.constant 0 : index
    %21 = vector.load %arg6[%c0_8, %c0_9] : memref<3x16xf32, #tpu.memory_space<vmem>>, vector<1x16xf32>
    %22 = vector.shape_cast %21 : vector<1x16xf32> to vector<16xf32>
    %23 = vector.shape_cast %22 : vector<16xf32> to vector<1x16xf32>
    %24 = vector.broadcast %23 : vector<1x16xf32> to vector<512x16xf32>
    %25 = arith.mulf %20, %24 : vector<512x16xf32>
    %c0_10 = arith.constant 0 : index
    %c0_11 = arith.constant 0 : index
    %26 = vector.load %arg7[%c0_10, %c0_11] : memref<3x16xf32, #tpu.memory_space<vmem>>, vector<1x16xf32>
    %27 = vector.shape_cast %26 : vector<1x16xf32> to vector<16xf32>
    %28 = vector.shape_cast %27 : vector<16xf32> to vector<1x16xf32>
    %29 = vector.broadcast %28 : vector<1x16xf32> to vector<512x16xf32>
    %30 = arith.addf %25, %29 : vector<512x16xf32>
    %cst_12 = arith.constant 0.000000e+00 : f32
    %31 = vector.broadcast %cst_12 : f32 to vector<512x16xf32>
    %32 = arith.maximumf %30, %31 : vector<512x16xf32>
    %33 = vector.extract_strided_slice %32 {offsets = [0, 0], sizes = [128, 16], strides = [1, 1]} : vector<512x16xf32> to vector<128x16xf32>
    %34 = vector.extract_strided_slice %32 {offsets = [128, 0], sizes = [128, 16], strides = [1, 1]} : vector<512x16xf32> to vector<128x16xf32>
    %35 = arith.maximumf %33, %34 : vector<128x16xf32>
    %36 = vector.extract_strided_slice %32 {offsets = [256, 0], sizes = [128, 16], strides = [1, 1]} : vector<512x16xf32> to vector<128x16xf32>
    %37 = vector.extract_strided_slice %32 {offsets = [384, 0], sizes = [128, 16], strides = [1, 1]} : vector<512x16xf32> to vector<128x16xf32>
    %38 = arith.maximumf %36, %37 : vector<128x16xf32>
    %39 = arith.maximumf %35, %38 : vector<128x16xf32>
    %c0_13 = arith.constant 0 : index
    %c0_14 = arith.constant 0 : index
    %c0_15 = arith.constant 0 : index
    %40 = vector.load %arg2[%c0_13, %c0_14, %c0_15] : memref<9x16x16xf32, #tpu.memory_space<vmem>>, vector<1x16x16xf32>
    %41 = vector.shape_cast %40 : vector<1x16x16xf32> to vector<16x16xf32>
    %cst_16 = arith.constant dense<0.000000e+00> : vector<128x16xf32>
    %42 = tpu.matmul %39, %41, %cst_16 {dimension_numbers = #tpu.dot_dimension_numbers<[1], [0], [0], [1], [0, 0, 1, 1], [], []>} : vector<128x16xf32>, vector<16x16xf32>, vector<128x16xf32> -> vector<128x16xf32>
    %c1 = arith.constant 1 : index
    %c0_17 = arith.constant 0 : index
    %c0_18 = arith.constant 0 : index
    %43 = vector.load %arg2[%c1, %c0_17, %c0_18] : memref<9x16x16xf32, #tpu.memory_space<vmem>>, vector<1x16x16xf32>
    %44 = vector.shape_cast %43 : vector<1x16x16xf32> to vector<16x16xf32>
    %cst_19 = arith.constant dense<0.000000e+00> : vector<128x16xf32>
    %45 = tpu.matmul %39, %44, %cst_19 {dimension_numbers = #tpu.dot_dimension_numbers<[1], [0], [0], [1], [0, 0, 1, 1], [], []>} : vector<128x16xf32>, vector<16x16xf32>, vector<128x16xf32> -> vector<128x16xf32>
    %c2 = arith.constant 2 : index
    %c0_20 = arith.constant 0 : index
    %c0_21 = arith.constant 0 : index
    %46 = vector.load %arg2[%c2, %c0_20, %c0_21] : memref<9x16x16xf32, #tpu.memory_space<vmem>>, vector<1x16x16xf32>
    %47 = vector.shape_cast %46 : vector<1x16x16xf32> to vector<16x16xf32>
    %cst_22 = arith.constant dense<0.000000e+00> : vector<128x16xf32>
    %48 = tpu.matmul %39, %47, %cst_22 {dimension_numbers = #tpu.dot_dimension_numbers<[1], [0], [0], [1], [0, 0, 1, 1], [], []>} : vector<128x16xf32>, vector<16x16xf32>, vector<128x16xf32> -> vector<128x16xf32>
    %c3 = arith.constant 3 : index
    %c0_23 = arith.constant 0 : index
    %c0_24 = arith.constant 0 : index
    %49 = vector.load %arg2[%c3, %c0_23, %c0_24] : memref<9x16x16xf32, #tpu.memory_space<vmem>>, vector<1x16x16xf32>
    %50 = vector.shape_cast %49 : vector<1x16x16xf32> to vector<16x16xf32>
    %cst_25 = arith.constant dense<0.000000e+00> : vector<128x16xf32>
    %51 = tpu.matmul %39, %50, %cst_25 {dimension_numbers = #tpu.dot_dimension_numbers<[1], [0], [0], [1], [0, 0, 1, 1], [], []>} : vector<128x16xf32>, vector<16x16xf32>, vector<128x16xf32> -> vector<128x16xf32>
    %c4 = arith.constant 4 : index
    %c0_26 = arith.constant 0 : index
    %c0_27 = arith.constant 0 : index
    %52 = vector.load %arg2[%c4, %c0_26, %c0_27] : memref<9x16x16xf32, #tpu.memory_space<vmem>>, vector<1x16x16xf32>
    %53 = vector.shape_cast %52 : vector<1x16x16xf32> to vector<16x16xf32>
    %cst_28 = arith.constant dense<0.000000e+00> : vector<128x16xf32>
    %54 = tpu.matmul %39, %53, %cst_28 {dimension_numbers = #tpu.dot_dimension_numbers<[1], [0], [0], [1], [0, 0, 1, 1], [], []>} : vector<128x16xf32>, vector<16x16xf32>, vector<128x16xf32> -> vector<128x16xf32>
    %c5 = arith.constant 5 : index
    %c0_29 = arith.constant 0 : index
    %c0_30 = arith.constant 0 : index
    %55 = vector.load %arg2[%c5, %c0_29, %c0_30] : memref<9x16x16xf32, #tpu.memory_space<vmem>>, vector<1x16x16xf32>
    %56 = vector.shape_cast %55 : vector<1x16x16xf32> to vector<16x16xf32>
    %cst_31 = arith.constant dense<0.000000e+00> : vector<128x16xf32>
    %57 = tpu.matmul %39, %56, %cst_31 {dimension_numbers = #tpu.dot_dimension_numbers<[1], [0], [0], [1], [0, 0, 1, 1], [], []>} : vector<128x16xf32>, vector<16x16xf32>, vector<128x16xf32> -> vector<128x16xf32>
    %c6 = arith.constant 6 : index
    %c0_32 = arith.constant 0 : index
    %c0_33 = arith.constant 0 : index
    %58 = vector.load %arg2[%c6, %c0_32, %c0_33] : memref<9x16x16xf32, #tpu.memory_space<vmem>>, vector<1x16x16xf32>
    %59 = vector.shape_cast %58 : vector<1x16x16xf32> to vector<16x16xf32>
    %cst_34 = arith.constant dense<0.000000e+00> : vector<128x16xf32>
    %60 = tpu.matmul %39, %59, %cst_34 {dimension_numbers = #tpu.dot_dimension_numbers<[1], [0], [0], [1], [0, 0, 1, 1], [], []>} : vector<128x16xf32>, vector<16x16xf32>, vector<128x16xf32> -> vector<128x16xf32>
    %c7 = arith.constant 7 : index
    %c0_35 = arith.constant 0 : index
    %c0_36 = arith.constant 0 : index
    %61 = vector.load %arg2[%c7, %c0_35, %c0_36] : memref<9x16x16xf32, #tpu.memory_space<vmem>>, vector<1x16x16xf32>
    %62 = vector.shape_cast %61 : vector<1x16x16xf32> to vector<16x16xf32>
    %cst_37 = arith.constant dense<0.000000e+00> : vector<128x16xf32>
    %63 = tpu.matmul %39, %62, %cst_37 {dimension_numbers = #tpu.dot_dimension_numbers<[1], [0], [0], [1], [0, 0, 1, 1], [], []>} : vector<128x16xf32>, vector<16x16xf32>, vector<128x16xf32> -> vector<128x16xf32>
    %c8 = arith.constant 8 : index
    %c0_38 = arith.constant 0 : index
    %c0_39 = arith.constant 0 : index
    %64 = vector.load %arg2[%c8, %c0_38, %c0_39] : memref<9x16x16xf32, #tpu.memory_space<vmem>>, vector<1x16x16xf32>
    %65 = vector.shape_cast %64 : vector<1x16x16xf32> to vector<16x16xf32>
    %cst_40 = arith.constant dense<0.000000e+00> : vector<128x16xf32>
    %66 = tpu.matmul %39, %65, %cst_40 {dimension_numbers = #tpu.dot_dimension_numbers<[1], [0], [0], [1], [0, 0, 1, 1], [], []>} : vector<128x16xf32>, vector<16x16xf32>, vector<128x16xf32> -> vector<128x16xf32>
    %67 = tpu.concatenate %42, %45, %48, %51, %54, %57, %60, %63, %66 in 0 : vector<128x16xf32>, vector<128x16xf32>, vector<128x16xf32>, vector<128x16xf32>, vector<128x16xf32>, vector<128x16xf32>, vector<128x16xf32>, vector<128x16xf32>, vector<128x16xf32> -> vector<1152x16xf32>
    %c0_41 = arith.constant 0 : index
    %c0_42 = arith.constant 0 : index
    %68 = vector.load %arg4[%c0_41, %c0_42] : memref<128x1152xf32, #tpu.memory_space<vmem>>, vector<128x1152xf32>
    %cst_43 = arith.constant dense<0.000000e+00> : vector<128x16xf32>
    %69 = tpu.matmul %68, %67, %cst_43 {dimension_numbers = #tpu.dot_dimension_numbers<[1], [0], [0], [1], [0, 0, 1, 1], [], []>} : vector<128x1152xf32>, vector<1152x16xf32>, vector<128x16xf32> -> vector<128x16xf32>
    %cst_44 = arith.constant dense<0.000000e+00> : vector<16xf32>
    %70 = vector.multi_reduction <add>, %69, %cst_44 [0] : vector<128x16xf32> to vector<16xf32>
    %71 = vector.shape_cast %70 : vector<16xf32> to vector<1x16xf32>
    %cst_45 = arith.constant 1.280000e+02 : f32
    %72 = vector.broadcast %cst_45 : f32 to vector<1x16xf32>
    %73 = arith.divf %71, %72 : vector<1x16xf32>
    %74 = vector.broadcast %73 : vector<1x16xf32> to vector<128x16xf32>
    %75 = arith.subf %69, %74 : vector<128x16xf32>
    %76 = arith.mulf %75, %75 : vector<128x16xf32>
    %cst_46 = arith.constant dense<0.000000e+00> : vector<16xf32>
    %77 = vector.multi_reduction <add>, %76, %cst_46 [0] : vector<128x16xf32> to vector<16xf32>
    %78 = vector.shape_cast %77 : vector<16xf32> to vector<1x16xf32>
    %cst_47 = arith.constant 1.280000e+02 : f32
    %79 = vector.broadcast %cst_47 : f32 to vector<1x16xf32>
    %80 = arith.divf %78, %79 : vector<1x16xf32>
    %cst_48 = arith.constant 9.99999974E-6 : f32
    %81 = vector.broadcast %cst_48 : f32 to vector<1x16xf32>
    %82 = arith.addf %80, %81 : vector<1x16xf32>
    %83 = math.rsqrt %82 : vector<1x16xf32>
    %84 = vector.broadcast %73 : vector<1x16xf32> to vector<128x16xf32>
    %85 = arith.subf %69, %84 : vector<128x16xf32>
    %86 = vector.broadcast %83 : vector<1x16xf32> to vector<128x16xf32>
    %87 = arith.mulf %85, %86 : vector<128x16xf32>
    %c1_49 = arith.constant 1 : index
    %c0_50 = arith.constant 0 : index
    %88 = vector.load %arg6[%c1_49, %c0_50] : memref<3x16xf32, #tpu.memory_space<vmem>>, vector<1x16xf32>
    %89 = vector.shape_cast %88 : vector<1x16xf32> to vector<16xf32>
    %90 = vector.shape_cast %89 : vector<16xf32> to vector<1x16xf32>
    %91 = vector.broadcast %90 : vector<1x16xf32> to vector<128x16xf32>
    %92 = arith.mulf %87, %91 : vector<128x16xf32>
    %c1_51 = arith.constant 1 : index
    %c0_52 = arith.constant 0 : index
    %93 = vector.load %arg7[%c1_51, %c0_52] : memref<3x16xf32, #tpu.memory_space<vmem>>, vector<1x16xf32>
    %94 = vector.shape_cast %93 : vector<1x16xf32> to vector<16xf32>
    %95 = vector.shape_cast %94 : vector<16xf32> to vector<1x16xf32>
    %96 = vector.broadcast %95 : vector<1x16xf32> to vector<128x16xf32>
    %97 = arith.addf %92, %96 : vector<128x16xf32>
    %cst_53 = arith.constant 0.000000e+00 : f32
    %98 = vector.broadcast %cst_53 : f32 to vector<128x16xf32>
    %99 = arith.maximumf %97, %98 : vector<128x16xf32>
    %c0_54 = arith.constant 0 : index
    %c0_55 = arith.constant 0 : index
    %c0_56 = arith.constant 0 : index
    %100 = vector.load %arg3[%c0_54, %c0_55, %c0_56] : memref<9x16x16xf32, #tpu.memory_space<vmem>>, vector<1x16x16xf32>
    %101 = vector.shape_cast %100 : vector<1x16x16xf32> to vector<16x16xf32>
    %cst_57 = arith.constant dense<0.000000e+00> : vector<128x16xf32>
    %102 = tpu.matmul %99, %101, %cst_57 {dimension_numbers = #tpu.dot_dimension_numbers<[1], [0], [0], [1], [0, 0, 1, 1], [], []>} : vector<128x16xf32>, vector<16x16xf32>, vector<128x16xf32> -> vector<128x16xf32>
    %c1_58 = arith.constant 1 : index
    %c0_59 = arith.constant 0 : index
    %c0_60 = arith.constant 0 : index
    %103 = vector.load %arg3[%c1_58, %c0_59, %c0_60] : memref<9x16x16xf32, #tpu.memory_space<vmem>>, vector<1x16x16xf32>
    %104 = vector.shape_cast %103 : vector<1x16x16xf32> to vector<16x16xf32>
    %cst_61 = arith.constant dense<0.000000e+00> : vector<128x16xf32>
    %105 = tpu.matmul %99, %104, %cst_61 {dimension_numbers = #tpu.dot_dimension_numbers<[1], [0], [0], [1], [0, 0, 1, 1], [], []>} : vector<128x16xf32>, vector<16x16xf32>, vector<128x16xf32> -> vector<128x16xf32>
    %c2_62 = arith.constant 2 : index
    %c0_63 = arith.constant 0 : index
    %c0_64 = arith.constant 0 : index
    %106 = vector.load %arg3[%c2_62, %c0_63, %c0_64] : memref<9x16x16xf32, #tpu.memory_space<vmem>>, vector<1x16x16xf32>
    %107 = vector.shape_cast %106 : vector<1x16x16xf32> to vector<16x16xf32>
    %cst_65 = arith.constant dense<0.000000e+00> : vector<128x16xf32>
    %108 = tpu.matmul %99, %107, %cst_65 {dimension_numbers = #tpu.dot_dimension_numbers<[1], [0], [0], [1], [0, 0, 1, 1], [], []>} : vector<128x16xf32>, vector<16x16xf32>, vector<128x16xf32> -> vector<128x16xf32>
    %c3_66 = arith.constant 3 : index
    %c0_67 = arith.constant 0 : index
    %c0_68 = arith.constant 0 : index
    %109 = vector.load %arg3[%c3_66, %c0_67, %c0_68] : memref<9x16x16xf32, #tpu.memory_space<vmem>>, vector<1x16x16xf32>
    %110 = vector.shape_cast %109 : vector<1x16x16xf32> to vector<16x16xf32>
    %cst_69 = arith.constant dense<0.000000e+00> : vector<128x16xf32>
    %111 = tpu.matmul %99, %110, %cst_69 {dimension_numbers = #tpu.dot_dimension_numbers<[1], [0], [0], [1], [0, 0, 1, 1], [], []>} : vector<128x16xf32>, vector<16x16xf32>, vector<128x16xf32> -> vector<128x16xf32>
    %c4_70 = arith.constant 4 : index
    %c0_71 = arith.constant 0 : index
    %c0_72 = arith.constant 0 : index
    %112 = vector.load %arg3[%c4_70, %c0_71, %c0_72] : memref<9x16x16xf32, #tpu.memory_space<vmem>>, vector<1x16x16xf32>
    %113 = vector.shape_cast %112 : vector<1x16x16xf32> to vector<16x16xf32>
    %cst_73 = arith.constant dense<0.000000e+00> : vector<128x16xf32>
    %114 = tpu.matmul %99, %113, %cst_73 {dimension_numbers = #tpu.dot_dimension_numbers<[1], [0], [0], [1], [0, 0, 1, 1], [], []>} : vector<128x16xf32>, vector<16x16xf32>, vector<128x16xf32> -> vector<128x16xf32>
    %c5_74 = arith.constant 5 : index
    %c0_75 = arith.constant 0 : index
    %c0_76 = arith.constant 0 : index
    %115 = vector.load %arg3[%c5_74, %c0_75, %c0_76] : memref<9x16x16xf32, #tpu.memory_space<vmem>>, vector<1x16x16xf32>
    %116 = vector.shape_cast %115 : vector<1x16x16xf32> to vector<16x16xf32>
    %cst_77 = arith.constant dense<0.000000e+00> : vector<128x16xf32>
    %117 = tpu.matmul %99, %116, %cst_77 {dimension_numbers = #tpu.dot_dimension_numbers<[1], [0], [0], [1], [0, 0, 1, 1], [], []>} : vector<128x16xf32>, vector<16x16xf32>, vector<128x16xf32> -> vector<128x16xf32>
    %c6_78 = arith.constant 6 : index
    %c0_79 = arith.constant 0 : index
    %c0_80 = arith.constant 0 : index
    %118 = vector.load %arg3[%c6_78, %c0_79, %c0_80] : memref<9x16x16xf32, #tpu.memory_space<vmem>>, vector<1x16x16xf32>
    %119 = vector.shape_cast %118 : vector<1x16x16xf32> to vector<16x16xf32>
    %cst_81 = arith.constant dense<0.000000e+00> : vector<128x16xf32>
    %120 = tpu.matmul %99, %119, %cst_81 {dimension_numbers = #tpu.dot_dimension_numbers<[1], [0], [0], [1], [0, 0, 1, 1], [], []>} : vector<128x16xf32>, vector<16x16xf32>, vector<128x16xf32> -> vector<128x16xf32>
    %c7_82 = arith.constant 7 : index
    %c0_83 = arith.constant 0 : index
    %c0_84 = arith.constant 0 : index
    %121 = vector.load %arg3[%c7_82, %c0_83, %c0_84] : memref<9x16x16xf32, #tpu.memory_space<vmem>>, vector<1x16x16xf32>
    %122 = vector.shape_cast %121 : vector<1x16x16xf32> to vector<16x16xf32>
    %cst_85 = arith.constant dense<0.000000e+00> : vector<128x16xf32>
    %123 = tpu.matmul %99, %122, %cst_85 {dimension_numbers = #tpu.dot_dimension_numbers<[1], [0], [0], [1], [0, 0, 1, 1], [], []>} : vector<128x16xf32>, vector<16x16xf32>, vector<128x16xf32> -> vector<128x16xf32>
    %c8_86 = arith.constant 8 : index
    %c0_87 = arith.constant 0 : index
    %c0_88 = arith.constant 0 : index
    %124 = vector.load %arg3[%c8_86, %c0_87, %c0_88] : memref<9x16x16xf32, #tpu.memory_space<vmem>>, vector<1x16x16xf32>
    %125 = vector.shape_cast %124 : vector<1x16x16xf32> to vector<16x16xf32>
    %cst_89 = arith.constant dense<0.000000e+00> : vector<128x16xf32>
    %126 = tpu.matmul %99, %125, %cst_89 {dimension_numbers = #tpu.dot_dimension_numbers<[1], [0], [0], [1], [0, 0, 1, 1], [], []>} : vector<128x16xf32>, vector<16x16xf32>, vector<128x16xf32> -> vector<128x16xf32>
    %127 = tpu.concatenate %102, %105, %108, %111, %114, %117, %120, %123, %126 in 0 : vector<128x16xf32>, vector<128x16xf32>, vector<128x16xf32>, vector<128x16xf32>, vector<128x16xf32>, vector<128x16xf32>, vector<128x16xf32>, vector<128x16xf32>, vector<128x16xf32> -> vector<1152x16xf32>
    %c0_90 = arith.constant 0 : index
    %c0_91 = arith.constant 0 : index
    %c0_92 = arith.constant 0 : index
    %128 = vector.load %arg5[%c0_90, %c0_91, %c0_92] : memref<4x50x1152xf32, #tpu.memory_space<vmem>>, vector<1x50x1152xf32>
    %129 = vector.shape_cast %128 : vector<1x50x1152xf32> to vector<50x1152xf32>
    %cst_93 = arith.constant dense<0.000000e+00> : vector<50x16xf32>
    %130 = tpu.matmul %129, %127, %cst_93 {dimension_numbers = #tpu.dot_dimension_numbers<[1], [0], [0], [1], [0, 0, 1, 1], [], []>} : vector<50x1152xf32>, vector<1152x16xf32>, vector<50x16xf32> -> vector<50x16xf32>
    %c1_94 = arith.constant 1 : index
    %c0_95 = arith.constant 0 : index
    %c0_96 = arith.constant 0 : index
    %131 = vector.load %arg5[%c1_94, %c0_95, %c0_96] : memref<4x50x1152xf32, #tpu.memory_space<vmem>>, vector<1x50x1152xf32>
    %132 = vector.shape_cast %131 : vector<1x50x1152xf32> to vector<50x1152xf32>
    %cst_97 = arith.constant dense<0.000000e+00> : vector<50x16xf32>
    %133 = tpu.matmul %132, %127, %cst_97 {dimension_numbers = #tpu.dot_dimension_numbers<[1], [0], [0], [1], [0, 0, 1, 1], [], []>} : vector<50x1152xf32>, vector<1152x16xf32>, vector<50x16xf32> -> vector<50x16xf32>
    %c2_98 = arith.constant 2 : index
    %c0_99 = arith.constant 0 : index
    %c0_100 = arith.constant 0 : index
    %134 = vector.load %arg5[%c2_98, %c0_99, %c0_100] : memref<4x50x1152xf32, #tpu.memory_space<vmem>>, vector<1x50x1152xf32>
    %135 = vector.shape_cast %134 : vector<1x50x1152xf32> to vector<50x1152xf32>
    %cst_101 = arith.constant dense<0.000000e+00> : vector<50x16xf32>
    %136 = tpu.matmul %135, %127, %cst_101 {dimension_numbers = #tpu.dot_dimension_numbers<[1], [0], [0], [1], [0, 0, 1, 1], [], []>} : vector<50x1152xf32>, vector<1152x16xf32>, vector<50x16xf32> -> vector<50x16xf32>
    %c3_102 = arith.constant 3 : index
    %c0_103 = arith.constant 0 : index
    %c0_104 = arith.constant 0 : index
    %137 = vector.load %arg5[%c3_102, %c0_103, %c0_104] : memref<4x50x1152xf32, #tpu.memory_space<vmem>>, vector<1x50x1152xf32>
    %138 = vector.shape_cast %137 : vector<1x50x1152xf32> to vector<50x1152xf32>
    %cst_105 = arith.constant dense<0.000000e+00> : vector<50x16xf32>
    %139 = tpu.matmul %138, %127, %cst_105 {dimension_numbers = #tpu.dot_dimension_numbers<[1], [0], [0], [1], [0, 0, 1, 1], [], []>} : vector<50x1152xf32>, vector<1152x16xf32>, vector<50x16xf32> -> vector<50x16xf32>
    %cst_106 = arith.constant dense<0.000000e+00> : vector<16xf32>
    %140 = vector.multi_reduction <add>, %130, %cst_106 [0] : vector<50x16xf32> to vector<16xf32>
    %141 = vector.shape_cast %140 : vector<16xf32> to vector<1x16xf32>
    %cst_107 = arith.constant 5.000000e+01 : f32
    %142 = vector.broadcast %cst_107 : f32 to vector<1x16xf32>
    %143 = arith.divf %141, %142 : vector<1x16xf32>
    %cst_108 = arith.constant dense<0.000000e+00> : vector<16xf32>
    %144 = vector.multi_reduction <add>, %133, %cst_108 [0] : vector<50x16xf32> to vector<16xf32>
    %145 = vector.shape_cast %144 : vector<16xf32> to vector<1x16xf32>
    %cst_109 = arith.constant 5.000000e+01 : f32
    %146 = vector.broadcast %cst_109 : f32 to vector<1x16xf32>
    %147 = arith.divf %145, %146 : vector<1x16xf32>
    %148 = arith.addf %143, %147 : vector<1x16xf32>
    %cst_110 = arith.constant dense<0.000000e+00> : vector<16xf32>
    %149 = vector.multi_reduction <add>, %136, %cst_110 [0] : vector<50x16xf32> to vector<16xf32>
    %150 = vector.shape_cast %149 : vector<16xf32> to vector<1x16xf32>
    %cst_111 = arith.constant 5.000000e+01 : f32
    %151 = vector.broadcast %cst_111 : f32 to vector<1x16xf32>
    %152 = arith.divf %150, %151 : vector<1x16xf32>
    %153 = arith.addf %148, %152 : vector<1x16xf32>
    %cst_112 = arith.constant dense<0.000000e+00> : vector<16xf32>
    %154 = vector.multi_reduction <add>, %139, %cst_112 [0] : vector<50x16xf32> to vector<16xf32>
    %155 = vector.shape_cast %154 : vector<16xf32> to vector<1x16xf32>
    %cst_113 = arith.constant 5.000000e+01 : f32
    %156 = vector.broadcast %cst_113 : f32 to vector<1x16xf32>
    %157 = arith.divf %155, %156 : vector<1x16xf32>
    %158 = arith.addf %153, %157 : vector<1x16xf32>
    %cst_114 = arith.constant 2.500000e-01 : f32
    %159 = vector.broadcast %cst_114 : f32 to vector<1x16xf32>
    %160 = arith.mulf %158, %159 : vector<1x16xf32>
    %161 = vector.broadcast %160 : vector<1x16xf32> to vector<50x16xf32>
    %162 = arith.subf %130, %161 : vector<50x16xf32>
    %163 = arith.mulf %162, %162 : vector<50x16xf32>
    %cst_115 = arith.constant dense<0.000000e+00> : vector<16xf32>
    %164 = vector.multi_reduction <add>, %163, %cst_115 [0] : vector<50x16xf32> to vector<16xf32>
    %165 = vector.shape_cast %164 : vector<16xf32> to vector<1x16xf32>
    %cst_116 = arith.constant 5.000000e+01 : f32
    %166 = vector.broadcast %cst_116 : f32 to vector<1x16xf32>
    %167 = arith.divf %165, %166 : vector<1x16xf32>
    %168 = vector.broadcast %160 : vector<1x16xf32> to vector<50x16xf32>
    %169 = arith.subf %133, %168 : vector<50x16xf32>
    %170 = arith.mulf %169, %169 : vector<50x16xf32>
    %cst_117 = arith.constant dense<0.000000e+00> : vector<16xf32>
    %171 = vector.multi_reduction <add>, %170, %cst_117 [0] : vector<50x16xf32> to vector<16xf32>
    %172 = vector.shape_cast %171 : vector<16xf32> to vector<1x16xf32>
    %cst_118 = arith.constant 5.000000e+01 : f32
    %173 = vector.broadcast %cst_118 : f32 to vector<1x16xf32>
    %174 = arith.divf %172, %173 : vector<1x16xf32>
    %175 = arith.addf %167, %174 : vector<1x16xf32>
    %176 = vector.broadcast %160 : vector<1x16xf32> to vector<50x16xf32>
    %177 = arith.subf %136, %176 : vector<50x16xf32>
    %178 = arith.mulf %177, %177 : vector<50x16xf32>
    %cst_119 = arith.constant dense<0.000000e+00> : vector<16xf32>
    %179 = vector.multi_reduction <add>, %178, %cst_119 [0] : vector<50x16xf32> to vector<16xf32>
    %180 = vector.shape_cast %179 : vector<16xf32> to vector<1x16xf32>
    %cst_120 = arith.constant 5.000000e+01 : f32
    %181 = vector.broadcast %cst_120 : f32 to vector<1x16xf32>
    %182 = arith.divf %180, %181 : vector<1x16xf32>
    %183 = arith.addf %175, %182 : vector<1x16xf32>
    %184 = vector.broadcast %160 : vector<1x16xf32> to vector<50x16xf32>
    %185 = arith.subf %139, %184 : vector<50x16xf32>
    %186 = arith.mulf %185, %185 : vector<50x16xf32>
    %cst_121 = arith.constant dense<0.000000e+00> : vector<16xf32>
    %187 = vector.multi_reduction <add>, %186, %cst_121 [0] : vector<50x16xf32> to vector<16xf32>
    %188 = vector.shape_cast %187 : vector<16xf32> to vector<1x16xf32>
    %cst_122 = arith.constant 5.000000e+01 : f32
    %189 = vector.broadcast %cst_122 : f32 to vector<1x16xf32>
    %190 = arith.divf %188, %189 : vector<1x16xf32>
    %191 = arith.addf %183, %190 : vector<1x16xf32>
    %cst_123 = arith.constant 2.500000e-01 : f32
    %192 = vector.broadcast %cst_123 : f32 to vector<1x16xf32>
    %193 = arith.mulf %191, %192 : vector<1x16xf32>
    %cst_124 = arith.constant 9.99999974E-6 : f32
    %194 = vector.broadcast %cst_124 : f32 to vector<1x16xf32>
    %195 = arith.addf %193, %194 : vector<1x16xf32>
    %196 = math.rsqrt %195 : vector<1x16xf32>
    %197 = vector.broadcast %160 : vector<1x16xf32> to vector<50x16xf32>
    %198 = arith.subf %130, %197 : vector<50x16xf32>
    %199 = vector.broadcast %196 : vector<1x16xf32> to vector<50x16xf32>
    %200 = arith.mulf %198, %199 : vector<50x16xf32>
    %c2_125 = arith.constant 2 : index
    %c0_126 = arith.constant 0 : index
    %201 = vector.load %arg6[%c2_125, %c0_126] : memref<3x16xf32, #tpu.memory_space<vmem>>, vector<1x16xf32>
    %202 = vector.shape_cast %201 : vector<1x16xf32> to vector<16xf32>
    %203 = vector.shape_cast %202 : vector<16xf32> to vector<1x16xf32>
    %204 = vector.broadcast %203 : vector<1x16xf32> to vector<50x16xf32>
    %205 = arith.mulf %200, %204 : vector<50x16xf32>
    %c2_127 = arith.constant 2 : index
    %c0_128 = arith.constant 0 : index
    %206 = vector.load %arg7[%c2_127, %c0_128] : memref<3x16xf32, #tpu.memory_space<vmem>>, vector<1x16xf32>
    %207 = vector.shape_cast %206 : vector<1x16xf32> to vector<16xf32>
    %208 = vector.shape_cast %207 : vector<16xf32> to vector<1x16xf32>
    %209 = vector.broadcast %208 : vector<1x16xf32> to vector<50x16xf32>
    %210 = arith.addf %205, %209 : vector<50x16xf32>
    %cst_129 = arith.constant 0.000000e+00 : f32
    %211 = vector.broadcast %cst_129 : f32 to vector<50x16xf32>
    %212 = arith.maximumf %210, %211 : vector<50x16xf32>
    %cst_130 = arith.constant 9.99999974E-6 : f32
    %213 = vector.broadcast %cst_130 : f32 to vector<1x16xf32>
    %214 = arith.addf %193, %213 : vector<1x16xf32>
    %215 = math.rsqrt %214 : vector<1x16xf32>
    %216 = vector.broadcast %160 : vector<1x16xf32> to vector<50x16xf32>
    %217 = arith.subf %133, %216 : vector<50x16xf32>
    %218 = vector.broadcast %215 : vector<1x16xf32> to vector<50x16xf32>
    %219 = arith.mulf %217, %218 : vector<50x16xf32>
    %c2_131 = arith.constant 2 : index
    %c0_132 = arith.constant 0 : index
    %220 = vector.load %arg6[%c2_131, %c0_132] : memref<3x16xf32, #tpu.memory_space<vmem>>, vector<1x16xf32>
    %221 = vector.shape_cast %220 : vector<1x16xf32> to vector<16xf32>
    %222 = vector.shape_cast %221 : vector<16xf32> to vector<1x16xf32>
    %223 = vector.broadcast %222 : vector<1x16xf32> to vector<50x16xf32>
    %224 = arith.mulf %219, %223 : vector<50x16xf32>
    %c2_133 = arith.constant 2 : index
    %c0_134 = arith.constant 0 : index
    %225 = vector.load %arg7[%c2_133, %c0_134] : memref<3x16xf32, #tpu.memory_space<vmem>>, vector<1x16xf32>
    %226 = vector.shape_cast %225 : vector<1x16xf32> to vector<16xf32>
    %227 = vector.shape_cast %226 : vector<16xf32> to vector<1x16xf32>
    %228 = vector.broadcast %227 : vector<1x16xf32> to vector<50x16xf32>
    %229 = arith.addf %224, %228 : vector<50x16xf32>
    %cst_135 = arith.constant 0.000000e+00 : f32
    %230 = vector.broadcast %cst_135 : f32 to vector<50x16xf32>
    %231 = arith.maximumf %229, %230 : vector<50x16xf32>
    %cst_136 = arith.constant 9.99999974E-6 : f32
    %232 = vector.broadcast %cst_136 : f32 to vector<1x16xf32>
    %233 = arith.addf %193, %232 : vector<1x16xf32>
    %234 = math.rsqrt %233 : vector<1x16xf32>
    %235 = vector.broadcast %160 : vector<1x16xf32> to vector<50x16xf32>
    %236 = arith.subf %136, %235 : vector<50x16xf32>
    %237 = vector.broadcast %234 : vector<1x16xf32> to vector<50x16xf32>
    %238 = arith.mulf %236, %237 : vector<50x16xf32>
    %c2_137 = arith.constant 2 : index
    %c0_138 = arith.constant 0 : index
    %239 = vector.load %arg6[%c2_137, %c0_138] : memref<3x16xf32, #tpu.memory_space<vmem>>, vector<1x16xf32>
    %240 = vector.shape_cast %239 : vector<1x16xf32> to vector<16xf32>
    %241 = vector.shape_cast %240 : vector<16xf32> to vector<1x16xf32>
    %242 = vector.broadcast %241 : vector<1x16xf32> to vector<50x16xf32>
    %243 = arith.mulf %238, %242 : vector<50x16xf32>
    %c2_139 = arith.constant 2 : index
    %c0_140 = arith.constant 0 : index
    %244 = vector.load %arg7[%c2_139, %c0_140] : memref<3x16xf32, #tpu.memory_space<vmem>>, vector<1x16xf32>
    %245 = vector.shape_cast %244 : vector<1x16xf32> to vector<16xf32>
    %246 = vector.shape_cast %245 : vector<16xf32> to vector<1x16xf32>
    %247 = vector.broadcast %246 : vector<1x16xf32> to vector<50x16xf32>
    %248 = arith.addf %243, %247 : vector<50x16xf32>
    %cst_141 = arith.constant 0.000000e+00 : f32
    %249 = vector.broadcast %cst_141 : f32 to vector<50x16xf32>
    %250 = arith.maximumf %248, %249 : vector<50x16xf32>
    %cst_142 = arith.constant 9.99999974E-6 : f32
    %251 = vector.broadcast %cst_142 : f32 to vector<1x16xf32>
    %252 = arith.addf %193, %251 : vector<1x16xf32>
    %253 = math.rsqrt %252 : vector<1x16xf32>
    %254 = vector.broadcast %160 : vector<1x16xf32> to vector<50x16xf32>
    %255 = arith.subf %139, %254 : vector<50x16xf32>
    %256 = vector.broadcast %253 : vector<1x16xf32> to vector<50x16xf32>
    %257 = arith.mulf %255, %256 : vector<50x16xf32>
    %c2_143 = arith.constant 2 : index
    %c0_144 = arith.constant 0 : index
    %258 = vector.load %arg6[%c2_143, %c0_144] : memref<3x16xf32, #tpu.memory_space<vmem>>, vector<1x16xf32>
    %259 = vector.shape_cast %258 : vector<1x16xf32> to vector<16xf32>
    %260 = vector.shape_cast %259 : vector<16xf32> to vector<1x16xf32>
    %261 = vector.broadcast %260 : vector<1x16xf32> to vector<50x16xf32>
    %262 = arith.mulf %257, %261 : vector<50x16xf32>
    %c2_145 = arith.constant 2 : index
    %c0_146 = arith.constant 0 : index
    %263 = vector.load %arg7[%c2_145, %c0_146] : memref<3x16xf32, #tpu.memory_space<vmem>>, vector<1x16xf32>
    %264 = vector.shape_cast %263 : vector<1x16xf32> to vector<16xf32>
    %265 = vector.shape_cast %264 : vector<16xf32> to vector<1x16xf32>
    %266 = vector.broadcast %265 : vector<1x16xf32> to vector<50x16xf32>
    %267 = arith.addf %262, %266 : vector<50x16xf32>
    %cst_147 = arith.constant 0.000000e+00 : f32
    %268 = vector.broadcast %cst_147 : f32 to vector<50x16xf32>
    %269 = arith.maximumf %267, %268 : vector<50x16xf32>
    %270 = arith.maximumf %212, %231 : vector<50x16xf32>
    %271 = arith.maximumf %250, %269 : vector<50x16xf32>
    %272 = arith.maximumf %270, %271 : vector<50x16xf32>
    %c0_148 = arith.constant 0 : index
    %c0_149 = arith.constant 0 : index
    %273 = vector.load %arg8[%c0_148, %c0_149] : memref<50x16xf32, #tpu.memory_space<vmem>>, vector<50x16xf32>
    tpu.vector_store %arg8[%c0_148, %c0_149], %272 {strides = array<i32>} : memref<50x16xf32, #tpu.memory_space<vmem>>, vector<50x16xf32>,
    return
  }
}

</mosaic_0001>

<llo_original>
// kernel: _lambda_.1
$region0: #{_lambda_.1}
  #allocation0 [shape = 'u32[]', space=smem, size = 0x4, offset = 0x4, fixed_abs, tag = 'smem constant byte address 0x4 - core index']
  #allocation1 [shape = 'u32[144,128]{1,0:T(1,128)}', space=vmem, size = 0x12000, scoped, tag = 'internal scratch']
  %s0 = inlined_call_operand.vmem [shape: f32[512,9], index: 0, kind: input, shape index: {}]
  %s1 = inlined_call_operand.vmem [shape: f32[9,16], index: 1, kind: input, shape index: {}]
  %s2 = inlined_call_operand.vmem [shape: f32[9,16,16], index: 2, kind: input, shape index: {}]
  %s3 = inlined_call_operand.vmem [shape: f32[9,16,16], index: 3, kind: input, shape index: {}]
  %s4 = inlined_call_operand.vmem [shape: f32[128,1152], index: 4, kind: input, shape index: {}]
  %s5 = inlined_call_operand.vmem [shape: f32[4,50,1152], index: 5, kind: input, shape index: {}]
  %s6 = inlined_call_operand.vmem [shape: f32[3,16], index: 6, kind: input, shape index: {}]
  %s7 = inlined_call_operand.vmem [shape: f32[3,16], index: 7, kind: input, shape index: {}]
  %s8 = inlined_call_operand.vmem [shape: f32[50,16], index: 8, kind: output, shape index: {}]
  %s9 = sld [smem:[#allocation0]]
  $region42: #{_lambda_.1} parent=0
    _
  %s11 = ssub.s32 1, %s9
  %s12 = scalar_select 0, %s11, %s9
  // Predicated region
  $region2: #{_lambda_.1} parent=0 // pred_check
    _
  $region3: #{_lambda_.1} parent=0 // pred_check_branch
    %14 = sbr.rel (0) target = $region5
  $region4: #{_lambda_.1} parent=0 // pred_region
    _
  $region5: #{_lambda_.1} parent=0 // pred_fallthru
    _
  // Predicated region
  $region6: #{_lambda_.1} parent=0 // pred_check
    _
  $region7: #{_lambda_.1} parent=0 // pred_check_branch
    %16 = sbr.rel (0) target = $region9
  $region8: #{_lambda_.1} parent=0 // pred_region
    _
  $region9: #{_lambda_.1} parent=0 // pred_fallthru
    _
  // Predicated region
  $region10: #{_lambda_.1} parent=0 // pred_check
    _
  $region11: #{_lambda_.1} parent=0 // pred_check_branch
    %18 = sbr.rel (0) target = $region13
  $region12: #{_lambda_.1} parent=0 // pred_region
    _
  $region13: #{_lambda_.1} parent=0 // pred_fallthru
    _
  // Predicated region
  $region14: #{_lambda_.1} parent=0 // pred_check
    _
  $region15: #{_lambda_.1} parent=0 // pred_check_branch
    %20 = sbr.rel (0) target = $region17
  $region16: #{_lambda_.1} parent=0 // pred_region
    _
  $region17: #{_lambda_.1} parent=0 // pred_fallthru
    _
  // Predicated region
  $region18: #{_lambda_.1} parent=0 // pred_check
    _
  $region19: #{_lambda_.1} parent=0 // pred_check_branch
    %22 = sbr.rel (0) target = $region21
  $region20: #{_lambda_.1} parent=0 // pred_region
    _
  $region21: #{_lambda_.1} parent=0 // pred_fallthru
    _
  // Predicated region
  $region22: #{_lambda_.1} parent=0 // pred_check
    _
  $region23: #{_lambda_.1} parent=0 // pred_check_branch
    %24 = sbr.rel (0) target = $region25
  $region24: #{_lambda_.1} parent=0 // pred_region
    _
  $region25: #{_lambda_.1} parent=0 // pred_fallthru
    _
  // Predicated region
  $region26: #{_lambda_.1} parent=0 // pred_check
    _
  $region27: #{_lambda_.1} parent=0 // pred_check_branch
    %26 = sbr.rel (0) target = $region29
  $region28: #{_lambda_.1} parent=0 // pred_region
    _
  $region29: #{_lambda_.1} parent=0 // pred_fallthru
    _
  // Predicated region
  $region30: #{_lambda_.1} parent=0 // pred_check
    _
  $region31: #{_lambda_.1} parent=0 // pred_check_branch
    %28 = sbr.rel (0) target = $region33
  $region32: #{_lambda_.1} parent=0 // pred_region
    _
  $region33: #{_lambda_.1} parent=0 // pred_fallthru
    _
  %v29 = vld [vmem:[%s0] sm:$0xff]
  %v30 = vld [vmem:[%s0 + $0x8] sm:$0xff]
  %v31 = vld [vmem:[%s0 + $0x10] sm:$0xff]
  %v32 = vld [vmem:[%s0 + $0x18] sm:$0xff]
  %v33 = vld [vmem:[%s0 + $0x20] sm:$0xff]
  %v34 = vld [vmem:[%s0 + $0x28] sm:$0xff]
  %v35 = vld [vmem:[%s0 + $0x30] sm:$0xff]
  %v36 = vld [vmem:[%s0 + $0x38] sm:$0xff]
  %v37 = vld [vmem:[%s0 + $0x40] sm:$0xff]
  %v38 = vld [vmem:[%s0 + $0x48] sm:$0xff]
  %v39 = vld [vmem:[%s0 + $0x50] sm:$0xff]
  %v40 = vld [vmem:[%s0 + $0x58] sm:$0xff]
  %v41 = vld [vmem:[%s0 + $0x60] sm:$0xff]
  %v42 = vld [vmem:[%s0 + $0x68] sm:$0xff]
  %v43 = vld [vmem:[%s0 + $0x70] sm:$0xff]
  %v44 = vld [vmem:[%s0 + $0x78] sm:$0xff]
  %v45 = vld [vmem:[%s0 + $0x80] sm:$0xff]
  %v46 = vld [vmem:[%s0 + $0x88] sm:$0xff]
  %v47 = vld [vmem:[%s0 + $0x90] sm:$0xff]
  %v48 = vld [vmem:[%s0 + $0x98] sm:$0xff]
  %v49 = vld [vmem:[%s0 + $0xa0] sm:$0xff]
  %v50 = vld [vmem:[%s0 + $0xa8] sm:$0xff]
  %v51 = vld [vmem:[%s0 + $0xb0] sm:$0xff]
  %v52 = vld [vmem:[%s0 + $0xb8] sm:$0xff]
  %v53 = vld [vmem:[%s0 + $0xc0] sm:$0xff]
  %v54 = vld [vmem:[%s0 + $0xc8] sm:$0xff]
  %v55 = vld [vmem:[%s0 + $0xd0] sm:$0xff]
  %v56 = vld [vmem:[%s0 + $0xd8] sm:$0xff]
  %v57 = vld [vmem:[%s0 + $0xe0] sm:$0xff]
  %v58 = vld [vmem:[%s0 + $0xe8] sm:$0xff]
  %v59 = vld [vmem:[%s0 + $0xf0] sm:$0xff]
  %v60 = vld [vmem:[%s0 + $0xf8] sm:$0xff]
  %v61 = vld [vmem:[%s0 + $0x100] sm:$0xff]
  %v62 = vld [vmem:[%s0 + $0x108] sm:$0xff]
  %v63 = vld [vmem:[%s0 + $0x110] sm:$0xff]
  %v64 = vld [vmem:[%s0 + $0x118] sm:$0xff]
  %v65 = vld [vmem:[%s0 + $0x120] sm:$0xff]
  %v66 = vld [vmem:[%s0 + $0x128] sm:$0xff]
  %v67 = vld [vmem:[%s0 + $0x130] sm:$0xff]
  %v68 = vld [vmem:[%s0 + $0x138] sm:$0xff]
  %v69 = vld [vmem:[%s0 + $0x140] sm:$0xff]
  %v70 = vld [vmem:[%s0 + $0x148] sm:$0xff]
  %v71 = vld [vmem:[%s0 + $0x150] sm:$0xff]
  %v72 = vld [vmem:[%s0 + $0x158] sm:$0xff]
  %v73 = vld [vmem:[%s0 + $0x160] sm:$0xff]
  %v74 = vld [vmem:[%s0 + $0x168] sm:$0xff]
  %v75 = vld [vmem:[%s0 + $0x170] sm:$0xff]
  %v76 = vld [vmem:[%s0 + $0x178] sm:$0xff]
  %v77 = vld [vmem:[%s0 + $0x180] sm:$0xff]
  %v78 = vld [vmem:[%s0 + $0x188] sm:$0xff]
  %v79 = vld [vmem:[%s0 + $0x190] sm:$0xff]
  %v80 = vld [vmem:[%s0 + $0x198] sm:$0xff]
  %v81 = vld [vmem:[%s0 + $0x1a0] sm:$0xff]
  %v82 = vld [vmem:[%s0 + $0x1a8] sm:$0xff]
  %v83 = vld [vmem:[%s0 + $0x1b0] sm:$0xff]
  %v84 = vld [vmem:[%s0 + $0x1b8] sm:$0xff]
  %v85 = vld [vmem:[%s0 + $0x1c0] sm:$0xff]
  %v86 = vld [vmem:[%s0 + $0x1c8] sm:$0xff]
  %v87 = vld [vmem:[%s0 + $0x1d0] sm:$0xff]
  %v88 = vld [vmem:[%s0 + $0x1d8] sm:$0xff]
  %v89 = vld [vmem:[%s0 + $0x1e0] sm:$0xff]
  %v90 = vld [vmem:[%s0 + $0x1e8] sm:$0xff]
  %v91 = vld [vmem:[%s0 + $0x1f0] sm:$0xff]
  %v92 = vld [vmem:[%s0 + $0x1f8] sm:$0xff]
  %v93 = vld [vmem:[%s1] sm:$0xff]
  %v94 = vld [vmem:[%s1 + $0x8] sm:$0x1]
  %vm95 = vcmask 72704
  %v97 = vsel %vm95, %v29, 0
  %v100 = vsel %vm95, %v30, 0
  %v103 = vsel %vm95, %v31, 0
  %v106 = vsel %vm95, %v32, 0
  %v109 = vsel %vm95, %v33, 0
  %v112 = vsel %vm95, %v34, 0
  %v115 = vsel %vm95, %v35, 0
  %v118 = vsel %vm95, %v36, 0
  %v121 = vsel %vm95, %v37, 0
  %v124 = vsel %vm95, %v38, 0
  %v127 = vsel %vm95, %v39, 0
  %v130 = vsel %vm95, %v40, 0
  %v133 = vsel %vm95, %v41, 0
  %v136 = vsel %vm95, %v42, 0
  %v139 = vsel %vm95, %v43, 0
  %v142 = vsel %vm95, %v44, 0
  %v145 = vsel %vm95, %v45, 0
  %v148 = vsel %vm95, %v46, 0
  %v151 = vsel %vm95, %v47, 0
  %v154 = vsel %vm95, %v48, 0
  %v157 = vsel %vm95, %v49, 0
  %v160 = vsel %vm95, %v50, 0
  %v163 = vsel %vm95, %v51, 0
  %v166 = vsel %vm95, %v52, 0
  %v169 = vsel %vm95, %v53, 0
  %v172 = vsel %vm95, %v54, 0
  %v175 = vsel %vm95, %v55, 0
  %v178 = vsel %vm95, %v56, 0
  %v181 = vsel %vm95, %v57, 0
  %v184 = vsel %vm95, %v58, 0
  %v187 = vsel %vm95, %v59, 0
  %v190 = vsel %vm95, %v60, 0
  %v193 = vsel %vm95, %v61, 0
  %v196 = vsel %vm95, %v62, 0
  %v199 = vsel %vm95, %v63, 0
  %v202 = vsel %vm95, %v64, 0
  %v205 = vsel %vm95, %v65, 0
  %v208 = vsel %vm95, %v66, 0
  %v211 = vsel %vm95, %v67, 0
  %v214 = vsel %vm95, %v68, 0
  %v217 = vsel %vm95, %v69, 0
  %v220 = vsel %vm95, %v70, 0
  %v223 = vsel %vm95, %v71, 0
  %v226 = vsel %vm95, %v72, 0
  %v229 = vsel %vm95, %v73, 0
  %v232 = vsel %vm95, %v74, 0
  %v235 = vsel %vm95, %v75, 0
  %v238 = vsel %vm95, %v76, 0
  %v241 = vsel %vm95, %v77, 0
  %v244 = vsel %vm95, %v78, 0
  %v247 = vsel %vm95, %v79, 0
  %v250 = vsel %vm95, %v80, 0
  %v253 = vsel %vm95, %v81, 0
  %v256 = vsel %vm95, %v82, 0
  %v259 = vsel %vm95, %v83, 0
  %v262 = vsel %vm95, %v84, 0
  %v265 = vsel %vm95, %v85, 0
  %v268 = vsel %vm95, %v86, 0
  %v271 = vsel %vm95, %v87, 0
  %v274 = vsel %vm95, %v88, 0
  %v277 = vsel %vm95, %v89, 0
  %v280 = vsel %vm95, %v90, 0
  %v283 = vsel %vm95, %v91, 0
  %v286 = vsel %vm95, %v92, 0
  %vm288 = vcmask 1040384
  %v290 = vsel %vm288, %v94, 0
  %292 = vmatprep.subr.mxu0 0.0
  %293 = vmatpush1.msra.mxu0 0.0
  %294 = vmatprep.subr.mxu0 0.0
  %295 = vmatpush1.msra.mxu0 0.0
  %296 = vmatprep.subr.mxu0 0.0
  %297 = vmatpush1.msra.mxu0 0.0
  %298 = vmatprep.subr.mxu0 0.0
  %299 = vmatpush1.msra.mxu0 0.0
  %300 = vmatprep.subr.mxu0 0.0
  %301 = vmatpush1.msra.mxu0 0.0
  %302 = vmatprep.subr.mxu0 0.0
  %303 = vmatpush1.msra.mxu0 0.0
  %304 = vmatprep.subr.mxu0 0.0
  %305 = vmatpush1.msra.mxu0 0.0
  %306 = vmatprep.subr.mxu0 0.0
  %307 = vmatpush1.msra.mxu0 0.0
  %308 = vmatprep.subr.mxu0 0.0
  %309 = vmatpush1.msra.mxu0 0.0
  %310 = vmatprep.subr.mxu0 0.0
  %311 = vmatpush1.msra.mxu0 0.0
  %312 = vmatprep.subr.mxu0 0.0
  %313 = vmatpush1.msra.mxu0 0.0
  %314 = vmatprep.subr.mxu0 0.0
  %315 = vmatpush1.msra.mxu0 0.0
  %316 = vmatprep.subr.mxu0 0.0
  %317 = vmatpush1.msra.mxu0 0.0
  %318 = vmatprep.subr.mxu0 0.0
  %319 = vmatpush1.msra.mxu0 0.0
  %320 = vmatprep.subr.mxu0 0.0
  %321 = vmatpush1.msra.mxu0 %v290
  %322 = vmatprep.subr.mxu0 0.0
  %323 = vmatpush1.msra.mxu0 %v93
  %324 = vmatprep.subr.mxu0 0.0
  %325 = vmatpush2.msra.mxu0 0.0
  %326 = vmatprep.subr.mxu0 0.0
  %327 = vmatpush2.msra.mxu0 0.0
  %328 = vmatprep.subr.mxu0 0.0
  %329 = vmatpush2.msra.mxu0 0.0
  %330 = vmatprep.subr.mxu0 0.0
  %331 = vmatpush2.msra.mxu0 0.0
  %332 = vmatprep.subr.mxu0 0.0
  %333 = vmatpush2.msra.mxu0 0.0
  %334 = vmatprep.subr.mxu0 0.0
  %335 = vmatpush2.msra.mxu0 0.0
  %336 = vmatprep.subr.mxu0 0.0
  %337 = vmatpush2.msra.mxu0 0.0
  %338 = vmatprep.subr.mxu0 0.0
  %339 = vmatpush2.msra.mxu0 0.0
  %340 = vmatprep.subr.mxu0 0.0
  %341 = vmatpush2.msra.mxu0 0.0
  %342 = vmatprep.subr.mxu0 0.0
  %343 = vmatpush2.msra.mxu0 0.0
  %344 = vmatprep.subr.mxu0 0.0
  %345 = vmatpush2.msra.mxu0 0.0
  %346 = vmatprep.subr.mxu0 0.0
  %347 = vmatpush2.msra.mxu0 0.0
  %348 = vmatprep.subr.mxu0 0.0
  %349 = vmatpush2.msra.mxu0 0.0
  %350 = vmatprep.subr.mxu0 0.0
  %351 = vmatpush2.msra.mxu0 0.0
  %352 = vmatprep.subr.mxu0 0.0
  %353 = vmatpush2.msra.mxu0 0.0
  %354 = vmatprep.subr.mxu0 0.0
  %355 = vmatpush2.msra.mxu0 0.0
  %356 = vmatprep.mubr.f32.mxu0 0.0
  %357 = vmatmul.mubr.f32.gmra.mxu0 %v97
  %v358 = vpop.f32.mrf.mxu0
  %v359 = vadd.f32 0.0, %v358
  %v360 = vpop.f32.mrf.mxu0
  %361 = vmatprep.mubr.f32.mxu0 0.0
  %362 = vmatmul.mubr.f32.gmra.mxu0 %v100
  %v363 = vpop.f32.mrf.mxu0
  %v364 = vadd.f32 0.0, %v363
  %v365 = vpop.f32.mrf.mxu0
  %366 = vmatprep.mubr.f32.mxu0 0.0
  %367 = vmatmul.mubr.f32.gmra.mxu0 %v103
  %v368 = vpop.f32.mrf.mxu0
  %v369 = vadd.f32 0.0, %v368
  %v370 = vpop.f32.mrf.mxu0
  %371 = vmatprep.mubr.f32.mxu0 0.0
  %372 = vmatmul.mubr.f32.gmra.mxu0 %v106
  %v373 = vpop.f32.mrf.mxu0
  %v374 = vadd.f32 0.0, %v373
  %v375 = vpop.f32.mrf.mxu0
  %376 = vmatprep.mubr.f32.mxu0 0.0
  %377 = vmatmul.mubr.f32.gmra.mxu0 %v109
  %v378 = vpop.f32.mrf.mxu0
  %v379 = vadd.f32 0.0, %v378
  %v380 = vpop.f32.mrf.mxu0
  %381 = vmatprep.mubr.f32.mxu0 0.0
  %382 = vmatmul.mubr.f32.gmra.mxu0 %v112
  %v383 = vpop.f32.mrf.mxu0
  %v384 = vadd.f32 0.0, %v383
  %v385 = vpop.f32.mrf.mxu0
  %386 = vmatprep.mubr.f32.mxu0 0.0
  %387 = vmatmul.mubr.f32.gmra.mxu0 %v115
  %v388 = vpop.f32.mrf.mxu0
  %v389 = vadd.f32 0.0, %v388
  %v390 = vpop.f32.mrf.mxu0
  %391 = vmatprep.mubr.f32.mxu0 0.0
  %392 = vmatmul.mubr.f32.gmra.mxu0 %v118
  %v393 = vpop.f32.mrf.mxu0
  %v394 = vadd.f32 0.0, %v393
  %v395 = vpop.f32.mrf.mxu0
  %396 = vmatprep.mubr.f32.mxu0 0.0
  %397 = vmatmul.mubr.f32.gmra.mxu0 %v121
  %v398 = vpop.f32.mrf.mxu0
  %v399 = vadd.f32 0.0, %v398
  %v400 = vpop.f32.mrf.mxu0
  %401 = vmatprep.mubr.f32.mxu0 0.0
  %402 = vmatmul.mubr.f32.gmra.mxu0 %v124
  %v403 = vpop.f32.mrf.mxu0
  %v404 = vadd.f32 0.0, %v403
  %v405 = vpop.f32.mrf.mxu0
  %406 = vmatprep.mubr.f32.mxu0 0.0
  %407 = vmatmul.mubr.f32.gmra.mxu0 %v127
  %v408 = vpop.f32.mrf.mxu0
  %v409 = vadd.f32 0.0, %v408
  %v410 = vpop.f32.mrf.mxu0
  %411 = vmatprep.mubr.f32.mxu0 0.0
  %412 = vmatmul.mubr.f32.gmra.mxu0 %v130
  %v413 = vpop.f32.mrf.mxu0
  %v414 = vadd.f32 0.0, %v413
  %v415 = vpop.f32.mrf.mxu0
  %416 = vmatprep.mubr.f32.mxu0 0.0
  %417 = vmatmul.mubr.f32.gmra.mxu0 %v133
  %v418 = vpop.f32.mrf.mxu0
  %v419 = vadd.f32 0.0, %v418
  %v420 = vpop.f32.mrf.mxu0
  %421 = vmatprep.mubr.f32.mxu0 0.0
  %422 = vmatmul.mubr.f32.gmra.mxu0 %v136
  %v423 = vpop.f32.mrf.mxu0
  %v424 = vadd.f32 0.0, %v423
  %v425 = vpop.f32.mrf.mxu0
  %426 = vmatprep.mubr.f32.mxu0 0.0
  %427 = vmatmul.mubr.f32.gmra.mxu0 %v139
  %v428 = vpop.f32.mrf.mxu0
  %v429 = vadd.f32 0.0, %v428
  %v430 = vpop.f32.mrf.mxu0
  %431 = vmatprep.mubr.f32.mxu0 0.0
  %432 = vmatmul.mubr.f32.gmra.mxu0 %v142
  %v433 = vpop.f32.mrf.mxu0
  %v434 = vadd.f32 0.0, %v433
  %v435 = vpop.f32.mrf.mxu0
  %436 = vmatprep.mubr.f32.mxu0 0.0
  %437 = vmatmul.mubr.f32.gmra.mxu0 %v145
  %v438 = vpop.f32.mrf.mxu0
  %v439 = vadd.f32 0.0, %v438
  %v440 = vpop.f32.mrf.mxu0
  %441 = vmatprep.mubr.f32.mxu0 0.0
  %442 = vmatmul.mubr.f32.gmra.mxu0 %v148
  %v443 = vpop.f32.mrf.mxu0
  %v444 = vadd.f32 0.0, %v443
  %v445 = vpop.f32.mrf.mxu0
  %446 = vmatprep.mubr.f32.mxu0 0.0
  %447 = vmatmul.mubr.f32.gmra.mxu0 %v151
  %v448 = vpop.f32.mrf.mxu0
  %v449 = vadd.f32 0.0, %v448
  %v450 = vpop.f32.mrf.mxu0
  %451 = vmatprep.mubr.f32.mxu0 0.0
  %452 = vmatmul.mubr.f32.gmra.mxu0 %v154
  %v453 = vpop.f32.mrf.mxu0
  %v454 = vadd.f32 0.0, %v453
  %v455 = vpop.f32.mrf.mxu0
  %456 = vmatprep.mubr.f32.mxu0 0.0
  %457 = vmatmul.mubr.f32.gmra.mxu0 %v157
  %v458 = vpop.f32.mrf.mxu0
  %v459 = vadd.f32 0.0, %v458
  %v460 = vpop.f32.mrf.mxu0
  %461 = vmatprep.mubr.f32.mxu0 0.0
  %462 = vmatmul.mubr.f32.gmra.mxu0 %v160
  %v463 = vpop.f32.mrf.mxu0
  %v464 = vadd.f32 0.0, %v463
  %v465 = vpop.f32.mrf.mxu0
  %466 = vmatprep.mubr.f32.mxu0 0.0
  %467 = vmatmul.mubr.f32.gmra.mxu0 %v163
  %v468 = vpop.f32.mrf.mxu0
  %v469 = vadd.f32 0.0, %v468
  %v470 = vpop.f32.mrf.mxu0
  %471 = vmatprep.mubr.f32.mxu0 0.0
  %472 = vmatmul.mubr.f32.gmra.mxu0 %v166
  %v473 = vpop.f32.mrf.mxu0
  %v474 = vadd.f32 0.0, %v473
  %v475 = vpop.f32.mrf.mxu0
  %476 = vmatprep.mubr.f32.mxu0 0.0
  %477 = vmatmul.mubr.f32.gmra.mxu0 %v169
  %v478 = vpop.f32.mrf.mxu0
  %v479 = vadd.f32 0.0, %v478
  %v480 = vpop.f32.mrf.mxu0
  %481 = vmatprep.mubr.f32.mxu0 0.0
  %482 = vmatmul.mubr.f32.gmra.mxu0 %v172
  %v483 = vpop.f32.mrf.mxu0
  %v484 = vadd.f32 0.0, %v483
  %v485 = vpop.f32.mrf.mxu0
  %486 = vmatprep.mubr.f32.mxu0 0.0
  %487 = vmatmul.mubr.f32.gmra.mxu0 %v175
  %v488 = vpop.f32.mrf.mxu0
  %v489 = vadd.f32 0.0, %v488
  %v490 = vpop.f32.mrf.mxu0
  %491 = vmatprep.mubr.f32.mxu0 0.0
  %492 = vmatmul.mubr.f32.gmra.mxu0 %v178
  %v493 = vpop.f32.mrf.mxu0
  %v494 = vadd.f32 0.0, %v493
  %v495 = vpop.f32.mrf.mxu0
  %496 = vmatprep.mubr.f32.mxu0 0.0
  %497 = vmatmul.mubr.f32.gmra.mxu0 %v181
  %v498 = vpop.f32.mrf.mxu0
  %v499 = vadd.f32 0.0, %v498
  %v500 = vpop.f32.mrf.mxu0
  %501 = vmatprep.mubr.f32.mxu0 0.0
  %502 = vmatmul.mubr.f32.gmra.mxu0 %v184
  %v503 = vpop.f32.mrf.mxu0
  %v504 = vadd.f32 0.0, %v503
  %v505 = vpop.f32.mrf.mxu0
  %506 = vmatprep.mubr.f32.mxu0 0.0
  %507 = vmatmul.mubr.f32.gmra.mxu0 %v187
  %v508 = vpop.f32.mrf.mxu0
  %v509 = vadd.f32 0.0, %v508
  %v510 = vpop.f32.mrf.mxu0
  %511 = vmatprep.mubr.f32.mxu0 0.0
  %512 = vmatmul.mubr.f32.gmra.mxu0 %v190
  %v513 = vpop.f32.mrf.mxu0
  %v514 = vadd.f32 0.0, %v513
  %v515 = vpop.f32.mrf.mxu0
  %516 = vmatprep.mubr.f32.mxu0 0.0
  %517 = vmatmul.mubr.f32.gmra.mxu0 %v193
  %v518 = vpop.f32.mrf.mxu0
  %v519 = vadd.f32 0.0, %v518
  %v520 = vpop.f32.mrf.mxu0
  %521 = vmatprep.mubr.f32.mxu0 0.0
  %522 = vmatmul.mubr.f32.gmra.mxu0 %v196
  %v523 = vpop.f32.mrf.mxu0
  %v524 = vadd.f32 0.0, %v523
  %v525 = vpop.f32.mrf.mxu0
  %526 = vmatprep.mubr.f32.mxu0 0.0
  %527 = vmatmul.mubr.f32.gmra.mxu0 %v199
  %v528 = vpop.f32.mrf.mxu0
  %v529 = vadd.f32 0.0, %v528
  %v530 = vpop.f32.mrf.mxu0
  %531 = vmatprep.mubr.f32.mxu0 0.0
  %532 = vmatmul.mubr.f32.gmra.mxu0 %v202
  %v533 = vpop.f32.mrf.mxu0
  %v534 = vadd.f32 0.0, %v533
  %v535 = vpop.f32.mrf.mxu0
  %536 = vmatprep.mubr.f32.mxu0 0.0
  %537 = vmatmul.mubr.f32.gmra.mxu0 %v205
  %v538 = vpop.f32.mrf.mxu0
  %v539 = vadd.f32 0.0, %v538
  %v540 = vpop.f32.mrf.mxu0
  %541 = vmatprep.mubr.f32.mxu0 0.0
  %542 = vmatmul.mubr.f32.gmra.mxu0 %v208
  %v543 = vpop.f32.mrf.mxu0
  %v544 = vadd.f32 0.0, %v543
  %v545 = vpop.f32.mrf.mxu0
  %546 = vmatprep.mubr.f32.mxu0 0.0
  %547 = vmatmul.mubr.f32.gmra.mxu0 %v211
  %v548 = vpop.f32.mrf.mxu0
  %v549 = vadd.f32 0.0, %v548
  %v550 = vpop.f32.mrf.mxu0
  %551 = vmatprep.mubr.f32.mxu0 0.0
  %552 = vmatmul.mubr.f32.gmra.mxu0 %v214
  %v553 = vpop.f32.mrf.mxu0
  %v554 = vadd.f32 0.0, %v553
  %v555 = vpop.f32.mrf.mxu0
  %556 = vmatprep.mubr.f32.mxu0 0.0
  %557 = vmatmul.mubr.f32.gmra.mxu0 %v217
  %v558 = vpop.f32.mrf.mxu0
  %v559 = vadd.f32 0.0, %v558
  %v560 = vpop.f32.mrf.mxu0
  %561 = vmatprep.mubr.f32.mxu0 0.0
  %562 = vmatmul.mubr.f32.gmra.mxu0 %v220
  %v563 = vpop.f32.mrf.mxu0
  %v564 = vadd.f32 0.0, %v563
  %v565 = vpop.f32.mrf.mxu0
  %566 = vmatprep.mubr.f32.mxu0 0.0
  %567 = vmatmul.mubr.f32.gmra.mxu0 %v223
  %v568 = vpop.f32.mrf.mxu0
  %v569 = vadd.f32 0.0, %v568
  %v570 = vpop.f32.mrf.mxu0
  %571 = vmatprep.mubr.f32.mxu0 0.0
  %572 = vmatmul.mubr.f32.gmra.mxu0 %v226
  %v573 = vpop.f32.mrf.mxu0
  %v574 = vadd.f32 0.0, %v573
  %v575 = vpop.f32.mrf.mxu0
  %576 = vmatprep.mubr.f32.mxu0 0.0
  %577 = vmatmul.mubr.f32.gmra.mxu0 %v229
  %v578 = vpop.f32.mrf.mxu0
  %v579 = vadd.f32 0.0, %v578
  %v580 = vpop.f32.mrf.mxu0
  %581 = vmatprep.mubr.f32.mxu0 0.0
  %582 = vmatmul.mubr.f32.gmra.mxu0 %v232
  %v583 = vpop.f32.mrf.mxu0
  %v584 = vadd.f32 0.0, %v583
  %v585 = vpop.f32.mrf.mxu0
  %586 = vmatprep.mubr.f32.mxu0 0.0
  %587 = vmatmul.mubr.f32.gmra.mxu0 %v235
  %v588 = vpop.f32.mrf.mxu0
  %v589 = vadd.f32 0.0, %v588
  %v590 = vpop.f32.mrf.mxu0
  %591 = vmatprep.mubr.f32.mxu0 0.0
  %592 = vmatmul.mubr.f32.gmra.mxu0 %v238
  %v593 = vpop.f32.mrf.mxu0
  %v594 = vadd.f32 0.0, %v593
  %v595 = vpop.f32.mrf.mxu0
  %596 = vmatprep.mubr.f32.mxu0 0.0
  %597 = vmatmul.mubr.f32.gmra.mxu0 %v241
  %v598 = vpop.f32.mrf.mxu0
  %v599 = vadd.f32 0.0, %v598
  %v600 = vpop.f32.mrf.mxu0
  %601 = vmatprep.mubr.f32.mxu0 0.0
  %602 = vmatmul.mubr.f32.gmra.mxu0 %v244
  %v603 = vpop.f32.mrf.mxu0
  %v604 = vadd.f32 0.0, %v603
  %v605 = vpop.f32.mrf.mxu0
  %606 = vmatprep.mubr.f32.mxu0 0.0
  %607 = vmatmul.mubr.f32.gmra.mxu0 %v247
  %v608 = vpop.f32.mrf.mxu0
  %v609 = vadd.f32 0.0, %v608
  %v610 = vpop.f32.mrf.mxu0
  %611 = vmatprep.mubr.f32.mxu0 0.0
  %612 = vmatmul.mubr.f32.gmra.mxu0 %v250
  %v613 = vpop.f32.mrf.mxu0
  %v614 = vadd.f32 0.0, %v613
  %v615 = vpop.f32.mrf.mxu0
  %616 = vmatprep.mubr.f32.mxu0 0.0
  %617 = vmatmul.mubr.f32.gmra.mxu0 %v253
  %v618 = vpop.f32.mrf.mxu0
  %v619 = vadd.f32 0.0, %v618
  %v620 = vpop.f32.mrf.mxu0
  %621 = vmatprep.mubr.f32.mxu0 0.0
  %622 = vmatmul.mubr.f32.gmra.mxu0 %v256
  %v623 = vpop.f32.mrf.mxu0
  %v624 = vadd.f32 0.0, %v623
  %v625 = vpop.f32.mrf.mxu0
  %626 = vmatprep.mubr.f32.mxu0 0.0
  %627 = vmatmul.mubr.f32.gmra.mxu0 %v259
  %v628 = vpop.f32.mrf.mxu0
  %v629 = vadd.f32 0.0, %v628
  %v630 = vpop.f32.mrf.mxu0
  %631 = vmatprep.mubr.f32.mxu0 0.0
  %632 = vmatmul.mubr.f32.gmra.mxu0 %v262
  %v633 = vpop.f32.mrf.mxu0
  %v634 = vadd.f32 0.0, %v633
  %v635 = vpop.f32.mrf.mxu0
  %636 = vmatprep.mubr.f32.mxu0 0.0
  %637 = vmatmul.mubr.f32.gmra.mxu0 %v265
  %v638 = vpop.f32.mrf.mxu0
  %v639 = vadd.f32 0.0, %v638
  %v640 = vpop.f32.mrf.mxu0
  %641 = vmatprep.mubr.f32.mxu0 0.0
  %642 = vmatmul.mubr.f32.gmra.mxu0 %v268
  %v643 = vpop.f32.mrf.mxu0
  %v644 = vadd.f32 0.0, %v643
  %v645 = vpop.f32.mrf.mxu0
  %646 = vmatprep.mubr.f32.mxu0 0.0
  %647 = vmatmul.mubr.f32.gmra.mxu0 %v271
  %v648 = vpop.f32.mrf.mxu0
  %v649 = vadd.f32 0.0, %v648
  %v650 = vpop.f32.mrf.mxu0
  %651 = vmatprep.mubr.f32.mxu0 0.0
  %652 = vmatmul.mubr.f32.gmra.mxu0 %v274
  %v653 = vpop.f32.mrf.mxu0
  %v654 = vadd.f32 0.0, %v653
  %v655 = vpop.f32.mrf.mxu0
  %656 = vmatprep.mubr.f32.mxu0 0.0
  %657 = vmatmul.mubr.f32.gmra.mxu0 %v277
  %v658 = vpop.f32.mrf.mxu0
  %v659 = vadd.f32 0.0, %v658
  %v660 = vpop.f32.mrf.mxu0
  %661 = vmatprep.mubr.f32.mxu0 0.0
  %662 = vmatmul.mubr.f32.gmra.mxu0 %v280
  %v663 = vpop.f32.mrf.mxu0
  %v664 = vadd.f32 0.0, %v663
  %v665 = vpop.f32.mrf.mxu0
  %666 = vmatprep.mubr.f32.mxu0 0.0
  %667 = vmatmul.mubr.f32.gmra.mxu0 %v283
  %v668 = vpop.f32.mrf.mxu0
  %v669 = vadd.f32 0.0, %v668
  %v670 = vpop.f32.mrf.mxu0
  %671 = vmatprep.mubr.f32.mxu0 0.0
  %672 = vmatmul.mubr.f32.gmra.mxu0 %v286
  %v673 = vpop.f32.mrf.mxu0
  %v674 = vadd.f32 0.0, %v673
  %v675 = vpop.f32.mrf.mxu0
  %676 = vdwg.mxu0
  %vm677 = vcmask 130048
  %v678 = vsel %vm677, %v359, 0.0
  %v679 = vsel %vm677, %v364, 0.0
  %v680 = vadd.f32 %v678, %v679
  %v681 = vsel %vm677, %v369, 0.0
  %v682 = vadd.f32 %v680, %v681
  %v683 = vsel %vm677, %v374, 0.0
  %v684 = vadd.f32 %v682, %v683
  %v685 = vsel %vm677, %v379, 0.0
  %v686 = vadd.f32 %v684, %v685
  %v687 = vsel %vm677, %v384, 0.0
  %v688 = vadd.f32 %v686, %v687
  %v689 = vsel %vm677, %v389, 0.0
  %v690 = vadd.f32 %v688, %v689
  %v691 = vsel %vm677, %v394, 0.0
  %v692 = vadd.f32 %v690, %v691
  %v693 = vsel %vm677, %v399, 0.0
  %v694 = vadd.f32 %v692, %v693
  %v695 = vsel %vm677, %v404, 0.0
  %v696 = vadd.f32 %v694, %v695
  %v697 = vsel %vm677, %v409, 0.0
  %v698 = vadd.f32 %v696, %v697
  %v699 = vsel %vm677, %v414, 0.0
  %v700 = vadd.f32 %v698, %v699
  %v701 = vsel %vm677, %v419, 0.0
  %v702 = vadd.f32 %v700, %v701
  %v703 = vsel %vm677, %v424, 0.0
  %v704 = vadd.f32 %v702, %v703
  %v705 = vsel %vm677, %v429, 0.0
  %v706 = vadd.f32 %v704, %v705
  %v707 = vsel %vm677, %v434, 0.0
  %v708 = vadd.f32 %v706, %v707
  %v709 = vsel %vm677, %v439, 0.0
  %v710 = vadd.f32 %v708, %v709
  %v711 = vsel %vm677, %v444, 0.0
  %v712 = vadd.f32 %v710, %v711
  %v713 = vsel %vm677, %v449, 0.0
  %v714 = vadd.f32 %v712, %v713
  %v715 = vsel %vm677, %v454, 0.0
  %v716 = vadd.f32 %v714, %v715
  %v717 = vsel %vm677, %v459, 0.0
  %v718 = vadd.f32 %v716, %v717
  %v719 = vsel %vm677, %v464, 0.0
  %v720 = vadd.f32 %v718, %v719
  %v721 = vsel %vm677, %v469, 0.0
  %v722 = vadd.f32 %v720, %v721
  %v723 = vsel %vm677, %v474, 0.0
  %v724 = vadd.f32 %v722, %v723
  %v725 = vsel %vm677, %v479, 0.0
  %v726 = vadd.f32 %v724, %v725
  %v727 = vsel %vm677, %v484, 0.0
  %v728 = vadd.f32 %v726, %v727
  %v729 = vsel %vm677, %v489, 0.0
  %v730 = vadd.f32 %v728, %v729
  %v731 = vsel %vm677, %v494, 0.0
  %v732 = vadd.f32 %v730, %v731
  %v733 = vsel %vm677, %v499, 0.0
  %v734 = vadd.f32 %v732, %v733
  %v735 = vsel %vm677, %v504, 0.0
  %v736 = vadd.f32 %v734, %v735
  %v737 = vsel %vm677, %v509, 0.0
  %v738 = vadd.f32 %v736, %v737
  %v739 = vsel %vm677, %v514, 0.0
  %v740 = vadd.f32 %v738, %v739
  %v741 = vsel %vm677, %v519, 0.0
  %v742 = vadd.f32 %v740, %v741
  %v743 = vsel %vm677, %v524, 0.0
  %v744 = vadd.f32 %v742, %v743
  %v745 = vsel %vm677, %v529, 0.0
  %v746 = vadd.f32 %v744, %v745
  %v747 = vsel %vm677, %v534, 0.0
  %v748 = vadd.f32 %v746, %v747
  %v749 = vsel %vm677, %v539, 0.0
  %v750 = vadd.f32 %v748, %v749
  %v751 = vsel %vm677, %v544, 0.0
  %v752 = vadd.f32 %v750, %v751
  %v753 = vsel %vm677, %v549, 0.0
  %v754 = vadd.f32 %v752, %v753
  %v755 = vsel %vm677, %v554, 0.0
  %v756 = vadd.f32 %v754, %v755
  %v757 = vsel %vm677, %v559, 0.0
  %v758 = vadd.f32 %v756, %v757
  %v759 = vsel %vm677, %v564, 0.0
  %v760 = vadd.f32 %v758, %v759
  %v761 = vsel %vm677, %v569, 0.0
  %v762 = vadd.f32 %v760, %v761
  %v763 = vsel %vm677, %v574, 0.0
  %v764 = vadd.f32 %v762, %v763
  %v765 = vsel %vm677, %v579, 0.0
  %v766 = vadd.f32 %v764, %v765
  %v767 = vsel %vm677, %v584, 0.0
  %v768 = vadd.f32 %v766, %v767
  %v769 = vsel %vm677, %v589, 0.0
  %v770 = vadd.f32 %v768, %v769
  %v771 = vsel %vm677, %v594, 0.0
  %v772 = vadd.f32 %v770, %v771
  %v773 = vsel %vm677, %v599, 0.0
  %v774 = vadd.f32 %v772, %v773
  %v775 = vsel %vm677, %v604, 0.0
  %v776 = vadd.f32 %v774, %v775
  %v777 = vsel %vm677, %v609, 0.0
  %v778 = vadd.f32 %v776, %v777
  %v779 = vsel %vm677, %v614, 0.0
  %v780 = vadd.f32 %v778, %v779
  %v781 = vsel %vm677, %v619, 0.0
  %v782 = vadd.f32 %v780, %v781
  %v783 = vsel %vm677, %v624, 0.0
  %v784 = vadd.f32 %v782, %v783
  %v785 = vsel %vm677, %v629, 0.0
  %v786 = vadd.f32 %v784, %v785
  %v787 = vsel %vm677, %v634, 0.0
  %v788 = vadd.f32 %v786, %v787
  %v789 = vsel %vm677, %v639, 0.0
  %v790 = vadd.f32 %v788, %v789
  %v791 = vsel %vm677, %v644, 0.0
  %v792 = vadd.f32 %v790, %v791
  %v793 = vsel %vm677, %v649, 0.0
  %v794 = vadd.f32 %v792, %v793
  %v795 = vsel %vm677, %v654, 0.0
  %v796 = vadd.f32 %v794, %v795
  %v797 = vsel %vm677, %v659, 0.0
  %v798 = vadd.f32 %v796, %v797
  %v799 = vsel %vm677, %v664, 0.0
  %v800 = vadd.f32 %v798, %v799
  %v801 = vsel %vm677, %v669, 0.0
  %v802 = vadd.f32 %v800, %v801
  %v803 = vsel %vm677, %v674, 0.0
  %v804 = vadd.f32 %v802, %v803
  %v805 = vrot.slane %v804, 4
  %v806 = vadd.f32 %v804, %v805
  %v807 = vrot.slane %v806, 2
  %v808 = vadd.f32 %v806, %v807
  %v809 = vrot.slane %v808, 1
  %v810 = vadd.f32 %v808, %v809
  %v811 = vrcp.pop 512.0
  %v812 = vmul.f32 %v810, %v811
  %v813 = vsub.f32 %v359, %v812
  %v814 = vsub.f32 %v364, %v812
  %v815 = vsub.f32 %v369, %v812
  %v816 = vsub.f32 %v374, %v812
  %v817 = vsub.f32 %v379, %v812
  %v818 = vsub.f32 %v384, %v812
  %v819 = vsub.f32 %v389, %v812
  %v820 = vsub.f32 %v394, %v812
  %v821 = vsub.f32 %v399, %v812
  %v822 = vsub.f32 %v404, %v812
  %v823 = vsub.f32 %v409, %v812
  %v824 = vsub.f32 %v414, %v812
  %v825 = vsub.f32 %v419, %v812
  %v826 = vsub.f32 %v424, %v812
  %v827 = vsub.f32 %v429, %v812
  %v828 = vsub.f32 %v434, %v812
  %v829 = vsub.f32 %v439, %v812
  %v830 = vsub.f32 %v444, %v812
  %v831 = vsub.f32 %v449, %v812
  %v832 = vsub.f32 %v454, %v812
  %v833 = vsub.f32 %v459, %v812
  %v834 = vsub.f32 %v464, %v812
  %v835 = vsub.f32 %v469, %v812
  %v836 = vsub.f32 %v474, %v812
  %v837 = vsub.f32 %v479, %v812
  %v838 = vsub.f32 %v484, %v812
  %v839 = vsub.f32 %v489, %v812
  %v840 = vsub.f32 %v494, %v812
  %v841 = vsub.f32 %v499, %v812
  %v842 = vsub.f32 %v504, %v812
  %v843 = vsub.f32 %v509, %v812
  %v844 = vsub.f32 %v514, %v812
  %v845 = vsub.f32 %v519, %v812
  %v846 = vsub.f32 %v524, %v812
  %v847 = vsub.f32 %v529, %v812
  %v848 = vsub.f32 %v534, %v812
  %v849 = vsub.f32 %v539, %v812
  %v850 = vsub.f32 %v544, %v812
  %v851 = vsub.f32 %v549, %v812
  %v852 = vsub.f32 %v554, %v812
  %v853 = vsub.f32 %v559, %v812
  %v854 = vsub.f32 %v564, %v812
  %v855 = vsub.f32 %v569, %v812
  %v856 = vsub.f32 %v574, %v812
  %v857 = vsub.f32 %v579, %v812
  %v858 = vsub.f32 %v584, %v812
  %v859 = vsub.f32 %v589, %v812
  %v860 = vsub.f32 %v594, %v812
  %v861 = vsub.f32 %v599, %v812
  %v862 = vsub.f32 %v604, %v812
  %v863 = vsub.f32 %v609, %v812
  %v864 = vsub.f32 %v614, %v812
  %v865 = vsub.f32 %v619, %v812
  %v866 = vsub.f32 %v624, %v812
  %v867 = vsub.f32 %v629, %v812
  %v868 = vsub.f32 %v634, %v812
  %v869 = vsub.f32 %v639, %v812
  %v870 = vsub.f32 %v644, %v812
  %v871 = vsub.f32 %v649, %v812
  %v872 = vsub.f32 %v654, %v812
  %v873 = vsub.f32 %v659, %v812
  %v874 = vsub.f32 %v664, %v812
  %v875 = vsub.f32 %v669, %v812
  %v876 = vsub.f32 %v674, %v812
  %v877 = vmul.f32 %v813, %v813
  %v878 = vmul.f32 %v814, %v814
  %v879 = vmul.f32 %v815, %v815
  %v880 = vmul.f32 %v816, %v816
  %v881 = vmul.f32 %v817, %v817
  %v882 = vmul.f32 %v818, %v818
  %v883 = vmul.f32 %v819, %v819
  %v884 = vmul.f32 %v820, %v820
  %v885 = vmul.f32 %v821, %v821
  %v886 = vmul.f32 %v822, %v822
  %v887 = vmul.f32 %v823, %v823
  %v888 = vmul.f32 %v824, %v824
  %v889 = vmul.f32 %v825, %v825
  %v890 = vmul.f32 %v826, %v826
  %v891 = vmul.f32 %v827, %v827
  %v892 = vmul.f32 %v828, %v828
  %v893 = vmul.f32 %v829, %v829
  %v894 = vmul.f32 %v830, %v830
  %v895 = vmul.f32 %v831, %v831
  %v896 = vmul.f32 %v832, %v832
  %v897 = vmul.f32 %v833, %v833
  %v898 = vmul.f32 %v834, %v834
  %v899 = vmul.f32 %v835, %v835
  %v900 = vmul.f32 %v836, %v836
  %v901 = vmul.f32 %v837, %v837
  %v902 = vmul.f32 %v838, %v838
  %v903 = vmul.f32 %v839, %v839
  %v904 = vmul.f32 %v840, %v840
  %v905 = vmul.f32 %v841, %v841
  %v906 = vmul.f32 %v842, %v842
  %v907 = vmul.f32 %v843, %v843
  %v908 = vmul.f32 %v844, %v844
  %v909 = vmul.f32 %v845, %v845
  %v910 = vmul.f32 %v846, %v846
  %v911 = vmul.f32 %v847, %v847
  %v912 = vmul.f32 %v848, %v848
  %v913 = vmul.f32 %v849, %v849
  %v914 = vmul.f32 %v850, %v850
  %v915 = vmul.f32 %v851, %v851
  %v916 = vmul.f32 %v852, %v852
  %v917 = vmul.f32 %v853, %v853
  %v918 = vmul.f32 %v854, %v854
  %v919 = vmul.f32 %v855, %v855
  %v920 = vmul.f32 %v856, %v856
  %v921 = vmul.f32 %v857, %v857
  %v922 = vmul.f32 %v858, %v858
  %v923 = vmul.f32 %v859, %v859
  %v924 = vmul.f32 %v860, %v860
  %v925 = vmul.f32 %v861, %v861
  %v926 = vmul.f32 %v862, %v862
  %v927 = vmul.f32 %v863, %v863
  %v928 = vmul.f32 %v864, %v864
  %v929 = vmul.f32 %v865, %v865
  %v930 = vmul.f32 %v866, %v866
  %v931 = vmul.f32 %v867, %v867
  %v932 = vmul.f32 %v868, %v868
  %v933 = vmul.f32 %v869, %v869
  %v934 = vmul.f32 %v870, %v870
  %v935 = vmul.f32 %v871, %v871
  %v936 = vmul.f32 %v872, %v872
  %v937 = vmul.f32 %v873, %v873
  %v938 = vmul.f32 %v874, %v874
  %v939 = vmul.f32 %v875, %v875
  %v940 = vmul.f32 %v876, %v876
  %v941 = vsel %vm677, %v877, 0.0
  %v942 = vsel %vm677, %v878, 0.0
  %v943 = vadd.f32 %v941, %v942
  %v944 = vsel %vm677, %v879, 0.0
  %v945 = vadd.f32 %v943, %v944
  %v946 = vsel %vm677, %v880, 0.0
  %v947 = vadd.f32 %v945, %v946
  %v948 = vsel %vm677, %v881, 0.0
  %v949 = vadd.f32 %v947, %v948
  %v950 = vsel %vm677, %v882, 0.0
  %v951 = vadd.f32 %v949, %v950
  %v952 = vsel %vm677, %v883, 0.0
  %v953 = vadd.f32 %v951, %v952
  %v954 = vsel %vm677, %v884, 0.0
  %v955 = vadd.f32 %v953, %v954
  %v956 = vsel %vm677, %v885, 0.0
  %v957 = vadd.f32 %v955, %v956
  %v958 = vsel %vm677, %v886, 0.0
  %v959 = vadd.f32 %v957, %v958
  %v960 = vsel %vm677, %v887, 0.0
  %v961 = vadd.f32 %v959, %v960
  %v962 = vsel %vm677, %v888, 0.0
  %v963 = vadd.f32 %v961, %v962
  %v964 = vsel %vm677, %v889, 0.0
  %v965 = vadd.f32 %v963, %v964
  %v966 = vsel %vm677, %v890, 0.0
  %v967 = vadd.f32 %v965, %v966
  %v968 = vsel %vm677, %v891, 0.0
  %v969 = vadd.f32 %v967, %v968
  %v970 = vsel %vm677, %v892, 0.0
  %v971 = vadd.f32 %v969, %v970
  %v972 = vsel %vm677, %v893, 0.0
  %v973 = vadd.f32 %v971, %v972
  %v974 = vsel %vm677, %v894, 0.0
  %v975 = vadd.f32 %v973, %v974
  %v976 = vsel %vm677, %v895, 0.0
  %v977 = vadd.f32 %v975, %v976
  %v978 = vsel %vm677, %v896, 0.0
  %v979 = vadd.f32 %v977, %v978
  %v980 = vsel %vm677, %v897, 0.0
  %v981 = vadd.f32 %v979, %v980
  %v982 = vsel %vm677, %v898, 0.0
  %v983 = vadd.f32 %v981, %v982
  %v984 = vsel %vm677, %v899, 0.0
  %v985 = vadd.f32 %v983, %v984
  %v986 = vsel %vm677, %v900, 0.0
  %v987 = vadd.f32 %v985, %v986
  %v988 = vsel %vm677, %v901, 0.0
  %v989 = vadd.f32 %v987, %v988
  %v990 = vsel %vm677, %v902, 0.0
  %v991 = vadd.f32 %v989, %v990
  %v992 = vsel %vm677, %v903, 0.0
  %v993 = vadd.f32 %v991, %v992
  %v994 = vsel %vm677, %v904, 0.0
  %v995 = vadd.f32 %v993, %v994
  %v996 = vsel %vm677, %v905, 0.0
  %v997 = vadd.f32 %v995, %v996
  %v998 = vsel %vm677, %v906, 0.0
  %v999 = vadd.f32 %v997, %v998
  %v1000 = vsel %vm677, %v907, 0.0
  %v1001 = vadd.f32 %v999, %v1000
  %v1002 = vsel %vm677, %v908, 0.0
  %v1003 = vadd.f32 %v1001, %v1002
  %v1004 = vsel %vm677, %v909, 0.0
  %v1005 = vadd.f32 %v1003, %v1004
  %v1006 = vsel %vm677, %v910, 0.0
  %v1007 = vadd.f32 %v1005, %v1006
  %v1008 = vsel %vm677, %v911, 0.0
  %v1009 = vadd.f32 %v1007, %v1008
  %v1010 = vsel %vm677, %v912, 0.0
  %v1011 = vadd.f32 %v1009, %v1010
  %v1012 = vsel %vm677, %v913, 0.0
  %v1013 = vadd.f32 %v1011, %v1012
  %v1014 = vsel %vm677, %v914, 0.0
  %v1015 = vadd.f32 %v1013, %v1014
  %v1016 = vsel %vm677, %v915, 0.0
  %v1017 = vadd.f32 %v1015, %v1016
  %v1018 = vsel %vm677, %v916, 0.0
  %v1019 = vadd.f32 %v1017, %v1018
  %v1020 = vsel %vm677, %v917, 0.0
  %v1021 = vadd.f32 %v1019, %v1020
  %v1022 = vsel %vm677, %v918, 0.0
  %v1023 = vadd.f32 %v1021, %v1022
  %v1024 = vsel %vm677, %v919, 0.0
  %v1025 = vadd.f32 %v1023, %v1024
  %v1026 = vsel %vm677, %v920, 0.0
  %v1027 = vadd.f32 %v1025, %v1026
  %v1028 = vsel %vm677, %v921, 0.0
  %v1029 = vadd.f32 %v1027, %v1028
  %v1030 = vsel %vm677, %v922, 0.0
  %v1031 = vadd.f32 %v1029, %v1030
  %v1032 = vsel %vm677, %v923, 0.0
  %v1033 = vadd.f32 %v1031, %v1032
  %v1034 = vsel %vm677, %v924, 0.0
  %v1035 = vadd.f32 %v1033, %v1034
  %v1036 = vsel %vm677, %v925, 0.0
  %v1037 = vadd.f32 %v1035, %v1036
  %v1038 = vsel %vm677, %v926, 0.0
  %v1039 = vadd.f32 %v1037, %v1038
  %v1040 = vsel %vm677, %v927, 0.0
  %v1041 = vadd.f32 %v1039, %v1040
  %v1042 = vsel %vm677, %v928, 0.0
  %v1043 = vadd.f32 %v1041, %v1042
  %v1044 = vsel %vm677, %v929, 0.0
  %v1045 = vadd.f32 %v1043, %v1044
  %v1046 = vsel %vm677, %v930, 0.0
  %v1047 = vadd.f32 %v1045, %v1046
  %v1048 = vsel %vm677, %v931, 0.0
  %v1049 = vadd.f32 %v1047, %v1048
  %v1050 = vsel %vm677, %v932, 0.0
  %v1051 = vadd.f32 %v1049, %v1050
  %v1052 = vsel %vm677, %v933, 0.0
  %v1053 = vadd.f32 %v1051, %v1052
  %v1054 = vsel %vm677, %v934, 0.0
  %v1055 = vadd.f32 %v1053, %v1054
  %v1056 = vsel %vm677, %v935, 0.0
  %v1057 = vadd.f32 %v1055, %v1056
  %v1058 = vsel %vm677, %v936, 0.0
  %v1059 = vadd.f32 %v1057, %v1058
  %v1060 = vsel %vm677, %v937, 0.0
  %v1061 = vadd.f32 %v1059, %v1060
  %v1062 = vsel %vm677, %v938, 0.0
  %v1063 = vadd.f32 %v1061, %v1062
  %v1064 = vsel %vm677, %v939, 0.0
  %v1065 = vadd.f32 %v1063, %v1064
  %v1066 = vsel %vm677, %v940, 0.0
  %v1067 = vadd.f32 %v1065, %v1066
  %v1068 = vrot.slane %v1067, 4
  %v1069 = vadd.f32 %v1067, %v1068
  %v1070 = vrot.slane %v1069, 2
  %v1071 = vadd.f32 %v1069, %v1070
  %v1072 = vrot.slane %v1071, 1
  %v1073 = vadd.f32 %v1071, %v1072
  %v1074 = vmul.f32 %v1073, %v811
  %v1075 = vadd.f32 %v1074, 1e-05
  %v1076 = vrsqrt.pop %v1075
  %v1077 = vmul.f32 %v813, %v1076
  %v1078 = vmul.f32 %v814, %v1076
  %v1079 = vmul.f32 %v815, %v1076
  %v1080 = vmul.f32 %v816, %v1076
  %v1081 = vmul.f32 %v817, %v1076
  %v1082 = vmul.f32 %v818, %v1076
  %v1083 = vmul.f32 %v819, %v1076
  %v1084 = vmul.f32 %v820, %v1076
  %v1085 = vmul.f32 %v821, %v1076
  %v1086 = vmul.f32 %v822, %v1076
  %v1087 = vmul.f32 %v823, %v1076
  %v1088 = vmul.f32 %v824, %v1076
  %v1089 = vmul.f32 %v825, %v1076
  %v1090 = vmul.f32 %v826, %v1076
  %v1091 = vmul.f32 %v827, %v1076
  %v1092 = vmul.f32 %v828, %v1076
  %v1093 = vmul.f32 %v829, %v1076
  %v1094 = vmul.f32 %v830, %v1076
  %v1095 = vmul.f32 %v831, %v1076
  %v1096 = vmul.f32 %v832, %v1076
  %v1097 = vmul.f32 %v833, %v1076
  %v1098 = vmul.f32 %v834, %v1076
  %v1099 = vmul.f32 %v835, %v1076
  %v1100 = vmul.f32 %v836, %v1076
  %v1101 = vmul.f32 %v837, %v1076
  %v1102 = vmul.f32 %v838, %v1076
  %v1103 = vmul.f32 %v839, %v1076
  %v1104 = vmul.f32 %v840, %v1076
  %v1105 = vmul.f32 %v841, %v1076
  %v1106 = vmul.f32 %v842, %v1076
  %v1107 = vmul.f32 %v843, %v1076
  %v1108 = vmul.f32 %v844, %v1076
  %v1109 = vmul.f32 %v845, %v1076
  %v1110 = vmul.f32 %v846, %v1076
  %v1111 = vmul.f32 %v847, %v1076
  %v1112 = vmul.f32 %v848, %v1076
  %v1113 = vmul.f32 %v849, %v1076
  %v1114 = vmul.f32 %v850, %v1076
  %v1115 = vmul.f32 %v851, %v1076
  %v1116 = vmul.f32 %v852, %v1076
  %v1117 = vmul.f32 %v853, %v1076
  %v1118 = vmul.f32 %v854, %v1076
  %v1119 = vmul.f32 %v855, %v1076
  %v1120 = vmul.f32 %v856, %v1076
  %v1121 = vmul.f32 %v857, %v1076
  %v1122 = vmul.f32 %v858, %v1076
  %v1123 = vmul.f32 %v859, %v1076
  %v1124 = vmul.f32 %v860, %v1076
  %v1125 = vmul.f32 %v861, %v1076
  %v1126 = vmul.f32 %v862, %v1076
  %v1127 = vmul.f32 %v863, %v1076
  %v1128 = vmul.f32 %v864, %v1076
  %v1129 = vmul.f32 %v865, %v1076
  %v1130 = vmul.f32 %v866, %v1076
  %v1131 = vmul.f32 %v867, %v1076
  %v1132 = vmul.f32 %v868, %v1076
  %v1133 = vmul.f32 %v869, %v1076
  %v1134 = vmul.f32 %v870, %v1076
  %v1135 = vmul.f32 %v871, %v1076
  %v1136 = vmul.f32 %v872, %v1076
  %v1137 = vmul.f32 %v873, %v1076
  %v1138 = vmul.f32 %v874, %v1076
  %v1139 = vmul.f32 %v875, %v1076
  %v1140 = vmul.f32 %v876, %v1076
  %v1141 = vld [vmem:[%s6] sm:$0x1]
  %v1142 = vlaneseq
  %v1143 = vshrl.u32 %v1142, 7
  %v1144 = vsub.s32 0, %v1143
  %v1145 = vrot.slane %v1141, %v1144
  %v1146 = vmul.f32 %v1077, %v1145
  %v1147 = vmul.f32 %v1078, %v1145
  %v1148 = vmul.f32 %v1079, %v1145
  %v1149 = vmul.f32 %v1080, %v1145
  %v1150 = vmul.f32 %v1081, %v1145
  %v1151 = vmul.f32 %v1082, %v1145
  %v1152 = vmul.f32 %v1083, %v1145
  %v1153 = vmul.f32 %v1084, %v1145
  %v1154 = vmul.f32 %v1085, %v1145
  %v1155 = vmul.f32 %v1086, %v1145
  %v1156 = vmul.f32 %v1087, %v1145
  %v1157 = vmul.f32 %v1088, %v1145
  %v1158 = vmul.f32 %v1089, %v1145
  %v1159 = vmul.f32 %v1090, %v1145
  %v1160 = vmul.f32 %v1091, %v1145
  %v1161 = vmul.f32 %v1092, %v1145
  %v1162 = vmul.f32 %v1093, %v1145
  %v1163 = vmul.f32 %v1094, %v1145
  %v1164 = vmul.f32 %v1095, %v1145
  %v1165 = vmul.f32 %v1096, %v1145
  %v1166 = vmul.f32 %v1097, %v1145
  %v1167 = vmul.f32 %v1098, %v1145
  %v1168 = vmul.f32 %v1099, %v1145
  %v1169 = vmul.f32 %v1100, %v1145
  %v1170 = vmul.f32 %v1101, %v1145
  %v1171 = vmul.f32 %v1102, %v1145
  %v1172 = vmul.f32 %v1103, %v1145
  %v1173 = vmul.f32 %v1104, %v1145
  %v1174 = vmul.f32 %v1105, %v1145
  %v1175 = vmul.f32 %v1106, %v1145
  %v1176 = vmul.f32 %v1107, %v1145
  %v1177 = vmul.f32 %v1108, %v1145
  %v1178 = vmul.f32 %v1109, %v1145
  %v1179 = vmul.f32 %v1110, %v1145
  %v1180 = vmul.f32 %v1111, %v1145
  %v1181 = vmul.f32 %v1112, %v1145
  %v1182 = vmul.f32 %v1113, %v1145
  %v1183 = vmul.f32 %v1114, %v1145
  %v1184 = vmul.f32 %v1115, %v1145
  %v1185 = vmul.f32 %v1116, %v1145
  %v1186 = vmul.f32 %v1117, %v1145
  %v1187 = vmul.f32 %v1118, %v1145
  %v1188 = vmul.f32 %v1119, %v1145
  %v1189 = vmul.f32 %v1120, %v1145
  %v1190 = vmul.f32 %v1121, %v1145
  %v1191 = vmul.f32 %v1122, %v1145
  %v1192 = vmul.f32 %v1123, %v1145
  %v1193 = vmul.f32 %v1124, %v1145
  %v1194 = vmul.f32 %v1125, %v1145
  %v1195 = vmul.f32 %v1126, %v1145
  %v1196 = vmul.f32 %v1127, %v1145
  %v1197 = vmul.f32 %v1128, %v1145
  %v1198 = vmul.f32 %v1129, %v1145
  %v1199 = vmul.f32 %v1130, %v1145
  %v1200 = vmul.f32 %v1131, %v1145
  %v1201 = vmul.f32 %v1132, %v1145
  %v1202 = vmul.f32 %v1133, %v1145
  %v1203 = vmul.f32 %v1134, %v1145
  %v1204 = vmul.f32 %v1135, %v1145
  %v1205 = vmul.f32 %v1136, %v1145
  %v1206 = vmul.f32 %v1137, %v1145
  %v1207 = vmul.f32 %v1138, %v1145
  %v1208 = vmul.f32 %v1139, %v1145
  %v1209 = vmul.f32 %v1140, %v1145
  %v1210 = vld [vmem:[%s7] sm:$0x1]
  %v1211 = vlaneseq
  %v1212 = vshrl.u32 %v1211, 7
  %v1213 = vsub.s32 0, %v1212
  %v1214 = vrot.slane %v1210, %v1213
  %v1215 = vadd.f32 %v1146, %v1214
  %v1216 = vadd.f32 %v1147, %v1214
  %v1217 = vadd.f32 %v1148, %v1214
  %v1218 = vadd.f32 %v1149, %v1214
  %v1219 = vadd.f32 %v1150, %v1214
  %v1220 = vadd.f32 %v1151, %v1214
  %v1221 = vadd.f32 %v1152, %v1214
  %v1222 = vadd.f32 %v1153, %v1214
  %v1223 = vadd.f32 %v1154, %v1214
  %v1224 = vadd.f32 %v1155, %v1214
  %v1225 = vadd.f32 %v1156, %v1214
  %v1226 = vadd.f32 %v1157, %v1214
  %v1227 = vadd.f32 %v1158, %v1214
  %v1228 = vadd.f32 %v1159, %v1214
  %v1229 = vadd.f32 %v1160, %v1214
  %v1230 = vadd.f32 %v1161, %v1214
  %v1231 = vadd.f32 %v1162, %v1214
  %v1232 = vadd.f32 %v1163, %v1214
  %v1233 = vadd.f32 %v1164, %v1214
  %v1234 = vadd.f32 %v1165, %v1214
  %v1235 = vadd.f32 %v1166, %v1214
  %v1236 = vadd.f32 %v1167, %v1214
  %v1237 = vadd.f32 %v1168, %v1214
  %v1238 = vadd.f32 %v1169, %v1214
  %v1239 = vadd.f32 %v1170, %v1214
  %v1240 = vadd.f32 %v1171, %v1214
  %v1241 = vadd.f32 %v1172, %v1214
  %v1242 = vadd.f32 %v1173, %v1214
  %v1243 = vadd.f32 %v1174, %v1214
  %v1244 = vadd.f32 %v1175, %v1214
  %v1245 = vadd.f32 %v1176, %v1214
  %v1246 = vadd.f32 %v1177, %v1214
  %v1247 = vadd.f32 %v1178, %v1214
  %v1248 = vadd.f32 %v1179, %v1214
  %v1249 = vadd.f32 %v1180, %v1214
  %v1250 = vadd.f32 %v1181, %v1214
  %v1251 = vadd.f32 %v1182, %v1214
  %v1252 = vadd.f32 %v1183, %v1214
  %v1253 = vadd.f32 %v1184, %v1214
  %v1254 = vadd.f32 %v1185, %v1214
  %v1255 = vadd.f32 %v1186, %v1214
  %v1256 = vadd.f32 %v1187, %v1214
  %v1257 = vadd.f32 %v1188, %v1214
  %v1258 = vadd.f32 %v1189, %v1214
  %v1259 = vadd.f32 %v1190, %v1214
  %v1260 = vadd.f32 %v1191, %v1214
  %v1261 = vadd.f32 %v1192, %v1214
  %v1262 = vadd.f32 %v1193, %v1214
  %v1263 = vadd.f32 %v1194, %v1214
  %v1264 = vadd.f32 %v1195, %v1214
  %v1265 = vadd.f32 %v1196, %v1214
  %v1266 = vadd.f32 %v1197, %v1214
  %v1267 = vadd.f32 %v1198, %v1214
  %v1268 = vadd.f32 %v1199, %v1214
  %v1269 = vadd.f32 %v1200, %v1214
  %v1270 = vadd.f32 %v1201, %v1214
  %v1271 = vadd.f32 %v1202, %v1214
  %v1272 = vadd.f32 %v1203, %v1214
  %v1273 = vadd.f32 %v1204, %v1214
  %v1274 = vadd.f32 %v1205, %v1214
  %v1275 = vadd.f32 %v1206, %v1214
  %v1276 = vadd.f32 %v1207, %v1214
  %v1277 = vadd.f32 %v1208, %v1214
  %v1278 = vadd.f32 %v1209, %v1214
  %v1279 = vmax.f32 %v1215, 0.0
  %v1280 = vmax.f32 %v1216, 0.0
  %v1281 = vmax.f32 %v1217, 0.0
  %v1282 = vmax.f32 %v1218, 0.0
  %v1283 = vmax.f32 %v1219, 0.0
  %v1284 = vmax.f32 %v1220, 0.0
  %v1285 = vmax.f32 %v1221, 0.0
  %v1286 = vmax.f32 %v1222, 0.0
  %v1287 = vmax.f32 %v1223, 0.0
  %v1288 = vmax.f32 %v1224, 0.0
  %v1289 = vmax.f32 %v1225, 0.0
  %v1290 = vmax.f32 %v1226, 0.0
  %v1291 = vmax.f32 %v1227, 0.0
  %v1292 = vmax.f32 %v1228, 0.0
  %v1293 = vmax.f32 %v1229, 0.0
  %v1294 = vmax.f32 %v1230, 0.0
  %v1295 = vmax.f32 %v1231, 0.0
  %v1296 = vmax.f32 %v1232, 0.0
  %v1297 = vmax.f32 %v1233, 0.0
  %v1298 = vmax.f32 %v1234, 0.0
  %v1299 = vmax.f32 %v1235, 0.0
  %v1300 = vmax.f32 %v1236, 0.0
  %v1301 = vmax.f32 %v1237, 0.0
  %v1302 = vmax.f32 %v1238, 0.0
  %v1303 = vmax.f32 %v1239, 0.0
  %v1304 = vmax.f32 %v1240, 0.0
  %v1305 = vmax.f32 %v1241, 0.0
  %v1306 = vmax.f32 %v1242, 0.0
  %v1307 = vmax.f32 %v1243, 0.0
  %v1308 = vmax.f32 %v1244, 0.0
  %v1309 = vmax.f32 %v1245, 0.0
  %v1310 = vmax.f32 %v1246, 0.0
  %v1311 = vmax.f32 %v1247, 0.0
  %v1312 = vmax.f32 %v1248, 0.0
  %v1313 = vmax.f32 %v1249, 0.0
  %v1314 = vmax.f32 %v1250, 0.0
  %v1315 = vmax.f32 %v1251, 0.0
  %v1316 = vmax.f32 %v1252, 0.0
  %v1317 = vmax.f32 %v1253, 0.0
  %v1318 = vmax.f32 %v1254, 0.0
  %v1319 = vmax.f32 %v1255, 0.0
  %v1320 = vmax.f32 %v1256, 0.0
  %v1321 = vmax.f32 %v1257, 0.0
  %v1322 = vmax.f32 %v1258, 0.0
  %v1323 = vmax.f32 %v1259, 0.0
  %v1324 = vmax.f32 %v1260, 0.0
  %v1325 = vmax.f32 %v1261, 0.0
  %v1326 = vmax.f32 %v1262, 0.0
  %v1327 = vmax.f32 %v1263, 0.0
  %v1328 = vmax.f32 %v1264, 0.0
  %v1329 = vmax.f32 %v1265, 0.0
  %v1330 = vmax.f32 %v1266, 0.0
  %v1331 = vmax.f32 %v1267, 0.0
  %v1332 = vmax.f32 %v1268, 0.0
  %v1333 = vmax.f32 %v1269, 0.0
  %v1334 = vmax.f32 %v1270, 0.0
  %v1335 = vmax.f32 %v1271, 0.0
  %v1336 = vmax.f32 %v1272, 0.0
  %v1337 = vmax.f32 %v1273, 0.0
  %v1338 = vmax.f32 %v1274, 0.0
  %v1339 = vmax.f32 %v1275, 0.0
  %v1340 = vmax.f32 %v1276, 0.0
  %v1341 = vmax.f32 %v1277, 0.0
  %v1342 = vmax.f32 %v1278, 0.0
  %v1343 = vmax.f32 %v1279, %v1295
  %v1344 = vmax.f32 %v1280, %v1296
  %v1345 = vmax.f32 %v1281, %v1297
  %v1346 = vmax.f32 %v1282, %v1298
  %v1347 = vmax.f32 %v1283, %v1299
  %v1348 = vmax.f32 %v1284, %v1300
  %v1349 = vmax.f32 %v1285, %v1301
  %v1350 = vmax.f32 %v1286, %v1302
  %v1351 = vmax.f32 %v1287, %v1303
  %v1352 = vmax.f32 %v1288, %v1304
  %v1353 = vmax.f32 %v1289, %v1305
  %v1354 = vmax.f32 %v1290, %v1306
  %v1355 = vmax.f32 %v1291, %v1307
  %v1356 = vmax.f32 %v1292, %v1308
  %v1357 = vmax.f32 %v1293, %v1309
  %v1358 = vmax.f32 %v1294, %v1310
  %v1359 = vmax.f32 %v1311, %v1327
  %v1360 = vmax.f32 %v1312, %v1328
  %v1361 = vmax.f32 %v1313, %v1329
  %v1362 = vmax.f32 %v1314, %v1330
  %v1363 = vmax.f32 %v1315, %v1331
  %v1364 = vmax.f32 %v1316, %v1332
  %v1365 = vmax.f32 %v1317, %v1333
  %v1366 = vmax.f32 %v1318, %v1334
  %v1367 = vmax.f32 %v1319, %v1335
  %v1368 = vmax.f32 %v1320, %v1336
  %v1369 = vmax.f32 %v1321, %v1337
  %v1370 = vmax.f32 %v1322, %v1338
  %v1371 = vmax.f32 %v1323, %v1339
  %v1372 = vmax.f32 %v1324, %v1340
  %v1373 = vmax.f32 %v1325, %v1341
  %v1374 = vmax.f32 %v1326, %v1342
  %v1375 = vmax.f32 %v1343, %v1359
  %v1376 = vmax.f32 %v1344, %v1360
  %v1377 = vmax.f32 %v1345, %v1361
  %v1378 = vmax.f32 %v1346, %v1362
  %v1379 = vmax.f32 %v1347, %v1363
  %v1380 = vmax.f32 %v1348, %v1364
  %v1381 = vmax.f32 %v1349, %v1365
  %v1382 = vmax.f32 %v1350, %v1366
  %v1383 = vmax.f32 %v1351, %v1367
  %v1384 = vmax.f32 %v1352, %v1368
  %v1385 = vmax.f32 %v1353, %v1369
  %v1386 = vmax.f32 %v1354, %v1370
  %v1387 = vmax.f32 %v1355, %v1371
  %v1388 = vmax.f32 %v1356, %v1372
  %v1389 = vmax.f32 %v1357, %v1373
  %v1390 = vmax.f32 %v1358, %v1374
  %v1391 = vld [vmem:[%s2] sm:$0xff]
  %v1392 = vld [vmem:[%s2 + $0x8] sm:$0xff]
  %v1394 = vsel %vm677, %v1375, 0
  %v1397 = vsel %vm677, %v1376, 0
  %v1400 = vsel %vm677, %v1377, 0
  %v1403 = vsel %vm677, %v1378, 0
  %v1406 = vsel %vm677, %v1379, 0
  %v1409 = vsel %vm677, %v1380, 0
  %v1412 = vsel %vm677, %v1381, 0
  %v1415 = vsel %vm677, %v1382, 0
  %v1418 = vsel %vm677, %v1383, 0
  %v1421 = vsel %vm677, %v1384, 0
  %v1424 = vsel %vm677, %v1385, 0
  %v1427 = vsel %vm677, %v1386, 0
  %v1430 = vsel %vm677, %v1387, 0
  %v1433 = vsel %vm677, %v1388, 0
  %v1436 = vsel %vm677, %v1389, 0
  %v1439 = vsel %vm677, %v1390, 0
  %1441 = vmatprep.subr.mxu0 0.0
  %1442 = vmatpush1.msra.mxu0 0.0
  %1443 = vmatprep.subr.mxu0 0.0
  %1444 = vmatpush1.msra.mxu0 0.0
  %1445 = vmatprep.subr.mxu0 0.0
  %1446 = vmatpush1.msra.mxu0 0.0
  %1447 = vmatprep.subr.mxu0 0.0
  %1448 = vmatpush1.msra.mxu0 0.0
  %1449 = vmatprep.subr.mxu0 0.0
  %1450 = vmatpush1.msra.mxu0 0.0
  %1451 = vmatprep.subr.mxu0 0.0
  %1452 = vmatpush1.msra.mxu0 0.0
  %1453 = vmatprep.subr.mxu0 0.0
  %1454 = vmatpush1.msra.mxu0 0.0
  %1455 = vmatprep.subr.mxu0 0.0
  %1456 = vmatpush1.msra.mxu0 0.0
  %1457 = vmatprep.subr.mxu0 0.0
  %1458 = vmatpush1.msra.mxu0 0.0
  %1459 = vmatprep.subr.mxu0 0.0
  %1460 = vmatpush1.msra.mxu0 0.0
  %1461 = vmatprep.subr.mxu0 0.0
  %1462 = vmatpush1.msra.mxu0 0.0
  %1463 = vmatprep.subr.mxu0 0.0
  %1464 = vmatpush1.msra.mxu0 0.0
  %1465 = vmatprep.subr.mxu0 0.0
  %1466 = vmatpush1.msra.mxu0 0.0
  %1467 = vmatprep.subr.mxu0 0.0
  %1468 = vmatpush1.msra.mxu0 0.0
  %1469 = vmatprep.subr.mxu0 0.0
  %1470 = vmatpush1.msra.mxu0 %v1392
  %1471 = vmatprep.subr.mxu0 0.0
  %1472 = vmatpush1.msra.mxu0 %v1391
  %1473 = vmatprep.subr.mxu0 0.0
  %1474 = vmatpush2.msra.mxu0 0.0
  %1475 = vmatprep.subr.mxu0 0.0
  %1476 = vmatpush2.msra.mxu0 0.0
  %1477 = vmatprep.subr.mxu0 0.0
  %1478 = vmatpush2.msra.mxu0 0.0
  %1479 = vmatprep.subr.mxu0 0.0
  %1480 = vmatpush2.msra.mxu0 0.0
  %1481 = vmatprep.subr.mxu0 0.0
  %1482 = vmatpush2.msra.mxu0 0.0
  %1483 = vmatprep.subr.mxu0 0.0
  %1484 = vmatpush2.msra.mxu0 0.0
  %1485 = vmatprep.subr.mxu0 0.0
  %1486 = vmatpush2.msra.mxu0 0.0
  %1487 = vmatprep.subr.mxu0 0.0
  %1488 = vmatpush2.msra.mxu0 0.0
  %1489 = vmatprep.subr.mxu0 0.0
  %1490 = vmatpush2.msra.mxu0 0.0
  %1491 = vmatprep.subr.mxu0 0.0
  %1492 = vmatpush2.msra.mxu0 0.0
  %1493 = vmatprep.subr.mxu0 0.0
  %1494 = vmatpush2.msra.mxu0 0.0
  %1495 = vmatprep.subr.mxu0 0.0
  %1496 = vmatpush2.msra.mxu0 0.0
  %1497 = vmatprep.subr.mxu0 0.0
  %1498 = vmatpush2.msra.mxu0 0.0
  %1499 = vmatprep.subr.mxu0 0.0
  %1500 = vmatpush2.msra.mxu0 0.0
  %1501 = vmatprep.subr.mxu0 0.0
  %1502 = vmatpush2.msra.mxu0 0.0
  %1503 = vmatprep.subr.mxu0 0.0
  %1504 = vmatpush2.msra.mxu0 0.0
  %1505 = vmatprep.mubr.f32.mxu0 0.0
  %1506 = vmatmul.mubr.f32.gmra.mxu0 %v1394
  %v1507 = vpop.f32.mrf.mxu0
  %v1508 = vadd.f32 0.0, %v1507
  %v1509 = vpop.f32.mrf.mxu0
  %1510 = vmatprep.mubr.f32.mxu0 0.0
  %1511 = vmatmul.mubr.f32.gmra.mxu0 %v1397
  %v1512 = vpop.f32.mrf.mxu0
  %v1513 = vadd.f32 0.0, %v1512
  %v1514 = vpop.f32.mrf.mxu0
  %1515 = vmatprep.mubr.f32.mxu0 0.0
  %1516 = vmatmul.mubr.f32.gmra.mxu0 %v1400
  %v1517 = vpop.f32.mrf.mxu0
  %v1518 = vadd.f32 0.0, %v1517
  %v1519 = vpop.f32.mrf.mxu0
  %1520 = vmatprep.mubr.f32.mxu0 0.0
  %1521 = vmatmul.mubr.f32.gmra.mxu0 %v1403
  %v1522 = vpop.f32.mrf.mxu0
  %v1523 = vadd.f32 0.0, %v1522
  %v1524 = vpop.f32.mrf.mxu0
  %1525 = vmatprep.mubr.f32.mxu0 0.0
  %1526 = vmatmul.mubr.f32.gmra.mxu0 %v1406
  %v1527 = vpop.f32.mrf.mxu0
  %v1528 = vadd.f32 0.0, %v1527
  %v1529 = vpop.f32.mrf.mxu0
  %1530 = vmatprep.mubr.f32.mxu0 0.0
  %1531 = vmatmul.mubr.f32.gmra.mxu0 %v1409
  %v1532 = vpop.f32.mrf.mxu0
  %v1533 = vadd.f32 0.0, %v1532
  %v1534 = vpop.f32.mrf.mxu0
  %1535 = vmatprep.mubr.f32.mxu0 0.0
  %1536 = vmatmul.mubr.f32.gmra.mxu0 %v1412
  %v1537 = vpop.f32.mrf.mxu0
  %v1538 = vadd.f32 0.0, %v1537
  %v1539 = vpop.f32.mrf.mxu0
  %1540 = vmatprep.mubr.f32.mxu0 0.0
  %1541 = vmatmul.mubr.f32.gmra.mxu0 %v1415
  %v1542 = vpop.f32.mrf.mxu0
  %v1543 = vadd.f32 0.0, %v1542
  %v1544 = vpop.f32.mrf.mxu0
  %1545 = vmatprep.mubr.f32.mxu0 0.0
  %1546 = vmatmul.mubr.f32.gmra.mxu0 %v1418
  %v1547 = vpop.f32.mrf.mxu0
  %v1548 = vadd.f32 0.0, %v1547
  %v1549 = vpop.f32.mrf.mxu0
  %1550 = vmatprep.mubr.f32.mxu0 0.0
  %1551 = vmatmul.mubr.f32.gmra.mxu0 %v1421
  %v1552 = vpop.f32.mrf.mxu0
  %v1553 = vadd.f32 0.0, %v1552
  %v1554 = vpop.f32.mrf.mxu0
  %1555 = vmatprep.mubr.f32.mxu0 0.0
  %1556 = vmatmul.mubr.f32.gmra.mxu0 %v1424
  %v1557 = vpop.f32.mrf.mxu0
  %v1558 = vadd.f32 0.0, %v1557
  %v1559 = vpop.f32.mrf.mxu0
  %1560 = vmatprep.mubr.f32.mxu0 0.0
  %1561 = vmatmul.mubr.f32.gmra.mxu0 %v1427
  %v1562 = vpop.f32.mrf.mxu0
  %v1563 = vadd.f32 0.0, %v1562
  %v1564 = vpop.f32.mrf.mxu0
  %1565 = vmatprep.mubr.f32.mxu0 0.0
  %1566 = vmatmul.mubr.f32.gmra.mxu0 %v1430
  %v1567 = vpop.f32.mrf.mxu0
  %v1568 = vadd.f32 0.0, %v1567
  %v1569 = vpop.f32.mrf.mxu0
  %1570 = vmatprep.mubr.f32.mxu0 0.0
  %1571 = vmatmul.mubr.f32.gmra.mxu0 %v1433
  %v1572 = vpop.f32.mrf.mxu0
  %v1573 = vadd.f32 0.0, %v1572
  %v1574 = vpop.f32.mrf.mxu0
  %1575 = vmatprep.mubr.f32.mxu0 0.0
  %1576 = vmatmul.mubr.f32.gmra.mxu0 %v1436
  %v1577 = vpop.f32.mrf.mxu0
  %v1578 = vadd.f32 0.0, %v1577
  %v1579 = vpop.f32.mrf.mxu0
  %1580 = vmatprep.mubr.f32.mxu0 0.0
  %1581 = vmatmul.mubr.f32.gmra.mxu0 %v1439
  %v1582 = vpop.f32.mrf.mxu0
  %v1583 = vadd.f32 0.0, %v1582
  %v1584 = vpop.f32.mrf.mxu0
  %1585 = vdwg.mxu0
  %s1586 = scalar_lea.vmem %s2, 16
  %v1587 = vld [vmem:[%s1586] sm:$0xff]
  %v1588 = vld [vmem:[%s1586 + $0x8] sm:$0xff]
  %1589 = vmatprep.subr.mxu0 0.0
  %1590 = vmatpush1.msra.mxu0 0.0
  %1591 = vmatprep.subr.mxu0 0.0
  %1592 = vmatpush1.msra.mxu0 0.0
  %1593 = vmatprep.subr.mxu0 0.0
  %1594 = vmatpush1.msra.mxu0 0.0
  %1595 = vmatprep.subr.mxu0 0.0
  %1596 = vmatpush1.msra.mxu0 0.0
  %1597 = vmatprep.subr.mxu0 0.0
  %1598 = vmatpush1.msra.mxu0 0.0
  %1599 = vmatprep.subr.mxu0 0.0
  %1600 = vmatpush1.msra.mxu0 0.0
  %1601 = vmatprep.subr.mxu0 0.0
  %1602 = vmatpush1.msra.mxu0 0.0
  %1603 = vmatprep.subr.mxu0 0.0
  %1604 = vmatpush1.msra.mxu0 0.0
  %1605 = vmatprep.subr.mxu0 0.0
  %1606 = vmatpush1.msra.mxu0 0.0
  %1607 = vmatprep.subr.mxu0 0.0
  %1608 = vmatpush1.msra.mxu0 0.0
  %1609 = vmatprep.subr.mxu0 0.0
  %1610 = vmatpush1.msra.mxu0 0.0
  %1611 = vmatprep.subr.mxu0 0.0
  %1612 = vmatpush1.msra.mxu0 0.0
  %1613 = vmatprep.subr.mxu0 0.0
  %1614 = vmatpush1.msra.mxu0 0.0
  %1615 = vmatprep.subr.mxu0 0.0
  %1616 = vmatpush1.msra.mxu0 0.0
  %1617 = vmatprep.subr.mxu0 0.0
  %1618 = vmatpush1.msra.mxu0 %v1588
  %1619 = vmatprep.subr.mxu0 0.0
  %1620 = vmatpush1.msra.mxu0 %v1587
  %1621 = vmatprep.subr.mxu0 0.0
  %1622 = vmatpush2.msra.mxu0 0.0
  %1623 = vmatprep.subr.mxu0 0.0
  %1624 = vmatpush2.msra.mxu0 0.0
  %1625 = vmatprep.subr.mxu0 0.0
  %1626 = vmatpush2.msra.mxu0 0.0
  %1627 = vmatprep.subr.mxu0 0.0
  %1628 = vmatpush2.msra.mxu0 0.0
  %1629 = vmatprep.subr.mxu0 0.0
  %1630 = vmatpush2.msra.mxu0 0.0
  %1631 = vmatprep.subr.mxu0 0.0
  %1632 = vmatpush2.msra.mxu0 0.0
  %1633 = vmatprep.subr.mxu0 0.0
  %1634 = vmatpush2.msra.mxu0 0.0
  %1635 = vmatprep.subr.mxu0 0.0
  %1636 = vmatpush2.msra.mxu0 0.0
  %1637 = vmatprep.subr.mxu0 0.0
  %1638 = vmatpush2.msra.mxu0 0.0
  %1639 = vmatprep.subr.mxu0 0.0
  %1640 = vmatpush2.msra.mxu0 0.0
  %1641 = vmatprep.subr.mxu0 0.0
  %1642 = vmatpush2.msra.mxu0 0.0
  %1643 = vmatprep.subr.mxu0 0.0
  %1644 = vmatpush2.msra.mxu0 0.0
  %1645 = vmatprep.subr.mxu0 0.0
  %1646 = vmatpush2.msra.mxu0 0.0
  %1647 = vmatprep.subr.mxu0 0.0
  %1648 = vmatpush2.msra.mxu0 0.0
  %1649 = vmatprep.subr.mxu0 0.0
  %1650 = vmatpush2.msra.mxu0 0.0
  %1651 = vmatprep.subr.mxu0 0.0
  %1652 = vmatpush2.msra.mxu0 0.0
  %1653 = vmatprep.mubr.f32.mxu0 0.0
  %1654 = vmatmul.mubr.f32.gmra.mxu0 %v1394
  %v1655 = vpop.f32.mrf.mxu0
  %v1656 = vadd.f32 0.0, %v1655
  %v1657 = vpop.f32.mrf.mxu0
  %1658 = vmatprep.mubr.f32.mxu0 0.0
  %1659 = vmatmul.mubr.f32.gmra.mxu0 %v1397
  %v1660 = vpop.f32.mrf.mxu0
  %v1661 = vadd.f32 0.0, %v1660
  %v1662 = vpop.f32.mrf.mxu0
  %1663 = vmatprep.mubr.f32.mxu0 0.0
  %1664 = vmatmul.mubr.f32.gmra.mxu0 %v1400
  %v1665 = vpop.f32.mrf.mxu0
  %v1666 = vadd.f32 0.0, %v1665
  %v1667 = vpop.f32.mrf.mxu0
  %1668 = vmatprep.mubr.f32.mxu0 0.0
  %1669 = vmatmul.mubr.f32.gmra.mxu0 %v1403
  %v1670 = vpop.f32.mrf.mxu0
  %v1671 = vadd.f32 0.0, %v1670
  %v1672 = vpop.f32.mrf.mxu0
  %1673 = vmatprep.mubr.f32.mxu0 0.0
  %1674 = vmatmul.mubr.f32.gmra.mxu0 %v1406
  %v1675 = vpop.f32.mrf.mxu0
  %v1676 = vadd.f32 0.0, %v1675
  %v1677 = vpop.f32.mrf.mxu0
  %1678 = vmatprep.mubr.f32.mxu0 0.0
  %1679 = vmatmul.mubr.f32.gmra.mxu0 %v1409
  %v1680 = vpop.f32.mrf.mxu0
  %v1681 = vadd.f32 0.0, %v1680
  %v1682 = vpop.f32.mrf.mxu0
  %1683 = vmatprep.mubr.f32.mxu0 0.0
  %1684 = vmatmul.mubr.f32.gmra.mxu0 %v1412
  %v1685 = vpop.f32.mrf.mxu0
  %v1686 = vadd.f32 0.0, %v1685
  %v1687 = vpop.f32.mrf.mxu0
  %1688 = vmatprep.mubr.f32.mxu0 0.0
  %1689 = vmatmul.mubr.f32.gmra.mxu0 %v1415
  %v1690 = vpop.f32.mrf.mxu0
  %v1691 = vadd.f32 0.0, %v1690
  %v1692 = vpop.f32.mrf.mxu0
  %1693 = vmatprep.mubr.f32.mxu0 0.0
  %1694 = vmatmul.mubr.f32.gmra.mxu0 %v1418
  %v1695 = vpop.f32.mrf.mxu0
  %v1696 = vadd.f32 0.0, %v1695
  %v1697 = vpop.f32.mrf.mxu0
  %1698 = vmatprep.mubr.f32.mxu0 0.0
  %1699 = vmatmul.mubr.f32.gmra.mxu0 %v1421
  %v1700 = vpop.f32.mrf.mxu0
  %v1701 = vadd.f32 0.0, %v1700
  %v1702 = vpop.f32.mrf.mxu0
  %1703 = vmatprep.mubr.f32.mxu0 0.0
  %1704 = vmatmul.mubr.f32.gmra.mxu0 %v1424
  %v1705 = vpop.f32.mrf.mxu0
  %v1706 = vadd.f32 0.0, %v1705
  %v1707 = vpop.f32.mrf.mxu0
  %1708 = vmatprep.mubr.f32.mxu0 0.0
  %1709 = vmatmul.mubr.f32.gmra.mxu0 %v1427
  %v1710 = vpop.f32.mrf.mxu0
  %v1711 = vadd.f32 0.0, %v1710
  %v1712 = vpop.f32.mrf.mxu0
  %1713 = vmatprep.mubr.f32.mxu0 0.0
  %1714 = vmatmul.mubr.f32.gmra.mxu0 %v1430
  %v1715 = vpop.f32.mrf.mxu0
  %v1716 = vadd.f32 0.0, %v1715
  %v1717 = vpop.f32.mrf.mxu0
  %1718 = vmatprep.mubr.f32.mxu0 0.0
  %1719 = vmatmul.mubr.f32.gmra.mxu0 %v1433
  %v1720 = vpop.f32.mrf.mxu0
  %v1721 = vadd.f32 0.0, %v1720
  %v1722 = vpop.f32.mrf.mxu0
  %1723 = vmatprep.mubr.f32.mxu0 0.0
  %1724 = vmatmul.mubr.f32.gmra.mxu0 %v1436
  %v1725 = vpop.f32.mrf.mxu0
  %v1726 = vadd.f32 0.0, %v1725
  %v1727 = vpop.f32.mrf.mxu0
  %1728 = vmatprep.mubr.f32.mxu0 0.0
  %1729 = vmatmul.mubr.f32.gmra.mxu0 %v1439
  %v1730 = vpop.f32.mrf.mxu0
  %v1731 = vadd.f32 0.0, %v1730
  %v1732 = vpop.f32.mrf.mxu0
  %1733 = vdwg.mxu0
  %s1734 = scalar_lea.vmem %s2, 32
  %v1735 = vld [vmem:[%s1734] sm:$0xff]
  %v1736 = vld [vmem:[%s1734 + $0x8] sm:$0xff]
  %1737 = vmatprep.subr.mxu0 0.0
  %1738 = vmatpush1.msra.mxu0 0.0
  %1739 = vmatprep.subr.mxu0 0.0
  %1740 = vmatpush1.msra.mxu0 0.0
  %1741 = vmatprep.subr.mxu0 0.0
  %1742 = vmatpush1.msra.mxu0 0.0
  %1743 = vmatprep.subr.mxu0 0.0
  %1744 = vmatpush1.msra.mxu0 0.0
  %1745 = vmatprep.subr.mxu0 0.0
  %1746 = vmatpush1.msra.mxu0 0.0
  %1747 = vmatprep.subr.mxu0 0.0
  %1748 = vmatpush1.msra.mxu0 0.0
  %1749 = vmatprep.subr.mxu0 0.0
  %1750 = vmatpush1.msra.mxu0 0.0
  %1751 = vmatprep.subr.mxu0 0.0
  %1752 = vmatpush1.msra.mxu0 0.0
  %1753 = vmatprep.subr.mxu0 0.0
  %1754 = vmatpush1.msra.mxu0 0.0
  %1755 = vmatprep.subr.mxu0 0.0
  %1756 = vmatpush1.msra.mxu0 0.0
  %1757 = vmatprep.subr.mxu0 0.0
  %1758 = vmatpush1.msra.mxu0 0.0
  %1759 = vmatprep.subr.mxu0 0.0
  %1760 = vmatpush1.msra.mxu0 0.0
  %1761 = vmatprep.subr.mxu0 0.0
  %1762 = vmatpush1.msra.mxu0 0.0
  %1763 = vmatprep.subr.mxu0 0.0
  %1764 = vmatpush1.msra.mxu0 0.0
  %1765 = vmatprep.subr.mxu0 0.0
  %1766 = vmatpush1.msra.mxu0 %v1736
  %1767 = vmatprep.subr.mxu0 0.0
  %1768 = vmatpush1.msra.mxu0 %v1735
  %1769 = vmatprep.subr.mxu0 0.0
  %1770 = vmatpush2.msra.mxu0 0.0
  %1771 = vmatprep.subr.mxu0 0.0
  %1772 = vmatpush2.msra.mxu0 0.0
  %1773 = vmatprep.subr.mxu0 0.0
  %1774 = vmatpush2.msra.mxu0 0.0
  %1775 = vmatprep.subr.mxu0 0.0
  %1776 = vmatpush2.msra.mxu0 0.0
  %1777 = vmatprep.subr.mxu0 0.0
  %1778 = vmatpush2.msra.mxu0 0.0
  %1779 = vmatprep.subr.mxu0 0.0
  %1780 = vmatpush2.msra.mxu0 0.0
  %1781 = vmatprep.subr.mxu0 0.0
  %1782 = vmatpush2.msra.mxu0 0.0
  %1783 = vmatprep.subr.mxu0 0.0
  %1784 = vmatpush2.msra.mxu0 0.0
  %1785 = vmatprep.subr.mxu0 0.0
  %1786 = vmatpush2.msra.mxu0 0.0
  %1787 = vmatprep.subr.mxu0 0.0
  %1788 = vmatpush2.msra.mxu0 0.0
  %1789 = vmatprep.subr.mxu0 0.0
  %1790 = vmatpush2.msra.mxu0 0.0
  %1791 = vmatprep.subr.mxu0 0.0
  %1792 = vmatpush2.msra.mxu0 0.0
  %1793 = vmatprep.subr.mxu0 0.0
  %1794 = vmatpush2.msra.mxu0 0.0
  %1795 = vmatprep.subr.mxu0 0.0
  %1796 = vmatpush2.msra.mxu0 0.0
  %1797 = vmatprep.subr.mxu0 0.0
  %1798 = vmatpush2.msra.mxu0 0.0
  %1799 = vmatprep.subr.mxu0 0.0
  %1800 = vmatpush2.msra.mxu0 0.0
  %1801 = vmatprep.mubr.f32.mxu0 0.0
  %1802 = vmatmul.mubr.f32.gmra.mxu0 %v1394
  %v1803 = vpop.f32.mrf.mxu0
  %v1804 = vadd.f32 0.0, %v1803
  %v1805 = vpop.f32.mrf.mxu0
  %1806 = vmatprep.mubr.f32.mxu0 0.0
  %1807 = vmatmul.mubr.f32.gmra.mxu0 %v1397
  %v1808 = vpop.f32.mrf.mxu0
  %v1809 = vadd.f32 0.0, %v1808
  %v1810 = vpop.f32.mrf.mxu0
  %1811 = vmatprep.mubr.f32.mxu0 0.0
  %1812 = vmatmul.mubr.f32.gmra.mxu0 %v1400
  %v1813 = vpop.f32.mrf.mxu0
  %v1814 = vadd.f32 0.0, %v1813
  %v1815 = vpop.f32.mrf.mxu0
  %1816 = vmatprep.mubr.f32.mxu0 0.0
  %1817 = vmatmul.mubr.f32.gmra.mxu0 %v1403
  %v1818 = vpop.f32.mrf.mxu0
  %v1819 = vadd.f32 0.0, %v1818
  %v1820 = vpop.f32.mrf.mxu0
  %1821 = vmatprep.mubr.f32.mxu0 0.0
  %1822 = vmatmul.mubr.f32.gmra.mxu0 %v1406
  %v1823 = vpop.f32.mrf.mxu0
  %v1824 = vadd.f32 0.0, %v1823
  %v1825 = vpop.f32.mrf.mxu0
  %1826 = vmatprep.mubr.f32.mxu0 0.0
  %1827 = vmatmul.mubr.f32.gmra.mxu0 %v1409
  %v1828 = vpop.f32.mrf.mxu0
  %v1829 = vadd.f32 0.0, %v1828
  %v1830 = vpop.f32.mrf.mxu0
  %1831 = vmatprep.mubr.f32.mxu0 0.0
  %1832 = vmatmul.mubr.f32.gmra.mxu0 %v1412
  %v1833 = vpop.f32.mrf.mxu0
  %v1834 = vadd.f32 0.0, %v1833
  %v1835 = vpop.f32.mrf.mxu0
  %1836 = vmatprep.mubr.f32.mxu0 0.0
  %1837 = vmatmul.mubr.f32.gmra.mxu0 %v1415
  %v1838 = vpop.f32.mrf.mxu0
  %v1839 = vadd.f32 0.0, %v1838
  %v1840 = vpop.f32.mrf.mxu0
  %1841 = vmatprep.mubr.f32.mxu0 0.0
  %1842 = vmatmul.mubr.f32.gmra.mxu0 %v1418
  %v1843 = vpop.f32.mrf.mxu0
  %v1844 = vadd.f32 0.0, %v1843
  %v1845 = vpop.f32.mrf.mxu0
  %1846 = vmatprep.mubr.f32.mxu0 0.0
  %1847 = vmatmul.mubr.f32.gmra.mxu0 %v1421
  %v1848 = vpop.f32.mrf.mxu0
  %v1849 = vadd.f32 0.0, %v1848
  %v1850 = vpop.f32.mrf.mxu0
  %1851 = vmatprep.mubr.f32.mxu0 0.0
  %1852 = vmatmul.mubr.f32.gmra.mxu0 %v1424
  %v1853 = vpop.f32.mrf.mxu0
  %v1854 = vadd.f32 0.0, %v1853
  %v1855 = vpop.f32.mrf.mxu0
  %1856 = vmatprep.mubr.f32.mxu0 0.0
  %1857 = vmatmul.mubr.f32.gmra.mxu0 %v1427
  %v1858 = vpop.f32.mrf.mxu0
  %v1859 = vadd.f32 0.0, %v1858
  %v1860 = vpop.f32.mrf.mxu0
  %1861 = vmatprep.mubr.f32.mxu0 0.0
  %1862 = vmatmul.mubr.f32.gmra.mxu0 %v1430
  %v1863 = vpop.f32.mrf.mxu0
  %v1864 = vadd.f32 0.0, %v1863
  %v1865 = vpop.f32.mrf.mxu0
  %1866 = vmatprep.mubr.f32.mxu0 0.0
  %1867 = vmatmul.mubr.f32.gmra.mxu0 %v1433
  %v1868 = vpop.f32.mrf.mxu0
  %v1869 = vadd.f32 0.0, %v1868
  %v1870 = vpop.f32.mrf.mxu0
  %1871 = vmatprep.mubr.f32.mxu0 0.0
  %1872 = vmatmul.mubr.f32.gmra.mxu0 %v1436
  %v1873 = vpop.f32.mrf.mxu0
  %v1874 = vadd.f32 0.0, %v1873
  %v1875 = vpop.f32.mrf.mxu0
  %1876 = vmatprep.mubr.f32.mxu0 0.0
  %1877 = vmatmul.mubr.f32.gmra.mxu0 %v1439
  %v1878 = vpop.f32.mrf.mxu0
  %v1879 = vadd.f32 0.0, %v1878
  %v1880 = vpop.f32.mrf.mxu0
  %1881 = vdwg.mxu0
  %s1882 = scalar_lea.vmem %s2, 48
  %v1883 = vld [vmem:[%s1882] sm:$0xff]
  %v1884 = vld [vmem:[%s1882 + $0x8] sm:$0xff]
  %1885 = vmatprep.subr.mxu0 0.0
  %1886 = vmatpush1.msra.mxu0 0.0
  %1887 = vmatprep.subr.mxu0 0.0
  %1888 = vmatpush1.msra.mxu0 0.0
  %1889 = vmatprep.subr.mxu0 0.0
  %1890 = vmatpush1.msra.mxu0 0.0
  %1891 = vmatprep.subr.mxu0 0.0
  %1892 = vmatpush1.msra.mxu0 0.0
  %1893 = vmatprep.subr.mxu0 0.0
  %1894 = vmatpush1.msra.mxu0 0.0
  %1895 = vmatprep.subr.mxu0 0.0
  %1896 = vmatpush1.msra.mxu0 0.0
  %1897 = vmatprep.subr.mxu0 0.0
  %1898 = vmatpush1.msra.mxu0 0.0
  %1899 = vmatprep.subr.mxu0 0.0
  %1900 = vmatpush1.msra.mxu0 0.0
  %1901 = vmatprep.subr.mxu0 0.0
  %1902 = vmatpush1.msra.mxu0 0.0
  %1903 = vmatprep.subr.mxu0 0.0
  %1904 = vmatpush1.msra.mxu0 0.0
  %1905 = vmatprep.subr.mxu0 0.0
  %1906 = vmatpush1.msra.mxu0 0.0
  %1907 = vmatprep.subr.mxu0 0.0
  %1908 = vmatpush1.msra.mxu0 0.0
  %1909 = vmatprep.subr.mxu0 0.0
  %1910 = vmatpush1.msra.mxu0 0.0
  %1911 = vmatprep.subr.mxu0 0.0
  %1912 = vmatpush1.msra.mxu0 0.0
  %1913 = vmatprep.subr.mxu0 0.0
  %1914 = vmatpush1.msra.mxu0 %v1884
  %1915 = vmatprep.subr.mxu0 0.0
  %1916 = vmatpush1.msra.mxu0 %v1883
  %1917 = vmatprep.subr.mxu0 0.0
  %1918 = vmatpush2.msra.mxu0 0.0
  %1919 = vmatprep.subr.mxu0 0.0
  %1920 = vmatpush2.msra.mxu0 0.0
  %1921 = vmatprep.subr.mxu0 0.0
  %1922 = vmatpush2.msra.mxu0 0.0
  %1923 = vmatprep.subr.mxu0 0.0
  %1924 = vmatpush2.msra.mxu0 0.0
  %1925 = vmatprep.subr.mxu0 0.0
  %1926 = vmatpush2.msra.mxu0 0.0
  %1927 = vmatprep.subr.mxu0 0.0
  %1928 = vmatpush2.msra.mxu0 0.0
  %1929 = vmatprep.subr.mxu0 0.0
  %1930 = vmatpush2.msra.mxu0 0.0
  %1931 = vmatprep.subr.mxu0 0.0
  %1932 = vmatpush2.msra.mxu0 0.0
  %1933 = vmatprep.subr.mxu0 0.0
  %1934 = vmatpush2.msra.mxu0 0.0
  %1935 = vmatprep.subr.mxu0 0.0
  %1936 = vmatpush2.msra.mxu0 0.0
  %1937 = vmatprep.subr.mxu0 0.0
  %1938 = vmatpush2.msra.mxu0 0.0
  %1939 = vmatprep.subr.mxu0 0.0
  %1940 = vmatpush2.msra.mxu0 0.0
  %1941 = vmatprep.subr.mxu0 0.0
  %1942 = vmatpush2.msra.mxu0 0.0
  %1943 = vmatprep.subr.mxu0 0.0
  %1944 = vmatpush2.msra.mxu0 0.0
  %1945 = vmatprep.subr.mxu0 0.0
  %1946 = vmatpush2.msra.mxu0 0.0
  %1947 = vmatprep.subr.mxu0 0.0
  %1948 = vmatpush2.msra.mxu0 0.0
  %1949 = vmatprep.mubr.f32.mxu0 0.0
  %1950 = vmatmul.mubr.f32.gmra.mxu0 %v1394
  %v1951 = vpop.f32.mrf.mxu0
  %v1952 = vadd.f32 0.0, %v1951
  %v1953 = vpop.f32.mrf.mxu0
  %1954 = vmatprep.mubr.f32.mxu0 0.0
  %1955 = vmatmul.mubr.f32.gmra.mxu0 %v1397
  %v1956 = vpop.f32.mrf.mxu0
  %v1957 = vadd.f32 0.0, %v1956
  %v1958 = vpop.f32.mrf.mxu0
  %1959 = vmatprep.mubr.f32.mxu0 0.0
  %1960 = vmatmul.mubr.f32.gmra.mxu0 %v1400
  %v1961 = vpop.f32.mrf.mxu0
  %v1962 = vadd.f32 0.0, %v1961
  %v1963 = vpop.f32.mrf.mxu0
  %1964 = vmatprep.mubr.f32.mxu0 0.0
  %1965 = vmatmul.mubr.f32.gmra.mxu0 %v1403
  %v1966 = vpop.f32.mrf.mxu0
  %v1967 = vadd.f32 0.0, %v1966
  %v1968 = vpop.f32.mrf.mxu0
  %1969 = vmatprep.mubr.f32.mxu0 0.0
  %1970 = vmatmul.mubr.f32.gmra.mxu0 %v1406
  %v1971 = vpop.f32.mrf.mxu0
  %v1972 = vadd.f32 0.0, %v1971
  %v1973 = vpop.f32.mrf.mxu0
  %1974 = vmatprep.mubr.f32.mxu0 0.0
  %1975 = vmatmul.mubr.f32.gmra.mxu0 %v1409
  %v1976 = vpop.f32.mrf.mxu0
  %v1977 = vadd.f32 0.0, %v1976
  %v1978 = vpop.f32.mrf.mxu0
  %1979 = vmatprep.mubr.f32.mxu0 0.0
  %1980 = vmatmul.mubr.f32.gmra.mxu0 %v1412
  %v1981 = vpop.f32.mrf.mxu0
  %v1982 = vadd.f32 0.0, %v1981
  %v1983 = vpop.f32.mrf.mxu0
  %1984 = vmatprep.mubr.f32.mxu0 0.0
  %1985 = vmatmul.mubr.f32.gmra.mxu0 %v1415
  %v1986 = vpop.f32.mrf.mxu0
  %v1987 = vadd.f32 0.0, %v1986
  %v1988 = vpop.f32.mrf.mxu0
  %1989 = vmatprep.mubr.f32.mxu0 0.0
  %1990 = vmatmul.mubr.f32.gmra.mxu0 %v1418
  %v1991 = vpop.f32.mrf.mxu0
  %v1992 = vadd.f32 0.0, %v1991
  %v1993 = vpop.f32.mrf.mxu0
  %1994 = vmatprep.mubr.f32.mxu0 0.0
  %1995 = vmatmul.mubr.f32.gmra.mxu0 %v1421
  %v1996 = vpop.f32.mrf.mxu0
  %v1997 = vadd.f32 0.0, %v1996
  %v1998 = vpop.f32.mrf.mxu0
  %1999 = vmatprep.mubr.f32.mxu0 0.0
  %2000 = vmatmul.mubr.f32.gmra.mxu0 %v1424
  %v2001 = vpop.f32.mrf.mxu0
  %v2002 = vadd.f32 0.0, %v2001
  %v2003 = vpop.f32.mrf.mxu0
  %2004 = vmatprep.mubr.f32.mxu0 0.0
  %2005 = vmatmul.mubr.f32.gmra.mxu0 %v1427
  %v2006 = vpop.f32.mrf.mxu0
  %v2007 = vadd.f32 0.0, %v2006
  %v2008 = vpop.f32.mrf.mxu0
  %2009 = vmatprep.mubr.f32.mxu0 0.0
  %2010 = vmatmul.mubr.f32.gmra.mxu0 %v1430
  %v2011 = vpop.f32.mrf.mxu0
  %v2012 = vadd.f32 0.0, %v2011
  %v2013 = vpop.f32.mrf.mxu0
  %2014 = vmatprep.mubr.f32.mxu0 0.0
  %2015 = vmatmul.mubr.f32.gmra.mxu0 %v1433
  %v2016 = vpop.f32.mrf.mxu0
  %v2017 = vadd.f32 0.0, %v2016
  %v2018 = vpop.f32.mrf.mxu0
  %2019 = vmatprep.mubr.f32.mxu0 0.0
  %2020 = vmatmul.mubr.f32.gmra.mxu0 %v1436
  %v2021 = vpop.f32.mrf.mxu0
  %v2022 = vadd.f32 0.0, %v2021
  %v2023 = vpop.f32.mrf.mxu0
  %2024 = vmatprep.mubr.f32.mxu0 0.0
  %2025 = vmatmul.mubr.f32.gmra.mxu0 %v1439
  %v2026 = vpop.f32.mrf.mxu0
  %v2027 = vadd.f32 0.0, %v2026
  %v2028 = vpop.f32.mrf.mxu0
  %2029 = vdwg.mxu0
  %s2030 = scalar_lea.vmem %s2, 64
  %v2031 = vld [vmem:[%s2030] sm:$0xff]
  %v2032 = vld [vmem:[%s2030 + $0x8] sm:$0xff]
  %2033 = vmatprep.subr.mxu0 0.0
  %2034 = vmatpush1.msra.mxu0 0.0
  %2035 = vmatprep.subr.mxu0 0.0
  %2036 = vmatpush1.msra.mxu0 0.0
  %2037 = vmatprep.subr.mxu0 0.0
  %2038 = vmatpush1.msra.mxu0 0.0
  %2039 = vmatprep.subr.mxu0 0.0
  %2040 = vmatpush1.msra.mxu0 0.0
  %2041 = vmatprep.subr.mxu0 0.0
  %2042 = vmatpush1.msra.mxu0 0.0
  %2043 = vmatprep.subr.mxu0 0.0
  %2044 = vmatpush1.msra.mxu0 0.0
  %2045 = vmatprep.subr.mxu0 0.0
  %2046 = vmatpush1.msra.mxu0 0.0
  %2047 = vmatprep.subr.mxu0 0.0
  %2048 = vmatpush1.msra.mxu0 0.0
  %2049 = vmatprep.subr.mxu0 0.0
  %2050 = vmatpush1.msra.mxu0 0.0
  %2051 = vmatprep.subr.mxu0 0.0
  %2052 = vmatpush1.msra.mxu0 0.0
  %2053 = vmatprep.subr.mxu0 0.0
  %2054 = vmatpush1.msra.mxu0 0.0
  %2055 = vmatprep.subr.mxu0 0.0
  %2056 = vmatpush1.msra.mxu0 0.0
  %2057 = vmatprep.subr.mxu0 0.0
  %2058 = vmatpush1.msra.mxu0 0.0
  %2059 = vmatprep.subr.mxu0 0.0
  %2060 = vmatpush1.msra.mxu0 0.0
  %2061 = vmatprep.subr.mxu0 0.0
  %2062 = vmatpush1.msra.mxu0 %v2032
  %2063 = vmatprep.subr.mxu0 0.0
  %2064 = vmatpush1.msra.mxu0 %v2031
  %2065 = vmatprep.subr.mxu0 0.0
  %2066 = vmatpush2.msra.mxu0 0.0
  %2067 = vmatprep.subr.mxu0 0.0
  %2068 = vmatpush2.msra.mxu0 0.0
  %2069 = vmatprep.subr.mxu0 0.0
  %2070 = vmatpush2.msra.mxu0 0.0
  %2071 = vmatprep.subr.mxu0 0.0
  %2072 = vmatpush2.msra.mxu0 0.0
  %2073 = vmatprep.subr.mxu0 0.0
  %2074 = vmatpush2.msra.mxu0 0.0
  %2075 = vmatprep.subr.mxu0 0.0
  %2076 = vmatpush2.msra.mxu0 0.0
  %2077 = vmatprep.subr.mxu0 0.0
  %2078 = vmatpush2.msra.mxu0 0.0
  %2079 = vmatprep.subr.mxu0 0.0
  %2080 = vmatpush2.msra.mxu0 0.0
  %2081 = vmatprep.subr.mxu0 0.0
  %2082 = vmatpush2.msra.mxu0 0.0
  %2083 = vmatprep.subr.mxu0 0.0
  %2084 = vmatpush2.msra.mxu0 0.0
  %2085 = vmatprep.subr.mxu0 0.0
  %2086 = vmatpush2.msra.mxu0 0.0
  %2087 = vmatprep.subr.mxu0 0.0
  %2088 = vmatpush2.msra.mxu0 0.0
  %2089 = vmatprep.subr.mxu0 0.0
  %2090 = vmatpush2.msra.mxu0 0.0
  %2091 = vmatprep.subr.mxu0 0.0
  %2092 = vmatpush2.msra.mxu0 0.0
  %2093 = vmatprep.subr.mxu0 0.0
  %2094 = vmatpush2.msra.mxu0 0.0
  %2095 = vmatprep.subr.mxu0 0.0
  %2096 = vmatpush2.msra.mxu0 0.0
  %2097 = vmatprep.mubr.f32.mxu0 0.0
  %2098 = vmatmul.mubr.f32.gmra.mxu0 %v1394
  %v2099 = vpop.f32.mrf.mxu0
  %v2100 = vadd.f32 0.0, %v2099
  %v2101 = vpop.f32.mrf.mxu0
  %2102 = vmatprep.mubr.f32.mxu0 0.0
  %2103 = vmatmul.mubr.f32.gmra.mxu0 %v1397
  %v2104 = vpop.f32.mrf.mxu0
  %v2105 = vadd.f32 0.0, %v2104
  %v2106 = vpop.f32.mrf.mxu0
  %2107 = vmatprep.mubr.f32.mxu0 0.0
  %2108 = vmatmul.mubr.f32.gmra.mxu0 %v1400
  %v2109 = vpop.f32.mrf.mxu0
  %v2110 = vadd.f32 0.0, %v2109
  %v2111 = vpop.f32.mrf.mxu0
  %2112 = vmatprep.mubr.f32.mxu0 0.0
  %2113 = vmatmul.mubr.f32.gmra.mxu0 %v1403
  %v2114 = vpop.f32.mrf.mxu0
  %v2115 = vadd.f32 0.0, %v2114
  %v2116 = vpop.f32.mrf.mxu0
  %2117 = vmatprep.mubr.f32.mxu0 0.0
  %2118 = vmatmul.mubr.f32.gmra.mxu0 %v1406
  %v2119 = vpop.f32.mrf.mxu0
  %v2120 = vadd.f32 0.0, %v2119
  %v2121 = vpop.f32.mrf.mxu0
  %2122 = vmatprep.mubr.f32.mxu0 0.0
  %2123 = vmatmul.mubr.f32.gmra.mxu0 %v1409
  %v2124 = vpop.f32.mrf.mxu0
  %v2125 = vadd.f32 0.0, %v2124
  %v2126 = vpop.f32.mrf.mxu0
  %2127 = vmatprep.mubr.f32.mxu0 0.0
  %2128 = vmatmul.mubr.f32.gmra.mxu0 %v1412
  %v2129 = vpop.f32.mrf.mxu0
  %v2130 = vadd.f32 0.0, %v2129
  %v2131 = vpop.f32.mrf.mxu0
  %2132 = vmatprep.mubr.f32.mxu0 0.0
  %2133 = vmatmul.mubr.f32.gmra.mxu0 %v1415
  %v2134 = vpop.f32.mrf.mxu0
  %v2135 = vadd.f32 0.0, %v2134
  %v2136 = vpop.f32.mrf.mxu0
  %2137 = vmatprep.mubr.f32.mxu0 0.0
  %2138 = vmatmul.mubr.f32.gmra.mxu0 %v1418
  %v2139 = vpop.f32.mrf.mxu0
  %v2140 = vadd.f32 0.0, %v2139
  %v2141 = vpop.f32.mrf.mxu0
  %2142 = vmatprep.mubr.f32.mxu0 0.0
  %2143 = vmatmul.mubr.f32.gmra.mxu0 %v1421
  %v2144 = vpop.f32.mrf.mxu0
  %v2145 = vadd.f32 0.0, %v2144
  %v2146 = vpop.f32.mrf.mxu0
  %2147 = vmatprep.mubr.f32.mxu0 0.0
  %2148 = vmatmul.mubr.f32.gmra.mxu0 %v1424
  %v2149 = vpop.f32.mrf.mxu0
  %v2150 = vadd.f32 0.0, %v2149
  %v2151 = vpop.f32.mrf.mxu0
  %2152 = vmatprep.mubr.f32.mxu0 0.0
  %2153 = vmatmul.mubr.f32.gmra.mxu0 %v1427
  %v2154 = vpop.f32.mrf.mxu0
  %v2155 = vadd.f32 0.0, %v2154
  %v2156 = vpop.f32.mrf.mxu0
  %2157 = vmatprep.mubr.f32.mxu0 0.0
  %2158 = vmatmul.mubr.f32.gmra.mxu0 %v1430
  %v2159 = vpop.f32.mrf.mxu0
  %v2160 = vadd.f32 0.0, %v2159
  %v2161 = vpop.f32.mrf.mxu0
  %2162 = vmatprep.mubr.f32.mxu0 0.0
  %2163 = vmatmul.mubr.f32.gmra.mxu0 %v1433
  %v2164 = vpop.f32.mrf.mxu0
  %v2165 = vadd.f32 0.0, %v2164
  %v2166 = vpop.f32.mrf.mxu0
  %2167 = vmatprep.mubr.f32.mxu0 0.0
  %2168 = vmatmul.mubr.f32.gmra.mxu0 %v1436
  %v2169 = vpop.f32.mrf.mxu0
  %v2170 = vadd.f32 0.0, %v2169
  %v2171 = vpop.f32.mrf.mxu0
  %2172 = vmatprep.mubr.f32.mxu0 0.0
  %2173 = vmatmul.mubr.f32.gmra.mxu0 %v1439
  %v2174 = vpop.f32.mrf.mxu0
  %v2175 = vadd.f32 0.0, %v2174
  %v2176 = vpop.f32.mrf.mxu0
  %2177 = vdwg.mxu0
  %s2178 = scalar_lea.vmem %s2, 80
  %v2179 = vld [vmem:[%s2178] sm:$0xff]
  %v2180 = vld [vmem:[%s2178 + $0x8] sm:$0xff]
  %2181 = vmatprep.subr.mxu0 0.0
  %2182 = vmatpush1.msra.mxu0 0.0
  %2183 = vmatprep.subr.mxu0 0.0
  %2184 = vmatpush1.msra.mxu0 0.0
  %2185 = vmatprep.subr.mxu0 0.0
  %2186 = vmatpush1.msra.mxu0 0.0
  %2187 = vmatprep.subr.mxu0 0.0
  %2188 = vmatpush1.msra.mxu0 0.0
  %2189 = vmatprep.subr.mxu0 0.0
  %2190 = vmatpush1.msra.mxu0 0.0
  %2191 = vmatprep.subr.mxu0 0.0
  %2192 = vmatpush1.msra.mxu0 0.0
  %2193 = vmatprep.subr.mxu0 0.0
  %2194 = vmatpush1.msra.mxu0 0.0
  %2195 = vmatprep.subr.mxu0 0.0
  %2196 = vmatpush1.msra.mxu0 0.0
  %2197 = vmatprep.subr.mxu0 0.0
  %2198 = vmatpush1.msra.mxu0 0.0
  %2199 = vmatprep.subr.mxu0 0.0
  %2200 = vmatpush1.msra.mxu0 0.0
  %2201 = vmatprep.subr.mxu0 0.0
  %2202 = vmatpush1.msra.mxu0 0.0
  %2203 = vmatprep.subr.mxu0 0.0
  %2204 = vmatpush1.msra.mxu0 0.0
  %2205 = vmatprep.subr.mxu0 0.0
  %2206 = vmatpush1.msra.mxu0 0.0
  %2207 = vmatprep.subr.mxu0 0.0
  %2208 = vmatpush1.msra.mxu0 0.0
  %2209 = vmatprep.subr.mxu0 0.0
  %2210 = vmatpush1.msra.mxu0 %v2180
  %2211 = vmatprep.subr.mxu0 0.0
  %2212 = vmatpush1.msra.mxu0 %v2179
  %2213 = vmatprep.subr.mxu0 0.0
  %2214 = vmatpush2.msra.mxu0 0.0
  %2215 = vmatprep.subr.mxu0 0.0
  %2216 = vmatpush2.msra.mxu0 0.0
  %2217 = vmatprep.subr.mxu0 0.0
  %2218 = vmatpush2.msra.mxu0 0.0
  %2219 = vmatprep.subr.mxu0 0.0
  %2220 = vmatpush2.msra.mxu0 0.0
  %2221 = vmatprep.subr.mxu0 0.0
  %2222 = vmatpush2.msra.mxu0 0.0
  %2223 = vmatprep.subr.mxu0 0.0
  %2224 = vmatpush2.msra.mxu0 0.0
  %2225 = vmatprep.subr.mxu0 0.0
  %2226 = vmatpush2.msra.mxu0 0.0
  %2227 = vmatprep.subr.mxu0 0.0
  %2228 = vmatpush2.msra.mxu0 0.0
  %2229 = vmatprep.subr.mxu0 0.0
  %2230 = vmatpush2.msra.mxu0 0.0
  %2231 = vmatprep.subr.mxu0 0.0
  %2232 = vmatpush2.msra.mxu0 0.0
  %2233 = vmatprep.subr.mxu0 0.0
  %2234 = vmatpush2.msra.mxu0 0.0
  %2235 = vmatprep.subr.mxu0 0.0
  %2236 = vmatpush2.msra.mxu0 0.0
  %2237 = vmatprep.subr.mxu0 0.0
  %2238 = vmatpush2.msra.mxu0 0.0
  %2239 = vmatprep.subr.mxu0 0.0
  %2240 = vmatpush2.msra.mxu0 0.0
  %2241 = vmatprep.subr.mxu0 0.0
  %2242 = vmatpush2.msra.mxu0 0.0
  %2243 = vmatprep.subr.mxu0 0.0
  %2244 = vmatpush2.msra.mxu0 0.0
  %2245 = vmatprep.mubr.f32.mxu0 0.0
  %2246 = vmatmul.mubr.f32.gmra.mxu0 %v1394
  %v2247 = vpop.f32.mrf.mxu0
  %v2248 = vadd.f32 0.0, %v2247
  %v2249 = vpop.f32.mrf.mxu0
  %2250 = vmatprep.mubr.f32.mxu0 0.0
  %2251 = vmatmul.mubr.f32.gmra.mxu0 %v1397
  %v2252 = vpop.f32.mrf.mxu0
  %v2253 = vadd.f32 0.0, %v2252
  %v2254 = vpop.f32.mrf.mxu0
  %2255 = vmatprep.mubr.f32.mxu0 0.0
  %2256 = vmatmul.mubr.f32.gmra.mxu0 %v1400
  %v2257 = vpop.f32.mrf.mxu0
  %v2258 = vadd.f32 0.0, %v2257
  %v2259 = vpop.f32.mrf.mxu0
  %2260 = vmatprep.mubr.f32.mxu0 0.0
  %2261 = vmatmul.mubr.f32.gmra.mxu0 %v1403
  %v2262 = vpop.f32.mrf.mxu0
  %v2263 = vadd.f32 0.0, %v2262
  %v2264 = vpop.f32.mrf.mxu0
  %2265 = vmatprep.mubr.f32.mxu0 0.0
  %2266 = vmatmul.mubr.f32.gmra.mxu0 %v1406
  %v2267 = vpop.f32.mrf.mxu0
  %v2268 = vadd.f32 0.0, %v2267
  %v2269 = vpop.f32.mrf.mxu0
  %2270 = vmatprep.mubr.f32.mxu0 0.0
  %2271 = vmatmul.mubr.f32.gmra.mxu0 %v1409
  %v2272 = vpop.f32.mrf.mxu0
  %v2273 = vadd.f32 0.0, %v2272
  %v2274 = vpop.f32.mrf.mxu0
  %2275 = vmatprep.mubr.f32.mxu0 0.0
  %2276 = vmatmul.mubr.f32.gmra.mxu0 %v1412
  %v2277 = vpop.f32.mrf.mxu0
  %v2278 = vadd.f32 0.0, %v2277
  %v2279 = vpop.f32.mrf.mxu0
  %2280 = vmatprep.mubr.f32.mxu0 0.0
  %2281 = vmatmul.mubr.f32.gmra.mxu0 %v1415
  %v2282 = vpop.f32.mrf.mxu0
  %v2283 = vadd.f32 0.0, %v2282
  %v2284 = vpop.f32.mrf.mxu0
  %2285 = vmatprep.mubr.f32.mxu0 0.0
  %2286 = vmatmul.mubr.f32.gmra.mxu0 %v1418
  %v2287 = vpop.f32.mrf.mxu0
  %v2288 = vadd.f32 0.0, %v2287
  %v2289 = vpop.f32.mrf.mxu0
  %2290 = vmatprep.mubr.f32.mxu0 0.0
  %2291 = vmatmul.mubr.f32.gmra.mxu0 %v1421
  %v2292 = vpop.f32.mrf.mxu0
  %v2293 = vadd.f32 0.0, %v2292
  %v2294 = vpop.f32.mrf.mxu0
  %2295 = vmatprep.mubr.f32.mxu0 0.0
  %2296 = vmatmul.mubr.f32.gmra.mxu0 %v1424
  %v2297 = vpop.f32.mrf.mxu0
  %v2298 = vadd.f32 0.0, %v2297
  %v2299 = vpop.f32.mrf.mxu0
  %2300 = vmatprep.mubr.f32.mxu0 0.0
  %2301 = vmatmul.mubr.f32.gmra.mxu0 %v1427
  %v2302 = vpop.f32.mrf.mxu0
  %v2303 = vadd.f32 0.0, %v2302
  %v2304 = vpop.f32.mrf.mxu0
  %2305 = vmatprep.mubr.f32.mxu0 0.0
  %2306 = vmatmul.mubr.f32.gmra.mxu0 %v1430
  %v2307 = vpop.f32.mrf.mxu0
  %v2308 = vadd.f32 0.0, %v2307
  %v2309 = vpop.f32.mrf.mxu0
  %2310 = vmatprep.mubr.f32.mxu0 0.0
  %2311 = vmatmul.mubr.f32.gmra.mxu0 %v1433
  %v2312 = vpop.f32.mrf.mxu0
  %v2313 = vadd.f32 0.0, %v2312
  %v2314 = vpop.f32.mrf.mxu0
  %2315 = vmatprep.mubr.f32.mxu0 0.0
  %2316 = vmatmul.mubr.f32.gmra.mxu0 %v1436
  %v2317 = vpop.f32.mrf.mxu0
  %v2318 = vadd.f32 0.0, %v2317
  %v2319 = vpop.f32.mrf.mxu0
  %2320 = vmatprep.mubr.f32.mxu0 0.0
  %2321 = vmatmul.mubr.f32.gmra.mxu0 %v1439
  %v2322 = vpop.f32.mrf.mxu0
  %v2323 = vadd.f32 0.0, %v2322
  %v2324 = vpop.f32.mrf.mxu0
  %2325 = vdwg.mxu0
  %s2326 = scalar_lea.vmem %s2, 96
  %v2327 = vld [vmem:[%s2326] sm:$0xff]
  %v2328 = vld [vmem:[%s2326 + $0x8] sm:$0xff]
  %2329 = vmatprep.subr.mxu0 0.0
  %2330 = vmatpush1.msra.mxu0 0.0
  %2331 = vmatprep.subr.mxu0 0.0
  %2332 = vmatpush1.msra.mxu0 0.0
  %2333 = vmatprep.subr.mxu0 0.0
  %2334 = vmatpush1.msra.mxu0 0.0
  %2335 = vmatprep.subr.mxu0 0.0
  %2336 = vmatpush1.msra.mxu0 0.0
  %2337 = vmatprep.subr.mxu0 0.0
  %2338 = vmatpush1.msra.mxu0 0.0
  %2339 = vmatprep.subr.mxu0 0.0
  %2340 = vmatpush1.msra.mxu0 0.0
  %2341 = vmatprep.subr.mxu0 0.0
  %2342 = vmatpush1.msra.mxu0 0.0
  %2343 = vmatprep.subr.mxu0 0.0
  %2344 = vmatpush1.msra.mxu0 0.0
  %2345 = vmatprep.subr.mxu0 0.0
  %2346 = vmatpush1.msra.mxu0 0.0
  %2347 = vmatprep.subr.mxu0 0.0
  %2348 = vmatpush1.msra.mxu0 0.0
  %2349 = vmatprep.subr.mxu0 0.0
  %2350 = vmatpush1.msra.mxu0 0.0
  %2351 = vmatprep.subr.mxu0 0.0
  %2352 = vmatpush1.msra.mxu0 0.0
  %2353 = vmatprep.subr.mxu0 0.0
  %2354 = vmatpush1.msra.mxu0 0.0
  %2355 = vmatprep.subr.mxu0 0.0
  %2356 = vmatpush1.msra.mxu0 0.0
  %2357 = vmatprep.subr.mxu0 0.0
  %2358 = vmatpush1.msra.mxu0 %v2328
  %2359 = vmatprep.subr.mxu0 0.0
  %2360 = vmatpush1.msra.mxu0 %v2327
  %2361 = vmatprep.subr.mxu0 0.0
  %2362 = vmatpush2.msra.mxu0 0.0
  %2363 = vmatprep.subr.mxu0 0.0
  %2364 = vmatpush2.msra.mxu0 0.0
  %2365 = vmatprep.subr.mxu0 0.0
  %2366 = vmatpush2.msra.mxu0 0.0
  %2367 = vmatprep.subr.mxu0 0.0
  %2368 = vmatpush2.msra.mxu0 0.0
  %2369 = vmatprep.subr.mxu0 0.0
  %2370 = vmatpush2.msra.mxu0 0.0
  %2371 = vmatprep.subr.mxu0 0.0
  %2372 = vmatpush2.msra.mxu0 0.0
  %2373 = vmatprep.subr.mxu0 0.0
  %2374 = vmatpush2.msra.mxu0 0.0
  %2375 = vmatprep.subr.mxu0 0.0
  %2376 = vmatpush2.msra.mxu0 0.0
  %2377 = vmatprep.subr.mxu0 0.0
  %2378 = vmatpush2.msra.mxu0 0.0
  %2379 = vmatprep.subr.mxu0 0.0
  %2380 = vmatpush2.msra.mxu0 0.0
  %2381 = vmatprep.subr.mxu0 0.0
  %2382 = vmatpush2.msra.mxu0 0.0
  %2383 = vmatprep.subr.mxu0 0.0
  %2384 = vmatpush2.msra.mxu0 0.0
  %2385 = vmatprep.subr.mxu0 0.0
  %2386 = vmatpush2.msra.mxu0 0.0
  %2387 = vmatprep.subr.mxu0 0.0
  %2388 = vmatpush2.msra.mxu0 0.0
  %2389 = vmatprep.subr.mxu0 0.0
  %2390 = vmatpush2.msra.mxu0 0.0
  %2391 = vmatprep.subr.mxu0 0.0
  %2392 = vmatpush2.msra.mxu0 0.0
  %2393 = vmatprep.mubr.f32.mxu0 0.0
  %2394 = vmatmul.mubr.f32.gmra.mxu0 %v1394
  %v2395 = vpop.f32.mrf.mxu0
  %v2396 = vadd.f32 0.0, %v2395
  %v2397 = vpop.f32.mrf.mxu0
  %2398 = vmatprep.mubr.f32.mxu0 0.0
  %2399 = vmatmul.mubr.f32.gmra.mxu0 %v1397
  %v2400 = vpop.f32.mrf.mxu0
  %v2401 = vadd.f32 0.0, %v2400
  %v2402 = vpop.f32.mrf.mxu0
  %2403 = vmatprep.mubr.f32.mxu0 0.0
  %2404 = vmatmul.mubr.f32.gmra.mxu0 %v1400
  %v2405 = vpop.f32.mrf.mxu0
  %v2406 = vadd.f32 0.0, %v2405
  %v2407 = vpop.f32.mrf.mxu0
  %2408 = vmatprep.mubr.f32.mxu0 0.0
  %2409 = vmatmul.mubr.f32.gmra.mxu0 %v1403
  %v2410 = vpop.f32.mrf.mxu0
  %v2411 = vadd.f32 0.0, %v2410
  %v2412 = vpop.f32.mrf.mxu0
  %2413 = vmatprep.mubr.f32.mxu0 0.0
  %2414 = vmatmul.mubr.f32.gmra.mxu0 %v1406
  %v2415 = vpop.f32.mrf.mxu0
  %v2416 = vadd.f32 0.0, %v2415
  %v2417 = vpop.f32.mrf.mxu0
  %2418 = vmatprep.mubr.f32.mxu0 0.0
  %2419 = vmatmul.mubr.f32.gmra.mxu0 %v1409
  %v2420 = vpop.f32.mrf.mxu0
  %v2421 = vadd.f32 0.0, %v2420
  %v2422 = vpop.f32.mrf.mxu0
  %2423 = vmatprep.mubr.f32.mxu0 0.0
  %2424 = vmatmul.mubr.f32.gmra.mxu0 %v1412
  %v2425 = vpop.f32.mrf.mxu0
  %v2426 = vadd.f32 0.0, %v2425
  %v2427 = vpop.f32.mrf.mxu0
  %2428 = vmatprep.mubr.f32.mxu0 0.0
  %2429 = vmatmul.mubr.f32.gmra.mxu0 %v1415
  %v2430 = vpop.f32.mrf.mxu0
  %v2431 = vadd.f32 0.0, %v2430
  %v2432 = vpop.f32.mrf.mxu0
  %2433 = vmatprep.mubr.f32.mxu0 0.0
  %2434 = vmatmul.mubr.f32.gmra.mxu0 %v1418
  %v2435 = vpop.f32.mrf.mxu0
  %v2436 = vadd.f32 0.0, %v2435
  %v2437 = vpop.f32.mrf.mxu0
  %2438 = vmatprep.mubr.f32.mxu0 0.0
  %2439 = vmatmul.mubr.f32.gmra.mxu0 %v1421
  %v2440 = vpop.f32.mrf.mxu0
  %v2441 = vadd.f32 0.0, %v2440
  %v2442 = vpop.f32.mrf.mxu0
  %2443 = vmatprep.mubr.f32.mxu0 0.0
  %2444 = vmatmul.mubr.f32.gmra.mxu0 %v1424
  %v2445 = vpop.f32.mrf.mxu0
  %v2446 = vadd.f32 0.0, %v2445
  %v2447 = vpop.f32.mrf.mxu0
  %2448 = vmatprep.mubr.f32.mxu0 0.0
  %2449 = vmatmul.mubr.f32.gmra.mxu0 %v1427
  %v2450 = vpop.f32.mrf.mxu0
  %v2451 = vadd.f32 0.0, %v2450
  %v2452 = vpop.f32.mrf.mxu0
  %2453 = vmatprep.mubr.f32.mxu0 0.0
  %2454 = vmatmul.mubr.f32.gmra.mxu0 %v1430
  %v2455 = vpop.f32.mrf.mxu0
  %v2456 = vadd.f32 0.0, %v2455
  %v2457 = vpop.f32.mrf.mxu0
  %2458 = vmatprep.mubr.f32.mxu0 0.0
  %2459 = vmatmul.mubr.f32.gmra.mxu0 %v1433
  %v2460 = vpop.f32.mrf.mxu0
  %v2461 = vadd.f32 0.0, %v2460
  %v2462 = vpop.f32.mrf.mxu0
  %2463 = vmatprep.mubr.f32.mxu0 0.0
  %2464 = vmatmul.mubr.f32.gmra.mxu0 %v1436
  %v2465 = vpop.f32.mrf.mxu0
  %v2466 = vadd.f32 0.0, %v2465
  %v2467 = vpop.f32.mrf.mxu0
  %2468 = vmatprep.mubr.f32.mxu0 0.0
  %2469 = vmatmul.mubr.f32.gmra.mxu0 %v1439
  %v2470 = vpop.f32.mrf.mxu0
  %v2471 = vadd.f32 0.0, %v2470
  %v2472 = vpop.f32.mrf.mxu0
  %2473 = vdwg.mxu0
  %s2474 = scalar_lea.vmem %s2, 112
  %v2475 = vld [vmem:[%s2474] sm:$0xff]
  %v2476 = vld [vmem:[%s2474 + $0x8] sm:$0xff]
  %2477 = vmatprep.subr.mxu0 0.0
  %2478 = vmatpush1.msra.mxu0 0.0
  %2479 = vmatprep.subr.mxu0 0.0
  %2480 = vmatpush1.msra.mxu0 0.0
  %2481 = vmatprep.subr.mxu0 0.0
  %2482 = vmatpush1.msra.mxu0 0.0
  %2483 = vmatprep.subr.mxu0 0.0
  %2484 = vmatpush1.msra.mxu0 0.0
  %2485 = vmatprep.subr.mxu0 0.0
  %2486 = vmatpush1.msra.mxu0 0.0
  %2487 = vmatprep.subr.mxu0 0.0
  %2488 = vmatpush1.msra.mxu0 0.0
  %2489 = vmatprep.subr.mxu0 0.0
  %2490 = vmatpush1.msra.mxu0 0.0
  %2491 = vmatprep.subr.mxu0 0.0
  %2492 = vmatpush1.msra.mxu0 0.0
  %2493 = vmatprep.subr.mxu0 0.0
  %2494 = vmatpush1.msra.mxu0 0.0
  %2495 = vmatprep.subr.mxu0 0.0
  %2496 = vmatpush1.msra.mxu0 0.0
  %2497 = vmatprep.subr.mxu0 0.0
  %2498 = vmatpush1.msra.mxu0 0.0
  %2499 = vmatprep.subr.mxu0 0.0
  %2500 = vmatpush1.msra.mxu0 0.0
  %2501 = vmatprep.subr.mxu0 0.0
  %2502 = vmatpush1.msra.mxu0 0.0
  %2503 = vmatprep.subr.mxu0 0.0
  %2504 = vmatpush1.msra.mxu0 0.0
  %2505 = vmatprep.subr.mxu0 0.0
  %2506 = vmatpush1.msra.mxu0 %v2476
  %2507 = vmatprep.subr.mxu0 0.0
  %2508 = vmatpush1.msra.mxu0 %v2475
  %2509 = vmatprep.subr.mxu0 0.0
  %2510 = vmatpush2.msra.mxu0 0.0
  %2511 = vmatprep.subr.mxu0 0.0
  %2512 = vmatpush2.msra.mxu0 0.0
  %2513 = vmatprep.subr.mxu0 0.0
  %2514 = vmatpush2.msra.mxu0 0.0
  %2515 = vmatprep.subr.mxu0 0.0
  %2516 = vmatpush2.msra.mxu0 0.0
  %2517 = vmatprep.subr.mxu0 0.0
  %2518 = vmatpush2.msra.mxu0 0.0
  %2519 = vmatprep.subr.mxu0 0.0
  %2520 = vmatpush2.msra.mxu0 0.0
  %2521 = vmatprep.subr.mxu0 0.0
  %2522 = vmatpush2.msra.mxu0 0.0
  %2523 = vmatprep.subr.mxu0 0.0
  %2524 = vmatpush2.msra.mxu0 0.0
  %2525 = vmatprep.subr.mxu0 0.0
  %2526 = vmatpush2.msra.mxu0 0.0
  %2527 = vmatprep.subr.mxu0 0.0
  %2528 = vmatpush2.msra.mxu0 0.0
  %2529 = vmatprep.subr.mxu0 0.0
  %2530 = vmatpush2.msra.mxu0 0.0
  %2531 = vmatprep.subr.mxu0 0.0
  %2532 = vmatpush2.msra.mxu0 0.0
  %2533 = vmatprep.subr.mxu0 0.0
  %2534 = vmatpush2.msra.mxu0 0.0
  %2535 = vmatprep.subr.mxu0 0.0
  %2536 = vmatpush2.msra.mxu0 0.0
  %2537 = vmatprep.subr.mxu0 0.0
  %2538 = vmatpush2.msra.mxu0 0.0
  %2539 = vmatprep.subr.mxu0 0.0
  %2540 = vmatpush2.msra.mxu0 0.0
  %2541 = vmatprep.mubr.f32.mxu0 0.0
  %2542 = vmatmul.mubr.f32.gmra.mxu0 %v1394
  %v2543 = vpop.f32.mrf.mxu0
  %v2544 = vadd.f32 0.0, %v2543
  %v2545 = vpop.f32.mrf.mxu0
  %2546 = vmatprep.mubr.f32.mxu0 0.0
  %2547 = vmatmul.mubr.f32.gmra.mxu0 %v1397
  %v2548 = vpop.f32.mrf.mxu0
  %v2549 = vadd.f32 0.0, %v2548
  %v2550 = vpop.f32.mrf.mxu0
  %2551 = vmatprep.mubr.f32.mxu0 0.0
  %2552 = vmatmul.mubr.f32.gmra.mxu0 %v1400
  %v2553 = vpop.f32.mrf.mxu0
  %v2554 = vadd.f32 0.0, %v2553
  %v2555 = vpop.f32.mrf.mxu0
  %2556 = vmatprep.mubr.f32.mxu0 0.0
  %2557 = vmatmul.mubr.f32.gmra.mxu0 %v1403
  %v2558 = vpop.f32.mrf.mxu0
  %v2559 = vadd.f32 0.0, %v2558
  %v2560 = vpop.f32.mrf.mxu0
  %2561 = vmatprep.mubr.f32.mxu0 0.0
  %2562 = vmatmul.mubr.f32.gmra.mxu0 %v1406
  %v2563 = vpop.f32.mrf.mxu0
  %v2564 = vadd.f32 0.0, %v2563
  %v2565 = vpop.f32.mrf.mxu0
  %2566 = vmatprep.mubr.f32.mxu0 0.0
  %2567 = vmatmul.mubr.f32.gmra.mxu0 %v1409
  %v2568 = vpop.f32.mrf.mxu0
  %v2569 = vadd.f32 0.0, %v2568
  %v2570 = vpop.f32.mrf.mxu0
  %2571 = vmatprep.mubr.f32.mxu0 0.0
  %2572 = vmatmul.mubr.f32.gmra.mxu0 %v1412
  %v2573 = vpop.f32.mrf.mxu0
  %v2574 = vadd.f32 0.0, %v2573
  %v2575 = vpop.f32.mrf.mxu0
  %2576 = vmatprep.mubr.f32.mxu0 0.0
  %2577 = vmatmul.mubr.f32.gmra.mxu0 %v1415
  %v2578 = vpop.f32.mrf.mxu0
  %v2579 = vadd.f32 0.0, %v2578
  %v2580 = vpop.f32.mrf.mxu0
  %2581 = vmatprep.mubr.f32.mxu0 0.0
  %2582 = vmatmul.mubr.f32.gmra.mxu0 %v1418
  %v2583 = vpop.f32.mrf.mxu0
  %v2584 = vadd.f32 0.0, %v2583
  %v2585 = vpop.f32.mrf.mxu0
  %2586 = vmatprep.mubr.f32.mxu0 0.0
  %2587 = vmatmul.mubr.f32.gmra.mxu0 %v1421
  %v2588 = vpop.f32.mrf.mxu0
  %v2589 = vadd.f32 0.0, %v2588
  %v2590 = vpop.f32.mrf.mxu0
  %2591 = vmatprep.mubr.f32.mxu0 0.0
  %2592 = vmatmul.mubr.f32.gmra.mxu0 %v1424
  %v2593 = vpop.f32.mrf.mxu0
  %v2594 = vadd.f32 0.0, %v2593
  %v2595 = vpop.f32.mrf.mxu0
  %2596 = vmatprep.mubr.f32.mxu0 0.0
  %2597 = vmatmul.mubr.f32.gmra.mxu0 %v1427
  %v2598 = vpop.f32.mrf.mxu0
  %v2599 = vadd.f32 0.0, %v2598
  %v2600 = vpop.f32.mrf.mxu0
  %2601 = vmatprep.mubr.f32.mxu0 0.0
  %2602 = vmatmul.mubr.f32.gmra.mxu0 %v1430
  %v2603 = vpop.f32.mrf.mxu0
  %v2604 = vadd.f32 0.0, %v2603
  %v2605 = vpop.f32.mrf.mxu0
  %2606 = vmatprep.mubr.f32.mxu0 0.0
  %2607 = vmatmul.mubr.f32.gmra.mxu0 %v1433
  %v2608 = vpop.f32.mrf.mxu0
  %v2609 = vadd.f32 0.0, %v2608
  %v2610 = vpop.f32.mrf.mxu0
  %2611 = vmatprep.mubr.f32.mxu0 0.0
  %2612 = vmatmul.mubr.f32.gmra.mxu0 %v1436
  %v2613 = vpop.f32.mrf.mxu0
  %v2614 = vadd.f32 0.0, %v2613
  %v2615 = vpop.f32.mrf.mxu0
  %2616 = vmatprep.mubr.f32.mxu0 0.0
  %2617 = vmatmul.mubr.f32.gmra.mxu0 %v1439
  %v2618 = vpop.f32.mrf.mxu0
  %v2619 = vadd.f32 0.0, %v2618
  %v2620 = vpop.f32.mrf.mxu0
  %2621 = vdwg.mxu0
  %s2622 = scalar_lea.vmem %s2, 128
  %v2623 = vld [vmem:[%s2622] sm:$0xff]
  %v2624 = vld [vmem:[%s2622 + $0x8] sm:$0xff]
  %2625 = vmatprep.subr.mxu0 0.0
  %2626 = vmatpush1.msra.mxu0 0.0
  %2627 = vmatprep.subr.mxu0 0.0
  %2628 = vmatpush1.msra.mxu0 0.0
  %2629 = vmatprep.subr.mxu0 0.0
  %2630 = vmatpush1.msra.mxu0 0.0
  %2631 = vmatprep.subr.mxu0 0.0
  %2632 = vmatpush1.msra.mxu0 0.0
  %2633 = vmatprep.subr.mxu0 0.0
  %2634 = vmatpush1.msra.mxu0 0.0
  %2635 = vmatprep.subr.mxu0 0.0
  %2636 = vmatpush1.msra.mxu0 0.0
  %2637 = vmatprep.subr.mxu0 0.0
  %2638 = vmatpush1.msra.mxu0 0.0
  %2639 = vmatprep.subr.mxu0 0.0
  %2640 = vmatpush1.msra.mxu0 0.0
  %2641 = vmatprep.subr.mxu0 0.0
  %2642 = vmatpush1.msra.mxu0 0.0
  %2643 = vmatprep.subr.mxu0 0.0
  %2644 = vmatpush1.msra.mxu0 0.0
  %2645 = vmatprep.subr.mxu0 0.0
  %2646 = vmatpush1.msra.mxu0 0.0
  %2647 = vmatprep.subr.mxu0 0.0
  %2648 = vmatpush1.msra.mxu0 0.0
  %2649 = vmatprep.subr.mxu0 0.0
  %2650 = vmatpush1.msra.mxu0 0.0
  %2651 = vmatprep.subr.mxu0 0.0
  %2652 = vmatpush1.msra.mxu0 0.0
  %2653 = vmatprep.subr.mxu0 0.0
  %2654 = vmatpush1.msra.mxu0 %v2624
  %2655 = vmatprep.subr.mxu0 0.0
  %2656 = vmatpush1.msra.mxu0 %v2623
  %2657 = vmatprep.subr.mxu0 0.0
  %2658 = vmatpush2.msra.mxu0 0.0
  %2659 = vmatprep.subr.mxu0 0.0
  %2660 = vmatpush2.msra.mxu0 0.0
  %2661 = vmatprep.subr.mxu0 0.0
  %2662 = vmatpush2.msra.mxu0 0.0
  %2663 = vmatprep.subr.mxu0 0.0
  %2664 = vmatpush2.msra.mxu0 0.0
  %2665 = vmatprep.subr.mxu0 0.0
  %2666 = vmatpush2.msra.mxu0 0.0
  %2667 = vmatprep.subr.mxu0 0.0
  %2668 = vmatpush2.msra.mxu0 0.0
  %2669 = vmatprep.subr.mxu0 0.0
  %2670 = vmatpush2.msra.mxu0 0.0
  %2671 = vmatprep.subr.mxu0 0.0
  %2672 = vmatpush2.msra.mxu0 0.0
  %2673 = vmatprep.subr.mxu0 0.0
  %2674 = vmatpush2.msra.mxu0 0.0
  %2675 = vmatprep.subr.mxu0 0.0
  %2676 = vmatpush2.msra.mxu0 0.0
  %2677 = vmatprep.subr.mxu0 0.0
  %2678 = vmatpush2.msra.mxu0 0.0
  %2679 = vmatprep.subr.mxu0 0.0
  %2680 = vmatpush2.msra.mxu0 0.0
  %2681 = vmatprep.subr.mxu0 0.0
  %2682 = vmatpush2.msra.mxu0 0.0
  %2683 = vmatprep.subr.mxu0 0.0
  %2684 = vmatpush2.msra.mxu0 0.0
  %2685 = vmatprep.subr.mxu0 0.0
  %2686 = vmatpush2.msra.mxu0 0.0
  %2687 = vmatprep.subr.mxu0 0.0
  %2688 = vmatpush2.msra.mxu0 0.0
  %2689 = vmatprep.mubr.f32.mxu0 0.0
  %2690 = vmatmul.mubr.f32.gmra.mxu0 %v1394
  %v2691 = vpop.f32.mrf.mxu0
  %v2692 = vadd.f32 0.0, %v2691
  %v2693 = vpop.f32.mrf.mxu0
  %2694 = vmatprep.mubr.f32.mxu0 0.0
  %2695 = vmatmul.mubr.f32.gmra.mxu0 %v1397
  %v2696 = vpop.f32.mrf.mxu0
  %v2697 = vadd.f32 0.0, %v2696
  %v2698 = vpop.f32.mrf.mxu0
  %2699 = vmatprep.mubr.f32.mxu0 0.0
  %2700 = vmatmul.mubr.f32.gmra.mxu0 %v1400
  %v2701 = vpop.f32.mrf.mxu0
  %v2702 = vadd.f32 0.0, %v2701
  %v2703 = vpop.f32.mrf.mxu0
  %2704 = vmatprep.mubr.f32.mxu0 0.0
  %2705 = vmatmul.mubr.f32.gmra.mxu0 %v1403
  %v2706 = vpop.f32.mrf.mxu0
  %v2707 = vadd.f32 0.0, %v2706
  %v2708 = vpop.f32.mrf.mxu0
  %2709 = vmatprep.mubr.f32.mxu0 0.0
  %2710 = vmatmul.mubr.f32.gmra.mxu0 %v1406
  %v2711 = vpop.f32.mrf.mxu0
  %v2712 = vadd.f32 0.0, %v2711
  %v2713 = vpop.f32.mrf.mxu0
  %2714 = vmatprep.mubr.f32.mxu0 0.0
  %2715 = vmatmul.mubr.f32.gmra.mxu0 %v1409
  %v2716 = vpop.f32.mrf.mxu0
  %v2717 = vadd.f32 0.0, %v2716
  %v2718 = vpop.f32.mrf.mxu0
  %2719 = vmatprep.mubr.f32.mxu0 0.0
  %2720 = vmatmul.mubr.f32.gmra.mxu0 %v1412
  %v2721 = vpop.f32.mrf.mxu0
  %v2722 = vadd.f32 0.0, %v2721
  %v2723 = vpop.f32.mrf.mxu0
  %2724 = vmatprep.mubr.f32.mxu0 0.0
  %2725 = vmatmul.mubr.f32.gmra.mxu0 %v1415
  %v2726 = vpop.f32.mrf.mxu0
  %v2727 = vadd.f32 0.0, %v2726
  %v2728 = vpop.f32.mrf.mxu0
  %2729 = vmatprep.mubr.f32.mxu0 0.0
  %2730 = vmatmul.mubr.f32.gmra.mxu0 %v1418
  %v2731 = vpop.f32.mrf.mxu0
  %v2732 = vadd.f32 0.0, %v2731
  %v2733 = vpop.f32.mrf.mxu0
  %2734 = vmatprep.mubr.f32.mxu0 0.0
  %2735 = vmatmul.mubr.f32.gmra.mxu0 %v1421
  %v2736 = vpop.f32.mrf.mxu0
  %v2737 = vadd.f32 0.0, %v2736
  %v2738 = vpop.f32.mrf.mxu0
  %2739 = vmatprep.mubr.f32.mxu0 0.0
  %2740 = vmatmul.mubr.f32.gmra.mxu0 %v1424
  %v2741 = vpop.f32.mrf.mxu0
  %v2742 = vadd.f32 0.0, %v2741
  %v2743 = vpop.f32.mrf.mxu0
  %2744 = vmatprep.mubr.f32.mxu0 0.0
  %2745 = vmatmul.mubr.f32.gmra.mxu0 %v1427
  %v2746 = vpop.f32.mrf.mxu0
  %v2747 = vadd.f32 0.0, %v2746
  %v2748 = vpop.f32.mrf.mxu0
  %2749 = vmatprep.mubr.f32.mxu0 0.0
  %2750 = vmatmul.mubr.f32.gmra.mxu0 %v1430
  %v2751 = vpop.f32.mrf.mxu0
  %v2752 = vadd.f32 0.0, %v2751
  %v2753 = vpop.f32.mrf.mxu0
  %2754 = vmatprep.mubr.f32.mxu0 0.0
  %2755 = vmatmul.mubr.f32.gmra.mxu0 %v1433
  %v2756 = vpop.f32.mrf.mxu0
  %v2757 = vadd.f32 0.0, %v2756
  %v2758 = vpop.f32.mrf.mxu0
  %2759 = vmatprep.mubr.f32.mxu0 0.0
  %2760 = vmatmul.mubr.f32.gmra.mxu0 %v1436
  %v2761 = vpop.f32.mrf.mxu0
  %v2762 = vadd.f32 0.0, %v2761
  %v2763 = vpop.f32.mrf.mxu0
  %2764 = vmatprep.mubr.f32.mxu0 0.0
  %2765 = vmatmul.mubr.f32.gmra.mxu0 %v1439
  %v2766 = vpop.f32.mrf.mxu0
  %v2767 = vadd.f32 0.0, %v2766
  %v2768 = vpop.f32.mrf.mxu0
  %2769 = vdwg.mxu0
  %v2770 = vld [vmem:[%s4] sm:$0xff]
  %v2771 = vld [vmem:[%s4 + $0x8] sm:$0xff]
  %v2772 = vld [vmem:[%s4 + $0x10] sm:$0xff]
  %v2773 = vld [vmem:[%s4 + $0x18] sm:$0xff]
  %v2774 = vld [vmem:[%s4 + $0x20] sm:$0xff]
  %v2775 = vld [vmem:[%s4 + $0x28] sm:$0xff]
  %v2776 = vld [vmem:[%s4 + $0x30] sm:$0xff]
  %v2777 = vld [vmem:[%s4 + $0x38] sm:$0xff]
  %v2778 = vld [vmem:[%s4 + $0x40] sm:$0xff]
  %v2779 = vld [vmem:[%s4 + $0x48] sm:$0xff]
  %v2780 = vld [vmem:[%s4 + $0x50] sm:$0xff]
  %v2781 = vld [vmem:[%s4 + $0x58] sm:$0xff]
  %v2782 = vld [vmem:[%s4 + $0x60] sm:$0xff]
  %v2783 = vld [vmem:[%s4 + $0x68] sm:$0xff]
  %v2784 = vld [vmem:[%s4 + $0x70] sm:$0xff]
  %v2785 = vld [vmem:[%s4 + $0x78] sm:$0xff]
  %v2786 = vld [vmem:[%s4 + $0x80] sm:$0xff]
  %v2787 = vld [vmem:[%s4 + $0x88] sm:$0xff]
  %v2788 = vld [vmem:[%s4 + $0x90] sm:$0xff]
  %v2789 = vld [vmem:[%s4 + $0x98] sm:$0xff]
  %v2790 = vld [vmem:[%s4 + $0xa0] sm:$0xff]
  %v2791 = vld [vmem:[%s4 + $0xa8] sm:$0xff]
  %v2792 = vld [vmem:[%s4 + $0xb0] sm:$0xff]
  %v2793 = vld [vmem:[%s4 + $0xb8] sm:$0xff]
  %v2794 = vld [vmem:[%s4 + $0xc0] sm:$0xff]
  %v2795 = vld [vmem:[%s4 + $0xc8] sm:$0xff]
  %v2796 = vld [vmem:[%s4 + $0xd0] sm:$0xff]
  %v2797 = vld [vmem:[%s4 + $0xd8] sm:$0xff]
  %v2798 = vld [vmem:[%s4 + $0xe0] sm:$0xff]
  %v2799 = vld [vmem:[%s4 + $0xe8] sm:$0xff]
  %v2800 = vld [vmem:[%s4 + $0xf0] sm:$0xff]
  %v2801 = vld [vmem:[%s4 + $0xf8] sm:$0xff]
  %v2802 = vld [vmem:[%s4 + $0x100] sm:$0xff]
  %v2803 = vld [vmem:[%s4 + $0x108] sm:$0xff]
  %v2804 = vld [vmem:[%s4 + $0x110] sm:$0xff]
  %v2805 = vld [vmem:[%s4 + $0x118] sm:$0xff]
  %v2806 = vld [vmem:[%s4 + $0x120] sm:$0xff]
  %v2807 = vld [vmem:[%s4 + $0x128] sm:$0xff]
  %v2808 = vld [vmem:[%s4 + $0x130] sm:$0xff]
  %v2809 = vld [vmem:[%s4 + $0x138] sm:$0xff]
  %v2810 = vld [vmem:[%s4 + $0x140] sm:$0xff]
  %v2811 = vld [vmem:[%s4 + $0x148] sm:$0xff]
  %v2812 = vld [vmem:[%s4 + $0x150] sm:$0xff]
  %v2813 = vld [vmem:[%s4 + $0x158] sm:$0xff]
  %v2814 = vld [vmem:[%s4 + $0x160] sm:$0xff]
  %v2815 = vld [vmem:[%s4 + $0x168] sm:$0xff]
  %v2816 = vld [vmem:[%s4 + $0x170] sm:$0xff]
  %v2817 = vld [vmem:[%s4 + $0x178] sm:$0xff]
  %v2818 = vld [vmem:[%s4 + $0x180] sm:$0xff]
  %v2819 = vld [vmem:[%s4 + $0x188] sm:$0xff]
  %v2820 = vld [vmem:[%s4 + $0x190] sm:$0xff]
  %v2821 = vld [vmem:[%s4 + $0x198] sm:$0xff]
  %v2822 = vld [vmem:[%s4 + $0x1a0] sm:$0xff]
  %v2823 = vld [vmem:[%s4 + $0x1a8] sm:$0xff]
  %v2824 = vld [vmem:[%s4 + $0x1b0] sm:$0xff]
  %v2825 = vld [vmem:[%s4 + $0x1b8] sm:$0xff]
  %v2826 = vld [vmem:[%s4 + $0x1c0] sm:$0xff]
  %v2827 = vld [vmem:[%s4 + $0x1c8] sm:$0xff]
  %v2828 = vld [vmem:[%s4 + $0x1d0] sm:$0xff]
  %v2829 = vld [vmem:[%s4 + $0x1d8] sm:$0xff]
  %v2830 = vld [vmem:[%s4 + $0x1e0] sm:$0xff]
  %v2831 = vld [vmem:[%s4 + $0x1e8] sm:$0xff]
  %v2832 = vld [vmem:[%s4 + $0x1f0] sm:$0xff]
  %v2833 = vld [vmem:[%s4 + $0x1f8] sm:$0xff]
  %v2834 = vld [vmem:[%s4 + $0x200] sm:$0xff]
  %v2835 = vld [vmem:[%s4 + $0x208] sm:$0xff]
  %v2836 = vld [vmem:[%s4 + $0x210] sm:$0xff]
  %v2837 = vld [vmem:[%s4 + $0x218] sm:$0xff]
  %v2838 = vld [vmem:[%s4 + $0x220] sm:$0xff]
  %v2839 = vld [vmem:[%s4 + $0x228] sm:$0xff]
  %v2840 = vld [vmem:[%s4 + $0x230] sm:$0xff]
  %v2841 = vld [vmem:[%s4 + $0x238] sm:$0xff]
  %v2842 = vld [vmem:[%s4 + $0x240] sm:$0xff]
  %v2843 = vld [vmem:[%s4 + $0x248] sm:$0xff]
  %v2844 = vld [vmem:[%s4 + $0x250] sm:$0xff]
  %v2845 = vld [vmem:[%s4 + $0x258] sm:$0xff]
  %v2846 = vld [vmem:[%s4 + $0x260] sm:$0xff]
  %v2847 = vld [vmem:[%s4 + $0x268] sm:$0xff]
  %v2848 = vld [vmem:[%s4 + $0x270] sm:$0xff]
  %v2849 = vld [vmem:[%s4 + $0x278] sm:$0xff]
  %v2850 = vld [vmem:[%s4 + $0x280] sm:$0xff]
  %v2851 = vld [vmem:[%s4 + $0x288] sm:$0xff]
  %v2852 = vld [vmem:[%s4 + $0x290] sm:$0xff]
  %v2853 = vld [vmem:[%s4 + $0x298] sm:$0xff]
  %v2854 = vld [vmem:[%s4 + $0x2a0] sm:$0xff]
  %v2855 = vld [vmem:[%s4 + $0x2a8] sm:$0xff]
  %v2856 = vld [vmem:[%s4 + $0x2b0] sm:$0xff]
  %v2857 = vld [vmem:[%s4 + $0x2b8] sm:$0xff]
  %v2858 = vld [vmem:[%s4 + $0x2c0] sm:$0xff]
  %v2859 = vld [vmem:[%s4 + $0x2c8] sm:$0xff]
  %v2860 = vld [vmem:[%s4 + $0x2d0] sm:$0xff]
  %v2861 = vld [vmem:[%s4 + $0x2d8] sm:$0xff]
  %v2862 = vld [vmem:[%s4 + $0x2e0] sm:$0xff]
  %v2863 = vld [vmem:[%s4 + $0x2e8] sm:$0xff]
  %v2864 = vld [vmem:[%s4 + $0x2f0] sm:$0xff]
  %v2865 = vld [vmem:[%s4 + $0x2f8] sm:$0xff]
  %v2866 = vld [vmem:[%s4 + $0x300] sm:$0xff]
  %v2867 = vld [vmem:[%s4 + $0x308] sm:$0xff]
  %v2868 = vld [vmem:[%s4 + $0x310] sm:$0xff]
  %v2869 = vld [vmem:[%s4 + $0x318] sm:$0xff]
  %v2870 = vld [vmem:[%s4 + $0x320] sm:$0xff]
  %v2871 = vld [vmem:[%s4 + $0x328] sm:$0xff]
  %v2872 = vld [vmem:[%s4 + $0x330] sm:$0xff]
  %v2873 = vld [vmem:[%s4 + $0x338] sm:$0xff]
  %v2874 = vld [vmem:[%s4 + $0x340] sm:$0xff]
  %v2875 = vld [vmem:[%s4 + $0x348] sm:$0xff]
  %v2876 = vld [vmem:[%s4 + $0x350] sm:$0xff]
  %v2877 = vld [vmem:[%s4 + $0x358] sm:$0xff]
  %v2878 = vld [vmem:[%s4 + $0x360] sm:$0xff]
  %v2879 = vld [vmem:[%s4 + $0x368] sm:$0xff]
  %v2880 = vld [vmem:[%s4 + $0x370] sm:$0xff]
  %v2881 = vld [vmem:[%s4 + $0x378] sm:$0xff]
  %v2882 = vld [vmem:[%s4 + $0x380] sm:$0xff]
  %v2883 = vld [vmem:[%s4 + $0x388] sm:$0xff]
  %v2884 = vld [vmem:[%s4 + $0x390] sm:$0xff]
  %v2885 = vld [vmem:[%s4 + $0x398] sm:$0xff]
  %v2886 = vld [vmem:[%s4 + $0x3a0] sm:$0xff]
  %v2887 = vld [vmem:[%s4 + $0x3a8] sm:$0xff]
  %v2888 = vld [vmem:[%s4 + $0x3b0] sm:$0xff]
  %v2889 = vld [vmem:[%s4 + $0x3b8] sm:$0xff]
  %v2890 = vld [vmem:[%s4 + $0x3c0] sm:$0xff]
  %v2891 = vld [vmem:[%s4 + $0x3c8] sm:$0xff]
  %v2892 = vld [vmem:[%s4 + $0x3d0] sm:$0xff]
  %v2893 = vld [vmem:[%s4 + $0x3d8] sm:$0xff]
  %v2894 = vld [vmem:[%s4 + $0x3e0] sm:$0xff]
  %v2895 = vld [vmem:[%s4 + $0x3e8] sm:$0xff]
  %v2896 = vld [vmem:[%s4 + $0x3f0] sm:$0xff]
  %v2897 = vld [vmem:[%s4 + $0x3f8] sm:$0xff]
  %v2898 = vld [vmem:[%s4 + $0x400] sm:$0xff]
  %v2899 = vld [vmem:[%s4 + $0x408] sm:$0xff]
  %v2900 = vld [vmem:[%s4 + $0x410] sm:$0xff]
  %v2901 = vld [vmem:[%s4 + $0x418] sm:$0xff]
  %v2902 = vld [vmem:[%s4 + $0x420] sm:$0xff]
  %v2903 = vld [vmem:[%s4 + $0x428] sm:$0xff]
  %v2904 = vld [vmem:[%s4 + $0x430] sm:$0xff]
  %v2905 = vld [vmem:[%s4 + $0x438] sm:$0xff]
  %v2906 = vld [vmem:[%s4 + $0x440] sm:$0xff]
  %v2907 = vld [vmem:[%s4 + $0x448] sm:$0xff]
  %v2908 = vld [vmem:[%s4 + $0x450] sm:$0xff]
  %v2909 = vld [vmem:[%s4 + $0x458] sm:$0xff]
  %v2910 = vld [vmem:[%s4 + $0x460] sm:$0xff]
  %v2911 = vld [vmem:[%s4 + $0x468] sm:$0xff]
  %v2912 = vld [vmem:[%s4 + $0x470] sm:$0xff]
  %v2913 = vld [vmem:[%s4 + $0x478] sm:$0xff]
  %2914 = vmatprep.subr.mxu0 0.0
  %2915 = vmatpush1.msra.mxu0 %v1583
  %2916 = vmatprep.subr.mxu0 0.0
  %2917 = vmatpush1.msra.mxu0 %v1578
  %2918 = vmatprep.subr.mxu0 0.0
  %2919 = vmatpush1.msra.mxu0 %v1573
  %2920 = vmatprep.subr.mxu0 0.0
  %2921 = vmatpush1.msra.mxu0 %v1568
  %2922 = vmatprep.subr.mxu0 0.0
  %2923 = vmatpush1.msra.mxu0 %v1563
  %2924 = vmatprep.subr.mxu0 0.0
  %2925 = vmatpush1.msra.mxu0 %v1558
  %2926 = vmatprep.subr.mxu0 0.0
  %2927 = vmatpush1.msra.mxu0 %v1553
  %2928 = vmatprep.subr.mxu0 0.0
  %2929 = vmatpush1.msra.mxu0 %v1548
  %2930 = vmatprep.subr.mxu0 0.0
  %2931 = vmatpush1.msra.mxu0 %v1543
  %2932 = vmatprep.subr.mxu0 0.0
  %2933 = vmatpush1.msra.mxu0 %v1538
  %2934 = vmatprep.subr.mxu0 0.0
  %2935 = vmatpush1.msra.mxu0 %v1533
  %2936 = vmatprep.subr.mxu0 0.0
  %2937 = vmatpush1.msra.mxu0 %v1528
  %2938 = vmatprep.subr.mxu0 0.0
  %2939 = vmatpush1.msra.mxu0 %v1523
  %2940 = vmatprep.subr.mxu0 0.0
  %2941 = vmatpush1.msra.mxu0 %v1518
  %2942 = vmatprep.subr.mxu0 0.0
  %2943 = vmatpush1.msra.mxu0 %v1513
  %2944 = vmatprep.subr.mxu0 0.0
  %2945 = vmatpush1.msra.mxu0 %v1508
  %2946 = vmatprep.subr.mxu0 0.0
  %2947 = vmatpush2.msra.mxu0 %v1731
  %2948 = vmatprep.subr.mxu0 0.0
  %2949 = vmatpush2.msra.mxu0 %v1726
  %2950 = vmatprep.subr.mxu0 0.0
  %2951 = vmatpush2.msra.mxu0 %v1721
  %2952 = vmatprep.subr.mxu0 0.0
  %2953 = vmatpush2.msra.mxu0 %v1716
  %2954 = vmatprep.subr.mxu0 0.0
  %2955 = vmatpush2.msra.mxu0 %v1711
  %2956 = vmatprep.subr.mxu0 0.0
  %2957 = vmatpush2.msra.mxu0 %v1706
  %2958 = vmatprep.subr.mxu0 0.0
  %2959 = vmatpush2.msra.mxu0 %v1701
  %2960 = vmatprep.subr.mxu0 0.0
  %2961 = vmatpush2.msra.mxu0 %v1696
  %2962 = vmatprep.subr.mxu0 0.0
  %2963 = vmatpush2.msra.mxu0 %v1691
  %2964 = vmatprep.subr.mxu0 0.0
  %2965 = vmatpush2.msra.mxu0 %v1686
  %2966 = vmatprep.subr.mxu0 0.0
  %2967 = vmatpush2.msra.mxu0 %v1681
  %2968 = vmatprep.subr.mxu0 0.0
  %2969 = vmatpush2.msra.mxu0 %v1676
  %2970 = vmatprep.subr.mxu0 0.0
  %2971 = vmatpush2.msra.mxu0 %v1671
  %2972 = vmatprep.subr.mxu0 0.0
  %2973 = vmatpush2.msra.mxu0 %v1666
  %2974 = vmatprep.subr.mxu0 0.0
  %2975 = vmatpush2.msra.mxu0 %v1661
  %2976 = vmatprep.subr.mxu0 0.0
  %2977 = vmatpush2.msra.mxu0 %v1656
  %2978 = vmatprep.mubr.f32.mxu0 %v2771
  %2979 = vmatmul.mubr.f32.gmra.mxu0 %v2770
  %v2980 = vpop.f32.mrf.mxu0
  %v2981 = vadd.f32 0.0, %v2980
  %v2982 = vpop.f32.mrf.mxu0
  %2983 = vmatprep.mubr.f32.mxu0 %v2780
  %2984 = vmatmul.mubr.f32.gmra.mxu0 %v2779
  %v2985 = vpop.f32.mrf.mxu0
  %v2986 = vadd.f32 0.0, %v2985
  %v2987 = vpop.f32.mrf.mxu0
  %2988 = vmatprep.mubr.f32.mxu0 %v2789
  %2989 = vmatmul.mubr.f32.gmra.mxu0 %v2788
  %v2990 = vpop.f32.mrf.mxu0
  %v2991 = vadd.f32 0.0, %v2990
  %v2992 = vpop.f32.mrf.mxu0
  %2993 = vmatprep.mubr.f32.mxu0 %v2798
  %2994 = vmatmul.mubr.f32.gmra.mxu0 %v2797
  %v2995 = vpop.f32.mrf.mxu0
  %v2996 = vadd.f32 0.0, %v2995
  %v2997 = vpop.f32.mrf.mxu0
  %2998 = vmatprep.mubr.f32.mxu0 %v2807
  %2999 = vmatmul.mubr.f32.gmra.mxu0 %v2806
  %v3000 = vpop.f32.mrf.mxu0
  %v3001 = vadd.f32 0.0, %v3000
  %v3002 = vpop.f32.mrf.mxu0
  %3003 = vmatprep.mubr.f32.mxu0 %v2816
  %3004 = vmatmul.mubr.f32.gmra.mxu0 %v2815
  %v3005 = vpop.f32.mrf.mxu0
  %v3006 = vadd.f32 0.0, %v3005
  %v3007 = vpop.f32.mrf.mxu0
  %3008 = vmatprep.mubr.f32.mxu0 %v2825
  %3009 = vmatmul.mubr.f32.gmra.mxu0 %v2824
  %v3010 = vpop.f32.mrf.mxu0
  %v3011 = vadd.f32 0.0, %v3010
  %v3012 = vpop.f32.mrf.mxu0
  %3013 = vmatprep.mubr.f32.mxu0 %v2834
  %3014 = vmatmul.mubr.f32.gmra.mxu0 %v2833
  %v3015 = vpop.f32.mrf.mxu0
  %v3016 = vadd.f32 0.0, %v3015
  %v3017 = vpop.f32.mrf.mxu0
  %3018 = vmatprep.mubr.f32.mxu0 %v2843
  %3019 = vmatmul.mubr.f32.gmra.mxu0 %v2842
  %v3020 = vpop.f32.mrf.mxu0
  %v3021 = vadd.f32 0.0, %v3020
  %v3022 = vpop.f32.mrf.mxu0
  %3023 = vmatprep.mubr.f32.mxu0 %v2852
  %3024 = vmatmul.mubr.f32.gmra.mxu0 %v2851
  %v3025 = vpop.f32.mrf.mxu0
  %v3026 = vadd.f32 0.0, %v3025
  %v3027 = vpop.f32.mrf.mxu0
  %3028 = vmatprep.mubr.f32.mxu0 %v2861
  %3029 = vmatmul.mubr.f32.gmra.mxu0 %v2860
  %v3030 = vpop.f32.mrf.mxu0
  %v3031 = vadd.f32 0.0, %v3030
  %v3032 = vpop.f32.mrf.mxu0
  %3033 = vmatprep.mubr.f32.mxu0 %v2870
  %3034 = vmatmul.mubr.f32.gmra.mxu0 %v2869
  %v3035 = vpop.f32.mrf.mxu0
  %v3036 = vadd.f32 0.0, %v3035
  %v3037 = vpop.f32.mrf.mxu0
  %3038 = vmatprep.mubr.f32.mxu0 %v2879
  %3039 = vmatmul.mubr.f32.gmra.mxu0 %v2878
  %v3040 = vpop.f32.mrf.mxu0
  %v3041 = vadd.f32 0.0, %v3040
  %v3042 = vpop.f32.mrf.mxu0
  %3043 = vmatprep.mubr.f32.mxu0 %v2888
  %3044 = vmatmul.mubr.f32.gmra.mxu0 %v2887
  %v3045 = vpop.f32.mrf.mxu0
  %v3046 = vadd.f32 0.0, %v3045
  %v3047 = vpop.f32.mrf.mxu0
  %3048 = vmatprep.mubr.f32.mxu0 %v2897
  %3049 = vmatmul.mubr.f32.gmra.mxu0 %v2896
  %v3050 = vpop.f32.mrf.mxu0
  %v3051 = vadd.f32 0.0, %v3050
  %v3052 = vpop.f32.mrf.mxu0
  %3053 = vmatprep.mubr.f32.mxu0 %v2906
  %3054 = vmatmul.mubr.f32.gmra.mxu0 %v2905
  %v3055 = vpop.f32.mrf.mxu0
  %v3056 = vadd.f32 0.0, %v3055
  %v3057 = vpop.f32.mrf.mxu0
  %3058 = vdwg.mxu0
  %3059 = vmatprep.subr.mxu0 0.0
  %3060 = vmatpush1.msra.mxu0 %v1879
  %3061 = vmatprep.subr.mxu0 0.0
  %3062 = vmatpush1.msra.mxu0 %v1874
  %3063 = vmatprep.subr.mxu0 0.0
  %3064 = vmatpush1.msra.mxu0 %v1869
  %3065 = vmatprep.subr.mxu0 0.0
  %3066 = vmatpush1.msra.mxu0 %v1864
  %3067 = vmatprep.subr.mxu0 0.0
  %3068 = vmatpush1.msra.mxu0 %v1859
  %3069 = vmatprep.subr.mxu0 0.0
  %3070 = vmatpush1.msra.mxu0 %v1854
  %3071 = vmatprep.subr.mxu0 0.0
  %3072 = vmatpush1.msra.mxu0 %v1849
  %3073 = vmatprep.subr.mxu0 0.0
  %3074 = vmatpush1.msra.mxu0 %v1844
  %3075 = vmatprep.subr.mxu0 0.0
  %3076 = vmatpush1.msra.mxu0 %v1839
  %3077 = vmatprep.subr.mxu0 0.0
  %3078 = vmatpush1.msra.mxu0 %v1834
  %3079 = vmatprep.subr.mxu0 0.0
  %3080 = vmatpush1.msra.mxu0 %v1829
  %3081 = vmatprep.subr.mxu0 0.0
  %3082 = vmatpush1.msra.mxu0 %v1824
  %3083 = vmatprep.subr.mxu0 0.0
  %3084 = vmatpush1.msra.mxu0 %v1819
  %3085 = vmatprep.subr.mxu0 0.0
  %3086 = vmatpush1.msra.mxu0 %v1814
  %3087 = vmatprep.subr.mxu0 0.0
  %3088 = vmatpush1.msra.mxu0 %v1809
  %3089 = vmatprep.subr.mxu0 0.0
  %3090 = vmatpush1.msra.mxu0 %v1804
  %3091 = vmatprep.subr.mxu0 0.0
  %3092 = vmatpush2.msra.mxu0 %v2027
  %3093 = vmatprep.subr.mxu0 0.0
  %3094 = vmatpush2.msra.mxu0 %v2022
  %3095 = vmatprep.subr.mxu0 0.0
  %3096 = vmatpush2.msra.mxu0 %v2017
  %3097 = vmatprep.subr.mxu0 0.0
  %3098 = vmatpush2.msra.mxu0 %v2012
  %3099 = vmatprep.subr.mxu0 0.0
  %3100 = vmatpush2.msra.mxu0 %v2007
  %3101 = vmatprep.subr.mxu0 0.0
  %3102 = vmatpush2.msra.mxu0 %v2002
  %3103 = vmatprep.subr.mxu0 0.0
  %3104 = vmatpush2.msra.mxu0 %v1997
  %3105 = vmatprep.subr.mxu0 0.0
  %3106 = vmatpush2.msra.mxu0 %v1992
  %3107 = vmatprep.subr.mxu0 0.0
  %3108 = vmatpush2.msra.mxu0 %v1987
  %3109 = vmatprep.subr.mxu0 0.0
  %3110 = vmatpush2.msra.mxu0 %v1982
  %3111 = vmatprep.subr.mxu0 0.0
  %3112 = vmatpush2.msra.mxu0 %v1977
  %3113 = vmatprep.subr.mxu0 0.0
  %3114 = vmatpush2.msra.mxu0 %v1972
  %3115 = vmatprep.subr.mxu0 0.0
  %3116 = vmatpush2.msra.mxu0 %v1967
  %3117 = vmatprep.subr.mxu0 0.0
  %3118 = vmatpush2.msra.mxu0 %v1962
  %3119 = vmatprep.subr.mxu0 0.0
  %3120 = vmatpush2.msra.mxu0 %v1957
  %3121 = vmatprep.subr.mxu0 0.0
  %3122 = vmatpush2.msra.mxu0 %v1952
  %3123 = vmatprep.mubr.f32.mxu0 %v2773
  %3124 = vmatmul.mubr.f32.gmra.mxu0 %v2772
  %v3125 = vpop.f32.mrf.mxu0
  %v3126 = vadd.f32 %v2981, %v3125
  %v3127 = vpop.f32.mrf.mxu0
  %3128 = vmatprep.mubr.f32.mxu0 %v2782
  %3129 = vmatmul.mubr.f32.gmra.mxu0 %v2781
  %v3130 = vpop.f32.mrf.mxu0
  %v3131 = vadd.f32 %v2986, %v3130
  %v3132 = vpop.f32.mrf.mxu0
  %3133 = vmatprep.mubr.f32.mxu0 %v2791
  %3134 = vmatmul.mubr.f32.gmra.mxu0 %v2790
  %v3135 = vpop.f32.mrf.mxu0
  %v3136 = vadd.f32 %v2991, %v3135
  %v3137 = vpop.f32.mrf.mxu0
  %3138 = vmatprep.mubr.f32.mxu0 %v2800
  %3139 = vmatmul.mubr.f32.gmra.mxu0 %v2799
  %v3140 = vpop.f32.mrf.mxu0
  %v3141 = vadd.f32 %v2996, %v3140
  %v3142 = vpop.f32.mrf.mxu0
  %3143 = vmatprep.mubr.f32.mxu0 %v2809
  %3144 = vmatmul.mubr.f32.gmra.mxu0 %v2808
  %v3145 = vpop.f32.mrf.mxu0
  %v3146 = vadd.f32 %v3001, %v3145
  %v3147 = vpop.f32.mrf.mxu0
  %3148 = vmatprep.mubr.f32.mxu0 %v2818
  %3149 = vmatmul.mubr.f32.gmra.mxu0 %v2817
  %v3150 = vpop.f32.mrf.mxu0
  %v3151 = vadd.f32 %v3006, %v3150
  %v3152 = vpop.f32.mrf.mxu0
  %3153 = vmatprep.mubr.f32.mxu0 %v2827
  %3154 = vmatmul.mubr.f32.gmra.mxu0 %v2826
  %v3155 = vpop.f32.mrf.mxu0
  %v3156 = vadd.f32 %v3011, %v3155
  %v3157 = vpop.f32.mrf.mxu0
  %3158 = vmatprep.mubr.f32.mxu0 %v2836
  %3159 = vmatmul.mubr.f32.gmra.mxu0 %v2835
  %v3160 = vpop.f32.mrf.mxu0
  %v3161 = vadd.f32 %v3016, %v3160
  %v3162 = vpop.f32.mrf.mxu0
  %3163 = vmatprep.mubr.f32.mxu0 %v2845
  %3164 = vmatmul.mubr.f32.gmra.mxu0 %v2844
  %v3165 = vpop.f32.mrf.mxu0
  %v3166 = vadd.f32 %v3021, %v3165
  %v3167 = vpop.f32.mrf.mxu0
  %3168 = vmatprep.mubr.f32.mxu0 %v2854
  %3169 = vmatmul.mubr.f32.gmra.mxu0 %v2853
  %v3170 = vpop.f32.mrf.mxu0
  %v3171 = vadd.f32 %v3026, %v3170
  %v3172 = vpop.f32.mrf.mxu0
  %3173 = vmatprep.mubr.f32.mxu0 %v2863
  %3174 = vmatmul.mubr.f32.gmra.mxu0 %v2862
  %v3175 = vpop.f32.mrf.mxu0
  %v3176 = vadd.f32 %v3031, %v3175
  %v3177 = vpop.f32.mrf.mxu0
  %3178 = vmatprep.mubr.f32.mxu0 %v2872
  %3179 = vmatmul.mubr.f32.gmra.mxu0 %v2871
  %v3180 = vpop.f32.mrf.mxu0
  %v3181 = vadd.f32 %v3036, %v3180
  %v3182 = vpop.f32.mrf.mxu0
  %3183 = vmatprep.mubr.f32.mxu0 %v2881
  %3184 = vmatmul.mubr.f32.gmra.mxu0 %v2880
  %v3185 = vpop.f32.mrf.mxu0
  %v3186 = vadd.f32 %v3041, %v3185
  %v3187 = vpop.f32.mrf.mxu0
  %3188 = vmatprep.mubr.f32.mxu0 %v2890
  %3189 = vmatmul.mubr.f32.gmra.mxu0 %v2889
  %v3190 = vpop.f32.mrf.mxu0
  %v3191 = vadd.f32 %v3046, %v3190
  %v3192 = vpop.f32.mrf.mxu0
  %3193 = vmatprep.mubr.f32.mxu0 %v2899
  %3194 = vmatmul.mubr.f32.gmra.mxu0 %v2898
  %v3195 = vpop.f32.mrf.mxu0
  %v3196 = vadd.f32 %v3051, %v3195
  %v3197 = vpop.f32.mrf.mxu0
  %3198 = vmatprep.mubr.f32.mxu0 %v2908
  %3199 = vmatmul.mubr.f32.gmra.mxu0 %v2907
  %v3200 = vpop.f32.mrf.mxu0
  %v3201 = vadd.f32 %v3056, %v3200
  %v3202 = vpop.f32.mrf.mxu0
  %3203 = vdwg.mxu0
  %3204 = vmatprep.subr.mxu0 0.0
  %3205 = vmatpush1.msra.mxu0 %v2175
  %3206 = vmatprep.subr.mxu0 0.0
  %3207 = vmatpush1.msra.mxu0 %v2170
  %3208 = vmatprep.subr.mxu0 0.0
  %3209 = vmatpush1.msra.mxu0 %v2165
  %3210 = vmatprep.subr.mxu0 0.0
  %3211 = vmatpush1.msra.mxu0 %v2160
  %3212 = vmatprep.subr.mxu0 0.0
  %3213 = vmatpush1.msra.mxu0 %v2155
  %3214 = vmatprep.subr.mxu0 0.0
  %3215 = vmatpush1.msra.mxu0 %v2150
  %3216 = vmatprep.subr.mxu0 0.0
  %3217 = vmatpush1.msra.mxu0 %v2145
  %3218 = vmatprep.subr.mxu0 0.0
  %3219 = vmatpush1.msra.mxu0 %v2140
  %3220 = vmatprep.subr.mxu0 0.0
  %3221 = vmatpush1.msra.mxu0 %v2135
  %3222 = vmatprep.subr.mxu0 0.0
  %3223 = vmatpush1.msra.mxu0 %v2130
  %3224 = vmatprep.subr.mxu0 0.0
  %3225 = vmatpush1.msra.mxu0 %v2125
  %3226 = vmatprep.subr.mxu0 0.0
  %3227 = vmatpush1.msra.mxu0 %v2120
  %3228 = vmatprep.subr.mxu0 0.0
  %3229 = vmatpush1.msra.mxu0 %v2115
  %3230 = vmatprep.subr.mxu0 0.0
  %3231 = vmatpush1.msra.mxu0 %v2110
  %3232 = vmatprep.subr.mxu0 0.0
  %3233 = vmatpush1.msra.mxu0 %v2105
  %3234 = vmatprep.subr.mxu0 0.0
  %3235 = vmatpush1.msra.mxu0 %v2100
  %3236 = vmatprep.subr.mxu0 0.0
  %3237 = vmatpush2.msra.mxu0 %v2323
  %3238 = vmatprep.subr.mxu0 0.0
  %3239 = vmatpush2.msra.mxu0 %v2318
  %3240 = vmatprep.subr.mxu0 0.0
  %3241 = vmatpush2.msra.mxu0 %v2313
  %3242 = vmatprep.subr.mxu0 0.0
  %3243 = vmatpush2.msra.mxu0 %v2308
  %3244 = vmatprep.subr.mxu0 0.0
  %3245 = vmatpush2.msra.mxu0 %v2303
  %3246 = vmatprep.subr.mxu0 0.0
  %3247 = vmatpush2.msra.mxu0 %v2298
  %3248 = vmatprep.subr.mxu0 0.0
  %3249 = vmatpush2.msra.mxu0 %v2293
  %3250 = vmatprep.subr.mxu0 0.0
  %3251 = vmatpush2.msra.mxu0 %v2288
  %3252 = vmatprep.subr.mxu0 0.0
  %3253 = vmatpush2.msra.mxu0 %v2283
  %3254 = vmatprep.subr.mxu0 0.0
  %3255 = vmatpush2.msra.mxu0 %v2278
  %3256 = vmatprep.subr.mxu0 0.0
  %3257 = vmatpush2.msra.mxu0 %v2273
  %3258 = vmatprep.subr.mxu0 0.0
  %3259 = vmatpush2.msra.mxu0 %v2268
  %3260 = vmatprep.subr.mxu0 0.0
  %3261 = vmatpush2.msra.mxu0 %v2263
  %3262 = vmatprep.subr.mxu0 0.0
  %3263 = vmatpush2.msra.mxu0 %v2258
  %3264 = vmatprep.subr.mxu0 0.0
  %3265 = vmatpush2.msra.mxu0 %v2253
  %3266 = vmatprep.subr.mxu0 0.0
  %3267 = vmatpush2.msra.mxu0 %v2248
  %3268 = vmatprep.mubr.f32.mxu0 %v2775
  %3269 = vmatmul.mubr.f32.gmra.mxu0 %v2774
  %v3270 = vpop.f32.mrf.mxu0
  %v3271 = vadd.f32 %v3126, %v3270
  %v3272 = vpop.f32.mrf.mxu0
  %3273 = vmatprep.mubr.f32.mxu0 %v2784
  %3274 = vmatmul.mubr.f32.gmra.mxu0 %v2783
  %v3275 = vpop.f32.mrf.mxu0
  %v3276 = vadd.f32 %v3131, %v3275
  %v3277 = vpop.f32.mrf.mxu0
  %3278 = vmatprep.mubr.f32.mxu0 %v2793
  %3279 = vmatmul.mubr.f32.gmra.mxu0 %v2792
  %v3280 = vpop.f32.mrf.mxu0
  %v3281 = vadd.f32 %v3136, %v3280
  %v3282 = vpop.f32.mrf.mxu0
  %3283 = vmatprep.mubr.f32.mxu0 %v2802
  %3284 = vmatmul.mubr.f32.gmra.mxu0 %v2801
  %v3285 = vpop.f32.mrf.mxu0
  %v3286 = vadd.f32 %v3141, %v3285
  %v3287 = vpop.f32.mrf.mxu0
  %3288 = vmatprep.mubr.f32.mxu0 %v2811
  %3289 = vmatmul.mubr.f32.gmra.mxu0 %v2810
  %v3290 = vpop.f32.mrf.mxu0
  %v3291 = vadd.f32 %v3146, %v3290
  %v3292 = vpop.f32.mrf.mxu0
  %3293 = vmatprep.mubr.f32.mxu0 %v2820
  %3294 = vmatmul.mubr.f32.gmra.mxu0 %v2819
  %v3295 = vpop.f32.mrf.mxu0
  %v3296 = vadd.f32 %v3151, %v3295
  %v3297 = vpop.f32.mrf.mxu0
  %3298 = vmatprep.mubr.f32.mxu0 %v2829
  %3299 = vmatmul.mubr.f32.gmra.mxu0 %v2828
  %v3300 = vpop.f32.mrf.mxu0
  %v3301 = vadd.f32 %v3156, %v3300
  %v3302 = vpop.f32.mrf.mxu0
  %3303 = vmatprep.mubr.f32.mxu0 %v2838
  %3304 = vmatmul.mubr.f32.gmra.mxu0 %v2837
  %v3305 = vpop.f32.mrf.mxu0
  %v3306 = vadd.f32 %v3161, %v3305
  %v3307 = vpop.f32.mrf.mxu0
  %3308 = vmatprep.mubr.f32.mxu0 %v2847
  %3309 = vmatmul.mubr.f32.gmra.mxu0 %v2846
  %v3310 = vpop.f32.mrf.mxu0
  %v3311 = vadd.f32 %v3166, %v3310
  %v3312 = vpop.f32.mrf.mxu0
  %3313 = vmatprep.mubr.f32.mxu0 %v2856
  %3314 = vmatmul.mubr.f32.gmra.mxu0 %v2855
  %v3315 = vpop.f32.mrf.mxu0
  %v3316 = vadd.f32 %v3171, %v3315
  %v3317 = vpop.f32.mrf.mxu0
  %3318 = vmatprep.mubr.f32.mxu0 %v2865
  %3319 = vmatmul.mubr.f32.gmra.mxu0 %v2864
  %v3320 = vpop.f32.mrf.mxu0
  %v3321 = vadd.f32 %v3176, %v3320
  %v3322 = vpop.f32.mrf.mxu0
  %3323 = vmatprep.mubr.f32.mxu0 %v2874
  %3324 = vmatmul.mubr.f32.gmra.mxu0 %v2873
  %v3325 = vpop.f32.mrf.mxu0
  %v3326 = vadd.f32 %v3181, %v3325
  %v3327 = vpop.f32.mrf.mxu0
  %3328 = vmatprep.mubr.f32.mxu0 %v2883
  %3329 = vmatmul.mubr.f32.gmra.mxu0 %v2882
  %v3330 = vpop.f32.mrf.mxu0
  %v3331 = vadd.f32 %v3186, %v3330
  %v3332 = vpop.f32.mrf.mxu0
  %3333 = vmatprep.mubr.f32.mxu0 %v2892
  %3334 = vmatmul.mubr.f32.gmra.mxu0 %v2891
  %v3335 = vpop.f32.mrf.mxu0
  %v3336 = vadd.f32 %v3191, %v3335
  %v3337 = vpop.f32.mrf.mxu0
  %3338 = vmatprep.mubr.f32.mxu0 %v2901
  %3339 = vmatmul.mubr.f32.gmra.mxu0 %v2900
  %v3340 = vpop.f32.mrf.mxu0
  %v3341 = vadd.f32 %v3196, %v3340
  %v3342 = vpop.f32.mrf.mxu0
  %3343 = vmatprep.mubr.f32.mxu0 %v2910
  %3344 = vmatmul.mubr.f32.gmra.mxu0 %v2909
  %v3345 = vpop.f32.mrf.mxu0
  %v3346 = vadd.f32 %v3201, %v3345
  %v3347 = vpop.f32.mrf.mxu0
  %3348 = vdwg.mxu0
  %3349 = vmatprep.subr.mxu0 0.0
  %3350 = vmatpush1.msra.mxu0 %v2471
  %3351 = vmatprep.subr.mxu0 0.0
  %3352 = vmatpush1.msra.mxu0 %v2466
  %3353 = vmatprep.subr.mxu0 0.0
  %3354 = vmatpush1.msra.mxu0 %v2461
  %3355 = vmatprep.subr.mxu0 0.0
  %3356 = vmatpush1.msra.mxu0 %v2456
  %3357 = vmatprep.subr.mxu0 0.0
  %3358 = vmatpush1.msra.mxu0 %v2451
  %3359 = vmatprep.subr.mxu0 0.0
  %3360 = vmatpush1.msra.mxu0 %v2446
  %3361 = vmatprep.subr.mxu0 0.0
  %3362 = vmatpush1.msra.mxu0 %v2441
  %3363 = vmatprep.subr.mxu0 0.0
  %3364 = vmatpush1.msra.mxu0 %v2436
  %3365 = vmatprep.subr.mxu0 0.0
  %3366 = vmatpush1.msra.mxu0 %v2431
  %3367 = vmatprep.subr.mxu0 0.0
  %3368 = vmatpush1.msra.mxu0 %v2426
  %3369 = vmatprep.subr.mxu0 0.0
  %3370 = vmatpush1.msra.mxu0 %v2421
  %3371 = vmatprep.subr.mxu0 0.0
  %3372 = vmatpush1.msra.mxu0 %v2416
  %3373 = vmatprep.subr.mxu0 0.0
  %3374 = vmatpush1.msra.mxu0 %v2411
  %3375 = vmatprep.subr.mxu0 0.0
  %3376 = vmatpush1.msra.mxu0 %v2406
  %3377 = vmatprep.subr.mxu0 0.0
  %3378 = vmatpush1.msra.mxu0 %v2401
  %3379 = vmatprep.subr.mxu0 0.0
  %3380 = vmatpush1.msra.mxu0 %v2396
  %3381 = vmatprep.subr.mxu0 0.0
  %3382 = vmatpush2.msra.mxu0 %v2619
  %3383 = vmatprep.subr.mxu0 0.0
  %3384 = vmatpush2.msra.mxu0 %v2614
  %3385 = vmatprep.subr.mxu0 0.0
  %3386 = vmatpush2.msra.mxu0 %v2609
  %3387 = vmatprep.subr.mxu0 0.0
  %3388 = vmatpush2.msra.mxu0 %v2604
  %3389 = vmatprep.subr.mxu0 0.0
  %3390 = vmatpush2.msra.mxu0 %v2599
  %3391 = vmatprep.subr.mxu0 0.0
  %3392 = vmatpush2.msra.mxu0 %v2594
  %3393 = vmatprep.subr.mxu0 0.0
  %3394 = vmatpush2.msra.mxu0 %v2589
  %3395 = vmatprep.subr.mxu0 0.0
  %3396 = vmatpush2.msra.mxu0 %v2584
  %3397 = vmatprep.subr.mxu0 0.0
  %3398 = vmatpush2.msra.mxu0 %v2579
  %3399 = vmatprep.subr.mxu0 0.0
  %3400 = vmatpush2.msra.mxu0 %v2574
  %3401 = vmatprep.subr.mxu0 0.0
  %3402 = vmatpush2.msra.mxu0 %v2569
  %3403 = vmatprep.subr.mxu0 0.0
  %3404 = vmatpush2.msra.mxu0 %v2564
  %3405 = vmatprep.subr.mxu0 0.0
  %3406 = vmatpush2.msra.mxu0 %v2559
  %3407 = vmatprep.subr.mxu0 0.0
  %3408 = vmatpush2.msra.mxu0 %v2554
  %3409 = vmatprep.subr.mxu0 0.0
  %3410 = vmatpush2.msra.mxu0 %v2549
  %3411 = vmatprep.subr.mxu0 0.0
  %3412 = vmatpush2.msra.mxu0 %v2544
  %3413 = vmatprep.mubr.f32.mxu0 %v2777
  %3414 = vmatmul.mubr.f32.gmra.mxu0 %v2776
  %v3415 = vpop.f32.mrf.mxu0
  %v3416 = vadd.f32 %v3271, %v3415
  %v3417 = vpop.f32.mrf.mxu0
  %3418 = vmatprep.mubr.f32.mxu0 %v2786
  %3419 = vmatmul.mubr.f32.gmra.mxu0 %v2785
  %v3420 = vpop.f32.mrf.mxu0
  %v3421 = vadd.f32 %v3276, %v3420
  %v3422 = vpop.f32.mrf.mxu0
  %3423 = vmatprep.mubr.f32.mxu0 %v2795
  %3424 = vmatmul.mubr.f32.gmra.mxu0 %v2794
  %v3425 = vpop.f32.mrf.mxu0
  %v3426 = vadd.f32 %v3281, %v3425
  %v3427 = vpop.f32.mrf.mxu0
  %3428 = vmatprep.mubr.f32.mxu0 %v2804
  %3429 = vmatmul.mubr.f32.gmra.mxu0 %v2803
  %v3430 = vpop.f32.mrf.mxu0
  %v3431 = vadd.f32 %v3286, %v3430
  %v3432 = vpop.f32.mrf.mxu0
  %3433 = vmatprep.mubr.f32.mxu0 %v2813
  %3434 = vmatmul.mubr.f32.gmra.mxu0 %v2812
  %v3435 = vpop.f32.mrf.mxu0
  %v3436 = vadd.f32 %v3291, %v3435
  %v3437 = vpop.f32.mrf.mxu0
  %3438 = vmatprep.mubr.f32.mxu0 %v2822
  %3439 = vmatmul.mubr.f32.gmra.mxu0 %v2821
  %v3440 = vpop.f32.mrf.mxu0
  %v3441 = vadd.f32 %v3296, %v3440
  %v3442 = vpop.f32.mrf.mxu0
  %3443 = vmatprep.mubr.f32.mxu0 %v2831
  %3444 = vmatmul.mubr.f32.gmra.mxu0 %v2830
  %v3445 = vpop.f32.mrf.mxu0
  %v3446 = vadd.f32 %v3301, %v3445
  %v3447 = vpop.f32.mrf.mxu0
  %3448 = vmatprep.mubr.f32.mxu0 %v2840
  %3449 = vmatmul.mubr.f32.gmra.mxu0 %v2839
  %v3450 = vpop.f32.mrf.mxu0
  %v3451 = vadd.f32 %v3306, %v3450
  %v3452 = vpop.f32.mrf.mxu0
  %3453 = vmatprep.mubr.f32.mxu0 %v2849
  %3454 = vmatmul.mubr.f32.gmra.mxu0 %v2848
  %v3455 = vpop.f32.mrf.mxu0
  %v3456 = vadd.f32 %v3311, %v3455
  %v3457 = vpop.f32.mrf.mxu0
  %3458 = vmatprep.mubr.f32.mxu0 %v2858
  %3459 = vmatmul.mubr.f32.gmra.mxu0 %v2857
  %v3460 = vpop.f32.mrf.mxu0
  %v3461 = vadd.f32 %v3316, %v3460
  %v3462 = vpop.f32.mrf.mxu0
  %3463 = vmatprep.mubr.f32.mxu0 %v2867
  %3464 = vmatmul.mubr.f32.gmra.mxu0 %v2866
  %v3465 = vpop.f32.mrf.mxu0
  %v3466 = vadd.f32 %v3321, %v3465
  %v3467 = vpop.f32.mrf.mxu0
  %3468 = vmatprep.mubr.f32.mxu0 %v2876
  %3469 = vmatmul.mubr.f32.gmra.mxu0 %v2875
  %v3470 = vpop.f32.mrf.mxu0
  %v3471 = vadd.f32 %v3326, %v3470
  %v3472 = vpop.f32.mrf.mxu0
  %3473 = vmatprep.mubr.f32.mxu0 %v2885
  %3474 = vmatmul.mubr.f32.gmra.mxu0 %v2884
  %v3475 = vpop.f32.mrf.mxu0
  %v3476 = vadd.f32 %v3331, %v3475
  %v3477 = vpop.f32.mrf.mxu0
  %3478 = vmatprep.mubr.f32.mxu0 %v2894
  %3479 = vmatmul.mubr.f32.gmra.mxu0 %v2893
  %v3480 = vpop.f32.mrf.mxu0
  %v3481 = vadd.f32 %v3336, %v3480
  %v3482 = vpop.f32.mrf.mxu0
  %3483 = vmatprep.mubr.f32.mxu0 %v2903
  %3484 = vmatmul.mubr.f32.gmra.mxu0 %v2902
  %v3485 = vpop.f32.mrf.mxu0
  %v3486 = vadd.f32 %v3341, %v3485
  %v3487 = vpop.f32.mrf.mxu0
  %3488 = vmatprep.mubr.f32.mxu0 %v2912
  %3489 = vmatmul.mubr.f32.gmra.mxu0 %v2911
  %v3490 = vpop.f32.mrf.mxu0
  %v3491 = vadd.f32 %v3346, %v3490
  %v3492 = vpop.f32.mrf.mxu0
  %3493 = vdwg.mxu0
  %3494 = vmatprep.subr.mxu0 0.0
  %3495 = vmatpush1.msra.mxu0 %v2767
  %3496 = vmatprep.subr.mxu0 0.0
  %3497 = vmatpush1.msra.mxu0 %v2762
  %3498 = vmatprep.subr.mxu0 0.0
  %3499 = vmatpush1.msra.mxu0 %v2757
  %3500 = vmatprep.subr.mxu0 0.0
  %3501 = vmatpush1.msra.mxu0 %v2752
  %3502 = vmatprep.subr.mxu0 0.0
  %3503 = vmatpush1.msra.mxu0 %v2747
  %3504 = vmatprep.subr.mxu0 0.0
  %3505 = vmatpush1.msra.mxu0 %v2742
  %3506 = vmatprep.subr.mxu0 0.0
  %3507 = vmatpush1.msra.mxu0 %v2737
  %3508 = vmatprep.subr.mxu0 0.0
  %3509 = vmatpush1.msra.mxu0 %v2732
  %3510 = vmatprep.subr.mxu0 0.0
  %3511 = vmatpush1.msra.mxu0 %v2727
  %3512 = vmatprep.subr.mxu0 0.0
  %3513 = vmatpush1.msra.mxu0 %v2722
  %3514 = vmatprep.subr.mxu0 0.0
  %3515 = vmatpush1.msra.mxu0 %v2717
  %3516 = vmatprep.subr.mxu0 0.0
  %3517 = vmatpush1.msra.mxu0 %v2712
  %3518 = vmatprep.subr.mxu0 0.0
  %3519 = vmatpush1.msra.mxu0 %v2707
  %3520 = vmatprep.subr.mxu0 0.0
  %3521 = vmatpush1.msra.mxu0 %v2702
  %3522 = vmatprep.subr.mxu0 0.0
  %3523 = vmatpush1.msra.mxu0 %v2697
  %3524 = vmatprep.subr.mxu0 0.0
  %3525 = vmatpush1.msra.mxu0 %v2692
  %3526 = vmatprep.subr.mxu0 0.0
  %3527 = vmatpush2.msra.mxu0 0.0
  %3528 = vmatprep.subr.mxu0 0.0
  %3529 = vmatpush2.msra.mxu0 0.0
  %3530 = vmatprep.subr.mxu0 0.0
  %3531 = vmatpush2.msra.mxu0 0.0
  %3532 = vmatprep.subr.mxu0 0.0
  %3533 = vmatpush2.msra.mxu0 0.0
  %3534 = vmatprep.subr.mxu0 0.0
  %3535 = vmatpush2.msra.mxu0 0.0
  %3536 = vmatprep.subr.mxu0 0.0
  %3537 = vmatpush2.msra.mxu0 0.0
  %3538 = vmatprep.subr.mxu0 0.0
  %3539 = vmatpush2.msra.mxu0 0.0
  %3540 = vmatprep.subr.mxu0 0.0
  %3541 = vmatpush2.msra.mxu0 0.0
  %3542 = vmatprep.subr.mxu0 0.0
  %3543 = vmatpush2.msra.mxu0 0.0
  %3544 = vmatprep.subr.mxu0 0.0
  %3545 = vmatpush2.msra.mxu0 0.0
  %3546 = vmatprep.subr.mxu0 0.0
  %3547 = vmatpush2.msra.mxu0 0.0
  %3548 = vmatprep.subr.mxu0 0.0
  %3549 = vmatpush2.msra.mxu0 0.0
  %3550 = vmatprep.subr.mxu0 0.0
  %3551 = vmatpush2.msra.mxu0 0.0
  %3552 = vmatprep.subr.mxu0 0.0
  %3553 = vmatpush2.msra.mxu0 0.0
  %3554 = vmatprep.subr.mxu0 0.0
  %3555 = vmatpush2.msra.mxu0 0.0
  %3556 = vmatprep.subr.mxu0 0.0
  %3557 = vmatpush2.msra.mxu0 0.0
  %3558 = vmatprep.mubr.f32.mxu0 0.0
  %3559 = vmatmul.mubr.f32.gmra.mxu0 %v2778
  %v3560 = vpop.f32.mrf.mxu0
  %v3561 = vadd.f32 %v3416, %v3560
  %v3562 = vpop.f32.mrf.mxu0
  %3563 = vmatprep.mubr.f32.mxu0 0.0
  %3564 = vmatmul.mubr.f32.gmra.mxu0 %v2787
  %v3565 = vpop.f32.mrf.mxu0
  %v3566 = vadd.f32 %v3421, %v3565
  %v3567 = vpop.f32.mrf.mxu0
  %3568 = vmatprep.mubr.f32.mxu0 0.0
  %3569 = vmatmul.mubr.f32.gmra.mxu0 %v2796
  %v3570 = vpop.f32.mrf.mxu0
  %v3571 = vadd.f32 %v3426, %v3570
  %v3572 = vpop.f32.mrf.mxu0
  %3573 = vmatprep.mubr.f32.mxu0 0.0
  %3574 = vmatmul.mubr.f32.gmra.mxu0 %v2805
  %v3575 = vpop.f32.mrf.mxu0
  %v3576 = vadd.f32 %v3431, %v3575
  %v3577 = vpop.f32.mrf.mxu0
  %3578 = vmatprep.mubr.f32.mxu0 0.0
  %3579 = vmatmul.mubr.f32.gmra.mxu0 %v2814
  %v3580 = vpop.f32.mrf.mxu0
  %v3581 = vadd.f32 %v3436, %v3580
  %v3582 = vpop.f32.mrf.mxu0
  %3583 = vmatprep.mubr.f32.mxu0 0.0
  %3584 = vmatmul.mubr.f32.gmra.mxu0 %v2823
  %v3585 = vpop.f32.mrf.mxu0
  %v3586 = vadd.f32 %v3441, %v3585
  %v3587 = vpop.f32.mrf.mxu0
  %3588 = vmatprep.mubr.f32.mxu0 0.0
  %3589 = vmatmul.mubr.f32.gmra.mxu0 %v2832
  %v3590 = vpop.f32.mrf.mxu0
  %v3591 = vadd.f32 %v3446, %v3590
  %v3592 = vpop.f32.mrf.mxu0
  %3593 = vmatprep.mubr.f32.mxu0 0.0
  %3594 = vmatmul.mubr.f32.gmra.mxu0 %v2841
  %v3595 = vpop.f32.mrf.mxu0
  %v3596 = vadd.f32 %v3451, %v3595
  %v3597 = vpop.f32.mrf.mxu0
  %3598 = vmatprep.mubr.f32.mxu0 0.0
  %3599 = vmatmul.mubr.f32.gmra.mxu0 %v2850
  %v3600 = vpop.f32.mrf.mxu0
  %v3601 = vadd.f32 %v3456, %v3600
  %v3602 = vpop.f32.mrf.mxu0
  %3603 = vmatprep.mubr.f32.mxu0 0.0
  %3604 = vmatmul.mubr.f32.gmra.mxu0 %v2859
  %v3605 = vpop.f32.mrf.mxu0
  %v3606 = vadd.f32 %v3461, %v3605
  %v3607 = vpop.f32.mrf.mxu0
  %3608 = vmatprep.mubr.f32.mxu0 0.0
  %3609 = vmatmul.mubr.f32.gmra.mxu0 %v2868
  %v3610 = vpop.f32.mrf.mxu0
  %v3611 = vadd.f32 %v3466, %v3610
  %v3612 = vpop.f32.mrf.mxu0
  %3613 = vmatprep.mubr.f32.mxu0 0.0
  %3614 = vmatmul.mubr.f32.gmra.mxu0 %v2877
  %v3615 = vpop.f32.mrf.mxu0
  %v3616 = vadd.f32 %v3471, %v3615
  %v3617 = vpop.f32.mrf.mxu0
  %3618 = vmatprep.mubr.f32.mxu0 0.0
  %3619 = vmatmul.mubr.f32.gmra.mxu0 %v2886
  %v3620 = vpop.f32.mrf.mxu0
  %v3621 = vadd.f32 %v3476, %v3620
  %v3622 = vpop.f32.mrf.mxu0
  %3623 = vmatprep.mubr.f32.mxu0 0.0
  %3624 = vmatmul.mubr.f32.gmra.mxu0 %v2895
  %v3625 = vpop.f32.mrf.mxu0
  %v3626 = vadd.f32 %v3481, %v3625
  %v3627 = vpop.f32.mrf.mxu0
  %3628 = vmatprep.mubr.f32.mxu0 0.0
  %3629 = vmatmul.mubr.f32.gmra.mxu0 %v2904
  %v3630 = vpop.f32.mrf.mxu0
  %v3631 = vadd.f32 %v3486, %v3630
  %v3632 = vpop.f32.mrf.mxu0
  %3633 = vmatprep.mubr.f32.mxu0 0.0
  %3634 = vmatmul.mubr.f32.gmra.mxu0 %v2913
  %v3635 = vpop.f32.mrf.mxu0
  %v3636 = vadd.f32 %v3491, %v3635
  %v3637 = vpop.f32.mrf.mxu0
  %3638 = vdwg.mxu0
  %v3639 = vsel %vm677, %v3561, 0.0
  %v3640 = vsel %vm677, %v3566, 0.0
  %v3641 = vadd.f32 %v3639, %v3640
  %v3642 = vsel %vm677, %v3571, 0.0
  %v3643 = vadd.f32 %v3641, %v3642
  %v3644 = vsel %vm677, %v3576, 0.0
  %v3645 = vadd.f32 %v3643, %v3644
  %v3646 = vsel %vm677, %v3581, 0.0
  %v3647 = vadd.f32 %v3645, %v3646
  %v3648 = vsel %vm677, %v3586, 0.0
  %v3649 = vadd.f32 %v3647, %v3648
  %v3650 = vsel %vm677, %v3591, 0.0
  %v3651 = vadd.f32 %v3649, %v3650
  %v3652 = vsel %vm677, %v3596, 0.0
  %v3653 = vadd.f32 %v3651, %v3652
  %v3654 = vsel %vm677, %v3601, 0.0
  %v3655 = vadd.f32 %v3653, %v3654
  %v3656 = vsel %vm677, %v3606, 0.0
  %v3657 = vadd.f32 %v3655, %v3656
  %v3658 = vsel %vm677, %v3611, 0.0
  %v3659 = vadd.f32 %v3657, %v3658
  %v3660 = vsel %vm677, %v3616, 0.0
  %v3661 = vadd.f32 %v3659, %v3660
  %v3662 = vsel %vm677, %v3621, 0.0
  %v3663 = vadd.f32 %v3661, %v3662
  %v3664 = vsel %vm677, %v3626, 0.0
  %v3665 = vadd.f32 %v3663, %v3664
  %v3666 = vsel %vm677, %v3631, 0.0
  %v3667 = vadd.f32 %v3665, %v3666
  %v3668 = vsel %vm677, %v3636, 0.0
  %v3669 = vadd.f32 %v3667, %v3668
  %v3670 = vrot.slane %v3669, 4
  %v3671 = vadd.f32 %v3669, %v3670
  %v3672 = vrot.slane %v3671, 2
  %v3673 = vadd.f32 %v3671, %v3672
  %v3674 = vrot.slane %v3673, 1
  %v3675 = vadd.f32 %v3673, %v3674
  %v3676 = vrcp.pop 128.0
  %v3677 = vmul.f32 %v3675, %v3676
  %v3678 = vsub.f32 %v3561, %v3677
  %v3679 = vsub.f32 %v3566, %v3677
  %v3680 = vsub.f32 %v3571, %v3677
  %v3681 = vsub.f32 %v3576, %v3677
  %v3682 = vsub.f32 %v3581, %v3677
  %v3683 = vsub.f32 %v3586, %v3677
  %v3684 = vsub.f32 %v3591, %v3677
  %v3685 = vsub.f32 %v3596, %v3677
  %v3686 = vsub.f32 %v3601, %v3677
  %v3687 = vsub.f32 %v3606, %v3677
  %v3688 = vsub.f32 %v3611, %v3677
  %v3689 = vsub.f32 %v3616, %v3677
  %v3690 = vsub.f32 %v3621, %v3677
  %v3691 = vsub.f32 %v3626, %v3677
  %v3692 = vsub.f32 %v3631, %v3677
  %v3693 = vsub.f32 %v3636, %v3677
  %v3694 = vmul.f32 %v3678, %v3678
  %v3695 = vmul.f32 %v3679, %v3679
  %v3696 = vmul.f32 %v3680, %v3680
  %v3697 = vmul.f32 %v3681, %v3681
  %v3698 = vmul.f32 %v3682, %v3682
  %v3699 = vmul.f32 %v3683, %v3683
  %v3700 = vmul.f32 %v3684, %v3684
  %v3701 = vmul.f32 %v3685, %v3685
  %v3702 = vmul.f32 %v3686, %v3686
  %v3703 = vmul.f32 %v3687, %v3687
  %v3704 = vmul.f32 %v3688, %v3688
  %v3705 = vmul.f32 %v3689, %v3689
  %v3706 = vmul.f32 %v3690, %v3690
  %v3707 = vmul.f32 %v3691, %v3691
  %v3708 = vmul.f32 %v3692, %v3692
  %v3709 = vmul.f32 %v3693, %v3693
  %v3710 = vsel %vm677, %v3694, 0.0
  %v3711 = vsel %vm677, %v3695, 0.0
  %v3712 = vadd.f32 %v3710, %v3711
  %v3713 = vsel %vm677, %v3696, 0.0
  %v3714 = vadd.f32 %v3712, %v3713
  %v3715 = vsel %vm677, %v3697, 0.0
  %v3716 = vadd.f32 %v3714, %v3715
  %v3717 = vsel %vm677, %v3698, 0.0
  %v3718 = vadd.f32 %v3716, %v3717
  %v3719 = vsel %vm677, %v3699, 0.0
  %v3720 = vadd.f32 %v3718, %v3719
  %v3721 = vsel %vm677, %v3700, 0.0
  %v3722 = vadd.f32 %v3720, %v3721
  %v3723 = vsel %vm677, %v3701, 0.0
  %v3724 = vadd.f32 %v3722, %v3723
  %v3725 = vsel %vm677, %v3702, 0.0
  %v3726 = vadd.f32 %v3724, %v3725
  %v3727 = vsel %vm677, %v3703, 0.0
  %v3728 = vadd.f32 %v3726, %v3727
  %v3729 = vsel %vm677, %v3704, 0.0
  %v3730 = vadd.f32 %v3728, %v3729
  %v3731 = vsel %vm677, %v3705, 0.0
  %v3732 = vadd.f32 %v3730, %v3731
  %v3733 = vsel %vm677, %v3706, 0.0
  %v3734 = vadd.f32 %v3732, %v3733
  %v3735 = vsel %vm677, %v3707, 0.0
  %v3736 = vadd.f32 %v3734, %v3735
  %v3737 = vsel %vm677, %v3708, 0.0
  %v3738 = vadd.f32 %v3736, %v3737
  %v3739 = vsel %vm677, %v3709, 0.0
  %v3740 = vadd.f32 %v3738, %v3739
  %v3741 = vrot.slane %v3740, 4
  %v3742 = vadd.f32 %v3740, %v3741
  %v3743 = vrot.slane %v3742, 2
  %v3744 = vadd.f32 %v3742, %v3743
  %v3745 = vrot.slane %v3744, 1
  %v3746 = vadd.f32 %v3744, %v3745
  %v3747 = vmul.f32 %v3746, %v3676
  %v3748 = vadd.f32 %v3747, 1e-05
  %v3749 = vrsqrt.pop %v3748
  %v3750 = vmul.f32 %v3678, %v3749
  %v3751 = vmul.f32 %v3679, %v3749
  %v3752 = vmul.f32 %v3680, %v3749
  %v3753 = vmul.f32 %v3681, %v3749
  %v3754 = vmul.f32 %v3682, %v3749
  %v3755 = vmul.f32 %v3683, %v3749
  %v3756 = vmul.f32 %v3684, %v3749
  %v3757 = vmul.f32 %v3685, %v3749
  %v3758 = vmul.f32 %v3686, %v3749
  %v3759 = vmul.f32 %v3687, %v3749
  %v3760 = vmul.f32 %v3688, %v3749
  %v3761 = vmul.f32 %v3689, %v3749
  %v3762 = vmul.f32 %v3690, %v3749
  %v3763 = vmul.f32 %v3691, %v3749
  %v3764 = vmul.f32 %v3692, %v3749
  %v3765 = vmul.f32 %v3693, %v3749
  %v3766 = vld [vmem:[%s6 + $0x1] sm:$0x1]
  %v3767 = vlaneseq
  %v3768 = vshrl.u32 %v3767, 7
  %v3769 = vsub.s32 0, %v3768
  %v3770 = vrot.slane %v3766, %v3769
  %v3771 = vmul.f32 %v3750, %v3770
  %v3772 = vmul.f32 %v3751, %v3770
  %v3773 = vmul.f32 %v3752, %v3770
  %v3774 = vmul.f32 %v3753, %v3770
  %v3775 = vmul.f32 %v3754, %v3770
  %v3776 = vmul.f32 %v3755, %v3770
  %v3777 = vmul.f32 %v3756, %v3770
  %v3778 = vmul.f32 %v3757, %v3770
  %v3779 = vmul.f32 %v3758, %v3770
  %v3780 = vmul.f32 %v3759, %v3770
  %v3781 = vmul.f32 %v3760, %v3770
  %v3782 = vmul.f32 %v3761, %v3770
  %v3783 = vmul.f32 %v3762, %v3770
  %v3784 = vmul.f32 %v3763, %v3770
  %v3785 = vmul.f32 %v3764, %v3770
  %v3786 = vmul.f32 %v3765, %v3770
  %v3787 = vld [vmem:[%s7 + $0x1] sm:$0x1]
  %v3788 = vlaneseq
  %v3789 = vshrl.u32 %v3788, 7
  %v3790 = vsub.s32 0, %v3789
  %v3791 = vrot.slane %v3787, %v3790
  %v3792 = vadd.f32 %v3771, %v3791
  %v3793 = vadd.f32 %v3772, %v3791
  %v3794 = vadd.f32 %v3773, %v3791
  %v3795 = vadd.f32 %v3774, %v3791
  %v3796 = vadd.f32 %v3775, %v3791
  %v3797 = vadd.f32 %v3776, %v3791
  %v3798 = vadd.f32 %v3777, %v3791
  %v3799 = vadd.f32 %v3778, %v3791
  %v3800 = vadd.f32 %v3779, %v3791
  %v3801 = vadd.f32 %v3780, %v3791
  %v3802 = vadd.f32 %v3781, %v3791
  %v3803 = vadd.f32 %v3782, %v3791
  %v3804 = vadd.f32 %v3783, %v3791
  %v3805 = vadd.f32 %v3784, %v3791
  %v3806 = vadd.f32 %v3785, %v3791
  %v3807 = vadd.f32 %v3786, %v3791
  %v3808 = vmax.f32 %v3792, 0.0
  %v3809 = vmax.f32 %v3793, 0.0
  %v3810 = vmax.f32 %v3794, 0.0
  %v3811 = vmax.f32 %v3795, 0.0
  %v3812 = vmax.f32 %v3796, 0.0
  %v3813 = vmax.f32 %v3797, 0.0
  %v3814 = vmax.f32 %v3798, 0.0
  %v3815 = vmax.f32 %v3799, 0.0
  %v3816 = vmax.f32 %v3800, 0.0
  %v3817 = vmax.f32 %v3801, 0.0
  %v3818 = vmax.f32 %v3802, 0.0
  %v3819 = vmax.f32 %v3803, 0.0
  %v3820 = vmax.f32 %v3804, 0.0
  %v3821 = vmax.f32 %v3805, 0.0
  %v3822 = vmax.f32 %v3806, 0.0
  %v3823 = vmax.f32 %v3807, 0.0
  %v3824 = vld [vmem:[%s3] sm:$0xff]
  %v3825 = vld [vmem:[%s3 + $0x8] sm:$0xff]
  %v3827 = vsel %vm677, %v3808, 0
  %v3830 = vsel %vm677, %v3809, 0
  %v3833 = vsel %vm677, %v3810, 0
  %v3836 = vsel %vm677, %v3811, 0
  %v3839 = vsel %vm677, %v3812, 0
  %v3842 = vsel %vm677, %v3813, 0
  %v3845 = vsel %vm677, %v3814, 0
  %v3848 = vsel %vm677, %v3815, 0
  %v3851 = vsel %vm677, %v3816, 0
  %v3854 = vsel %vm677, %v3817, 0
  %v3857 = vsel %vm677, %v3818, 0
  %v3860 = vsel %vm677, %v3819, 0
  %v3863 = vsel %vm677, %v3820, 0
  %v3866 = vsel %vm677, %v3821, 0
  %v3869 = vsel %vm677, %v3822, 0
  %v3872 = vsel %vm677, %v3823, 0
  %3874 = vmatprep.subr.mxu0 0.0
  %3875 = vmatpush1.msra.mxu0 0.0
  %3876 = vmatprep.subr.mxu0 0.0
  %3877 = vmatpush1.msra.mxu0 0.0
  %3878 = vmatprep.subr.mxu0 0.0
  %3879 = vmatpush1.msra.mxu0 0.0
  %3880 = vmatprep.subr.mxu0 0.0
  %3881 = vmatpush1.msra.mxu0 0.0
  %3882 = vmatprep.subr.mxu0 0.0
  %3883 = vmatpush1.msra.mxu0 0.0
  %3884 = vmatprep.subr.mxu0 0.0
  %3885 = vmatpush1.msra.mxu0 0.0
  %3886 = vmatprep.subr.mxu0 0.0
  %3887 = vmatpush1.msra.mxu0 0.0
  %3888 = vmatprep.subr.mxu0 0.0
  %3889 = vmatpush1.msra.mxu0 0.0
  %3890 = vmatprep.subr.mxu0 0.0
  %3891 = vmatpush1.msra.mxu0 0.0
  %3892 = vmatprep.subr.mxu0 0.0
  %3893 = vmatpush1.msra.mxu0 0.0
  %3894 = vmatprep.subr.mxu0 0.0
  %3895 = vmatpush1.msra.mxu0 0.0
  %3896 = vmatprep.subr.mxu0 0.0
  %3897 = vmatpush1.msra.mxu0 0.0
  %3898 = vmatprep.subr.mxu0 0.0
  %3899 = vmatpush1.msra.mxu0 0.0
  %3900 = vmatprep.subr.mxu0 0.0
  %3901 = vmatpush1.msra.mxu0 0.0
  %3902 = vmatprep.subr.mxu0 0.0
  %3903 = vmatpush1.msra.mxu0 %v3825
  %3904 = vmatprep.subr.mxu0 0.0
  %3905 = vmatpush1.msra.mxu0 %v3824
  %3906 = vmatprep.subr.mxu0 0.0
  %3907 = vmatpush2.msra.mxu0 0.0
  %3908 = vmatprep.subr.mxu0 0.0
  %3909 = vmatpush2.msra.mxu0 0.0
  %3910 = vmatprep.subr.mxu0 0.0
  %3911 = vmatpush2.msra.mxu0 0.0
  %3912 = vmatprep.subr.mxu0 0.0
  %3913 = vmatpush2.msra.mxu0 0.0
  %3914 = vmatprep.subr.mxu0 0.0
  %3915 = vmatpush2.msra.mxu0 0.0
  %3916 = vmatprep.subr.mxu0 0.0
  %3917 = vmatpush2.msra.mxu0 0.0
  %3918 = vmatprep.subr.mxu0 0.0
  %3919 = vmatpush2.msra.mxu0 0.0
  %3920 = vmatprep.subr.mxu0 0.0
  %3921 = vmatpush2.msra.mxu0 0.0
  %3922 = vmatprep.subr.mxu0 0.0
  %3923 = vmatpush2.msra.mxu0 0.0
  %3924 = vmatprep.subr.mxu0 0.0
  %3925 = vmatpush2.msra.mxu0 0.0
  %3926 = vmatprep.subr.mxu0 0.0
  %3927 = vmatpush2.msra.mxu0 0.0
  %3928 = vmatprep.subr.mxu0 0.0
  %3929 = vmatpush2.msra.mxu0 0.0
  %3930 = vmatprep.subr.mxu0 0.0
  %3931 = vmatpush2.msra.mxu0 0.0
  %3932 = vmatprep.subr.mxu0 0.0
  %3933 = vmatpush2.msra.mxu0 0.0
  %3934 = vmatprep.subr.mxu0 0.0
  %3935 = vmatpush2.msra.mxu0 0.0
  %3936 = vmatprep.subr.mxu0 0.0
  %3937 = vmatpush2.msra.mxu0 0.0
  %3938 = vmatprep.mubr.f32.mxu0 0.0
  %3939 = vmatmul.mubr.f32.gmra.mxu0 %v3827
  %v3940 = vpop.f32.mrf.mxu0
  %v3941 = vadd.f32 0.0, %v3940
  %v3942 = vpop.f32.mrf.mxu0
  %3943 = vmatprep.mubr.f32.mxu0 0.0
  %3944 = vmatmul.mubr.f32.gmra.mxu0 %v3830
  %v3945 = vpop.f32.mrf.mxu0
  %v3946 = vadd.f32 0.0, %v3945
  %v3947 = vpop.f32.mrf.mxu0
  %3948 = vmatprep.mubr.f32.mxu0 0.0
  %3949 = vmatmul.mubr.f32.gmra.mxu0 %v3833
  %v3950 = vpop.f32.mrf.mxu0
  %v3951 = vadd.f32 0.0, %v3950
  %v3952 = vpop.f32.mrf.mxu0
  %3953 = vmatprep.mubr.f32.mxu0 0.0
  %3954 = vmatmul.mubr.f32.gmra.mxu0 %v3836
  %v3955 = vpop.f32.mrf.mxu0
  %v3956 = vadd.f32 0.0, %v3955
  %v3957 = vpop.f32.mrf.mxu0
  %3958 = vmatprep.mubr.f32.mxu0 0.0
  %3959 = vmatmul.mubr.f32.gmra.mxu0 %v3839
  %v3960 = vpop.f32.mrf.mxu0
  %v3961 = vadd.f32 0.0, %v3960
  %v3962 = vpop.f32.mrf.mxu0
  %3963 = vmatprep.mubr.f32.mxu0 0.0
  %3964 = vmatmul.mubr.f32.gmra.mxu0 %v3842
  %v3965 = vpop.f32.mrf.mxu0
  %v3966 = vadd.f32 0.0, %v3965
  %v3967 = vpop.f32.mrf.mxu0
  %3968 = vmatprep.mubr.f32.mxu0 0.0
  %3969 = vmatmul.mubr.f32.gmra.mxu0 %v3845
  %v3970 = vpop.f32.mrf.mxu0
  %v3971 = vadd.f32 0.0, %v3970
  %v3972 = vpop.f32.mrf.mxu0
  %3973 = vmatprep.mubr.f32.mxu0 0.0
  %3974 = vmatmul.mubr.f32.gmra.mxu0 %v3848
  %v3975 = vpop.f32.mrf.mxu0
  %v3976 = vadd.f32 0.0, %v3975
  %v3977 = vpop.f32.mrf.mxu0
  %3978 = vmatprep.mubr.f32.mxu0 0.0
  %3979 = vmatmul.mubr.f32.gmra.mxu0 %v3851
  %v3980 = vpop.f32.mrf.mxu0
  %v3981 = vadd.f32 0.0, %v3980
  %v3982 = vpop.f32.mrf.mxu0
  %3983 = vmatprep.mubr.f32.mxu0 0.0
  %3984 = vmatmul.mubr.f32.gmra.mxu0 %v3854
  %v3985 = vpop.f32.mrf.mxu0
  %v3986 = vadd.f32 0.0, %v3985
  %v3987 = vpop.f32.mrf.mxu0
  %3988 = vmatprep.mubr.f32.mxu0 0.0
  %3989 = vmatmul.mubr.f32.gmra.mxu0 %v3857
  %v3990 = vpop.f32.mrf.mxu0
  %v3991 = vadd.f32 0.0, %v3990
  %v3992 = vpop.f32.mrf.mxu0
  %3993 = vmatprep.mubr.f32.mxu0 0.0
  %3994 = vmatmul.mubr.f32.gmra.mxu0 %v3860
  %v3995 = vpop.f32.mrf.mxu0
  %v3996 = vadd.f32 0.0, %v3995
  %v3997 = vpop.f32.mrf.mxu0
  %3998 = vmatprep.mubr.f32.mxu0 0.0
  %3999 = vmatmul.mubr.f32.gmra.mxu0 %v3863
  %v4000 = vpop.f32.mrf.mxu0
  %v4001 = vadd.f32 0.0, %v4000
  %v4002 = vpop.f32.mrf.mxu0
  %4003 = vmatprep.mubr.f32.mxu0 0.0
  %4004 = vmatmul.mubr.f32.gmra.mxu0 %v3866
  %v4005 = vpop.f32.mrf.mxu0
  %v4006 = vadd.f32 0.0, %v4005
  %v4007 = vpop.f32.mrf.mxu0
  %4008 = vmatprep.mubr.f32.mxu0 0.0
  %4009 = vmatmul.mubr.f32.gmra.mxu0 %v3869
  %v4010 = vpop.f32.mrf.mxu0
  %v4011 = vadd.f32 0.0, %v4010
  %v4012 = vpop.f32.mrf.mxu0
  %4013 = vmatprep.mubr.f32.mxu0 0.0
  %4014 = vmatmul.mubr.f32.gmra.mxu0 %v3872
  %v4015 = vpop.f32.mrf.mxu0
  %v4016 = vadd.f32 0.0, %v4015
  %v4017 = vpop.f32.mrf.mxu0
  %4018 = vdwg.mxu0
  %s4019 = scalar_lea.vmem %s3, 16
  %v4020 = vld [vmem:[%s4019] sm:$0xff]
  %v4021 = vld [vmem:[%s4019 + $0x8] sm:$0xff]
  %4022 = vmatprep.subr.mxu0 0.0
  %4023 = vmatpush1.msra.mxu0 0.0
  %4024 = vmatprep.subr.mxu0 0.0
  %4025 = vmatpush1.msra.mxu0 0.0
  %4026 = vmatprep.subr.mxu0 0.0
  %4027 = vmatpush1.msra.mxu0 0.0
  %4028 = vmatprep.subr.mxu0 0.0
  %4029 = vmatpush1.msra.mxu0 0.0
  %4030 = vmatprep.subr.mxu0 0.0
  %4031 = vmatpush1.msra.mxu0 0.0
  %4032 = vmatprep.subr.mxu0 0.0
  %4033 = vmatpush1.msra.mxu0 0.0
  %4034 = vmatprep.subr.mxu0 0.0
  %4035 = vmatpush1.msra.mxu0 0.0
  %4036 = vmatprep.subr.mxu0 0.0
  %4037 = vmatpush1.msra.mxu0 0.0
  %4038 = vmatprep.subr.mxu0 0.0
  %4039 = vmatpush1.msra.mxu0 0.0
  %4040 = vmatprep.subr.mxu0 0.0
  %4041 = vmatpush1.msra.mxu0 0.0
  %4042 = vmatprep.subr.mxu0 0.0
  %4043 = vmatpush1.msra.mxu0 0.0
  %4044 = vmatprep.subr.mxu0 0.0
  %4045 = vmatpush1.msra.mxu0 0.0
  %4046 = vmatprep.subr.mxu0 0.0
  %4047 = vmatpush1.msra.mxu0 0.0
  %4048 = vmatprep.subr.mxu0 0.0
  %4049 = vmatpush1.msra.mxu0 0.0
  %4050 = vmatprep.subr.mxu0 0.0
  %4051 = vmatpush1.msra.mxu0 %v4021
  %4052 = vmatprep.subr.mxu0 0.0
  %4053 = vmatpush1.msra.mxu0 %v4020
  %4054 = vmatprep.subr.mxu0 0.0
  %4055 = vmatpush2.msra.mxu0 0.0
  %4056 = vmatprep.subr.mxu0 0.0
  %4057 = vmatpush2.msra.mxu0 0.0
  %4058 = vmatprep.subr.mxu0 0.0
  %4059 = vmatpush2.msra.mxu0 0.0
  %4060 = vmatprep.subr.mxu0 0.0
  %4061 = vmatpush2.msra.mxu0 0.0
  %4062 = vmatprep.subr.mxu0 0.0
  %4063 = vmatpush2.msra.mxu0 0.0
  %4064 = vmatprep.subr.mxu0 0.0
  %4065 = vmatpush2.msra.mxu0 0.0
  %4066 = vmatprep.subr.mxu0 0.0
  %4067 = vmatpush2.msra.mxu0 0.0
  %4068 = vmatprep.subr.mxu0 0.0
  %4069 = vmatpush2.msra.mxu0 0.0
  %4070 = vmatprep.subr.mxu0 0.0
  %4071 = vmatpush2.msra.mxu0 0.0
  %4072 = vmatprep.subr.mxu0 0.0
  %4073 = vmatpush2.msra.mxu0 0.0
  %4074 = vmatprep.subr.mxu0 0.0
  %4075 = vmatpush2.msra.mxu0 0.0
  %4076 = vmatprep.subr.mxu0 0.0
  %4077 = vmatpush2.msra.mxu0 0.0
  %4078 = vmatprep.subr.mxu0 0.0
  %4079 = vmatpush2.msra.mxu0 0.0
  %4080 = vmatprep.subr.mxu0 0.0
  %4081 = vmatpush2.msra.mxu0 0.0
  %4082 = vmatprep.subr.mxu0 0.0
  %4083 = vmatpush2.msra.mxu0 0.0
  %4084 = vmatprep.subr.mxu0 0.0
  %4085 = vmatpush2.msra.mxu0 0.0
  %4086 = vmatprep.mubr.f32.mxu0 0.0
  %4087 = vmatmul.mubr.f32.gmra.mxu0 %v3827
  %v4088 = vpop.f32.mrf.mxu0
  %v4089 = vadd.f32 0.0, %v4088
  %v4090 = vpop.f32.mrf.mxu0
  %4091 = vmatprep.mubr.f32.mxu0 0.0
  %4092 = vmatmul.mubr.f32.gmra.mxu0 %v3830
  %v4093 = vpop.f32.mrf.mxu0
  %v4094 = vadd.f32 0.0, %v4093
  %v4095 = vpop.f32.mrf.mxu0
  %4096 = vmatprep.mubr.f32.mxu0 0.0
  %4097 = vmatmul.mubr.f32.gmra.mxu0 %v3833
  %v4098 = vpop.f32.mrf.mxu0
  %v4099 = vadd.f32 0.0, %v4098
  %v4100 = vpop.f32.mrf.mxu0
  %4101 = vmatprep.mubr.f32.mxu0 0.0
  %4102 = vmatmul.mubr.f32.gmra.mxu0 %v3836
  %v4103 = vpop.f32.mrf.mxu0
  %v4104 = vadd.f32 0.0, %v4103
  %v4105 = vpop.f32.mrf.mxu0
  %4106 = vmatprep.mubr.f32.mxu0 0.0
  %4107 = vmatmul.mubr.f32.gmra.mxu0 %v3839
  %v4108 = vpop.f32.mrf.mxu0
  %v4109 = vadd.f32 0.0, %v4108
  %v4110 = vpop.f32.mrf.mxu0
  %4111 = vmatprep.mubr.f32.mxu0 0.0
  %4112 = vmatmul.mubr.f32.gmra.mxu0 %v3842
  %v4113 = vpop.f32.mrf.mxu0
  %v4114 = vadd.f32 0.0, %v4113
  %v4115 = vpop.f32.mrf.mxu0
  %4116 = vmatprep.mubr.f32.mxu0 0.0
  %4117 = vmatmul.mubr.f32.gmra.mxu0 %v3845
  %v4118 = vpop.f32.mrf.mxu0
  %v4119 = vadd.f32 0.0, %v4118
  %v4120 = vpop.f32.mrf.mxu0
  %4121 = vmatprep.mubr.f32.mxu0 0.0
  %4122 = vmatmul.mubr.f32.gmra.mxu0 %v3848
  %v4123 = vpop.f32.mrf.mxu0
  %v4124 = vadd.f32 0.0, %v4123
  %v4125 = vpop.f32.mrf.mxu0
  %4126 = vmatprep.mubr.f32.mxu0 0.0
  %4127 = vmatmul.mubr.f32.gmra.mxu0 %v3851
  %v4128 = vpop.f32.mrf.mxu0
  %v4129 = vadd.f32 0.0, %v4128
  %v4130 = vpop.f32.mrf.mxu0
  %4131 = vmatprep.mubr.f32.mxu0 0.0
  %4132 = vmatmul.mubr.f32.gmra.mxu0 %v3854
  %v4133 = vpop.f32.mrf.mxu0
  %v4134 = vadd.f32 0.0, %v4133
  %v4135 = vpop.f32.mrf.mxu0
  %4136 = vmatprep.mubr.f32.mxu0 0.0
  %4137 = vmatmul.mubr.f32.gmra.mxu0 %v3857
  %v4138 = vpop.f32.mrf.mxu0
  %v4139 = vadd.f32 0.0, %v4138
  %v4140 = vpop.f32.mrf.mxu0
  %4141 = vmatprep.mubr.f32.mxu0 0.0
  %4142 = vmatmul.mubr.f32.gmra.mxu0 %v3860
  %v4143 = vpop.f32.mrf.mxu0
  %v4144 = vadd.f32 0.0, %v4143
  %v4145 = vpop.f32.mrf.mxu0
  %4146 = vmatprep.mubr.f32.mxu0 0.0
  %4147 = vmatmul.mubr.f32.gmra.mxu0 %v3863
  %v4148 = vpop.f32.mrf.mxu0
  %v4149 = vadd.f32 0.0, %v4148
  %v4150 = vpop.f32.mrf.mxu0
  %4151 = vmatprep.mubr.f32.mxu0 0.0
  %4152 = vmatmul.mubr.f32.gmra.mxu0 %v3866
  %v4153 = vpop.f32.mrf.mxu0
  %v4154 = vadd.f32 0.0, %v4153
  %v4155 = vpop.f32.mrf.mxu0
  %4156 = vmatprep.mubr.f32.mxu0 0.0
  %4157 = vmatmul.mubr.f32.gmra.mxu0 %v3869
  %v4158 = vpop.f32.mrf.mxu0
  %v4159 = vadd.f32 0.0, %v4158
  %v4160 = vpop.f32.mrf.mxu0
  %4161 = vmatprep.mubr.f32.mxu0 0.0
  %4162 = vmatmul.mubr.f32.gmra.mxu0 %v3872
  %v4163 = vpop.f32.mrf.mxu0
  %v4164 = vadd.f32 0.0, %v4163
  %v4165 = vpop.f32.mrf.mxu0
  %4166 = vdwg.mxu0
  %s4167 = scalar_lea.vmem %s3, 32
  %v4168 = vld [vmem:[%s4167] sm:$0xff]
  %v4169 = vld [vmem:[%s4167 + $0x8] sm:$0xff]
  %4170 = vmatprep.subr.mxu0 0.0
  %4171 = vmatpush1.msra.mxu0 0.0
  %4172 = vmatprep.subr.mxu0 0.0
  %4173 = vmatpush1.msra.mxu0 0.0
  %4174 = vmatprep.subr.mxu0 0.0
  %4175 = vmatpush1.msra.mxu0 0.0
  %4176 = vmatprep.subr.mxu0 0.0
  %4177 = vmatpush1.msra.mxu0 0.0
  %4178 = vmatprep.subr.mxu0 0.0
  %4179 = vmatpush1.msra.mxu0 0.0
  %4180 = vmatprep.subr.mxu0 0.0
  %4181 = vmatpush1.msra.mxu0 0.0
  %4182 = vmatprep.subr.mxu0 0.0
  %4183 = vmatpush1.msra.mxu0 0.0
  %4184 = vmatprep.subr.mxu0 0.0
  %4185 = vmatpush1.msra.mxu0 0.0
  %4186 = vmatprep.subr.mxu0 0.0
  %4187 = vmatpush1.msra.mxu0 0.0
  %4188 = vmatprep.subr.mxu0 0.0
  %4189 = vmatpush1.msra.mxu0 0.0
  %4190 = vmatprep.subr.mxu0 0.0
  %4191 = vmatpush1.msra.mxu0 0.0
  %4192 = vmatprep.subr.mxu0 0.0
  %4193 = vmatpush1.msra.mxu0 0.0
  %4194 = vmatprep.subr.mxu0 0.0
  %4195 = vmatpush1.msra.mxu0 0.0
  %4196 = vmatprep.subr.mxu0 0.0
  %4197 = vmatpush1.msra.mxu0 0.0
  %4198 = vmatprep.subr.mxu0 0.0
  %4199 = vmatpush1.msra.mxu0 %v4169
  %4200 = vmatprep.subr.mxu0 0.0
  %4201 = vmatpush1.msra.mxu0 %v4168
  %4202 = vmatprep.subr.mxu0 0.0
  %4203 = vmatpush2.msra.mxu0 0.0
  %4204 = vmatprep.subr.mxu0 0.0
  %4205 = vmatpush2.msra.mxu0 0.0
  %4206 = vmatprep.subr.mxu0 0.0
  %4207 = vmatpush2.msra.mxu0 0.0
  %4208 = vmatprep.subr.mxu0 0.0
  %4209 = vmatpush2.msra.mxu0 0.0
  %4210 = vmatprep.subr.mxu0 0.0
  %4211 = vmatpush2.msra.mxu0 0.0
  %4212 = vmatprep.subr.mxu0 0.0
  %4213 = vmatpush2.msra.mxu0 0.0
  %4214 = vmatprep.subr.mxu0 0.0
  %4215 = vmatpush2.msra.mxu0 0.0
  %4216 = vmatprep.subr.mxu0 0.0
  %4217 = vmatpush2.msra.mxu0 0.0
  %4218 = vmatprep.subr.mxu0 0.0
  %4219 = vmatpush2.msra.mxu0 0.0
  %4220 = vmatprep.subr.mxu0 0.0
  %4221 = vmatpush2.msra.mxu0 0.0
  %4222 = vmatprep.subr.mxu0 0.0
  %4223 = vmatpush2.msra.mxu0 0.0
  %4224 = vmatprep.subr.mxu0 0.0
  %4225 = vmatpush2.msra.mxu0 0.0
  %4226 = vmatprep.subr.mxu0 0.0
  %4227 = vmatpush2.msra.mxu0 0.0
  %4228 = vmatprep.subr.mxu0 0.0
  %4229 = vmatpush2.msra.mxu0 0.0
  %4230 = vmatprep.subr.mxu0 0.0
  %4231 = vmatpush2.msra.mxu0 0.0
  %4232 = vmatprep.subr.mxu0 0.0
  %4233 = vmatpush2.msra.mxu0 0.0
  %4234 = vmatprep.mubr.f32.mxu0 0.0
  %4235 = vmatmul.mubr.f32.gmra.mxu0 %v3827
  %v4236 = vpop.f32.mrf.mxu0
  %v4237 = vadd.f32 0.0, %v4236
  %v4238 = vpop.f32.mrf.mxu0
  %4239 = vmatprep.mubr.f32.mxu0 0.0
  %4240 = vmatmul.mubr.f32.gmra.mxu0 %v3830
  %v4241 = vpop.f32.mrf.mxu0
  %v4242 = vadd.f32 0.0, %v4241
  %v4243 = vpop.f32.mrf.mxu0
  %4244 = vmatprep.mubr.f32.mxu0 0.0
  %4245 = vmatmul.mubr.f32.gmra.mxu0 %v3833
  %v4246 = vpop.f32.mrf.mxu0
  %v4247 = vadd.f32 0.0, %v4246
  %v4248 = vpop.f32.mrf.mxu0
  %4249 = vmatprep.mubr.f32.mxu0 0.0
  %4250 = vmatmul.mubr.f32.gmra.mxu0 %v3836
  %v4251 = vpop.f32.mrf.mxu0
  %v4252 = vadd.f32 0.0, %v4251
  %v4253 = vpop.f32.mrf.mxu0
  %4254 = vmatprep.mubr.f32.mxu0 0.0
  %4255 = vmatmul.mubr.f32.gmra.mxu0 %v3839
  %v4256 = vpop.f32.mrf.mxu0
  %v4257 = vadd.f32 0.0, %v4256
  %v4258 = vpop.f32.mrf.mxu0
  %4259 = vmatprep.mubr.f32.mxu0 0.0
  %4260 = vmatmul.mubr.f32.gmra.mxu0 %v3842
  %v4261 = vpop.f32.mrf.mxu0
  %v4262 = vadd.f32 0.0, %v4261
  %v4263 = vpop.f32.mrf.mxu0
  %4264 = vmatprep.mubr.f32.mxu0 0.0
  %4265 = vmatmul.mubr.f32.gmra.mxu0 %v3845
  %v4266 = vpop.f32.mrf.mxu0
  %v4267 = vadd.f32 0.0, %v4266
  %v4268 = vpop.f32.mrf.mxu0
  %4269 = vmatprep.mubr.f32.mxu0 0.0
  %4270 = vmatmul.mubr.f32.gmra.mxu0 %v3848
  %v4271 = vpop.f32.mrf.mxu0
  %v4272 = vadd.f32 0.0, %v4271
  %v4273 = vpop.f32.mrf.mxu0
  %4274 = vmatprep.mubr.f32.mxu0 0.0
  %4275 = vmatmul.mubr.f32.gmra.mxu0 %v3851
  %v4276 = vpop.f32.mrf.mxu0
  %v4277 = vadd.f32 0.0, %v4276
  %v4278 = vpop.f32.mrf.mxu0
  %4279 = vmatprep.mubr.f32.mxu0 0.0
  %4280 = vmatmul.mubr.f32.gmra.mxu0 %v3854
  %v4281 = vpop.f32.mrf.mxu0
  %v4282 = vadd.f32 0.0, %v4281
  %v4283 = vpop.f32.mrf.mxu0
  %4284 = vmatprep.mubr.f32.mxu0 0.0
  %4285 = vmatmul.mubr.f32.gmra.mxu0 %v3857
  %v4286 = vpop.f32.mrf.mxu0
  %v4287 = vadd.f32 0.0, %v4286
  %v4288 = vpop.f32.mrf.mxu0
  %4289 = vmatprep.mubr.f32.mxu0 0.0
  %4290 = vmatmul.mubr.f32.gmra.mxu0 %v3860
  %v4291 = vpop.f32.mrf.mxu0
  %v4292 = vadd.f32 0.0, %v4291
  %v4293 = vpop.f32.mrf.mxu0
  %4294 = vmatprep.mubr.f32.mxu0 0.0
  %4295 = vmatmul.mubr.f32.gmra.mxu0 %v3863
  %v4296 = vpop.f32.mrf.mxu0
  %v4297 = vadd.f32 0.0, %v4296
  %v4298 = vpop.f32.mrf.mxu0
  %4299 = vmatprep.mubr.f32.mxu0 0.0
  %4300 = vmatmul.mubr.f32.gmra.mxu0 %v3866
  %v4301 = vpop.f32.mrf.mxu0
  %v4302 = vadd.f32 0.0, %v4301
  %v4303 = vpop.f32.mrf.mxu0
  %4304 = vmatprep.mubr.f32.mxu0 0.0
  %4305 = vmatmul.mubr.f32.gmra.mxu0 %v3869
  %v4306 = vpop.f32.mrf.mxu0
  %v4307 = vadd.f32 0.0, %v4306
  %v4308 = vpop.f32.mrf.mxu0
  %4309 = vmatprep.mubr.f32.mxu0 0.0
  %4310 = vmatmul.mubr.f32.gmra.mxu0 %v3872
  %v4311 = vpop.f32.mrf.mxu0
  %v4312 = vadd.f32 0.0, %v4311
  %v4313 = vpop.f32.mrf.mxu0
  %4314 = vdwg.mxu0
  %s4315 = scalar_lea.vmem %s3, 48
  %v4316 = vld [vmem:[%s4315] sm:$0xff]
  %v4317 = vld [vmem:[%s4315 + $0x8] sm:$0xff]
  %4318 = vmatprep.subr.mxu0 0.0
  %4319 = vmatpush1.msra.mxu0 0.0
  %4320 = vmatprep.subr.mxu0 0.0
  %4321 = vmatpush1.msra.mxu0 0.0
  %4322 = vmatprep.subr.mxu0 0.0
  %4323 = vmatpush1.msra.mxu0 0.0
  %4324 = vmatprep.subr.mxu0 0.0
  %4325 = vmatpush1.msra.mxu0 0.0
  %4326 = vmatprep.subr.mxu0 0.0
  %4327 = vmatpush1.msra.mxu0 0.0
  %4328 = vmatprep.subr.mxu0 0.0
  %4329 = vmatpush1.msra.mxu0 0.0
  %4330 = vmatprep.subr.mxu0 0.0
  %4331 = vmatpush1.msra.mxu0 0.0
  %4332 = vmatprep.subr.mxu0 0.0
  %4333 = vmatpush1.msra.mxu0 0.0
  %4334 = vmatprep.subr.mxu0 0.0
  %4335 = vmatpush1.msra.mxu0 0.0
  %4336 = vmatprep.subr.mxu0 0.0
  %4337 = vmatpush1.msra.mxu0 0.0
  %4338 = vmatprep.subr.mxu0 0.0
  %4339 = vmatpush1.msra.mxu0 0.0
  %4340 = vmatprep.subr.mxu0 0.0
  %4341 = vmatpush1.msra.mxu0 0.0
  %4342 = vmatprep.subr.mxu0 0.0
  %4343 = vmatpush1.msra.mxu0 0.0
  %4344 = vmatprep.subr.mxu0 0.0
  %4345 = vmatpush1.msra.mxu0 0.0
  %4346 = vmatprep.subr.mxu0 0.0
  %4347 = vmatpush1.msra.mxu0 %v4317
  %4348 = vmatprep.subr.mxu0 0.0
  %4349 = vmatpush1.msra.mxu0 %v4316
  %4350 = vmatprep.subr.mxu0 0.0
  %4351 = vmatpush2.msra.mxu0 0.0
  %4352 = vmatprep.subr.mxu0 0.0
  %4353 = vmatpush2.msra.mxu0 0.0
  %4354 = vmatprep.subr.mxu0 0.0
  %4355 = vmatpush2.msra.mxu0 0.0
  %4356 = vmatprep.subr.mxu0 0.0
  %4357 = vmatpush2.msra.mxu0 0.0
  %4358 = vmatprep.subr.mxu0 0.0
  %4359 = vmatpush2.msra.mxu0 0.0
  %4360 = vmatprep.subr.mxu0 0.0
  %4361 = vmatpush2.msra.mxu0 0.0
  %4362 = vmatprep.subr.mxu0 0.0
  %4363 = vmatpush2.msra.mxu0 0.0
  %4364 = vmatprep.subr.mxu0 0.0
  %4365 = vmatpush2.msra.mxu0 0.0
  %4366 = vmatprep.subr.mxu0 0.0
  %4367 = vmatpush2.msra.mxu0 0.0
  %4368 = vmatprep.subr.mxu0 0.0
  %4369 = vmatpush2.msra.mxu0 0.0
  %4370 = vmatprep.subr.mxu0 0.0
  %4371 = vmatpush2.msra.mxu0 0.0
  %4372 = vmatprep.subr.mxu0 0.0
  %4373 = vmatpush2.msra.mxu0 0.0
  %4374 = vmatprep.subr.mxu0 0.0
  %4375 = vmatpush2.msra.mxu0 0.0
  %4376 = vmatprep.subr.mxu0 0.0
  %4377 = vmatpush2.msra.mxu0 0.0
  %4378 = vmatprep.subr.mxu0 0.0
  %4379 = vmatpush2.msra.mxu0 0.0
  %4380 = vmatprep.subr.mxu0 0.0
  %4381 = vmatpush2.msra.mxu0 0.0
  %4382 = vmatprep.mubr.f32.mxu0 0.0
  %4383 = vmatmul.mubr.f32.gmra.mxu0 %v3827
  %v4384 = vpop.f32.mrf.mxu0
  %v4385 = vadd.f32 0.0, %v4384
  %v4386 = vpop.f32.mrf.mxu0
  %4387 = vmatprep.mubr.f32.mxu0 0.0
  %4388 = vmatmul.mubr.f32.gmra.mxu0 %v3830
  %v4389 = vpop.f32.mrf.mxu0
  %v4390 = vadd.f32 0.0, %v4389
  %v4391 = vpop.f32.mrf.mxu0
  %4392 = vmatprep.mubr.f32.mxu0 0.0
  %4393 = vmatmul.mubr.f32.gmra.mxu0 %v3833
  %v4394 = vpop.f32.mrf.mxu0
  %v4395 = vadd.f32 0.0, %v4394
  %v4396 = vpop.f32.mrf.mxu0
  %4397 = vmatprep.mubr.f32.mxu0 0.0
  %4398 = vmatmul.mubr.f32.gmra.mxu0 %v3836
  %v4399 = vpop.f32.mrf.mxu0
  %v4400 = vadd.f32 0.0, %v4399
  %v4401 = vpop.f32.mrf.mxu0
  %4402 = vmatprep.mubr.f32.mxu0 0.0
  %4403 = vmatmul.mubr.f32.gmra.mxu0 %v3839
  %v4404 = vpop.f32.mrf.mxu0
  %v4405 = vadd.f32 0.0, %v4404
  %v4406 = vpop.f32.mrf.mxu0
  %4407 = vmatprep.mubr.f32.mxu0 0.0
  %4408 = vmatmul.mubr.f32.gmra.mxu0 %v3842
  %v4409 = vpop.f32.mrf.mxu0
  %v4410 = vadd.f32 0.0, %v4409
  %v4411 = vpop.f32.mrf.mxu0
  %4412 = vmatprep.mubr.f32.mxu0 0.0
  %4413 = vmatmul.mubr.f32.gmra.mxu0 %v3845
  %v4414 = vpop.f32.mrf.mxu0
  %v4415 = vadd.f32 0.0, %v4414
  %v4416 = vpop.f32.mrf.mxu0
  %4417 = vmatprep.mubr.f32.mxu0 0.0
  %4418 = vmatmul.mubr.f32.gmra.mxu0 %v3848
  %v4419 = vpop.f32.mrf.mxu0
  %v4420 = vadd.f32 0.0, %v4419
  %v4421 = vpop.f32.mrf.mxu0
  %4422 = vmatprep.mubr.f32.mxu0 0.0
  %4423 = vmatmul.mubr.f32.gmra.mxu0 %v3851
  %v4424 = vpop.f32.mrf.mxu0
  %v4425 = vadd.f32 0.0, %v4424
  %v4426 = vpop.f32.mrf.mxu0
  %4427 = vmatprep.mubr.f32.mxu0 0.0
  %4428 = vmatmul.mubr.f32.gmra.mxu0 %v3854
  %v4429 = vpop.f32.mrf.mxu0
  %v4430 = vadd.f32 0.0, %v4429
  %v4431 = vpop.f32.mrf.mxu0
  %4432 = vmatprep.mubr.f32.mxu0 0.0
  %4433 = vmatmul.mubr.f32.gmra.mxu0 %v3857
  %v4434 = vpop.f32.mrf.mxu0
  %v4435 = vadd.f32 0.0, %v4434
  %v4436 = vpop.f32.mrf.mxu0
  %4437 = vmatprep.mubr.f32.mxu0 0.0
  %4438 = vmatmul.mubr.f32.gmra.mxu0 %v3860
  %v4439 = vpop.f32.mrf.mxu0
  %v4440 = vadd.f32 0.0, %v4439
  %v4441 = vpop.f32.mrf.mxu0
  %4442 = vmatprep.mubr.f32.mxu0 0.0
  %4443 = vmatmul.mubr.f32.gmra.mxu0 %v3863
  %v4444 = vpop.f32.mrf.mxu0
  %v4445 = vadd.f32 0.0, %v4444
  %v4446 = vpop.f32.mrf.mxu0
  %4447 = vmatprep.mubr.f32.mxu0 0.0
  %4448 = vmatmul.mubr.f32.gmra.mxu0 %v3866
  %v4449 = vpop.f32.mrf.mxu0
  %v4450 = vadd.f32 0.0, %v4449
  %v4451 = vpop.f32.mrf.mxu0
  %4452 = vmatprep.mubr.f32.mxu0 0.0
  %4453 = vmatmul.mubr.f32.gmra.mxu0 %v3869
  %v4454 = vpop.f32.mrf.mxu0
  %v4455 = vadd.f32 0.0, %v4454
  %v4456 = vpop.f32.mrf.mxu0
  %4457 = vmatprep.mubr.f32.mxu0 0.0
  %4458 = vmatmul.mubr.f32.gmra.mxu0 %v3872
  %v4459 = vpop.f32.mrf.mxu0
  %v4460 = vadd.f32 0.0, %v4459
  %v4461 = vpop.f32.mrf.mxu0
  %4462 = vdwg.mxu0
  %s4463 = scalar_lea.vmem %s3, 64
  %v4464 = vld [vmem:[%s4463] sm:$0xff]
  %v4465 = vld [vmem:[%s4463 + $0x8] sm:$0xff]
  %4466 = vmatprep.subr.mxu0 0.0
  %4467 = vmatpush1.msra.mxu0 0.0
  %4468 = vmatprep.subr.mxu0 0.0
  %4469 = vmatpush1.msra.mxu0 0.0
  %4470 = vmatprep.subr.mxu0 0.0
  %4471 = vmatpush1.msra.mxu0 0.0
  %4472 = vmatprep.subr.mxu0 0.0
  %4473 = vmatpush1.msra.mxu0 0.0
  %4474 = vmatprep.subr.mxu0 0.0
  %4475 = vmatpush1.msra.mxu0 0.0
  %4476 = vmatprep.subr.mxu0 0.0
  %4477 = vmatpush1.msra.mxu0 0.0
  %4478 = vmatprep.subr.mxu0 0.0
  %4479 = vmatpush1.msra.mxu0 0.0
  %4480 = vmatprep.subr.mxu0 0.0
  %4481 = vmatpush1.msra.mxu0 0.0
  %4482 = vmatprep.subr.mxu0 0.0
  %4483 = vmatpush1.msra.mxu0 0.0
  %4484 = vmatprep.subr.mxu0 0.0
  %4485 = vmatpush1.msra.mxu0 0.0
  %4486 = vmatprep.subr.mxu0 0.0
  %4487 = vmatpush1.msra.mxu0 0.0
  %4488 = vmatprep.subr.mxu0 0.0
  %4489 = vmatpush1.msra.mxu0 0.0
  %4490 = vmatprep.subr.mxu0 0.0
  %4491 = vmatpush1.msra.mxu0 0.0
  %4492 = vmatprep.subr.mxu0 0.0
  %4493 = vmatpush1.msra.mxu0 0.0
  %4494 = vmatprep.subr.mxu0 0.0
  %4495 = vmatpush1.msra.mxu0 %v4465
  %4496 = vmatprep.subr.mxu0 0.0
  %4497 = vmatpush1.msra.mxu0 %v4464
  %4498 = vmatprep.subr.mxu0 0.0
  %4499 = vmatpush2.msra.mxu0 0.0
  %4500 = vmatprep.subr.mxu0 0.0
  %4501 = vmatpush2.msra.mxu0 0.0
  %4502 = vmatprep.subr.mxu0 0.0
  %4503 = vmatpush2.msra.mxu0 0.0
  %4504 = vmatprep.subr.mxu0 0.0
  %4505 = vmatpush2.msra.mxu0 0.0
  %4506 = vmatprep.subr.mxu0 0.0
  %4507 = vmatpush2.msra.mxu0 0.0
  %4508 = vmatprep.subr.mxu0 0.0
  %4509 = vmatpush2.msra.mxu0 0.0
  %4510 = vmatprep.subr.mxu0 0.0
  %4511 = vmatpush2.msra.mxu0 0.0
  %4512 = vmatprep.subr.mxu0 0.0
  %4513 = vmatpush2.msra.mxu0 0.0
  %4514 = vmatprep.subr.mxu0 0.0
  %4515 = vmatpush2.msra.mxu0 0.0
  %4516 = vmatprep.subr.mxu0 0.0
  %4517 = vmatpush2.msra.mxu0 0.0
  %4518 = vmatprep.subr.mxu0 0.0
  %4519 = vmatpush2.msra.mxu0 0.0
  %4520 = vmatprep.subr.mxu0 0.0
  %4521 = vmatpush2.msra.mxu0 0.0
  %4522 = vmatprep.subr.mxu0 0.0
  %4523 = vmatpush2.msra.mxu0 0.0
  %4524 = vmatprep.subr.mxu0 0.0
  %4525 = vmatpush2.msra.mxu0 0.0
  %4526 = vmatprep.subr.mxu0 0.0
  %4527 = vmatpush2.msra.mxu0 0.0
  %4528 = vmatprep.subr.mxu0 0.0
  %4529 = vmatpush2.msra.mxu0 0.0
  %4530 = vmatprep.mubr.f32.mxu0 0.0
  %4531 = vmatmul.mubr.f32.gmra.mxu0 %v3827
  %v4532 = vpop.f32.mrf.mxu0
  %v4533 = vadd.f32 0.0, %v4532
  %v4534 = vpop.f32.mrf.mxu0
  %4535 = vmatprep.mubr.f32.mxu0 0.0
  %4536 = vmatmul.mubr.f32.gmra.mxu0 %v3830
  %v4537 = vpop.f32.mrf.mxu0
  %v4538 = vadd.f32 0.0, %v4537
  %v4539 = vpop.f32.mrf.mxu0
  %4540 = vmatprep.mubr.f32.mxu0 0.0
  %4541 = vmatmul.mubr.f32.gmra.mxu0 %v3833
  %v4542 = vpop.f32.mrf.mxu0
  %v4543 = vadd.f32 0.0, %v4542
  %v4544 = vpop.f32.mrf.mxu0
  %4545 = vmatprep.mubr.f32.mxu0 0.0
  %4546 = vmatmul.mubr.f32.gmra.mxu0 %v3836
  %v4547 = vpop.f32.mrf.mxu0
  %v4548 = vadd.f32 0.0, %v4547
  %v4549 = vpop.f32.mrf.mxu0
  %4550 = vmatprep.mubr.f32.mxu0 0.0
  %4551 = vmatmul.mubr.f32.gmra.mxu0 %v3839
  %v4552 = vpop.f32.mrf.mxu0
  %v4553 = vadd.f32 0.0, %v4552
  %v4554 = vpop.f32.mrf.mxu0
  %4555 = vmatprep.mubr.f32.mxu0 0.0
  %4556 = vmatmul.mubr.f32.gmra.mxu0 %v3842
  %v4557 = vpop.f32.mrf.mxu0
  %v4558 = vadd.f32 0.0, %v4557
  %v4559 = vpop.f32.mrf.mxu0
  %4560 = vmatprep.mubr.f32.mxu0 0.0
  %4561 = vmatmul.mubr.f32.gmra.mxu0 %v3845
  %v4562 = vpop.f32.mrf.mxu0
  %v4563 = vadd.f32 0.0, %v4562
  %v4564 = vpop.f32.mrf.mxu0
  %4565 = vmatprep.mubr.f32.mxu0 0.0
  %4566 = vmatmul.mubr.f32.gmra.mxu0 %v3848
  %v4567 = vpop.f32.mrf.mxu0
  %v4568 = vadd.f32 0.0, %v4567
  %v4569 = vpop.f32.mrf.mxu0
  %4570 = vmatprep.mubr.f32.mxu0 0.0
  %4571 = vmatmul.mubr.f32.gmra.mxu0 %v3851
  %v4572 = vpop.f32.mrf.mxu0
  %v4573 = vadd.f32 0.0, %v4572
  %v4574 = vpop.f32.mrf.mxu0
  %4575 = vmatprep.mubr.f32.mxu0 0.0
  %4576 = vmatmul.mubr.f32.gmra.mxu0 %v3854
  %v4577 = vpop.f32.mrf.mxu0
  %v4578 = vadd.f32 0.0, %v4577
  %v4579 = vpop.f32.mrf.mxu0
  %4580 = vmatprep.mubr.f32.mxu0 0.0
  %4581 = vmatmul.mubr.f32.gmra.mxu0 %v3857
  %v4582 = vpop.f32.mrf.mxu0
  %v4583 = vadd.f32 0.0, %v4582
  %v4584 = vpop.f32.mrf.mxu0
  %4585 = vmatprep.mubr.f32.mxu0 0.0
  %4586 = vmatmul.mubr.f32.gmra.mxu0 %v3860
  %v4587 = vpop.f32.mrf.mxu0
  %v4588 = vadd.f32 0.0, %v4587
  %v4589 = vpop.f32.mrf.mxu0
  %4590 = vmatprep.mubr.f32.mxu0 0.0
  %4591 = vmatmul.mubr.f32.gmra.mxu0 %v3863
  %v4592 = vpop.f32.mrf.mxu0
  %v4593 = vadd.f32 0.0, %v4592
  %v4594 = vpop.f32.mrf.mxu0
  %4595 = vmatprep.mubr.f32.mxu0 0.0
  %4596 = vmatmul.mubr.f32.gmra.mxu0 %v3866
  %v4597 = vpop.f32.mrf.mxu0
  %v4598 = vadd.f32 0.0, %v4597
  %v4599 = vpop.f32.mrf.mxu0
  %4600 = vmatprep.mubr.f32.mxu0 0.0
  %4601 = vmatmul.mubr.f32.gmra.mxu0 %v3869
  %v4602 = vpop.f32.mrf.mxu0
  %v4603 = vadd.f32 0.0, %v4602
  %v4604 = vpop.f32.mrf.mxu0
  %4605 = vmatprep.mubr.f32.mxu0 0.0
  %4606 = vmatmul.mubr.f32.gmra.mxu0 %v3872
  %v4607 = vpop.f32.mrf.mxu0
  %v4608 = vadd.f32 0.0, %v4607
  %v4609 = vpop.f32.mrf.mxu0
  %4610 = vdwg.mxu0
  %s4611 = scalar_lea.vmem %s3, 80
  %v4612 = vld [vmem:[%s4611] sm:$0xff]
  %v4613 = vld [vmem:[%s4611 + $0x8] sm:$0xff]
  %4614 = vmatprep.subr.mxu0 0.0
  %4615 = vmatpush1.msra.mxu0 0.0
  %4616 = vmatprep.subr.mxu0 0.0
  %4617 = vmatpush1.msra.mxu0 0.0
  %4618 = vmatprep.subr.mxu0 0.0
  %4619 = vmatpush1.msra.mxu0 0.0
  %4620 = vmatprep.subr.mxu0 0.0
  %4621 = vmatpush1.msra.mxu0 0.0
  %4622 = vmatprep.subr.mxu0 0.0
  %4623 = vmatpush1.msra.mxu0 0.0
  %4624 = vmatprep.subr.mxu0 0.0
  %4625 = vmatpush1.msra.mxu0 0.0
  %4626 = vmatprep.subr.mxu0 0.0
  %4627 = vmatpush1.msra.mxu0 0.0
  %4628 = vmatprep.subr.mxu0 0.0
  %4629 = vmatpush1.msra.mxu0 0.0
  %4630 = vmatprep.subr.mxu0 0.0
  %4631 = vmatpush1.msra.mxu0 0.0
  %4632 = vmatprep.subr.mxu0 0.0
  %4633 = vmatpush1.msra.mxu0 0.0
  %4634 = vmatprep.subr.mxu0 0.0
  %4635 = vmatpush1.msra.mxu0 0.0
  %4636 = vmatprep.subr.mxu0 0.0
  %4637 = vmatpush1.msra.mxu0 0.0
  %4638 = vmatprep.subr.mxu0 0.0
  %4639 = vmatpush1.msra.mxu0 0.0
  %4640 = vmatprep.subr.mxu0 0.0
  %4641 = vmatpush1.msra.mxu0 0.0
  %4642 = vmatprep.subr.mxu0 0.0
  %4643 = vmatpush1.msra.mxu0 %v4613
  %4644 = vmatprep.subr.mxu0 0.0
  %4645 = vmatpush1.msra.mxu0 %v4612
  %4646 = vmatprep.subr.mxu0 0.0
  %4647 = vmatpush2.msra.mxu0 0.0
  %4648 = vmatprep.subr.mxu0 0.0
  %4649 = vmatpush2.msra.mxu0 0.0
  %4650 = vmatprep.subr.mxu0 0.0
  %4651 = vmatpush2.msra.mxu0 0.0
  %4652 = vmatprep.subr.mxu0 0.0
  %4653 = vmatpush2.msra.mxu0 0.0
  %4654 = vmatprep.subr.mxu0 0.0
  %4655 = vmatpush2.msra.mxu0 0.0
  %4656 = vmatprep.subr.mxu0 0.0
  %4657 = vmatpush2.msra.mxu0 0.0
  %4658 = vmatprep.subr.mxu0 0.0
  %4659 = vmatpush2.msra.mxu0 0.0
  %4660 = vmatprep.subr.mxu0 0.0
  %4661 = vmatpush2.msra.mxu0 0.0
  %4662 = vmatprep.subr.mxu0 0.0
  %4663 = vmatpush2.msra.mxu0 0.0
  %4664 = vmatprep.subr.mxu0 0.0
  %4665 = vmatpush2.msra.mxu0 0.0
  %4666 = vmatprep.subr.mxu0 0.0
  %4667 = vmatpush2.msra.mxu0 0.0
  %4668 = vmatprep.subr.mxu0 0.0
  %4669 = vmatpush2.msra.mxu0 0.0
  %4670 = vmatprep.subr.mxu0 0.0
  %4671 = vmatpush2.msra.mxu0 0.0
  %4672 = vmatprep.subr.mxu0 0.0
  %4673 = vmatpush2.msra.mxu0 0.0
  %4674 = vmatprep.subr.mxu0 0.0
  %4675 = vmatpush2.msra.mxu0 0.0
  %4676 = vmatprep.subr.mxu0 0.0
  %4677 = vmatpush2.msra.mxu0 0.0
  %4678 = vmatprep.mubr.f32.mxu0 0.0
  %4679 = vmatmul.mubr.f32.gmra.mxu0 %v3827
  %v4680 = vpop.f32.mrf.mxu0
  %v4681 = vadd.f32 0.0, %v4680
  %v4682 = vpop.f32.mrf.mxu0
  %4683 = vmatprep.mubr.f32.mxu0 0.0
  %4684 = vmatmul.mubr.f32.gmra.mxu0 %v3830
  %v4685 = vpop.f32.mrf.mxu0
  %v4686 = vadd.f32 0.0, %v4685
  %v4687 = vpop.f32.mrf.mxu0
  %4688 = vmatprep.mubr.f32.mxu0 0.0
  %4689 = vmatmul.mubr.f32.gmra.mxu0 %v3833
  %v4690 = vpop.f32.mrf.mxu0
  %v4691 = vadd.f32 0.0, %v4690
  %v4692 = vpop.f32.mrf.mxu0
  %4693 = vmatprep.mubr.f32.mxu0 0.0
  %4694 = vmatmul.mubr.f32.gmra.mxu0 %v3836
  %v4695 = vpop.f32.mrf.mxu0
  %v4696 = vadd.f32 0.0, %v4695
  %v4697 = vpop.f32.mrf.mxu0
  %4698 = vmatprep.mubr.f32.mxu0 0.0
  %4699 = vmatmul.mubr.f32.gmra.mxu0 %v3839
  %v4700 = vpop.f32.mrf.mxu0
  %v4701 = vadd.f32 0.0, %v4700
  %v4702 = vpop.f32.mrf.mxu0
  %4703 = vmatprep.mubr.f32.mxu0 0.0
  %4704 = vmatmul.mubr.f32.gmra.mxu0 %v3842
  %v4705 = vpop.f32.mrf.mxu0
  %v4706 = vadd.f32 0.0, %v4705
  %v4707 = vpop.f32.mrf.mxu0
  %4708 = vmatprep.mubr.f32.mxu0 0.0
  %4709 = vmatmul.mubr.f32.gmra.mxu0 %v3845
  %v4710 = vpop.f32.mrf.mxu0
  %v4711 = vadd.f32 0.0, %v4710
  %v4712 = vpop.f32.mrf.mxu0
  %4713 = vmatprep.mubr.f32.mxu0 0.0
  %4714 = vmatmul.mubr.f32.gmra.mxu0 %v3848
  %v4715 = vpop.f32.mrf.mxu0
  %v4716 = vadd.f32 0.0, %v4715
  %v4717 = vpop.f32.mrf.mxu0
  %4718 = vmatprep.mubr.f32.mxu0 0.0
  %4719 = vmatmul.mubr.f32.gmra.mxu0 %v3851
  %v4720 = vpop.f32.mrf.mxu0
  %v4721 = vadd.f32 0.0, %v4720
  %v4722 = vpop.f32.mrf.mxu0
  %4723 = vmatprep.mubr.f32.mxu0 0.0
  %4724 = vmatmul.mubr.f32.gmra.mxu0 %v3854
  %v4725 = vpop.f32.mrf.mxu0
  %v4726 = vadd.f32 0.0, %v4725
  %v4727 = vpop.f32.mrf.mxu0
  %4728 = vmatprep.mubr.f32.mxu0 0.0
  %4729 = vmatmul.mubr.f32.gmra.mxu0 %v3857
  %v4730 = vpop.f32.mrf.mxu0
  %v4731 = vadd.f32 0.0, %v4730
  %v4732 = vpop.f32.mrf.mxu0
  %4733 = vmatprep.mubr.f32.mxu0 0.0
  %4734 = vmatmul.mubr.f32.gmra.mxu0 %v3860
  %v4735 = vpop.f32.mrf.mxu0
  %v4736 = vadd.f32 0.0, %v4735
  %v4737 = vpop.f32.mrf.mxu0
  %4738 = vmatprep.mubr.f32.mxu0 0.0
  %4739 = vmatmul.mubr.f32.gmra.mxu0 %v3863
  %v4740 = vpop.f32.mrf.mxu0
  %v4741 = vadd.f32 0.0, %v4740
  %v4742 = vpop.f32.mrf.mxu0
  %4743 = vmatprep.mubr.f32.mxu0 0.0
  %4744 = vmatmul.mubr.f32.gmra.mxu0 %v3866
  %v4745 = vpop.f32.mrf.mxu0
  %v4746 = vadd.f32 0.0, %v4745
  %v4747 = vpop.f32.mrf.mxu0
  %4748 = vmatprep.mubr.f32.mxu0 0.0
  %4749 = vmatmul.mubr.f32.gmra.mxu0 %v3869
  %v4750 = vpop.f32.mrf.mxu0
  %v4751 = vadd.f32 0.0, %v4750
  %v4752 = vpop.f32.mrf.mxu0
  %4753 = vmatprep.mubr.f32.mxu0 0.0
  %4754 = vmatmul.mubr.f32.gmra.mxu0 %v3872
  %v4755 = vpop.f32.mrf.mxu0
  %v4756 = vadd.f32 0.0, %v4755
  %v4757 = vpop.f32.mrf.mxu0
  %4758 = vdwg.mxu0
  %s4759 = scalar_lea.vmem %s3, 96
  %v4760 = vld [vmem:[%s4759] sm:$0xff]
  %v4761 = vld [vmem:[%s4759 + $0x8] sm:$0xff]
  %4762 = vmatprep.subr.mxu0 0.0
  %4763 = vmatpush1.msra.mxu0 0.0
  %4764 = vmatprep.subr.mxu0 0.0
  %4765 = vmatpush1.msra.mxu0 0.0
  %4766 = vmatprep.subr.mxu0 0.0
  %4767 = vmatpush1.msra.mxu0 0.0
  %4768 = vmatprep.subr.mxu0 0.0
  %4769 = vmatpush1.msra.mxu0 0.0
  %4770 = vmatprep.subr.mxu0 0.0
  %4771 = vmatpush1.msra.mxu0 0.0
  %4772 = vmatprep.subr.mxu0 0.0
  %4773 = vmatpush1.msra.mxu0 0.0
  %4774 = vmatprep.subr.mxu0 0.0
  %4775 = vmatpush1.msra.mxu0 0.0
  %4776 = vmatprep.subr.mxu0 0.0
  %4777 = vmatpush1.msra.mxu0 0.0
  %4778 = vmatprep.subr.mxu0 0.0
  %4779 = vmatpush1.msra.mxu0 0.0
  %4780 = vmatprep.subr.mxu0 0.0
  %4781 = vmatpush1.msra.mxu0 0.0
  %4782 = vmatprep.subr.mxu0 0.0
  %4783 = vmatpush1.msra.mxu0 0.0
  %4784 = vmatprep.subr.mxu0 0.0
  %4785 = vmatpush1.msra.mxu0 0.0
  %4786 = vmatprep.subr.mxu0 0.0
  %4787 = vmatpush1.msra.mxu0 0.0
  %4788 = vmatprep.subr.mxu0 0.0
  %4789 = vmatpush1.msra.mxu0 0.0
  %4790 = vmatprep.subr.mxu0 0.0
  %4791 = vmatpush1.msra.mxu0 %v4761
  %4792 = vmatprep.subr.mxu0 0.0
  %4793 = vmatpush1.msra.mxu0 %v4760
  %4794 = vmatprep.subr.mxu0 0.0
  %4795 = vmatpush2.msra.mxu0 0.0
  %4796 = vmatprep.subr.mxu0 0.0
  %4797 = vmatpush2.msra.mxu0 0.0
  %4798 = vmatprep.subr.mxu0 0.0
  %4799 = vmatpush2.msra.mxu0 0.0
  %4800 = vmatprep.subr.mxu0 0.0
  %4801 = vmatpush2.msra.mxu0 0.0
  %4802 = vmatprep.subr.mxu0 0.0
  %4803 = vmatpush2.msra.mxu0 0.0
  %4804 = vmatprep.subr.mxu0 0.0
  %4805 = vmatpush2.msra.mxu0 0.0
  %4806 = vmatprep.subr.mxu0 0.0
  %4807 = vmatpush2.msra.mxu0 0.0
  %4808 = vmatprep.subr.mxu0 0.0
  %4809 = vmatpush2.msra.mxu0 0.0
  %4810 = vmatprep.subr.mxu0 0.0
  %4811 = vmatpush2.msra.mxu0 0.0
  %4812 = vmatprep.subr.mxu0 0.0
  %4813 = vmatpush2.msra.mxu0 0.0
  %4814 = vmatprep.subr.mxu0 0.0
  %4815 = vmatpush2.msra.mxu0 0.0
  %4816 = vmatprep.subr.mxu0 0.0
  %4817 = vmatpush2.msra.mxu0 0.0
  %4818 = vmatprep.subr.mxu0 0.0
  %4819 = vmatpush2.msra.mxu0 0.0
  %4820 = vmatprep.subr.mxu0 0.0
  %4821 = vmatpush2.msra.mxu0 0.0
  %4822 = vmatprep.subr.mxu0 0.0
  %4823 = vmatpush2.msra.mxu0 0.0
  %4824 = vmatprep.subr.mxu0 0.0
  %4825 = vmatpush2.msra.mxu0 0.0
  %4826 = vmatprep.mubr.f32.mxu0 0.0
  %4827 = vmatmul.mubr.f32.gmra.mxu0 %v3827
  %v4828 = vpop.f32.mrf.mxu0
  %v4829 = vadd.f32 0.0, %v4828
  %v4830 = vpop.f32.mrf.mxu0
  %4831 = vmatprep.mubr.f32.mxu0 0.0
  %4832 = vmatmul.mubr.f32.gmra.mxu0 %v3830
  %v4833 = vpop.f32.mrf.mxu0
  %v4834 = vadd.f32 0.0, %v4833
  %v4835 = vpop.f32.mrf.mxu0
  %4836 = vmatprep.mubr.f32.mxu0 0.0
  %4837 = vmatmul.mubr.f32.gmra.mxu0 %v3833
  %v4838 = vpop.f32.mrf.mxu0
  %v4839 = vadd.f32 0.0, %v4838
  %v4840 = vpop.f32.mrf.mxu0
  %4841 = vmatprep.mubr.f32.mxu0 0.0
  %4842 = vmatmul.mubr.f32.gmra.mxu0 %v3836
  %v4843 = vpop.f32.mrf.mxu0
  %v4844 = vadd.f32 0.0, %v4843
  %v4845 = vpop.f32.mrf.mxu0
  %4846 = vmatprep.mubr.f32.mxu0 0.0
  %4847 = vmatmul.mubr.f32.gmra.mxu0 %v3839
  %v4848 = vpop.f32.mrf.mxu0
  %v4849 = vadd.f32 0.0, %v4848
  %v4850 = vpop.f32.mrf.mxu0
  %4851 = vmatprep.mubr.f32.mxu0 0.0
  %4852 = vmatmul.mubr.f32.gmra.mxu0 %v3842
  %v4853 = vpop.f32.mrf.mxu0
  %v4854 = vadd.f32 0.0, %v4853
  %v4855 = vpop.f32.mrf.mxu0
  %4856 = vmatprep.mubr.f32.mxu0 0.0
  %4857 = vmatmul.mubr.f32.gmra.mxu0 %v3845
  %v4858 = vpop.f32.mrf.mxu0
  %v4859 = vadd.f32 0.0, %v4858
  %v4860 = vpop.f32.mrf.mxu0
  %4861 = vmatprep.mubr.f32.mxu0 0.0
  %4862 = vmatmul.mubr.f32.gmra.mxu0 %v3848
  %v4863 = vpop.f32.mrf.mxu0
  %v4864 = vadd.f32 0.0, %v4863
  %v4865 = vpop.f32.mrf.mxu0
  %4866 = vmatprep.mubr.f32.mxu0 0.0
  %4867 = vmatmul.mubr.f32.gmra.mxu0 %v3851
  %v4868 = vpop.f32.mrf.mxu0
  %v4869 = vadd.f32 0.0, %v4868
  %v4870 = vpop.f32.mrf.mxu0
  %4871 = vmatprep.mubr.f32.mxu0 0.0
  %4872 = vmatmul.mubr.f32.gmra.mxu0 %v3854
  %v4873 = vpop.f32.mrf.mxu0
  %v4874 = vadd.f32 0.0, %v4873
  %v4875 = vpop.f32.mrf.mxu0
  %4876 = vmatprep.mubr.f32.mxu0 0.0
  %4877 = vmatmul.mubr.f32.gmra.mxu0 %v3857
  %v4878 = vpop.f32.mrf.mxu0
  %v4879 = vadd.f32 0.0, %v4878
  %v4880 = vpop.f32.mrf.mxu0
  %4881 = vmatprep.mubr.f32.mxu0 0.0
  %4882 = vmatmul.mubr.f32.gmra.mxu0 %v3860
  %v4883 = vpop.f32.mrf.mxu0
  %v4884 = vadd.f32 0.0, %v4883
  %v4885 = vpop.f32.mrf.mxu0
  %4886 = vmatprep.mubr.f32.mxu0 0.0
  %4887 = vmatmul.mubr.f32.gmra.mxu0 %v3863
  %v4888 = vpop.f32.mrf.mxu0
  %v4889 = vadd.f32 0.0, %v4888
  %v4890 = vpop.f32.mrf.mxu0
  %4891 = vmatprep.mubr.f32.mxu0 0.0
  %4892 = vmatmul.mubr.f32.gmra.mxu0 %v3866
  %v4893 = vpop.f32.mrf.mxu0
  %v4894 = vadd.f32 0.0, %v4893
  %v4895 = vpop.f32.mrf.mxu0
  %4896 = vmatprep.mubr.f32.mxu0 0.0
  %4897 = vmatmul.mubr.f32.gmra.mxu0 %v3869
  %v4898 = vpop.f32.mrf.mxu0
  %v4899 = vadd.f32 0.0, %v4898
  %v4900 = vpop.f32.mrf.mxu0
  %4901 = vmatprep.mubr.f32.mxu0 0.0
  %4902 = vmatmul.mubr.f32.gmra.mxu0 %v3872
  %v4903 = vpop.f32.mrf.mxu0
  %v4904 = vadd.f32 0.0, %v4903
  %v4905 = vpop.f32.mrf.mxu0
  %4906 = vdwg.mxu0
  %s4907 = scalar_lea.vmem %s3, 112
  %v4908 = vld [vmem:[%s4907] sm:$0xff]
  %v4909 = vld [vmem:[%s4907 + $0x8] sm:$0xff]
  %4910 = vmatprep.subr.mxu0 0.0
  %4911 = vmatpush1.msra.mxu0 0.0
  %4912 = vmatprep.subr.mxu0 0.0
  %4913 = vmatpush1.msra.mxu0 0.0
  %4914 = vmatprep.subr.mxu0 0.0
  %4915 = vmatpush1.msra.mxu0 0.0
  %4916 = vmatprep.subr.mxu0 0.0
  %4917 = vmatpush1.msra.mxu0 0.0
  %4918 = vmatprep.subr.mxu0 0.0
  %4919 = vmatpush1.msra.mxu0 0.0
  %4920 = vmatprep.subr.mxu0 0.0
  %4921 = vmatpush1.msra.mxu0 0.0
  %4922 = vmatprep.subr.mxu0 0.0
  %4923 = vmatpush1.msra.mxu0 0.0
  %4924 = vmatprep.subr.mxu0 0.0
  %4925 = vmatpush1.msra.mxu0 0.0
  %4926 = vmatprep.subr.mxu0 0.0
  %4927 = vmatpush1.msra.mxu0 0.0
  %4928 = vmatprep.subr.mxu0 0.0
  %4929 = vmatpush1.msra.mxu0 0.0
  %4930 = vmatprep.subr.mxu0 0.0
  %4931 = vmatpush1.msra.mxu0 0.0
  %4932 = vmatprep.subr.mxu0 0.0
  %4933 = vmatpush1.msra.mxu0 0.0
  %4934 = vmatprep.subr.mxu0 0.0
  %4935 = vmatpush1.msra.mxu0 0.0
  %4936 = vmatprep.subr.mxu0 0.0
  %4937 = vmatpush1.msra.mxu0 0.0
  %4938 = vmatprep.subr.mxu0 0.0
  %4939 = vmatpush1.msra.mxu0 %v4909
  %4940 = vmatprep.subr.mxu0 0.0
  %4941 = vmatpush1.msra.mxu0 %v4908
  %4942 = vmatprep.subr.mxu0 0.0
  %4943 = vmatpush2.msra.mxu0 0.0
  %4944 = vmatprep.subr.mxu0 0.0
  %4945 = vmatpush2.msra.mxu0 0.0
  %4946 = vmatprep.subr.mxu0 0.0
  %4947 = vmatpush2.msra.mxu0 0.0
  %4948 = vmatprep.subr.mxu0 0.0
  %4949 = vmatpush2.msra.mxu0 0.0
  %4950 = vmatprep.subr.mxu0 0.0
  %4951 = vmatpush2.msra.mxu0 0.0
  %4952 = vmatprep.subr.mxu0 0.0
  %4953 = vmatpush2.msra.mxu0 0.0
  %4954 = vmatprep.subr.mxu0 0.0
  %4955 = vmatpush2.msra.mxu0 0.0
  %4956 = vmatprep.subr.mxu0 0.0
  %4957 = vmatpush2.msra.mxu0 0.0
  %4958 = vmatprep.subr.mxu0 0.0
  %4959 = vmatpush2.msra.mxu0 0.0
  %4960 = vmatprep.subr.mxu0 0.0
  %4961 = vmatpush2.msra.mxu0 0.0
  %4962 = vmatprep.subr.mxu0 0.0
  %4963 = vmatpush2.msra.mxu0 0.0
  %4964 = vmatprep.subr.mxu0 0.0
  %4965 = vmatpush2.msra.mxu0 0.0
  %4966 = vmatprep.subr.mxu0 0.0
  %4967 = vmatpush2.msra.mxu0 0.0
  %4968 = vmatprep.subr.mxu0 0.0
  %4969 = vmatpush2.msra.mxu0 0.0
  %4970 = vmatprep.subr.mxu0 0.0
  %4971 = vmatpush2.msra.mxu0 0.0
  %4972 = vmatprep.subr.mxu0 0.0
  %4973 = vmatpush2.msra.mxu0 0.0
  %4974 = vmatprep.mubr.f32.mxu0 0.0
  %4975 = vmatmul.mubr.f32.gmra.mxu0 %v3827
  %v4976 = vpop.f32.mrf.mxu0
  %v4977 = vadd.f32 0.0, %v4976
  %v4978 = vpop.f32.mrf.mxu0
  %4979 = vmatprep.mubr.f32.mxu0 0.0
  %4980 = vmatmul.mubr.f32.gmra.mxu0 %v3830
  %v4981 = vpop.f32.mrf.mxu0
  %v4982 = vadd.f32 0.0, %v4981
  %v4983 = vpop.f32.mrf.mxu0
  %4984 = vmatprep.mubr.f32.mxu0 0.0
  %4985 = vmatmul.mubr.f32.gmra.mxu0 %v3833
  %v4986 = vpop.f32.mrf.mxu0
  %v4987 = vadd.f32 0.0, %v4986
  %v4988 = vpop.f32.mrf.mxu0
  %4989 = vmatprep.mubr.f32.mxu0 0.0
  %4990 = vmatmul.mubr.f32.gmra.mxu0 %v3836
  %v4991 = vpop.f32.mrf.mxu0
  %v4992 = vadd.f32 0.0, %v4991
  %v4993 = vpop.f32.mrf.mxu0
  %4994 = vmatprep.mubr.f32.mxu0 0.0
  %4995 = vmatmul.mubr.f32.gmra.mxu0 %v3839
  %v4996 = vpop.f32.mrf.mxu0
  %v4997 = vadd.f32 0.0, %v4996
  %v4998 = vpop.f32.mrf.mxu0
  %4999 = vmatprep.mubr.f32.mxu0 0.0
  %5000 = vmatmul.mubr.f32.gmra.mxu0 %v3842
  %v5001 = vpop.f32.mrf.mxu0
  %v5002 = vadd.f32 0.0, %v5001
  %v5003 = vpop.f32.mrf.mxu0
  %5004 = vmatprep.mubr.f32.mxu0 0.0
  %5005 = vmatmul.mubr.f32.gmra.mxu0 %v3845
  %v5006 = vpop.f32.mrf.mxu0
  %v5007 = vadd.f32 0.0, %v5006
  %v5008 = vpop.f32.mrf.mxu0
  %5009 = vmatprep.mubr.f32.mxu0 0.0
  %5010 = vmatmul.mubr.f32.gmra.mxu0 %v3848
  %v5011 = vpop.f32.mrf.mxu0
  %v5012 = vadd.f32 0.0, %v5011
  %v5013 = vpop.f32.mrf.mxu0
  %5014 = vmatprep.mubr.f32.mxu0 0.0
  %5015 = vmatmul.mubr.f32.gmra.mxu0 %v3851
  %v5016 = vpop.f32.mrf.mxu0
  %v5017 = vadd.f32 0.0, %v5016
  %v5018 = vpop.f32.mrf.mxu0
  %5019 = vmatprep.mubr.f32.mxu0 0.0
  %5020 = vmatmul.mubr.f32.gmra.mxu0 %v3854
  %v5021 = vpop.f32.mrf.mxu0
  %v5022 = vadd.f32 0.0, %v5021
  %v5023 = vpop.f32.mrf.mxu0
  %5024 = vmatprep.mubr.f32.mxu0 0.0
  %5025 = vmatmul.mubr.f32.gmra.mxu0 %v3857
  %v5026 = vpop.f32.mrf.mxu0
  %v5027 = vadd.f32 0.0, %v5026
  %v5028 = vpop.f32.mrf.mxu0
  %5029 = vmatprep.mubr.f32.mxu0 0.0
  %5030 = vmatmul.mubr.f32.gmra.mxu0 %v3860
  %v5031 = vpop.f32.mrf.mxu0
  %v5032 = vadd.f32 0.0, %v5031
  %v5033 = vpop.f32.mrf.mxu0
  %5034 = vmatprep.mubr.f32.mxu0 0.0
  %5035 = vmatmul.mubr.f32.gmra.mxu0 %v3863
  %v5036 = vpop.f32.mrf.mxu0
  %v5037 = vadd.f32 0.0, %v5036
  %v5038 = vpop.f32.mrf.mxu0
  %5039 = vmatprep.mubr.f32.mxu0 0.0
  %5040 = vmatmul.mubr.f32.gmra.mxu0 %v3866
  %v5041 = vpop.f32.mrf.mxu0
  %v5042 = vadd.f32 0.0, %v5041
  %v5043 = vpop.f32.mrf.mxu0
  %5044 = vmatprep.mubr.f32.mxu0 0.0
  %5045 = vmatmul.mubr.f32.gmra.mxu0 %v3869
  %v5046 = vpop.f32.mrf.mxu0
  %v5047 = vadd.f32 0.0, %v5046
  %v5048 = vpop.f32.mrf.mxu0
  %5049 = vmatprep.mubr.f32.mxu0 0.0
  %5050 = vmatmul.mubr.f32.gmra.mxu0 %v3872
  %v5051 = vpop.f32.mrf.mxu0
  %v5052 = vadd.f32 0.0, %v5051
  %v5053 = vpop.f32.mrf.mxu0
  %5054 = vdwg.mxu0
  %s5055 = scalar_lea.vmem %s3, 128
  %v5056 = vld [vmem:[%s5055] sm:$0xff]
  %v5057 = vld [vmem:[%s5055 + $0x8] sm:$0xff]
  %5058 = vmatprep.subr.mxu0 0.0
  %5059 = vmatpush1.msra.mxu0 0.0
  %5060 = vmatprep.subr.mxu0 0.0
  %5061 = vmatpush1.msra.mxu0 0.0
  %5062 = vmatprep.subr.mxu0 0.0
  %5063 = vmatpush1.msra.mxu0 0.0
  %5064 = vmatprep.subr.mxu0 0.0
  %5065 = vmatpush1.msra.mxu0 0.0
  %5066 = vmatprep.subr.mxu0 0.0
  %5067 = vmatpush1.msra.mxu0 0.0
  %5068 = vmatprep.subr.mxu0 0.0
  %5069 = vmatpush1.msra.mxu0 0.0
  %5070 = vmatprep.subr.mxu0 0.0
  %5071 = vmatpush1.msra.mxu0 0.0
  %5072 = vmatprep.subr.mxu0 0.0
  %5073 = vmatpush1.msra.mxu0 0.0
  %5074 = vmatprep.subr.mxu0 0.0
  %5075 = vmatpush1.msra.mxu0 0.0
  %5076 = vmatprep.subr.mxu0 0.0
  %5077 = vmatpush1.msra.mxu0 0.0
  %5078 = vmatprep.subr.mxu0 0.0
  %5079 = vmatpush1.msra.mxu0 0.0
  %5080 = vmatprep.subr.mxu0 0.0
  %5081 = vmatpush1.msra.mxu0 0.0
  %5082 = vmatprep.subr.mxu0 0.0
  %5083 = vmatpush1.msra.mxu0 0.0
  %5084 = vmatprep.subr.mxu0 0.0
  %5085 = vmatpush1.msra.mxu0 0.0
  %5086 = vmatprep.subr.mxu0 0.0
  %5087 = vmatpush1.msra.mxu0 %v5057
  %5088 = vmatprep.subr.mxu0 0.0
  %5089 = vmatpush1.msra.mxu0 %v5056
  %5090 = vmatprep.subr.mxu0 0.0
  %5091 = vmatpush2.msra.mxu0 0.0
  %5092 = vmatprep.subr.mxu0 0.0
  %5093 = vmatpush2.msra.mxu0 0.0
  %5094 = vmatprep.subr.mxu0 0.0
  %5095 = vmatpush2.msra.mxu0 0.0
  %5096 = vmatprep.subr.mxu0 0.0
  %5097 = vmatpush2.msra.mxu0 0.0
  %5098 = vmatprep.subr.mxu0 0.0
  %5099 = vmatpush2.msra.mxu0 0.0
  %5100 = vmatprep.subr.mxu0 0.0
  %5101 = vmatpush2.msra.mxu0 0.0
  %5102 = vmatprep.subr.mxu0 0.0
  %5103 = vmatpush2.msra.mxu0 0.0
  %5104 = vmatprep.subr.mxu0 0.0
  %5105 = vmatpush2.msra.mxu0 0.0
  %5106 = vmatprep.subr.mxu0 0.0
  %5107 = vmatpush2.msra.mxu0 0.0
  %5108 = vmatprep.subr.mxu0 0.0
  %5109 = vmatpush2.msra.mxu0 0.0
  %5110 = vmatprep.subr.mxu0 0.0
  %5111 = vmatpush2.msra.mxu0 0.0
  %5112 = vmatprep.subr.mxu0 0.0
  %5113 = vmatpush2.msra.mxu0 0.0
  %5114 = vmatprep.subr.mxu0 0.0
  %5115 = vmatpush2.msra.mxu0 0.0
  %5116 = vmatprep.subr.mxu0 0.0
  %5117 = vmatpush2.msra.mxu0 0.0
  %5118 = vmatprep.subr.mxu0 0.0
  %5119 = vmatpush2.msra.mxu0 0.0
  %5120 = vmatprep.subr.mxu0 0.0
  %5121 = vmatpush2.msra.mxu0 0.0
  %5122 = vmatprep.mubr.f32.mxu0 0.0
  %5123 = vmatmul.mubr.f32.gmra.mxu0 %v3827
  %v5124 = vpop.f32.mrf.mxu0
  %v5125 = vadd.f32 0.0, %v5124
  %v5126 = vpop.f32.mrf.mxu0
  %5127 = vmatprep.mubr.f32.mxu0 0.0
  %5128 = vmatmul.mubr.f32.gmra.mxu0 %v3830
  %v5129 = vpop.f32.mrf.mxu0
  %v5130 = vadd.f32 0.0, %v5129
  %v5131 = vpop.f32.mrf.mxu0
  %5132 = vmatprep.mubr.f32.mxu0 0.0
  %5133 = vmatmul.mubr.f32.gmra.mxu0 %v3833
  %v5134 = vpop.f32.mrf.mxu0
  %v5135 = vadd.f32 0.0, %v5134
  %v5136 = vpop.f32.mrf.mxu0
  %5137 = vmatprep.mubr.f32.mxu0 0.0
  %5138 = vmatmul.mubr.f32.gmra.mxu0 %v3836
  %v5139 = vpop.f32.mrf.mxu0
  %v5140 = vadd.f32 0.0, %v5139
  %v5141 = vpop.f32.mrf.mxu0
  %5142 = vmatprep.mubr.f32.mxu0 0.0
  %5143 = vmatmul.mubr.f32.gmra.mxu0 %v3839
  %v5144 = vpop.f32.mrf.mxu0
  %v5145 = vadd.f32 0.0, %v5144
  %v5146 = vpop.f32.mrf.mxu0
  %5147 = vmatprep.mubr.f32.mxu0 0.0
  %5148 = vmatmul.mubr.f32.gmra.mxu0 %v3842
  %v5149 = vpop.f32.mrf.mxu0
  %v5150 = vadd.f32 0.0, %v5149
  %v5151 = vpop.f32.mrf.mxu0
  %5152 = vmatprep.mubr.f32.mxu0 0.0
  %5153 = vmatmul.mubr.f32.gmra.mxu0 %v3845
  %v5154 = vpop.f32.mrf.mxu0
  %v5155 = vadd.f32 0.0, %v5154
  %v5156 = vpop.f32.mrf.mxu0
  %5157 = vmatprep.mubr.f32.mxu0 0.0
  %5158 = vmatmul.mubr.f32.gmra.mxu0 %v3848
  %v5159 = vpop.f32.mrf.mxu0
  %v5160 = vadd.f32 0.0, %v5159
  %v5161 = vpop.f32.mrf.mxu0
  %5162 = vmatprep.mubr.f32.mxu0 0.0
  %5163 = vmatmul.mubr.f32.gmra.mxu0 %v3851
  %v5164 = vpop.f32.mrf.mxu0
  %v5165 = vadd.f32 0.0, %v5164
  %v5166 = vpop.f32.mrf.mxu0
  %5167 = vmatprep.mubr.f32.mxu0 0.0
  %5168 = vmatmul.mubr.f32.gmra.mxu0 %v3854
  %v5169 = vpop.f32.mrf.mxu0
  %v5170 = vadd.f32 0.0, %v5169
  %v5171 = vpop.f32.mrf.mxu0
  %5172 = vmatprep.mubr.f32.mxu0 0.0
  %5173 = vmatmul.mubr.f32.gmra.mxu0 %v3857
  %v5174 = vpop.f32.mrf.mxu0
  %v5175 = vadd.f32 0.0, %v5174
  %v5176 = vpop.f32.mrf.mxu0
  %5177 = vmatprep.mubr.f32.mxu0 0.0
  %5178 = vmatmul.mubr.f32.gmra.mxu0 %v3860
  %v5179 = vpop.f32.mrf.mxu0
  %v5180 = vadd.f32 0.0, %v5179
  %v5181 = vpop.f32.mrf.mxu0
  %5182 = vmatprep.mubr.f32.mxu0 0.0
  %5183 = vmatmul.mubr.f32.gmra.mxu0 %v3863
  %v5184 = vpop.f32.mrf.mxu0
  %v5185 = vadd.f32 0.0, %v5184
  %v5186 = vpop.f32.mrf.mxu0
  %5187 = vmatprep.mubr.f32.mxu0 0.0
  %5188 = vmatmul.mubr.f32.gmra.mxu0 %v3866
  %v5189 = vpop.f32.mrf.mxu0
  %v5190 = vadd.f32 0.0, %v5189
  %v5191 = vpop.f32.mrf.mxu0
  %5192 = vmatprep.mubr.f32.mxu0 0.0
  %5193 = vmatmul.mubr.f32.gmra.mxu0 %v3869
  %v5194 = vpop.f32.mrf.mxu0
  %v5195 = vadd.f32 0.0, %v5194
  %v5196 = vpop.f32.mrf.mxu0
  %5197 = vmatprep.mubr.f32.mxu0 0.0
  %5198 = vmatmul.mubr.f32.gmra.mxu0 %v3872
  %v5199 = vpop.f32.mrf.mxu0
  %v5200 = vadd.f32 0.0, %v5199
  %v5201 = vpop.f32.mrf.mxu0
  %5202 = vdwg.mxu0
  %v5203 = vld [vmem:[%s5] sm:$0xff]
  %v5204 = vld [vmem:[%s5 + $0x8] sm:$0xff]
  %v5205 = vld [vmem:[%s5 + $0x10] sm:$0xff]
  %v5206 = vld [vmem:[%s5 + $0x18] sm:$0xff]
  %v5207 = vld [vmem:[%s5 + $0x20] sm:$0xff]
  %v5208 = vld [vmem:[%s5 + $0x28] sm:$0xff]
  %v5209 = vld [vmem:[%s5 + $0x30] sm:$0xff]
  %v5210 = vld [vmem:[%s5 + $0x38] sm:$0xff]
  %v5211 = vld [vmem:[%s5 + $0x40] sm:$0xff]
  %v5212 = vld [vmem:[%s5 + $0x48] sm:$0xff]
  %v5213 = vld [vmem:[%s5 + $0x50] sm:$0xff]
  %v5214 = vld [vmem:[%s5 + $0x58] sm:$0xff]
  %v5215 = vld [vmem:[%s5 + $0x60] sm:$0xff]
  %v5216 = vld [vmem:[%s5 + $0x68] sm:$0xff]
  %v5217 = vld [vmem:[%s5 + $0x70] sm:$0xff]
  %v5218 = vld [vmem:[%s5 + $0x78] sm:$0xff]
  %v5219 = vld [vmem:[%s5 + $0x80] sm:$0xff]
  %v5220 = vld [vmem:[%s5 + $0x88] sm:$0xff]
  %v5221 = vld [vmem:[%s5 + $0x90] sm:$0xff]
  %v5222 = vld [vmem:[%s5 + $0x98] sm:$0xff]
  %v5223 = vld [vmem:[%s5 + $0xa0] sm:$0xff]
  %v5224 = vld [vmem:[%s5 + $0xa8] sm:$0xff]
  %v5225 = vld [vmem:[%s5 + $0xb0] sm:$0xff]
  %v5226 = vld [vmem:[%s5 + $0xb8] sm:$0xff]
  %v5227 = vld [vmem:[%s5 + $0xc0] sm:$0xff]
  %v5228 = vld [vmem:[%s5 + $0xc8] sm:$0xff]
  %v5229 = vld [vmem:[%s5 + $0xd0] sm:$0xff]
  %v5230 = vld [vmem:[%s5 + $0xd8] sm:$0xff]
  %v5231 = vld [vmem:[%s5 + $0xe0] sm:$0xff]
  %v5232 = vld [vmem:[%s5 + $0xe8] sm:$0xff]
  %v5233 = vld [vmem:[%s5 + $0xf0] sm:$0xff]
  %v5234 = vld [vmem:[%s5 + $0xf8] sm:$0xff]
  %v5235 = vld [vmem:[%s5 + $0x100] sm:$0xff]
  %v5236 = vld [vmem:[%s5 + $0x108] sm:$0xff]
  %v5237 = vld [vmem:[%s5 + $0x110] sm:$0xff]
  %v5238 = vld [vmem:[%s5 + $0x118] sm:$0xff]
  %v5239 = vld [vmem:[%s5 + $0x120] sm:$0xff]
  %v5240 = vld [vmem:[%s5 + $0x128] sm:$0xff]
  %v5241 = vld [vmem:[%s5 + $0x130] sm:$0xff]
  %v5242 = vld [vmem:[%s5 + $0x138] sm:$0xff]
  %v5243 = vld [vmem:[%s5 + $0x140] sm:$0xff]
  %v5244 = vld [vmem:[%s5 + $0x148] sm:$0xff]
  %v5245 = vld [vmem:[%s5 + $0x150] sm:$0xff]
  %v5246 = vld [vmem:[%s5 + $0x158] sm:$0xff]
  %v5247 = vld [vmem:[%s5 + $0x160] sm:$0xff]
  %v5248 = vld [vmem:[%s5 + $0x168] sm:$0xff]
  %v5249 = vld [vmem:[%s5 + $0x170] sm:$0xff]
  %v5250 = vld [vmem:[%s5 + $0x178] sm:$0xff]
  %v5251 = vld [vmem:[%s5 + $0x180] sm:$0xff]
  %v5252 = vld [vmem:[%s5 + $0x188] sm:$0xff]
  %v5253 = vld [vmem:[%s5 + $0x190] sm:$0xff]
  %v5254 = vld [vmem:[%s5 + $0x198] sm:$0xff]
  %v5255 = vld [vmem:[%s5 + $0x1a0] sm:$0xff]
  %v5256 = vld [vmem:[%s5 + $0x1a8] sm:$0xff]
  %v5257 = vld [vmem:[%s5 + $0x1b0] sm:$0x3]
  %v5258 = vld [vmem:[%s5 + $0x1b8] sm:$0x3]
  %v5259 = vld [vmem:[%s5 + $0x1c0] sm:$0x3]
  %v5260 = vld [vmem:[%s5 + $0x1c8] sm:$0x3]
  %v5261 = vld [vmem:[%s5 + $0x1d0] sm:$0x3]
  %v5262 = vld [vmem:[%s5 + $0x1d8] sm:$0x3]
  %v5263 = vld [vmem:[%s5 + $0x1e0] sm:$0x3]
  %v5264 = vld [vmem:[%s5 + $0x1e8] sm:$0x3]
  %v5265 = vld [vmem:[%s5 + $0x1f0] sm:$0x3]
  %5266 = vmatprep.subr.mxu0 0.0
  %5267 = vmatpush1.msra.mxu0 %v4016
  %5268 = vmatprep.subr.mxu0 0.0
  %5269 = vmatpush1.msra.mxu0 %v4011
  %5270 = vmatprep.subr.mxu0 0.0
  %5271 = vmatpush1.msra.mxu0 %v4006
  %5272 = vmatprep.subr.mxu0 0.0
  %5273 = vmatpush1.msra.mxu0 %v4001
  %5274 = vmatprep.subr.mxu0 0.0
  %5275 = vmatpush1.msra.mxu0 %v3996
  %5276 = vmatprep.subr.mxu0 0.0
  %5277 = vmatpush1.msra.mxu0 %v3991
  %5278 = vmatprep.subr.mxu0 0.0
  %5279 = vmatpush1.msra.mxu0 %v3986
  %5280 = vmatprep.subr.mxu0 0.0
  %5281 = vmatpush1.msra.mxu0 %v3981
  %5282 = vmatprep.subr.mxu0 0.0
  %5283 = vmatpush1.msra.mxu0 %v3976
  %5284 = vmatprep.subr.mxu0 0.0
  %5285 = vmatpush1.msra.mxu0 %v3971
  %5286 = vmatprep.subr.mxu0 0.0
  %5287 = vmatpush1.msra.mxu0 %v3966
  %5288 = vmatprep.subr.mxu0 0.0
  %5289 = vmatpush1.msra.mxu0 %v3961
  %5290 = vmatprep.subr.mxu0 0.0
  %5291 = vmatpush1.msra.mxu0 %v3956
  %5292 = vmatprep.subr.mxu0 0.0
  %5293 = vmatpush1.msra.mxu0 %v3951
  %5294 = vmatprep.subr.mxu0 0.0
  %5295 = vmatpush1.msra.mxu0 %v3946
  %5296 = vmatprep.subr.mxu0 0.0
  %5297 = vmatpush1.msra.mxu0 %v3941
  %5298 = vmatprep.subr.mxu0 0.0
  %5299 = vmatpush2.msra.mxu0 %v4164
  %5300 = vmatprep.subr.mxu0 0.0
  %5301 = vmatpush2.msra.mxu0 %v4159
  %5302 = vmatprep.subr.mxu0 0.0
  %5303 = vmatpush2.msra.mxu0 %v4154
  %5304 = vmatprep.subr.mxu0 0.0
  %5305 = vmatpush2.msra.mxu0 %v4149
  %5306 = vmatprep.subr.mxu0 0.0
  %5307 = vmatpush2.msra.mxu0 %v4144
  %5308 = vmatprep.subr.mxu0 0.0
  %5309 = vmatpush2.msra.mxu0 %v4139
  %5310 = vmatprep.subr.mxu0 0.0
  %5311 = vmatpush2.msra.mxu0 %v4134
  %5312 = vmatprep.subr.mxu0 0.0
  %5313 = vmatpush2.msra.mxu0 %v4129
  %5314 = vmatprep.subr.mxu0 0.0
  %5315 = vmatpush2.msra.mxu0 %v4124
  %5316 = vmatprep.subr.mxu0 0.0
  %5317 = vmatpush2.msra.mxu0 %v4119
  %5318 = vmatprep.subr.mxu0 0.0
  %5319 = vmatpush2.msra.mxu0 %v4114
  %5320 = vmatprep.subr.mxu0 0.0
  %5321 = vmatpush2.msra.mxu0 %v4109
  %5322 = vmatprep.subr.mxu0 0.0
  %5323 = vmatpush2.msra.mxu0 %v4104
  %5324 = vmatprep.subr.mxu0 0.0
  %5325 = vmatpush2.msra.mxu0 %v4099
  %5326 = vmatprep.subr.mxu0 0.0
  %5327 = vmatpush2.msra.mxu0 %v4094
  %5328 = vmatprep.subr.mxu0 0.0
  %5329 = vmatpush2.msra.mxu0 %v4089
  %5330 = vmatprep.mubr.f32.mxu0 %v5204
  %5331 = vmatmul.mubr.f32.gmra.mxu0 %v5203
  %v5332 = vpop.f32.mrf.mxu0
  %v5333 = vadd.f32 0.0, %v5332
  %v5334 = vpop.f32.mrf.mxu0
  %5335 = vmatprep.mubr.f32.mxu0 %v5213
  %5336 = vmatmul.mubr.f32.gmra.mxu0 %v5212
  %v5337 = vpop.f32.mrf.mxu0
  %v5338 = vadd.f32 0.0, %v5337
  %v5339 = vpop.f32.mrf.mxu0
  %5340 = vmatprep.mubr.f32.mxu0 %v5222
  %5341 = vmatmul.mubr.f32.gmra.mxu0 %v5221
  %v5342 = vpop.f32.mrf.mxu0
  %v5343 = vadd.f32 0.0, %v5342
  %v5344 = vpop.f32.mrf.mxu0
  %5345 = vmatprep.mubr.f32.mxu0 %v5231
  %5346 = vmatmul.mubr.f32.gmra.mxu0 %v5230
  %v5347 = vpop.f32.mrf.mxu0
  %v5348 = vadd.f32 0.0, %v5347
  %v5349 = vpop.f32.mrf.mxu0
  %5350 = vmatprep.mubr.f32.mxu0 %v5240
  %5351 = vmatmul.mubr.f32.gmra.mxu0 %v5239
  %v5352 = vpop.f32.mrf.mxu0
  %v5353 = vadd.f32 0.0, %v5352
  %v5354 = vpop.f32.mrf.mxu0
  %5355 = vmatprep.mubr.f32.mxu0 %v5249
  %5356 = vmatmul.mubr.f32.gmra.mxu0 %v5248
  %v5357 = vpop.f32.mrf.mxu0
  %v5358 = vadd.f32 0.0, %v5357
  %v5359 = vpop.f32.mrf.mxu0
  %5360 = vmatprep.mubr.f32.mxu0 %v5258
  %5361 = vmatmul.mubr.f32.gmra.mxu0 %v5257
  %v5362 = vpop.f32.mrf.mxu0
  %v5363 = vadd.f32 0.0, %v5362
  %v5364 = vpop.f32.mrf.mxu0
  %5365 = vdwg.mxu0
  %5366 = vmatprep.subr.mxu0 0.0
  %5367 = vmatpush1.msra.mxu0 %v4312
  %5368 = vmatprep.subr.mxu0 0.0
  %5369 = vmatpush1.msra.mxu0 %v4307
  %5370 = vmatprep.subr.mxu0 0.0
  %5371 = vmatpush1.msra.mxu0 %v4302
  %5372 = vmatprep.subr.mxu0 0.0
  %5373 = vmatpush1.msra.mxu0 %v4297
  %5374 = vmatprep.subr.mxu0 0.0
  %5375 = vmatpush1.msra.mxu0 %v4292
  %5376 = vmatprep.subr.mxu0 0.0
  %5377 = vmatpush1.msra.mxu0 %v4287
  %5378 = vmatprep.subr.mxu0 0.0
  %5379 = vmatpush1.msra.mxu0 %v4282
  %5380 = vmatprep.subr.mxu0 0.0
  %5381 = vmatpush1.msra.mxu0 %v4277
  %5382 = vmatprep.subr.mxu0 0.0
  %5383 = vmatpush1.msra.mxu0 %v4272
  %5384 = vmatprep.subr.mxu0 0.0
  %5385 = vmatpush1.msra.mxu0 %v4267
  %5386 = vmatprep.subr.mxu0 0.0
  %5387 = vmatpush1.msra.mxu0 %v4262
  %5388 = vmatprep.subr.mxu0 0.0
  %5389 = vmatpush1.msra.mxu0 %v4257
  %5390 = vmatprep.subr.mxu0 0.0
  %5391 = vmatpush1.msra.mxu0 %v4252
  %5392 = vmatprep.subr.mxu0 0.0
  %5393 = vmatpush1.msra.mxu0 %v4247
  %5394 = vmatprep.subr.mxu0 0.0
  %5395 = vmatpush1.msra.mxu0 %v4242
  %5396 = vmatprep.subr.mxu0 0.0
  %5397 = vmatpush1.msra.mxu0 %v4237
  %5398 = vmatprep.subr.mxu0 0.0
  %5399 = vmatpush2.msra.mxu0 %v4460
  %5400 = vmatprep.subr.mxu0 0.0
  %5401 = vmatpush2.msra.mxu0 %v4455
  %5402 = vmatprep.subr.mxu0 0.0
  %5403 = vmatpush2.msra.mxu0 %v4450
  %5404 = vmatprep.subr.mxu0 0.0
  %5405 = vmatpush2.msra.mxu0 %v4445
  %5406 = vmatprep.subr.mxu0 0.0
  %5407 = vmatpush2.msra.mxu0 %v4440
  %5408 = vmatprep.subr.mxu0 0.0
  %5409 = vmatpush2.msra.mxu0 %v4435
  %5410 = vmatprep.subr.mxu0 0.0
  %5411 = vmatpush2.msra.mxu0 %v4430
  %5412 = vmatprep.subr.mxu0 0.0
  %5413 = vmatpush2.msra.mxu0 %v4425
  %5414 = vmatprep.subr.mxu0 0.0
  %5415 = vmatpush2.msra.mxu0 %v4420
  %5416 = vmatprep.subr.mxu0 0.0
  %5417 = vmatpush2.msra.mxu0 %v4415
  %5418 = vmatprep.subr.mxu0 0.0
  %5419 = vmatpush2.msra.mxu0 %v4410
  %5420 = vmatprep.subr.mxu0 0.0
  %5421 = vmatpush2.msra.mxu0 %v4405
  %5422 = vmatprep.subr.mxu0 0.0
  %5423 = vmatpush2.msra.mxu0 %v4400
  %5424 = vmatprep.subr.mxu0 0.0
  %5425 = vmatpush2.msra.mxu0 %v4395
  %5426 = vmatprep.subr.mxu0 0.0
  %5427 = vmatpush2.msra.mxu0 %v4390
  %5428 = vmatprep.subr.mxu0 0.0
  %5429 = vmatpush2.msra.mxu0 %v4385
  %5430 = vmatprep.mubr.f32.mxu0 %v5206
  %5431 = vmatmul.mubr.f32.gmra.mxu0 %v5205
  %v5432 = vpop.f32.mrf.mxu0
  %v5433 = vadd.f32 %v5333, %v5432
  %v5434 = vpop.f32.mrf.mxu0
  %5435 = vmatprep.mubr.f32.mxu0 %v5215
  %5436 = vmatmul.mubr.f32.gmra.mxu0 %v5214
  %v5437 = vpop.f32.mrf.mxu0
  %v5438 = vadd.f32 %v5338, %v5437
  %v5439 = vpop.f32.mrf.mxu0
  %5440 = vmatprep.mubr.f32.mxu0 %v5224
  %5441 = vmatmul.mubr.f32.gmra.mxu0 %v5223
  %v5442 = vpop.f32.mrf.mxu0
  %v5443 = vadd.f32 %v5343, %v5442
  %v5444 = vpop.f32.mrf.mxu0
  %5445 = vmatprep.mubr.f32.mxu0 %v5233
  %5446 = vmatmul.mubr.f32.gmra.mxu0 %v5232
  %v5447 = vpop.f32.mrf.mxu0
  %v5448 = vadd.f32 %v5348, %v5447
  %v5449 = vpop.f32.mrf.mxu0
  %5450 = vmatprep.mubr.f32.mxu0 %v5242
  %5451 = vmatmul.mubr.f32.gmra.mxu0 %v5241
  %v5452 = vpop.f32.mrf.mxu0
  %v5453 = vadd.f32 %v5353, %v5452
  %v5454 = vpop.f32.mrf.mxu0
  %5455 = vmatprep.mubr.f32.mxu0 %v5251
  %5456 = vmatmul.mubr.f32.gmra.mxu0 %v5250
  %v5457 = vpop.f32.mrf.mxu0
  %v5458 = vadd.f32 %v5358, %v5457
  %v5459 = vpop.f32.mrf.mxu0
  %5460 = vmatprep.mubr.f32.mxu0 %v5260
  %5461 = vmatmul.mubr.f32.gmra.mxu0 %v5259
  %v5462 = vpop.f32.mrf.mxu0
  %v5463 = vadd.f32 %v5363, %v5462
  %v5464 = vpop.f32.mrf.mxu0
  %5465 = vdwg.mxu0
  %5466 = vmatprep.subr.mxu0 0.0
  %5467 = vmatpush1.msra.mxu0 %v4608
  %5468 = vmatprep.subr.mxu0 0.0
  %5469 = vmatpush1.msra.mxu0 %v4603
  %5470 = vmatprep.subr.mxu0 0.0
  %5471 = vmatpush1.msra.mxu0 %v4598
  %5472 = vmatprep.subr.mxu0 0.0
  %5473 = vmatpush1.msra.mxu0 %v4593
  %5474 = vmatprep.subr.mxu0 0.0
  %5475 = vmatpush1.msra.mxu0 %v4588
  %5476 = vmatprep.subr.mxu0 0.0
  %5477 = vmatpush1.msra.mxu0 %v4583
  %5478 = vmatprep.subr.mxu0 0.0
  %5479 = vmatpush1.msra.mxu0 %v4578
  %5480 = vmatprep.subr.mxu0 0.0
  %5481 = vmatpush1.msra.mxu0 %v4573
  %5482 = vmatprep.subr.mxu0 0.0
  %5483 = vmatpush1.msra.mxu0 %v4568
  %5484 = vmatprep.subr.mxu0 0.0
  %5485 = vmatpush1.msra.mxu0 %v4563
  %5486 = vmatprep.subr.mxu0 0.0
  %5487 = vmatpush1.msra.mxu0 %v4558
  %5488 = vmatprep.subr.mxu0 0.0
  %5489 = vmatpush1.msra.mxu0 %v4553
  %5490 = vmatprep.subr.mxu0 0.0
  %5491 = vmatpush1.msra.mxu0 %v4548
  %5492 = vmatprep.subr.mxu0 0.0
  %5493 = vmatpush1.msra.mxu0 %v4543
  %5494 = vmatprep.subr.mxu0 0.0
  %5495 = vmatpush1.msra.mxu0 %v4538
  %5496 = vmatprep.subr.mxu0 0.0
  %5497 = vmatpush1.msra.mxu0 %v4533
  %5498 = vmatprep.subr.mxu0 0.0
  %5499 = vmatpush2.msra.mxu0 %v4756
  %5500 = vmatprep.subr.mxu0 0.0
  %5501 = vmatpush2.msra.mxu0 %v4751
  %5502 = vmatprep.subr.mxu0 0.0
  %5503 = vmatpush2.msra.mxu0 %v4746
  %5504 = vmatprep.subr.mxu0 0.0
  %5505 = vmatpush2.msra.mxu0 %v4741
  %5506 = vmatprep.subr.mxu0 0.0
  %5507 = vmatpush2.msra.mxu0 %v4736
  %5508 = vmatprep.subr.mxu0 0.0
  %5509 = vmatpush2.msra.mxu0 %v4731
  %5510 = vmatprep.subr.mxu0 0.0
  %5511 = vmatpush2.msra.mxu0 %v4726
  %5512 = vmatprep.subr.mxu0 0.0
  %5513 = vmatpush2.msra.mxu0 %v4721
  %5514 = vmatprep.subr.mxu0 0.0
  %5515 = vmatpush2.msra.mxu0 %v4716
  %5516 = vmatprep.subr.mxu0 0.0
  %5517 = vmatpush2.msra.mxu0 %v4711
  %5518 = vmatprep.subr.mxu0 0.0
  %5519 = vmatpush2.msra.mxu0 %v4706
  %5520 = vmatprep.subr.mxu0 0.0
  %5521 = vmatpush2.msra.mxu0 %v4701
  %5522 = vmatprep.subr.mxu0 0.0
  %5523 = vmatpush2.msra.mxu0 %v4696
  %5524 = vmatprep.subr.mxu0 0.0
  %5525 = vmatpush2.msra.mxu0 %v4691
  %5526 = vmatprep.subr.mxu0 0.0
  %5527 = vmatpush2.msra.mxu0 %v4686
  %5528 = vmatprep.subr.mxu0 0.0
  %5529 = vmatpush2.msra.mxu0 %v4681
  %5530 = vmatprep.mubr.f32.mxu0 %v5208
  %5531 = vmatmul.mubr.f32.gmra.mxu0 %v5207
  %v5532 = vpop.f32.mrf.mxu0
  %v5533 = vadd.f32 %v5433, %v5532
  %v5534 = vpop.f32.mrf.mxu0
  %5535 = vmatprep.mubr.f32.mxu0 %v5217
  %5536 = vmatmul.mubr.f32.gmra.mxu0 %v5216
  %v5537 = vpop.f32.mrf.mxu0
  %v5538 = vadd.f32 %v5438, %v5537
  %v5539 = vpop.f32.mrf.mxu0
  %5540 = vmatprep.mubr.f32.mxu0 %v5226
  %5541 = vmatmul.mubr.f32.gmra.mxu0 %v5225
  %v5542 = vpop.f32.mrf.mxu0
  %v5543 = vadd.f32 %v5443, %v5542
  %v5544 = vpop.f32.mrf.mxu0
  %5545 = vmatprep.mubr.f32.mxu0 %v5235
  %5546 = vmatmul.mubr.f32.gmra.mxu0 %v5234
  %v5547 = vpop.f32.mrf.mxu0
  %v5548 = vadd.f32 %v5448, %v5547
  %v5549 = vpop.f32.mrf.mxu0
  %5550 = vmatprep.mubr.f32.mxu0 %v5244
  %5551 = vmatmul.mubr.f32.gmra.mxu0 %v5243
  %v5552 = vpop.f32.mrf.mxu0
  %v5553 = vadd.f32 %v5453, %v5552
  %v5554 = vpop.f32.mrf.mxu0
  %5555 = vmatprep.mubr.f32.mxu0 %v5253
  %5556 = vmatmul.mubr.f32.gmra.mxu0 %v5252
  %v5557 = vpop.f32.mrf.mxu0
  %v5558 = vadd.f32 %v5458, %v5557
  %v5559 = vpop.f32.mrf.mxu0
  %5560 = vmatprep.mubr.f32.mxu0 %v5262
  %5561 = vmatmul.mubr.f32.gmra.mxu0 %v5261
  %v5562 = vpop.f32.mrf.mxu0
  %v5563 = vadd.f32 %v5463, %v5562
  %v5564 = vpop.f32.mrf.mxu0
  %5565 = vdwg.mxu0
  %5566 = vmatprep.subr.mxu0 0.0
  %5567 = vmatpush1.msra.mxu0 %v4904
  %5568 = vmatprep.subr.mxu0 0.0
  %5569 = vmatpush1.msra.mxu0 %v4899
  %5570 = vmatprep.subr.mxu0 0.0
  %5571 = vmatpush1.msra.mxu0 %v4894
  %5572 = vmatprep.subr.mxu0 0.0
  %5573 = vmatpush1.msra.mxu0 %v4889
  %5574 = vmatprep.subr.mxu0 0.0
  %5575 = vmatpush1.msra.mxu0 %v4884
  %5576 = vmatprep.subr.mxu0 0.0
  %5577 = vmatpush1.msra.mxu0 %v4879
  %5578 = vmatprep.subr.mxu0 0.0
  %5579 = vmatpush1.msra.mxu0 %v4874
  %5580 = vmatprep.subr.mxu0 0.0
  %5581 = vmatpush1.msra.mxu0 %v4869
  %5582 = vmatprep.subr.mxu0 0.0
  %5583 = vmatpush1.msra.mxu0 %v4864
  %5584 = vmatprep.subr.mxu0 0.0
  %5585 = vmatpush1.msra.mxu0 %v4859
  %5586 = vmatprep.subr.mxu0 0.0
  %5587 = vmatpush1.msra.mxu0 %v4854
  %5588 = vmatprep.subr.mxu0 0.0
  %5589 = vmatpush1.msra.mxu0 %v4849
  %5590 = vmatprep.subr.mxu0 0.0
  %5591 = vmatpush1.msra.mxu0 %v4844
  %5592 = vmatprep.subr.mxu0 0.0
  %5593 = vmatpush1.msra.mxu0 %v4839
  %5594 = vmatprep.subr.mxu0 0.0
  %5595 = vmatpush1.msra.mxu0 %v4834
  %5596 = vmatprep.subr.mxu0 0.0
  %5597 = vmatpush1.msra.mxu0 %v4829
  %5598 = vmatprep.subr.mxu0 0.0
  %5599 = vmatpush2.msra.mxu0 %v5052
  %5600 = vmatprep.subr.mxu0 0.0
  %5601 = vmatpush2.msra.mxu0 %v5047
  %5602 = vmatprep.subr.mxu0 0.0
  %5603 = vmatpush2.msra.mxu0 %v5042
  %5604 = vmatprep.subr.mxu0 0.0
  %5605 = vmatpush2.msra.mxu0 %v5037
  %5606 = vmatprep.subr.mxu0 0.0
  %5607 = vmatpush2.msra.mxu0 %v5032
  %5608 = vmatprep.subr.mxu0 0.0
  %5609 = vmatpush2.msra.mxu0 %v5027
  %5610 = vmatprep.subr.mxu0 0.0
  %5611 = vmatpush2.msra.mxu0 %v5022
  %5612 = vmatprep.subr.mxu0 0.0
  %5613 = vmatpush2.msra.mxu0 %v5017
  %5614 = vmatprep.subr.mxu0 0.0
  %5615 = vmatpush2.msra.mxu0 %v5012
  %5616 = vmatprep.subr.mxu0 0.0
  %5617 = vmatpush2.msra.mxu0 %v5007
  %5618 = vmatprep.subr.mxu0 0.0
  %5619 = vmatpush2.msra.mxu0 %v5002
  %5620 = vmatprep.subr.mxu0 0.0
  %5621 = vmatpush2.msra.mxu0 %v4997
  %5622 = vmatprep.subr.mxu0 0.0
  %5623 = vmatpush2.msra.mxu0 %v4992
  %5624 = vmatprep.subr.mxu0 0.0
  %5625 = vmatpush2.msra.mxu0 %v4987
  %5626 = vmatprep.subr.mxu0 0.0
  %5627 = vmatpush2.msra.mxu0 %v4982
  %5628 = vmatprep.subr.mxu0 0.0
  %5629 = vmatpush2.msra.mxu0 %v4977
  %5630 = vmatprep.mubr.f32.mxu0 %v5210
  %5631 = vmatmul.mubr.f32.gmra.mxu0 %v5209
  %v5632 = vpop.f32.mrf.mxu0
  %v5633 = vadd.f32 %v5533, %v5632
  %v5634 = vpop.f32.mrf.mxu0
  %5635 = vmatprep.mubr.f32.mxu0 %v5219
  %5636 = vmatmul.mubr.f32.gmra.mxu0 %v5218
  %v5637 = vpop.f32.mrf.mxu0
  %v5638 = vadd.f32 %v5538, %v5637
  %v5639 = vpop.f32.mrf.mxu0
  %5640 = vmatprep.mubr.f32.mxu0 %v5228
  %5641 = vmatmul.mubr.f32.gmra.mxu0 %v5227
  %v5642 = vpop.f32.mrf.mxu0
  %v5643 = vadd.f32 %v5543, %v5642
  %v5644 = vpop.f32.mrf.mxu0
  %5645 = vmatprep.mubr.f32.mxu0 %v5237
  %5646 = vmatmul.mubr.f32.gmra.mxu0 %v5236
  %v5647 = vpop.f32.mrf.mxu0
  %v5648 = vadd.f32 %v5548, %v5647
  %v5649 = vpop.f32.mrf.mxu0
  %5650 = vmatprep.mubr.f32.mxu0 %v5246
  %5651 = vmatmul.mubr.f32.gmra.mxu0 %v5245
  %v5652 = vpop.f32.mrf.mxu0
  %v5653 = vadd.f32 %v5553, %v5652
  %v5654 = vpop.f32.mrf.mxu0
  %5655 = vmatprep.mubr.f32.mxu0 %v5255
  %5656 = vmatmul.mubr.f32.gmra.mxu0 %v5254
  %v5657 = vpop.f32.mrf.mxu0
  %v5658 = vadd.f32 %v5558, %v5657
  %v5659 = vpop.f32.mrf.mxu0
  %5660 = vmatprep.mubr.f32.mxu0 %v5264
  %5661 = vmatmul.mubr.f32.gmra.mxu0 %v5263
  %v5662 = vpop.f32.mrf.mxu0
  %v5663 = vadd.f32 %v5563, %v5662
  %v5664 = vpop.f32.mrf.mxu0
  %5665 = vdwg.mxu0
  %5666 = vmatprep.subr.mxu0 0.0
  %5667 = vmatpush1.msra.mxu0 %v5200
  %5668 = vmatprep.subr.mxu0 0.0
  %5669 = vmatpush1.msra.mxu0 %v5195
  %5670 = vmatprep.subr.mxu0 0.0
  %5671 = vmatpush1.msra.mxu0 %v5190
  %5672 = vmatprep.subr.mxu0 0.0
  %5673 = vmatpush1.msra.mxu0 %v5185
  %5674 = vmatprep.subr.mxu0 0.0
  %5675 = vmatpush1.msra.mxu0 %v5180
  %5676 = vmatprep.subr.mxu0 0.0
  %5677 = vmatpush1.msra.mxu0 %v5175
  %5678 = vmatprep.subr.mxu0 0.0
  %5679 = vmatpush1.msra.mxu0 %v5170
  %5680 = vmatprep.subr.mxu0 0.0
  %5681 = vmatpush1.msra.mxu0 %v5165
  %5682 = vmatprep.subr.mxu0 0.0
  %5683 = vmatpush1.msra.mxu0 %v5160
  %5684 = vmatprep.subr.mxu0 0.0
  %5685 = vmatpush1.msra.mxu0 %v5155
  %5686 = vmatprep.subr.mxu0 0.0
  %5687 = vmatpush1.msra.mxu0 %v5150
  %5688 = vmatprep.subr.mxu0 0.0
  %5689 = vmatpush1.msra.mxu0 %v5145
  %5690 = vmatprep.subr.mxu0 0.0
  %5691 = vmatpush1.msra.mxu0 %v5140
  %5692 = vmatprep.subr.mxu0 0.0
  %5693 = vmatpush1.msra.mxu0 %v5135
  %5694 = vmatprep.subr.mxu0 0.0
  %5695 = vmatpush1.msra.mxu0 %v5130
  %5696 = vmatprep.subr.mxu0 0.0
  %5697 = vmatpush1.msra.mxu0 %v5125
  %5698 = vmatprep.subr.mxu0 0.0
  %5699 = vmatpush2.msra.mxu0 0.0
  %5700 = vmatprep.subr.mxu0 0.0
  %5701 = vmatpush2.msra.mxu0 0.0
  %5702 = vmatprep.subr.mxu0 0.0
  %5703 = vmatpush2.msra.mxu0 0.0
  %5704 = vmatprep.subr.mxu0 0.0
  %5705 = vmatpush2.msra.mxu0 0.0
  %5706 = vmatprep.subr.mxu0 0.0
  %5707 = vmatpush2.msra.mxu0 0.0
  %5708 = vmatprep.subr.mxu0 0.0
  %5709 = vmatpush2.msra.mxu0 0.0
  %5710 = vmatprep.subr.mxu0 0.0
  %5711 = vmatpush2.msra.mxu0 0.0
  %5712 = vmatprep.subr.mxu0 0.0
  %5713 = vmatpush2.msra.mxu0 0.0
  %5714 = vmatprep.subr.mxu0 0.0
  %5715 = vmatpush2.msra.mxu0 0.0
  %5716 = vmatprep.subr.mxu0 0.0
  %5717 = vmatpush2.msra.mxu0 0.0
  %5718 = vmatprep.subr.mxu0 0.0
  %5719 = vmatpush2.msra.mxu0 0.0
  %5720 = vmatprep.subr.mxu0 0.0
  %5721 = vmatpush2.msra.mxu0 0.0
  %5722 = vmatprep.subr.mxu0 0.0
  %5723 = vmatpush2.msra.mxu0 0.0
  %5724 = vmatprep.subr.mxu0 0.0
  %5725 = vmatpush2.msra.mxu0 0.0
  %5726 = vmatprep.subr.mxu0 0.0
  %5727 = vmatpush2.msra.mxu0 0.0
  %5728 = vmatprep.subr.mxu0 0.0
  %5729 = vmatpush2.msra.mxu0 0.0
  %5730 = vmatprep.mubr.f32.mxu0 0.0
  %5731 = vmatmul.mubr.f32.gmra.mxu0 %v5211
  %v5732 = vpop.f32.mrf.mxu0
  %v5733 = vadd.f32 %v5633, %v5732
  %v5734 = vpop.f32.mrf.mxu0
  %5735 = vmatprep.mubr.f32.mxu0 0.0
  %5736 = vmatmul.mubr.f32.gmra.mxu0 %v5220
  %v5737 = vpop.f32.mrf.mxu0
  %v5738 = vadd.f32 %v5638, %v5737
  %v5739 = vpop.f32.mrf.mxu0
  %5740 = vmatprep.mubr.f32.mxu0 0.0
  %5741 = vmatmul.mubr.f32.gmra.mxu0 %v5229
  %v5742 = vpop.f32.mrf.mxu0
  %v5743 = vadd.f32 %v5643, %v5742
  %v5744 = vpop.f32.mrf.mxu0
  %5745 = vmatprep.mubr.f32.mxu0 0.0
  %5746 = vmatmul.mubr.f32.gmra.mxu0 %v5238
  %v5747 = vpop.f32.mrf.mxu0
  %v5748 = vadd.f32 %v5648, %v5747
  %v5749 = vpop.f32.mrf.mxu0
  %5750 = vmatprep.mubr.f32.mxu0 0.0
  %5751 = vmatmul.mubr.f32.gmra.mxu0 %v5247
  %v5752 = vpop.f32.mrf.mxu0
  %v5753 = vadd.f32 %v5653, %v5752
  %v5754 = vpop.f32.mrf.mxu0
  %5755 = vmatprep.mubr.f32.mxu0 0.0
  %5756 = vmatmul.mubr.f32.gmra.mxu0 %v5256
  %v5757 = vpop.f32.mrf.mxu0
  %v5758 = vadd.f32 %v5658, %v5757
  %v5759 = vpop.f32.mrf.mxu0
  %5760 = vmatprep.mubr.f32.mxu0 0.0
  %5761 = vmatmul.mubr.f32.gmra.mxu0 %v5265
  %v5762 = vpop.f32.mrf.mxu0
  %v5763 = vadd.f32 %v5663, %v5762
  %v5764 = vpop.f32.mrf.mxu0
  %5765 = vdwg.mxu0
  %s5766 = scalar_lea.vmem %s5, 504
  %v5767 = vld [vmem:[%s5766] sm:$0xff]
  %v5768 = vld [vmem:[%s5766 + $0x8] sm:$0xff]
  %v5769 = vld [vmem:[%s5766 + $0x10] sm:$0xff]
  %v5770 = vld [vmem:[%s5766 + $0x18] sm:$0xff]
  %v5771 = vld [vmem:[%s5766 + $0x20] sm:$0xff]
  %v5772 = vld [vmem:[%s5766 + $0x28] sm:$0xff]
  %v5773 = vld [vmem:[%s5766 + $0x30] sm:$0xff]
  %v5774 = vld [vmem:[%s5766 + $0x38] sm:$0xff]
  %v5775 = vld [vmem:[%s5766 + $0x40] sm:$0xff]
  %v5776 = vld [vmem:[%s5766 + $0x48] sm:$0xff]
  %v5777 = vld [vmem:[%s5766 + $0x50] sm:$0xff]
  %v5778 = vld [vmem:[%s5766 + $0x58] sm:$0xff]
  %v5779 = vld [vmem:[%s5766 + $0x60] sm:$0xff]
  %v5780 = vld [vmem:[%s5766 + $0x68] sm:$0xff]
  %v5781 = vld [vmem:[%s5766 + $0x70] sm:$0xff]
  %v5782 = vld [vmem:[%s5766 + $0x78] sm:$0xff]
  %v5783 = vld [vmem:[%s5766 + $0x80] sm:$0xff]
  %v5784 = vld [vmem:[%s5766 + $0x88] sm:$0xff]
  %v5785 = vld [vmem:[%s5766 + $0x90] sm:$0xff]
  %v5786 = vld [vmem:[%s5766 + $0x98] sm:$0xff]
  %v5787 = vld [vmem:[%s5766 + $0xa0] sm:$0xff]
  %v5788 = vld [vmem:[%s5766 + $0xa8] sm:$0xff]
  %v5789 = vld [vmem:[%s5766 + $0xb0] sm:$0xff]
  %v5790 = vld [vmem:[%s5766 + $0xb8] sm:$0xff]
  %v5791 = vld [vmem:[%s5766 + $0xc0] sm:$0xff]
  %v5792 = vld [vmem:[%s5766 + $0xc8] sm:$0xff]
  %v5793 = vld [vmem:[%s5766 + $0xd0] sm:$0xff]
  %v5794 = vld [vmem:[%s5766 + $0xd8] sm:$0xff]
  %v5795 = vld [vmem:[%s5766 + $0xe0] sm:$0xff]
  %v5796 = vld [vmem:[%s5766 + $0xe8] sm:$0xff]
  %v5797 = vld [vmem:[%s5766 + $0xf0] sm:$0xff]
  %v5798 = vld [vmem:[%s5766 + $0xf8] sm:$0xff]
  %v5799 = vld [vmem:[%s5766 + $0x100] sm:$0xff]
  %v5800 = vld [vmem:[%s5766 + $0x108] sm:$0xff]
  %v5801 = vld [vmem:[%s5766 + $0x110] sm:$0xff]
  %v5802 = vld [vmem:[%s5766 + $0x118] sm:$0xff]
  %v5803 = vld [vmem:[%s5766 + $0x120] sm:$0xff]
  %v5804 = vld [vmem:[%s5766 + $0x128] sm:$0xff]
  %v5805 = vld [vmem:[%s5766 + $0x130] sm:$0xff]
  %v5806 = vld [vmem:[%s5766 + $0x138] sm:$0xff]
  %v5807 = vld [vmem:[%s5766 + $0x140] sm:$0xff]
  %v5808 = vld [vmem:[%s5766 + $0x148] sm:$0xff]
  %v5809 = vld [vmem:[%s5766 + $0x150] sm:$0xff]
  %v5810 = vld [vmem:[%s5766 + $0x158] sm:$0xff]
  %v5811 = vld [vmem:[%s5766 + $0x160] sm:$0xff]
  %v5812 = vld [vmem:[%s5766 + $0x168] sm:$0xff]
  %v5813 = vld [vmem:[%s5766 + $0x170] sm:$0xff]
  %v5814 = vld [vmem:[%s5766 + $0x178] sm:$0xff]
  %v5815 = vld [vmem:[%s5766 + $0x180] sm:$0xff]
  %v5816 = vld [vmem:[%s5766 + $0x188] sm:$0xff]
  %v5817 = vld [vmem:[%s5766 + $0x190] sm:$0xff]
  %v5818 = vld [vmem:[%s5766 + $0x198] sm:$0xff]
  %v5819 = vld [vmem:[%s5766 + $0x1a0] sm:$0xff]
  %v5820 = vld [vmem:[%s5766 + $0x1a8] sm:$0xff]
  %v5821 = vld [vmem:[%s5766 + $0x1b0] sm:$0x3]
  %v5822 = vld [vmem:[%s5766 + $0x1b8] sm:$0x3]
  %v5823 = vld [vmem:[%s5766 + $0x1c0] sm:$0x3]
  %v5824 = vld [vmem:[%s5766 + $0x1c8] sm:$0x3]
  %v5825 = vld [vmem:[%s5766 + $0x1d0] sm:$0x3]
  %v5826 = vld [vmem:[%s5766 + $0x1d8] sm:$0x3]
  %v5827 = vld [vmem:[%s5766 + $0x1e0] sm:$0x3]
  %v5828 = vld [vmem:[%s5766 + $0x1e8] sm:$0x3]
  %v5829 = vld [vmem:[%s5766 + $0x1f0] sm:$0x3]
  %5830 = vmatprep.subr.mxu0 0.0
  %5831 = vmatpush1.msra.mxu0 %v4016
  %5832 = vmatprep.subr.mxu0 0.0
  %5833 = vmatpush1.msra.mxu0 %v4011
  %5834 = vmatprep.subr.mxu0 0.0
  %5835 = vmatpush1.msra.mxu0 %v4006
  %5836 = vmatprep.subr.mxu0 0.0
  %5837 = vmatpush1.msra.mxu0 %v4001
  %5838 = vmatprep.subr.mxu0 0.0
  %5839 = vmatpush1.msra.mxu0 %v3996
  %5840 = vmatprep.subr.mxu0 0.0
  %5841 = vmatpush1.msra.mxu0 %v3991
  %5842 = vmatprep.subr.mxu0 0.0
  %5843 = vmatpush1.msra.mxu0 %v3986
  %5844 = vmatprep.subr.mxu0 0.0
  %5845 = vmatpush1.msra.mxu0 %v3981
  %5846 = vmatprep.subr.mxu0 0.0
  %5847 = vmatpush1.msra.mxu0 %v3976
  %5848 = vmatprep.subr.mxu0 0.0
  %5849 = vmatpush1.msra.mxu0 %v3971
  %5850 = vmatprep.subr.mxu0 0.0
  %5851 = vmatpush1.msra.mxu0 %v3966
  %5852 = vmatprep.subr.mxu0 0.0
  %5853 = vmatpush1.msra.mxu0 %v3961
  %5854 = vmatprep.subr.mxu0 0.0
  %5855 = vmatpush1.msra.mxu0 %v3956
  %5856 = vmatprep.subr.mxu0 0.0
  %5857 = vmatpush1.msra.mxu0 %v3951
  %5858 = vmatprep.subr.mxu0 0.0
  %5859 = vmatpush1.msra.mxu0 %v3946
  %5860 = vmatprep.subr.mxu0 0.0
  %5861 = vmatpush1.msra.mxu0 %v3941
  %5862 = vmatprep.subr.mxu0 0.0
  %5863 = vmatpush2.msra.mxu0 %v4164
  %5864 = vmatprep.subr.mxu0 0.0
  %5865 = vmatpush2.msra.mxu0 %v4159
  %5866 = vmatprep.subr.mxu0 0.0
  %5867 = vmatpush2.msra.mxu0 %v4154
  %5868 = vmatprep.subr.mxu0 0.0
  %5869 = vmatpush2.msra.mxu0 %v4149
  %5870 = vmatprep.subr.mxu0 0.0
  %5871 = vmatpush2.msra.mxu0 %v4144
  %5872 = vmatprep.subr.mxu0 0.0
  %5873 = vmatpush2.msra.mxu0 %v4139
  %5874 = vmatprep.subr.mxu0 0.0
  %5875 = vmatpush2.msra.mxu0 %v4134
  %5876 = vmatprep.subr.mxu0 0.0
  %5877 = vmatpush2.msra.mxu0 %v4129
  %5878 = vmatprep.subr.mxu0 0.0
  %5879 = vmatpush2.msra.mxu0 %v4124
  %5880 = vmatprep.subr.mxu0 0.0
  %5881 = vmatpush2.msra.mxu0 %v4119
  %5882 = vmatprep.subr.mxu0 0.0
  %5883 = vmatpush2.msra.mxu0 %v4114
  %5884 = vmatprep.subr.mxu0 0.0
  %5885 = vmatpush2.msra.mxu0 %v4109
  %5886 = vmatprep.subr.mxu0 0.0
  %5887 = vmatpush2.msra.mxu0 %v4104
  %5888 = vmatprep.subr.mxu0 0.0
  %5889 = vmatpush2.msra.mxu0 %v4099
  %5890 = vmatprep.subr.mxu0 0.0
  %5891 = vmatpush2.msra.mxu0 %v4094
  %5892 = vmatprep.subr.mxu0 0.0
  %5893 = vmatpush2.msra.mxu0 %v4089
  %5894 = vmatprep.mubr.f32.mxu0 %v5768
  %5895 = vmatmul.mubr.f32.gmra.mxu0 %v5767
  %v5896 = vpop.f32.mrf.mxu0
  %v5897 = vadd.f32 0.0, %v5896
  %v5898 = vpop.f32.mrf.mxu0
  %5899 = vmatprep.mubr.f32.mxu0 %v5777
  %5900 = vmatmul.mubr.f32.gmra.mxu0 %v5776
  %v5901 = vpop.f32.mrf.mxu0
  %v5902 = vadd.f32 0.0, %v5901
  %v5903 = vpop.f32.mrf.mxu0
  %5904 = vmatprep.mubr.f32.mxu0 %v5786
  %5905 = vmatmul.mubr.f32.gmra.mxu0 %v5785
  %v5906 = vpop.f32.mrf.mxu0
  %v5907 = vadd.f32 0.0, %v5906
  %v5908 = vpop.f32.mrf.mxu0
  %5909 = vmatprep.mubr.f32.mxu0 %v5795
  %5910 = vmatmul.mubr.f32.gmra.mxu0 %v5794
  %v5911 = vpop.f32.mrf.mxu0
  %v5912 = vadd.f32 0.0, %v5911
  %v5913 = vpop.f32.mrf.mxu0
  %5914 = vmatprep.mubr.f32.mxu0 %v5804
  %5915 = vmatmul.mubr.f32.gmra.mxu0 %v5803
  %v5916 = vpop.f32.mrf.mxu0
  %v5917 = vadd.f32 0.0, %v5916
  %v5918 = vpop.f32.mrf.mxu0
  %5919 = vmatprep.mubr.f32.mxu0 %v5813
  %5920 = vmatmul.mubr.f32.gmra.mxu0 %v5812
  %v5921 = vpop.f32.mrf.mxu0
  %v5922 = vadd.f32 0.0, %v5921
  %v5923 = vpop.f32.mrf.mxu0
  %5924 = vmatprep.mubr.f32.mxu0 %v5822
  %5925 = vmatmul.mubr.f32.gmra.mxu0 %v5821
  %v5926 = vpop.f32.mrf.mxu0
  %v5927 = vadd.f32 0.0, %v5926
  %v5928 = vpop.f32.mrf.mxu0
  %5929 = vdwg.mxu0
  %5930 = vmatprep.subr.mxu0 0.0
  %5931 = vmatpush1.msra.mxu0 %v4312
  %5932 = vmatprep.subr.mxu0 0.0
  %5933 = vmatpush1.msra.mxu0 %v4307
  %5934 = vmatprep.subr.mxu0 0.0
  %5935 = vmatpush1.msra.mxu0 %v4302
  %5936 = vmatprep.subr.mxu0 0.0
  %5937 = vmatpush1.msra.mxu0 %v4297
  %5938 = vmatprep.subr.mxu0 0.0
  %5939 = vmatpush1.msra.mxu0 %v4292
  %5940 = vmatprep.subr.mxu0 0.0
  %5941 = vmatpush1.msra.mxu0 %v4287
  %5942 = vmatprep.subr.mxu0 0.0
  %5943 = vmatpush1.msra.mxu0 %v4282
  %5944 = vmatprep.subr.mxu0 0.0
  %5945 = vmatpush1.msra.mxu0 %v4277
  %5946 = vmatprep.subr.mxu0 0.0
  %5947 = vmatpush1.msra.mxu0 %v4272
  %5948 = vmatprep.subr.mxu0 0.0
  %5949 = vmatpush1.msra.mxu0 %v4267
  %5950 = vmatprep.subr.mxu0 0.0
  %5951 = vmatpush1.msra.mxu0 %v4262
  %5952 = vmatprep.subr.mxu0 0.0
  %5953 = vmatpush1.msra.mxu0 %v4257
  %5954 = vmatprep.subr.mxu0 0.0
  %5955 = vmatpush1.msra.mxu0 %v4252
  %5956 = vmatprep.subr.mxu0 0.0
  %5957 = vmatpush1.msra.mxu0 %v4247
  %5958 = vmatprep.subr.mxu0 0.0
  %5959 = vmatpush1.msra.mxu0 %v4242
  %5960 = vmatprep.subr.mxu0 0.0
  %5961 = vmatpush1.msra.mxu0 %v4237
  %5962 = vmatprep.subr.mxu0 0.0
  %5963 = vmatpush2.msra.mxu0 %v4460
  %5964 = vmatprep.subr.mxu0 0.0
  %5965 = vmatpush2.msra.mxu0 %v4455
  %5966 = vmatprep.subr.mxu0 0.0
  %5967 = vmatpush2.msra.mxu0 %v4450
  %5968 = vmatprep.subr.mxu0 0.0
  %5969 = vmatpush2.msra.mxu0 %v4445
  %5970 = vmatprep.subr.mxu0 0.0
  %5971 = vmatpush2.msra.mxu0 %v4440
  %5972 = vmatprep.subr.mxu0 0.0
  %5973 = vmatpush2.msra.mxu0 %v4435
  %5974 = vmatprep.subr.mxu0 0.0
  %5975 = vmatpush2.msra.mxu0 %v4430
  %5976 = vmatprep.subr.mxu0 0.0
  %5977 = vmatpush2.msra.mxu0 %v4425
  %5978 = vmatprep.subr.mxu0 0.0
  %5979 = vmatpush2.msra.mxu0 %v4420
  %5980 = vmatprep.subr.mxu0 0.0
  %5981 = vmatpush2.msra.mxu0 %v4415
  %5982 = vmatprep.subr.mxu0 0.0
  %5983 = vmatpush2.msra.mxu0 %v4410
  %5984 = vmatprep.subr.mxu0 0.0
  %5985 = vmatpush2.msra.mxu0 %v4405
  %5986 = vmatprep.subr.mxu0 0.0
  %5987 = vmatpush2.msra.mxu0 %v4400
  %5988 = vmatprep.subr.mxu0 0.0
  %5989 = vmatpush2.msra.mxu0 %v4395
  %5990 = vmatprep.subr.mxu0 0.0
  %5991 = vmatpush2.msra.mxu0 %v4390
  %5992 = vmatprep.subr.mxu0 0.0
  %5993 = vmatpush2.msra.mxu0 %v4385
  %5994 = vmatprep.mubr.f32.mxu0 %v5770
  %5995 = vmatmul.mubr.f32.gmra.mxu0 %v5769
  %v5996 = vpop.f32.mrf.mxu0
  %v5997 = vadd.f32 %v5897, %v5996
  %v5998 = vpop.f32.mrf.mxu0
  %5999 = vmatprep.mubr.f32.mxu0 %v5779
  %6000 = vmatmul.mubr.f32.gmra.mxu0 %v5778
  %v6001 = vpop.f32.mrf.mxu0
  %v6002 = vadd.f32 %v5902, %v6001
  %v6003 = vpop.f32.mrf.mxu0
  %6004 = vmatprep.mubr.f32.mxu0 %v5788
  %6005 = vmatmul.mubr.f32.gmra.mxu0 %v5787
  %v6006 = vpop.f32.mrf.mxu0
  %v6007 = vadd.f32 %v5907, %v6006
  %v6008 = vpop.f32.mrf.mxu0
  %6009 = vmatprep.mubr.f32.mxu0 %v5797
  %6010 = vmatmul.mubr.f32.gmra.mxu0 %v5796
  %v6011 = vpop.f32.mrf.mxu0
  %v6012 = vadd.f32 %v5912, %v6011
  %v6013 = vpop.f32.mrf.mxu0
  %6014 = vmatprep.mubr.f32.mxu0 %v5806
  %6015 = vmatmul.mubr.f32.gmra.mxu0 %v5805
  %v6016 = vpop.f32.mrf.mxu0
  %v6017 = vadd.f32 %v5917, %v6016
  %v6018 = vpop.f32.mrf.mxu0
  %6019 = vmatprep.mubr.f32.mxu0 %v5815
  %6020 = vmatmul.mubr.f32.gmra.mxu0 %v5814
  %v6021 = vpop.f32.mrf.mxu0
  %v6022 = vadd.f32 %v5922, %v6021
  %v6023 = vpop.f32.mrf.mxu0
  %6024 = vmatprep.mubr.f32.mxu0 %v5824
  %6025 = vmatmul.mubr.f32.gmra.mxu0 %v5823
  %v6026 = vpop.f32.mrf.mxu0
  %v6027 = vadd.f32 %v5927, %v6026
  %v6028 = vpop.f32.mrf.mxu0
  %6029 = vdwg.mxu0
  %6030 = vmatprep.subr.mxu0 0.0
  %6031 = vmatpush1.msra.mxu0 %v4608
  %6032 = vmatprep.subr.mxu0 0.0
  %6033 = vmatpush1.msra.mxu0 %v4603
  %6034 = vmatprep.subr.mxu0 0.0
  %6035 = vmatpush1.msra.mxu0 %v4598
  %6036 = vmatprep.subr.mxu0 0.0
  %6037 = vmatpush1.msra.mxu0 %v4593
  %6038 = vmatprep.subr.mxu0 0.0
  %6039 = vmatpush1.msra.mxu0 %v4588
  %6040 = vmatprep.subr.mxu0 0.0
  %6041 = vmatpush1.msra.mxu0 %v4583
  %6042 = vmatprep.subr.mxu0 0.0
  %6043 = vmatpush1.msra.mxu0 %v4578
  %6044 = vmatprep.subr.mxu0 0.0
  %6045 = vmatpush1.msra.mxu0 %v4573
  %6046 = vmatprep.subr.mxu0 0.0
  %6047 = vmatpush1.msra.mxu0 %v4568
  %6048 = vmatprep.subr.mxu0 0.0
  %6049 = vmatpush1.msra.mxu0 %v4563
  %6050 = vmatprep.subr.mxu0 0.0
  %6051 = vmatpush1.msra.mxu0 %v4558
  %6052 = vmatprep.subr.mxu0 0.0
  %6053 = vmatpush1.msra.mxu0 %v4553
  %6054 = vmatprep.subr.mxu0 0.0
  %6055 = vmatpush1.msra.mxu0 %v4548
  %6056 = vmatprep.subr.mxu0 0.0
  %6057 = vmatpush1.msra.mxu0 %v4543
  %6058 = vmatprep.subr.mxu0 0.0
  %6059 = vmatpush1.msra.mxu0 %v4538
  %6060 = vmatprep.subr.mxu0 0.0
  %6061 = vmatpush1.msra.mxu0 %v4533
  %6062 = vmatprep.subr.mxu0 0.0
  %6063 = vmatpush2.msra.mxu0 %v4756
  %6064 = vmatprep.subr.mxu0 0.0
  %6065 = vmatpush2.msra.mxu0 %v4751
  %6066 = vmatprep.subr.mxu0 0.0
  %6067 = vmatpush2.msra.mxu0 %v4746
  %6068 = vmatprep.subr.mxu0 0.0
  %6069 = vmatpush2.msra.mxu0 %v4741
  %6070 = vmatprep.subr.mxu0 0.0
  %6071 = vmatpush2.msra.mxu0 %v4736
  %6072 = vmatprep.subr.mxu0 0.0
  %6073 = vmatpush2.msra.mxu0 %v4731
  %6074 = vmatprep.subr.mxu0 0.0
  %6075 = vmatpush2.msra.mxu0 %v4726
  %6076 = vmatprep.subr.mxu0 0.0
  %6077 = vmatpush2.msra.mxu0 %v4721
  %6078 = vmatprep.subr.mxu0 0.0
  %6079 = vmatpush2.msra.mxu0 %v4716
  %6080 = vmatprep.subr.mxu0 0.0
  %6081 = vmatpush2.msra.mxu0 %v4711
  %6082 = vmatprep.subr.mxu0 0.0
  %6083 = vmatpush2.msra.mxu0 %v4706
  %6084 = vmatprep.subr.mxu0 0.0
  %6085 = vmatpush2.msra.mxu0 %v4701
  %6086 = vmatprep.subr.mxu0 0.0
  %6087 = vmatpush2.msra.mxu0 %v4696
  %6088 = vmatprep.subr.mxu0 0.0
  %6089 = vmatpush2.msra.mxu0 %v4691
  %6090 = vmatprep.subr.mxu0 0.0
  %6091 = vmatpush2.msra.mxu0 %v4686
  %6092 = vmatprep.subr.mxu0 0.0
  %6093 = vmatpush2.msra.mxu0 %v4681
  %6094 = vmatprep.mubr.f32.mxu0 %v5772
  %6095 = vmatmul.mubr.f32.gmra.mxu0 %v5771
  %v6096 = vpop.f32.mrf.mxu0
  %v6097 = vadd.f32 %v5997, %v6096
  %v6098 = vpop.f32.mrf.mxu0
  %6099 = vmatprep.mubr.f32.mxu0 %v5781
  %6100 = vmatmul.mubr.f32.gmra.mxu0 %v5780
  %v6101 = vpop.f32.mrf.mxu0
  %v6102 = vadd.f32 %v6002, %v6101
  %v6103 = vpop.f32.mrf.mxu0
  %6104 = vmatprep.mubr.f32.mxu0 %v5790
  %6105 = vmatmul.mubr.f32.gmra.mxu0 %v5789
  %v6106 = vpop.f32.mrf.mxu0
  %v6107 = vadd.f32 %v6007, %v6106
  %v6108 = vpop.f32.mrf.mxu0
  %6109 = vmatprep.mubr.f32.mxu0 %v5799
  %6110 = vmatmul.mubr.f32.gmra.mxu0 %v5798
  %v6111 = vpop.f32.mrf.mxu0
  %v6112 = vadd.f32 %v6012, %v6111
  %v6113 = vpop.f32.mrf.mxu0
  %6114 = vmatprep.mubr.f32.mxu0 %v5808
  %6115 = vmatmul.mubr.f32.gmra.mxu0 %v5807
  %v6116 = vpop.f32.mrf.mxu0
  %v6117 = vadd.f32 %v6017, %v6116
  %v6118 = vpop.f32.mrf.mxu0
  %6119 = vmatprep.mubr.f32.mxu0 %v5817
  %6120 = vmatmul.mubr.f32.gmra.mxu0 %v5816
  %v6121 = vpop.f32.mrf.mxu0
  %v6122 = vadd.f32 %v6022, %v6121
  %v6123 = vpop.f32.mrf.mxu0
  %6124 = vmatprep.mubr.f32.mxu0 %v5826
  %6125 = vmatmul.mubr.f32.gmra.mxu0 %v5825
  %v6126 = vpop.f32.mrf.mxu0
  %v6127 = vadd.f32 %v6027, %v6126
  %v6128 = vpop.f32.mrf.mxu0
  %6129 = vdwg.mxu0
  %6130 = vmatprep.subr.mxu0 0.0
  %6131 = vmatpush1.msra.mxu0 %v4904
  %6132 = vmatprep.subr.mxu0 0.0
  %6133 = vmatpush1.msra.mxu0 %v4899
  %6134 = vmatprep.subr.mxu0 0.0
  %6135 = vmatpush1.msra.mxu0 %v4894
  %6136 = vmatprep.subr.mxu0 0.0
  %6137 = vmatpush1.msra.mxu0 %v4889
  %6138 = vmatprep.subr.mxu0 0.0
  %6139 = vmatpush1.msra.mxu0 %v4884
  %6140 = vmatprep.subr.mxu0 0.0
  %6141 = vmatpush1.msra.mxu0 %v4879
  %6142 = vmatprep.subr.mxu0 0.0
  %6143 = vmatpush1.msra.mxu0 %v4874
  %6144 = vmatprep.subr.mxu0 0.0
  %6145 = vmatpush1.msra.mxu0 %v4869
  %6146 = vmatprep.subr.mxu0 0.0
  %6147 = vmatpush1.msra.mxu0 %v4864
  %6148 = vmatprep.subr.mxu0 0.0
  %6149 = vmatpush1.msra.mxu0 %v4859
  %6150 = vmatprep.subr.mxu0 0.0
  %6151 = vmatpush1.msra.mxu0 %v4854
  %6152 = vmatprep.subr.mxu0 0.0
  %6153 = vmatpush1.msra.mxu0 %v4849
  %6154 = vmatprep.subr.mxu0 0.0
  %6155 = vmatpush1.msra.mxu0 %v4844
  %6156 = vmatprep.subr.mxu0 0.0
  %6157 = vmatpush1.msra.mxu0 %v4839
  %6158 = vmatprep.subr.mxu0 0.0
  %6159 = vmatpush1.msra.mxu0 %v4834
  %6160 = vmatprep.subr.mxu0 0.0
  %6161 = vmatpush1.msra.mxu0 %v4829
  %6162 = vmatprep.subr.mxu0 0.0
  %6163 = vmatpush2.msra.mxu0 %v5052
  %6164 = vmatprep.subr.mxu0 0.0
  %6165 = vmatpush2.msra.mxu0 %v5047
  %6166 = vmatprep.subr.mxu0 0.0
  %6167 = vmatpush2.msra.mxu0 %v5042
  %6168 = vmatprep.subr.mxu0 0.0
  %6169 = vmatpush2.msra.mxu0 %v5037
  %6170 = vmatprep.subr.mxu0 0.0
  %6171 = vmatpush2.msra.mxu0 %v5032
  %6172 = vmatprep.subr.mxu0 0.0
  %6173 = vmatpush2.msra.mxu0 %v5027
  %6174 = vmatprep.subr.mxu0 0.0
  %6175 = vmatpush2.msra.mxu0 %v5022
  %6176 = vmatprep.subr.mxu0 0.0
  %6177 = vmatpush2.msra.mxu0 %v5017
  %6178 = vmatprep.subr.mxu0 0.0
  %6179 = vmatpush2.msra.mxu0 %v5012
  %6180 = vmatprep.subr.mxu0 0.0
  %6181 = vmatpush2.msra.mxu0 %v5007
  %6182 = vmatprep.subr.mxu0 0.0
  %6183 = vmatpush2.msra.mxu0 %v5002
  %6184 = vmatprep.subr.mxu0 0.0
  %6185 = vmatpush2.msra.mxu0 %v4997
  %6186 = vmatprep.subr.mxu0 0.0
  %6187 = vmatpush2.msra.mxu0 %v4992
  %6188 = vmatprep.subr.mxu0 0.0
  %6189 = vmatpush2.msra.mxu0 %v4987
  %6190 = vmatprep.subr.mxu0 0.0
  %6191 = vmatpush2.msra.mxu0 %v4982
  %6192 = vmatprep.subr.mxu0 0.0
  %6193 = vmatpush2.msra.mxu0 %v4977
  %6194 = vmatprep.mubr.f32.mxu0 %v5774
  %6195 = vmatmul.mubr.f32.gmra.mxu0 %v5773
  %v6196 = vpop.f32.mrf.mxu0
  %v6197 = vadd.f32 %v6097, %v6196
  %v6198 = vpop.f32.mrf.mxu0
  %6199 = vmatprep.mubr.f32.mxu0 %v5783
  %6200 = vmatmul.mubr.f32.gmra.mxu0 %v5782
  %v6201 = vpop.f32.mrf.mxu0
  %v6202 = vadd.f32 %v6102, %v6201
  %v6203 = vpop.f32.mrf.mxu0
  %6204 = vmatprep.mubr.f32.mxu0 %v5792
  %6205 = vmatmul.mubr.f32.gmra.mxu0 %v5791
  %v6206 = vpop.f32.mrf.mxu0
  %v6207 = vadd.f32 %v6107, %v6206
  %v6208 = vpop.f32.mrf.mxu0
  %6209 = vmatprep.mubr.f32.mxu0 %v5801
  %6210 = vmatmul.mubr.f32.gmra.mxu0 %v5800
  %v6211 = vpop.f32.mrf.mxu0
  %v6212 = vadd.f32 %v6112, %v6211
  %v6213 = vpop.f32.mrf.mxu0
  %6214 = vmatprep.mubr.f32.mxu0 %v5810
  %6215 = vmatmul.mubr.f32.gmra.mxu0 %v5809
  %v6216 = vpop.f32.mrf.mxu0
  %v6217 = vadd.f32 %v6117, %v6216
  %v6218 = vpop.f32.mrf.mxu0
  %6219 = vmatprep.mubr.f32.mxu0 %v5819
  %6220 = vmatmul.mubr.f32.gmra.mxu0 %v5818
  %v6221 = vpop.f32.mrf.mxu0
  %v6222 = vadd.f32 %v6122, %v6221
  %v6223 = vpop.f32.mrf.mxu0
  %6224 = vmatprep.mubr.f32.mxu0 %v5828
  %6225 = vmatmul.mubr.f32.gmra.mxu0 %v5827
  %v6226 = vpop.f32.mrf.mxu0
  %v6227 = vadd.f32 %v6127, %v6226
  %v6228 = vpop.f32.mrf.mxu0
  %6229 = vdwg.mxu0
  %6230 = vmatprep.subr.mxu0 0.0
  %6231 = vmatpush1.msra.mxu0 %v5200
  %6232 = vmatprep.subr.mxu0 0.0
  %6233 = vmatpush1.msra.mxu0 %v5195
  %6234 = vmatprep.subr.mxu0 0.0
  %6235 = vmatpush1.msra.mxu0 %v5190
  %6236 = vmatprep.subr.mxu0 0.0
  %6237 = vmatpush1.msra.mxu0 %v5185
  %6238 = vmatprep.subr.mxu0 0.0
  %6239 = vmatpush1.msra.mxu0 %v5180
  %6240 = vmatprep.subr.mxu0 0.0
  %6241 = vmatpush1.msra.mxu0 %v5175
  %6242 = vmatprep.subr.mxu0 0.0
  %6243 = vmatpush1.msra.mxu0 %v5170
  %6244 = vmatprep.subr.mxu0 0.0
  %6245 = vmatpush1.msra.mxu0 %v5165
  %6246 = vmatprep.subr.mxu0 0.0
  %6247 = vmatpush1.msra.mxu0 %v5160
  %6248 = vmatprep.subr.mxu0 0.0
  %6249 = vmatpush1.msra.mxu0 %v5155
  %6250 = vmatprep.subr.mxu0 0.0
  %6251 = vmatpush1.msra.mxu0 %v5150
  %6252 = vmatprep.subr.mxu0 0.0
  %6253 = vmatpush1.msra.mxu0 %v5145
  %6254 = vmatprep.subr.mxu0 0.0
  %6255 = vmatpush1.msra.mxu0 %v5140
  %6256 = vmatprep.subr.mxu0 0.0
  %6257 = vmatpush1.msra.mxu0 %v5135
  %6258 = vmatprep.subr.mxu0 0.0
  %6259 = vmatpush1.msra.mxu0 %v5130
  %6260 = vmatprep.subr.mxu0 0.0
  %6261 = vmatpush1.msra.mxu0 %v5125
  %6262 = vmatprep.subr.mxu0 0.0
  %6263 = vmatpush2.msra.mxu0 0.0
  %6264 = vmatprep.subr.mxu0 0.0
  %6265 = vmatpush2.msra.mxu0 0.0
  %6266 = vmatprep.subr.mxu0 0.0
  %6267 = vmatpush2.msra.mxu0 0.0
  %6268 = vmatprep.subr.mxu0 0.0
  %6269 = vmatpush2.msra.mxu0 0.0
  %6270 = vmatprep.subr.mxu0 0.0
  %6271 = vmatpush2.msra.mxu0 0.0
  %6272 = vmatprep.subr.mxu0 0.0
  %6273 = vmatpush2.msra.mxu0 0.0
  %6274 = vmatprep.subr.mxu0 0.0
  %6275 = vmatpush2.msra.mxu0 0.0
  %6276 = vmatprep.subr.mxu0 0.0
  %6277 = vmatpush2.msra.mxu0 0.0
  %6278 = vmatprep.subr.mxu0 0.0
  %6279 = vmatpush2.msra.mxu0 0.0
  %6280 = vmatprep.subr.mxu0 0.0
  %6281 = vmatpush2.msra.mxu0 0.0
  %6282 = vmatprep.subr.mxu0 0.0
  %6283 = vmatpush2.msra.mxu0 0.0
  %6284 = vmatprep.subr.mxu0 0.0
  %6285 = vmatpush2.msra.mxu0 0.0
  %6286 = vmatprep.subr.mxu0 0.0
  %6287 = vmatpush2.msra.mxu0 0.0
  %6288 = vmatprep.subr.mxu0 0.0
  %6289 = vmatpush2.msra.mxu0 0.0
  %6290 = vmatprep.subr.mxu0 0.0
  %6291 = vmatpush2.msra.mxu0 0.0
  %6292 = vmatprep.subr.mxu0 0.0
  %6293 = vmatpush2.msra.mxu0 0.0
  %6294 = vmatprep.mubr.f32.mxu0 0.0
  %6295 = vmatmul.mubr.f32.gmra.mxu0 %v5775
  %v6296 = vpop.f32.mrf.mxu0
  %v6297 = vadd.f32 %v6197, %v6296
  %v6298 = vpop.f32.mrf.mxu0
  %6299 = vmatprep.mubr.f32.mxu0 0.0
  %6300 = vmatmul.mubr.f32.gmra.mxu0 %v5784
  %v6301 = vpop.f32.mrf.mxu0
  %v6302 = vadd.f32 %v6202, %v6301
  %v6303 = vpop.f32.mrf.mxu0
  %6304 = vmatprep.mubr.f32.mxu0 0.0
  %6305 = vmatmul.mubr.f32.gmra.mxu0 %v5793
  %v6306 = vpop.f32.mrf.mxu0
  %v6307 = vadd.f32 %v6207, %v6306
  %v6308 = vpop.f32.mrf.mxu0
  %6309 = vmatprep.mubr.f32.mxu0 0.0
  %6310 = vmatmul.mubr.f32.gmra.mxu0 %v5802
  %v6311 = vpop.f32.mrf.mxu0
  %v6312 = vadd.f32 %v6212, %v6311
  %v6313 = vpop.f32.mrf.mxu0
  %6314 = vmatprep.mubr.f32.mxu0 0.0
  %6315 = vmatmul.mubr.f32.gmra.mxu0 %v5811
  %v6316 = vpop.f32.mrf.mxu0
  %v6317 = vadd.f32 %v6217, %v6316
  %v6318 = vpop.f32.mrf.mxu0
  %6319 = vmatprep.mubr.f32.mxu0 0.0
  %6320 = vmatmul.mubr.f32.gmra.mxu0 %v5820
  %v6321 = vpop.f32.mrf.mxu0
  %v6322 = vadd.f32 %v6222, %v6321
  %v6323 = vpop.f32.mrf.mxu0
  %6324 = vmatprep.mubr.f32.mxu0 0.0
  %6325 = vmatmul.mubr.f32.gmra.mxu0 %v5829
  %v6326 = vpop.f32.mrf.mxu0
  %v6327 = vadd.f32 %v6227, %v6326
  %v6328 = vpop.f32.mrf.mxu0
  %6329 = vdwg.mxu0
  %s6330 = scalar_lea.vmem %s5, 1008
  %v6331 = vld [vmem:[%s6330] sm:$0xff]
  %v6332 = vld [vmem:[%s6330 + $0x8] sm:$0xff]
  %v6333 = vld [vmem:[%s6330 + $0x10] sm:$0xff]
  %v6334 = vld [vmem:[%s6330 + $0x18] sm:$0xff]
  %v6335 = vld [vmem:[%s6330 + $0x20] sm:$0xff]
  %v6336 = vld [vmem:[%s6330 + $0x28] sm:$0xff]
  %v6337 = vld [vmem:[%s6330 + $0x30] sm:$0xff]
  %v6338 = vld [vmem:[%s6330 + $0x38] sm:$0xff]
  %v6339 = vld [vmem:[%s6330 + $0x40] sm:$0xff]
  %v6340 = vld [vmem:[%s6330 + $0x48] sm:$0xff]
  %v6341 = vld [vmem:[%s6330 + $0x50] sm:$0xff]
  %v6342 = vld [vmem:[%s6330 + $0x58] sm:$0xff]
  %v6343 = vld [vmem:[%s6330 + $0x60] sm:$0xff]
  %v6344 = vld [vmem:[%s6330 + $0x68] sm:$0xff]
  %v6345 = vld [vmem:[%s6330 + $0x70] sm:$0xff]
  %v6346 = vld [vmem:[%s6330 + $0x78] sm:$0xff]
  %v6347 = vld [vmem:[%s6330 + $0x80] sm:$0xff]
  %v6348 = vld [vmem:[%s6330 + $0x88] sm:$0xff]
  %v6349 = vld [vmem:[%s6330 + $0x90] sm:$0xff]
  %v6350 = vld [vmem:[%s6330 + $0x98] sm:$0xff]
  %v6351 = vld [vmem:[%s6330 + $0xa0] sm:$0xff]
  %v6352 = vld [vmem:[%s6330 + $0xa8] sm:$0xff]
  %v6353 = vld [vmem:[%s6330 + $0xb0] sm:$0xff]
  %v6354 = vld [vmem:[%s6330 + $0xb8] sm:$0xff]
  %v6355 = vld [vmem:[%s6330 + $0xc0] sm:$0xff]
  %v6356 = vld [vmem:[%s6330 + $0xc8] sm:$0xff]
  %v6357 = vld [vmem:[%s6330 + $0xd0] sm:$0xff]
  %v6358 = vld [vmem:[%s6330 + $0xd8] sm:$0xff]
  %v6359 = vld [vmem:[%s6330 + $0xe0] sm:$0xff]
  %v6360 = vld [vmem:[%s6330 + $0xe8] sm:$0xff]
  %v6361 = vld [vmem:[%s6330 + $0xf0] sm:$0xff]
  %v6362 = vld [vmem:[%s6330 + $0xf8] sm:$0xff]
  %v6363 = vld [vmem:[%s6330 + $0x100] sm:$0xff]
  %v6364 = vld [vmem:[%s6330 + $0x108] sm:$0xff]
  %v6365 = vld [vmem:[%s6330 + $0x110] sm:$0xff]
  %v6366 = vld [vmem:[%s6330 + $0x118] sm:$0xff]
  %v6367 = vld [vmem:[%s6330 + $0x120] sm:$0xff]
  %v6368 = vld [vmem:[%s6330 + $0x128] sm:$0xff]
  %v6369 = vld [vmem:[%s6330 + $0x130] sm:$0xff]
  %v6370 = vld [vmem:[%s6330 + $0x138] sm:$0xff]
  %v6371 = vld [vmem:[%s6330 + $0x140] sm:$0xff]
  %v6372 = vld [vmem:[%s6330 + $0x148] sm:$0xff]
  %v6373 = vld [vmem:[%s6330 + $0x150] sm:$0xff]
  %v6374 = vld [vmem:[%s6330 + $0x158] sm:$0xff]
  %v6375 = vld [vmem:[%s6330 + $0x160] sm:$0xff]
  %v6376 = vld [vmem:[%s6330 + $0x168] sm:$0xff]
  %v6377 = vld [vmem:[%s6330 + $0x170] sm:$0xff]
  %v6378 = vld [vmem:[%s6330 + $0x178] sm:$0xff]
  %v6379 = vld [vmem:[%s6330 + $0x180] sm:$0xff]
  %v6380 = vld [vmem:[%s6330 + $0x188] sm:$0xff]
  %v6381 = vld [vmem:[%s6330 + $0x190] sm:$0xff]
  %v6382 = vld [vmem:[%s6330 + $0x198] sm:$0xff]
  %v6383 = vld [vmem:[%s6330 + $0x1a0] sm:$0xff]
  %v6384 = vld [vmem:[%s6330 + $0x1a8] sm:$0xff]
  %v6385 = vld [vmem:[%s6330 + $0x1b0] sm:$0x3]
  %v6386 = vld [vmem:[%s6330 + $0x1b8] sm:$0x3]
  %v6387 = vld [vmem:[%s6330 + $0x1c0] sm:$0x3]
  %v6388 = vld [vmem:[%s6330 + $0x1c8] sm:$0x3]
  %v6389 = vld [vmem:[%s6330 + $0x1d0] sm:$0x3]
  %v6390 = vld [vmem:[%s6330 + $0x1d8] sm:$0x3]
  %v6391 = vld [vmem:[%s6330 + $0x1e0] sm:$0x3]
  %v6392 = vld [vmem:[%s6330 + $0x1e8] sm:$0x3]
  %v6393 = vld [vmem:[%s6330 + $0x1f0] sm:$0x3]
  %6394 = vmatprep.subr.mxu0 0.0
  %6395 = vmatpush1.msra.mxu0 %v4016
  %6396 = vmatprep.subr.mxu0 0.0
  %6397 = vmatpush1.msra.mxu0 %v4011
  %6398 = vmatprep.subr.mxu0 0.0
  %6399 = vmatpush1.msra.mxu0 %v4006
  %6400 = vmatprep.subr.mxu0 0.0
  %6401 = vmatpush1.msra.mxu0 %v4001
  %6402 = vmatprep.subr.mxu0 0.0
  %6403 = vmatpush1.msra.mxu0 %v3996
  %6404 = vmatprep.subr.mxu0 0.0
  %6405 = vmatpush1.msra.mxu0 %v3991
  %6406 = vmatprep.subr.mxu0 0.0
  %6407 = vmatpush1.msra.mxu0 %v3986
  %6408 = vmatprep.subr.mxu0 0.0
  %6409 = vmatpush1.msra.mxu0 %v3981
  %6410 = vmatprep.subr.mxu0 0.0
  %6411 = vmatpush1.msra.mxu0 %v3976
  %6412 = vmatprep.subr.mxu0 0.0
  %6413 = vmatpush1.msra.mxu0 %v3971
  %6414 = vmatprep.subr.mxu0 0.0
  %6415 = vmatpush1.msra.mxu0 %v3966
  %6416 = vmatprep.subr.mxu0 0.0
  %6417 = vmatpush1.msra.mxu0 %v3961
  %6418 = vmatprep.subr.mxu0 0.0
  %6419 = vmatpush1.msra.mxu0 %v3956
  %6420 = vmatprep.subr.mxu0 0.0
  %6421 = vmatpush1.msra.mxu0 %v3951
  %6422 = vmatprep.subr.mxu0 0.0
  %6423 = vmatpush1.msra.mxu0 %v3946
  %6424 = vmatprep.subr.mxu0 0.0
  %6425 = vmatpush1.msra.mxu0 %v3941
  %6426 = vmatprep.subr.mxu0 0.0
  %6427 = vmatpush2.msra.mxu0 %v4164
  %6428 = vmatprep.subr.mxu0 0.0
  %6429 = vmatpush2.msra.mxu0 %v4159
  %6430 = vmatprep.subr.mxu0 0.0
  %6431 = vmatpush2.msra.mxu0 %v4154
  %6432 = vmatprep.subr.mxu0 0.0
  %6433 = vmatpush2.msra.mxu0 %v4149
  %6434 = vmatprep.subr.mxu0 0.0
  %6435 = vmatpush2.msra.mxu0 %v4144
  %6436 = vmatprep.subr.mxu0 0.0
  %6437 = vmatpush2.msra.mxu0 %v4139
  %6438 = vmatprep.subr.mxu0 0.0
  %6439 = vmatpush2.msra.mxu0 %v4134
  %6440 = vmatprep.subr.mxu0 0.0
  %6441 = vmatpush2.msra.mxu0 %v4129
  %6442 = vmatprep.subr.mxu0 0.0
  %6443 = vmatpush2.msra.mxu0 %v4124
  %6444 = vmatprep.subr.mxu0 0.0
  %6445 = vmatpush2.msra.mxu0 %v4119
  %6446 = vmatprep.subr.mxu0 0.0
  %6447 = vmatpush2.msra.mxu0 %v4114
  %6448 = vmatprep.subr.mxu0 0.0
  %6449 = vmatpush2.msra.mxu0 %v4109
  %6450 = vmatprep.subr.mxu0 0.0
  %6451 = vmatpush2.msra.mxu0 %v4104
  %6452 = vmatprep.subr.mxu0 0.0
  %6453 = vmatpush2.msra.mxu0 %v4099
  %6454 = vmatprep.subr.mxu0 0.0
  %6455 = vmatpush2.msra.mxu0 %v4094
  %6456 = vmatprep.subr.mxu0 0.0
  %6457 = vmatpush2.msra.mxu0 %v4089
  %6458 = vmatprep.mubr.f32.mxu0 %v6332
  %6459 = vmatmul.mubr.f32.gmra.mxu0 %v6331
  %v6460 = vpop.f32.mrf.mxu0
  %v6461 = vadd.f32 0.0, %v6460
  %v6462 = vpop.f32.mrf.mxu0
  %6463 = vmatprep.mubr.f32.mxu0 %v6341
  %6464 = vmatmul.mubr.f32.gmra.mxu0 %v6340
  %v6465 = vpop.f32.mrf.mxu0
  %v6466 = vadd.f32 0.0, %v6465
  %v6467 = vpop.f32.mrf.mxu0
  %6468 = vmatprep.mubr.f32.mxu0 %v6350
  %6469 = vmatmul.mubr.f32.gmra.mxu0 %v6349
  %v6470 = vpop.f32.mrf.mxu0
  %v6471 = vadd.f32 0.0, %v6470
  %v6472 = vpop.f32.mrf.mxu0
  %6473 = vmatprep.mubr.f32.mxu0 %v6359
  %6474 = vmatmul.mubr.f32.gmra.mxu0 %v6358
  %v6475 = vpop.f32.mrf.mxu0
  %v6476 = vadd.f32 0.0, %v6475
  %v6477 = vpop.f32.mrf.mxu0
  %6478 = vmatprep.mubr.f32.mxu0 %v6368
  %6479 = vmatmul.mubr.f32.gmra.mxu0 %v6367
  %v6480 = vpop.f32.mrf.mxu0
  %v6481 = vadd.f32 0.0, %v6480
  %v6482 = vpop.f32.mrf.mxu0
  %6483 = vmatprep.mubr.f32.mxu0 %v6377
  %6484 = vmatmul.mubr.f32.gmra.mxu0 %v6376
  %v6485 = vpop.f32.mrf.mxu0
  %v6486 = vadd.f32 0.0, %v6485
  %v6487 = vpop.f32.mrf.mxu0
  %6488 = vmatprep.mubr.f32.mxu0 %v6386
  %6489 = vmatmul.mubr.f32.gmra.mxu0 %v6385
  %v6490 = vpop.f32.mrf.mxu0
  %v6491 = vadd.f32 0.0, %v6490
  %v6492 = vpop.f32.mrf.mxu0
  %6493 = vdwg.mxu0
  %6494 = vmatprep.subr.mxu0 0.0
  %6495 = vmatpush1.msra.mxu0 %v4312
  %6496 = vmatprep.subr.mxu0 0.0
  %6497 = vmatpush1.msra.mxu0 %v4307
  %6498 = vmatprep.subr.mxu0 0.0
  %6499 = vmatpush1.msra.mxu0 %v4302
  %6500 = vmatprep.subr.mxu0 0.0
  %6501 = vmatpush1.msra.mxu0 %v4297
  %6502 = vmatprep.subr.mxu0 0.0
  %6503 = vmatpush1.msra.mxu0 %v4292
  %6504 = vmatprep.subr.mxu0 0.0
  %6505 = vmatpush1.msra.mxu0 %v4287
  %6506 = vmatprep.subr.mxu0 0.0
  %6507 = vmatpush1.msra.mxu0 %v4282
  %6508 = vmatprep.subr.mxu0 0.0
  %6509 = vmatpush1.msra.mxu0 %v4277
  %6510 = vmatprep.subr.mxu0 0.0
  %6511 = vmatpush1.msra.mxu0 %v4272
  %6512 = vmatprep.subr.mxu0 0.0
  %6513 = vmatpush1.msra.mxu0 %v4267
  %6514 = vmatprep.subr.mxu0 0.0
  %6515 = vmatpush1.msra.mxu0 %v4262
  %6516 = vmatprep.subr.mxu0 0.0
  %6517 = vmatpush1.msra.mxu0 %v4257
  %6518 = vmatprep.subr.mxu0 0.0
  %6519 = vmatpush1.msra.mxu0 %v4252
  %6520 = vmatprep.subr.mxu0 0.0
  %6521 = vmatpush1.msra.mxu0 %v4247
  %6522 = vmatprep.subr.mxu0 0.0
  %6523 = vmatpush1.msra.mxu0 %v4242
  %6524 = vmatprep.subr.mxu0 0.0
  %6525 = vmatpush1.msra.mxu0 %v4237
  %6526 = vmatprep.subr.mxu0 0.0
  %6527 = vmatpush2.msra.mxu0 %v4460
  %6528 = vmatprep.subr.mxu0 0.0
  %6529 = vmatpush2.msra.mxu0 %v4455
  %6530 = vmatprep.subr.mxu0 0.0
  %6531 = vmatpush2.msra.mxu0 %v4450
  %6532 = vmatprep.subr.mxu0 0.0
  %6533 = vmatpush2.msra.mxu0 %v4445
  %6534 = vmatprep.subr.mxu0 0.0
  %6535 = vmatpush2.msra.mxu0 %v4440
  %6536 = vmatprep.subr.mxu0 0.0
  %6537 = vmatpush2.msra.mxu0 %v4435
  %6538 = vmatprep.subr.mxu0 0.0
  %6539 = vmatpush2.msra.mxu0 %v4430
  %6540 = vmatprep.subr.mxu0 0.0
  %6541 = vmatpush2.msra.mxu0 %v4425
  %6542 = vmatprep.subr.mxu0 0.0
  %6543 = vmatpush2.msra.mxu0 %v4420
  %6544 = vmatprep.subr.mxu0 0.0
  %6545 = vmatpush2.msra.mxu0 %v4415
  %6546 = vmatprep.subr.mxu0 0.0
  %6547 = vmatpush2.msra.mxu0 %v4410
  %6548 = vmatprep.subr.mxu0 0.0
  %6549 = vmatpush2.msra.mxu0 %v4405
  %6550 = vmatprep.subr.mxu0 0.0
  %6551 = vmatpush2.msra.mxu0 %v4400
  %6552 = vmatprep.subr.mxu0 0.0
  %6553 = vmatpush2.msra.mxu0 %v4395
  %6554 = vmatprep.subr.mxu0 0.0
  %6555 = vmatpush2.msra.mxu0 %v4390
  %6556 = vmatprep.subr.mxu0 0.0
  %6557 = vmatpush2.msra.mxu0 %v4385
  %6558 = vmatprep.mubr.f32.mxu0 %v6334
  %6559 = vmatmul.mubr.f32.gmra.mxu0 %v6333
  %v6560 = vpop.f32.mrf.mxu0
  %v6561 = vadd.f32 %v6461, %v6560
  %v6562 = vpop.f32.mrf.mxu0
  %6563 = vmatprep.mubr.f32.mxu0 %v6343
  %6564 = vmatmul.mubr.f32.gmra.mxu0 %v6342
  %v6565 = vpop.f32.mrf.mxu0
  %v6566 = vadd.f32 %v6466, %v6565
  %v6567 = vpop.f32.mrf.mxu0
  %6568 = vmatprep.mubr.f32.mxu0 %v6352
  %6569 = vmatmul.mubr.f32.gmra.mxu0 %v6351
  %v6570 = vpop.f32.mrf.mxu0
  %v6571 = vadd.f32 %v6471, %v6570
  %v6572 = vpop.f32.mrf.mxu0
  %6573 = vmatprep.mubr.f32.mxu0 %v6361
  %6574 = vmatmul.mubr.f32.gmra.mxu0 %v6360
  %v6575 = vpop.f32.mrf.mxu0
  %v6576 = vadd.f32 %v6476, %v6575
  %v6577 = vpop.f32.mrf.mxu0
  %6578 = vmatprep.mubr.f32.mxu0 %v6370
  %6579 = vmatmul.mubr.f32.gmra.mxu0 %v6369
  %v6580 = vpop.f32.mrf.mxu0
  %v6581 = vadd.f32 %v6481, %v6580
  %v6582 = vpop.f32.mrf.mxu0
  %6583 = vmatprep.mubr.f32.mxu0 %v6379
  %6584 = vmatmul.mubr.f32.gmra.mxu0 %v6378
  %v6585 = vpop.f32.mrf.mxu0
  %v6586 = vadd.f32 %v6486, %v6585
  %v6587 = vpop.f32.mrf.mxu0
  %6588 = vmatprep.mubr.f32.mxu0 %v6388
  %6589 = vmatmul.mubr.f32.gmra.mxu0 %v6387
  %v6590 = vpop.f32.mrf.mxu0
  %v6591 = vadd.f32 %v6491, %v6590
  %v6592 = vpop.f32.mrf.mxu0
  %6593 = vdwg.mxu0
  %6594 = vmatprep.subr.mxu0 0.0
  %6595 = vmatpush1.msra.mxu0 %v4608
  %6596 = vmatprep.subr.mxu0 0.0
  %6597 = vmatpush1.msra.mxu0 %v4603
  %6598 = vmatprep.subr.mxu0 0.0
  %6599 = vmatpush1.msra.mxu0 %v4598
  %6600 = vmatprep.subr.mxu0 0.0
  %6601 = vmatpush1.msra.mxu0 %v4593
  %6602 = vmatprep.subr.mxu0 0.0
  %6603 = vmatpush1.msra.mxu0 %v4588
  %6604 = vmatprep.subr.mxu0 0.0
  %6605 = vmatpush1.msra.mxu0 %v4583
  %6606 = vmatprep.subr.mxu0 0.0
  %6607 = vmatpush1.msra.mxu0 %v4578
  %6608 = vmatprep.subr.mxu0 0.0
  %6609 = vmatpush1.msra.mxu0 %v4573
  %6610 = vmatprep.subr.mxu0 0.0
  %6611 = vmatpush1.msra.mxu0 %v4568
  %6612 = vmatprep.subr.mxu0 0.0
  %6613 = vmatpush1.msra.mxu0 %v4563
  %6614 = vmatprep.subr.mxu0 0.0
  %6615 = vmatpush1.msra.mxu0 %v4558
  %6616 = vmatprep.subr.mxu0 0.0
  %6617 = vmatpush1.msra.mxu0 %v4553
  %6618 = vmatprep.subr.mxu0 0.0
  %6619 = vmatpush1.msra.mxu0 %v4548
  %6620 = vmatprep.subr.mxu0 0.0
  %6621 = vmatpush1.msra.mxu0 %v4543
  %6622 = vmatprep.subr.mxu0 0.0
  %6623 = vmatpush1.msra.mxu0 %v4538
  %6624 = vmatprep.subr.mxu0 0.0
  %6625 = vmatpush1.msra.mxu0 %v4533
  %6626 = vmatprep.subr.mxu0 0.0
  %6627 = vmatpush2.msra.mxu0 %v4756
  %6628 = vmatprep.subr.mxu0 0.0
  %6629 = vmatpush2.msra.mxu0 %v4751
  %6630 = vmatprep.subr.mxu0 0.0
  %6631 = vmatpush2.msra.mxu0 %v4746
  %6632 = vmatprep.subr.mxu0 0.0
  %6633 = vmatpush2.msra.mxu0 %v4741
  %6634 = vmatprep.subr.mxu0 0.0
  %6635 = vmatpush2.msra.mxu0 %v4736
  %6636 = vmatprep.subr.mxu0 0.0
  %6637 = vmatpush2.msra.mxu0 %v4731
  %6638 = vmatprep.subr.mxu0 0.0
  %6639 = vmatpush2.msra.mxu0 %v4726
  %6640 = vmatprep.subr.mxu0 0.0
  %6641 = vmatpush2.msra.mxu0 %v4721
  %6642 = vmatprep.subr.mxu0 0.0
  %6643 = vmatpush2.msra.mxu0 %v4716
  %6644 = vmatprep.subr.mxu0 0.0
  %6645 = vmatpush2.msra.mxu0 %v4711
  %6646 = vmatprep.subr.mxu0 0.0
  %6647 = vmatpush2.msra.mxu0 %v4706
  %6648 = vmatprep.subr.mxu0 0.0
  %6649 = vmatpush2.msra.mxu0 %v4701
  %6650 = vmatprep.subr.mxu0 0.0
  %6651 = vmatpush2.msra.mxu0 %v4696
  %6652 = vmatprep.subr.mxu0 0.0
  %6653 = vmatpush2.msra.mxu0 %v4691
  %6654 = vmatprep.subr.mxu0 0.0
  %6655 = vmatpush2.msra.mxu0 %v4686
  %6656 = vmatprep.subr.mxu0 0.0
  %6657 = vmatpush2.msra.mxu0 %v4681
  %6658 = vmatprep.mubr.f32.mxu0 %v6336
  %6659 = vmatmul.mubr.f32.gmra.mxu0 %v6335
  %v6660 = vpop.f32.mrf.mxu0
  %v6661 = vadd.f32 %v6561, %v6660
  %v6662 = vpop.f32.mrf.mxu0
  %6663 = vmatprep.mubr.f32.mxu0 %v6345
  %6664 = vmatmul.mubr.f32.gmra.mxu0 %v6344
  %v6665 = vpop.f32.mrf.mxu0
  %v6666 = vadd.f32 %v6566, %v6665
  %v6667 = vpop.f32.mrf.mxu0
  %6668 = vmatprep.mubr.f32.mxu0 %v6354
  %6669 = vmatmul.mubr.f32.gmra.mxu0 %v6353
  %v6670 = vpop.f32.mrf.mxu0
  %v6671 = vadd.f32 %v6571, %v6670
  %v6672 = vpop.f32.mrf.mxu0
  %6673 = vmatprep.mubr.f32.mxu0 %v6363
  %6674 = vmatmul.mubr.f32.gmra.mxu0 %v6362
  %v6675 = vpop.f32.mrf.mxu0
  %v6676 = vadd.f32 %v6576, %v6675
  %v6677 = vpop.f32.mrf.mxu0
  %6678 = vmatprep.mubr.f32.mxu0 %v6372
  %6679 = vmatmul.mubr.f32.gmra.mxu0 %v6371
  %v6680 = vpop.f32.mrf.mxu0
  %v6681 = vadd.f32 %v6581, %v6680
  %v6682 = vpop.f32.mrf.mxu0
  %6683 = vmatprep.mubr.f32.mxu0 %v6381
  %6684 = vmatmul.mubr.f32.gmra.mxu0 %v6380
  %v6685 = vpop.f32.mrf.mxu0
  %v6686 = vadd.f32 %v6586, %v6685
  %v6687 = vpop.f32.mrf.mxu0
  %6688 = vmatprep.mubr.f32.mxu0 %v6390
  %6689 = vmatmul.mubr.f32.gmra.mxu0 %v6389
  %v6690 = vpop.f32.mrf.mxu0
  %v6691 = vadd.f32 %v6591, %v6690
  %v6692 = vpop.f32.mrf.mxu0
  %6693 = vdwg.mxu0
  %6694 = vmatprep.subr.mxu0 0.0
  %6695 = vmatpush1.msra.mxu0 %v4904
  %6696 = vmatprep.subr.mxu0 0.0
  %6697 = vmatpush1.msra.mxu0 %v4899
  %6698 = vmatprep.subr.mxu0 0.0
  %6699 = vmatpush1.msra.mxu0 %v4894
  %6700 = vmatprep.subr.mxu0 0.0
  %6701 = vmatpush1.msra.mxu0 %v4889
  %6702 = vmatprep.subr.mxu0 0.0
  %6703 = vmatpush1.msra.mxu0 %v4884
  %6704 = vmatprep.subr.mxu0 0.0
  %6705 = vmatpush1.msra.mxu0 %v4879
  %6706 = vmatprep.subr.mxu0 0.0
  %6707 = vmatpush1.msra.mxu0 %v4874
  %6708 = vmatprep.subr.mxu0 0.0
  %6709 = vmatpush1.msra.mxu0 %v4869
  %6710 = vmatprep.subr.mxu0 0.0
  %6711 = vmatpush1.msra.mxu0 %v4864
  %6712 = vmatprep.subr.mxu0 0.0
  %6713 = vmatpush1.msra.mxu0 %v4859
  %6714 = vmatprep.subr.mxu0 0.0
  %6715 = vmatpush1.msra.mxu0 %v4854
  %6716 = vmatprep.subr.mxu0 0.0
  %6717 = vmatpush1.msra.mxu0 %v4849
  %6718 = vmatprep.subr.mxu0 0.0
  %6719 = vmatpush1.msra.mxu0 %v4844
  %6720 = vmatprep.subr.mxu0 0.0
  %6721 = vmatpush1.msra.mxu0 %v4839
  %6722 = vmatprep.subr.mxu0 0.0
  %6723 = vmatpush1.msra.mxu0 %v4834
  %6724 = vmatprep.subr.mxu0 0.0
  %6725 = vmatpush1.msra.mxu0 %v4829
  %6726 = vmatprep.subr.mxu0 0.0
  %6727 = vmatpush2.msra.mxu0 %v5052
  %6728 = vmatprep.subr.mxu0 0.0
  %6729 = vmatpush2.msra.mxu0 %v5047
  %6730 = vmatprep.subr.mxu0 0.0
  %6731 = vmatpush2.msra.mxu0 %v5042
  %6732 = vmatprep.subr.mxu0 0.0
  %6733 = vmatpush2.msra.mxu0 %v5037
  %6734 = vmatprep.subr.mxu0 0.0
  %6735 = vmatpush2.msra.mxu0 %v5032
  %6736 = vmatprep.subr.mxu0 0.0
  %6737 = vmatpush2.msra.mxu0 %v5027
  %6738 = vmatprep.subr.mxu0 0.0
  %6739 = vmatpush2.msra.mxu0 %v5022
  %6740 = vmatprep.subr.mxu0 0.0
  %6741 = vmatpush2.msra.mxu0 %v5017
  %6742 = vmatprep.subr.mxu0 0.0
  %6743 = vmatpush2.msra.mxu0 %v5012
  %6744 = vmatprep.subr.mxu0 0.0
  %6745 = vmatpush2.msra.mxu0 %v5007
  %6746 = vmatprep.subr.mxu0 0.0
  %6747 = vmatpush2.msra.mxu0 %v5002
  %6748 = vmatprep.subr.mxu0 0.0
  %6749 = vmatpush2.msra.mxu0 %v4997
  %6750 = vmatprep.subr.mxu0 0.0
  %6751 = vmatpush2.msra.mxu0 %v4992
  %6752 = vmatprep.subr.mxu0 0.0
  %6753 = vmatpush2.msra.mxu0 %v4987
  %6754 = vmatprep.subr.mxu0 0.0
  %6755 = vmatpush2.msra.mxu0 %v4982
  %6756 = vmatprep.subr.mxu0 0.0
  %6757 = vmatpush2.msra.mxu0 %v4977
  %6758 = vmatprep.mubr.f32.mxu0 %v6338
  %6759 = vmatmul.mubr.f32.gmra.mxu0 %v6337
  %v6760 = vpop.f32.mrf.mxu0
  %v6761 = vadd.f32 %v6661, %v6760
  %v6762 = vpop.f32.mrf.mxu0
  %6763 = vmatprep.mubr.f32.mxu0 %v6347
  %6764 = vmatmul.mubr.f32.gmra.mxu0 %v6346
  %v6765 = vpop.f32.mrf.mxu0
  %v6766 = vadd.f32 %v6666, %v6765
  %v6767 = vpop.f32.mrf.mxu0
  %6768 = vmatprep.mubr.f32.mxu0 %v6356
  %6769 = vmatmul.mubr.f32.gmra.mxu0 %v6355
  %v6770 = vpop.f32.mrf.mxu0
  %v6771 = vadd.f32 %v6671, %v6770
  %v6772 = vpop.f32.mrf.mxu0
  %6773 = vmatprep.mubr.f32.mxu0 %v6365
  %6774 = vmatmul.mubr.f32.gmra.mxu0 %v6364
  %v6775 = vpop.f32.mrf.mxu0
  %v6776 = vadd.f32 %v6676, %v6775
  %v6777 = vpop.f32.mrf.mxu0
  %6778 = vmatprep.mubr.f32.mxu0 %v6374
  %6779 = vmatmul.mubr.f32.gmra.mxu0 %v6373
  %v6780 = vpop.f32.mrf.mxu0
  %v6781 = vadd.f32 %v6681, %v6780
  %v6782 = vpop.f32.mrf.mxu0
  %6783 = vmatprep.mubr.f32.mxu0 %v6383
  %6784 = vmatmul.mubr.f32.gmra.mxu0 %v6382
  %v6785 = vpop.f32.mrf.mxu0
  %v6786 = vadd.f32 %v6686, %v6785
  %v6787 = vpop.f32.mrf.mxu0
  %6788 = vmatprep.mubr.f32.mxu0 %v6392
  %6789 = vmatmul.mubr.f32.gmra.mxu0 %v6391
  %v6790 = vpop.f32.mrf.mxu0
  %v6791 = vadd.f32 %v6691, %v6790
  %v6792 = vpop.f32.mrf.mxu0
  %6793 = vdwg.mxu0
  %6794 = vmatprep.subr.mxu0 0.0
  %6795 = vmatpush1.msra.mxu0 %v5200
  %6796 = vmatprep.subr.mxu0 0.0
  %6797 = vmatpush1.msra.mxu0 %v5195
  %6798 = vmatprep.subr.mxu0 0.0
  %6799 = vmatpush1.msra.mxu0 %v5190
  %6800 = vmatprep.subr.mxu0 0.0
  %6801 = vmatpush1.msra.mxu0 %v5185
  %6802 = vmatprep.subr.mxu0 0.0
  %6803 = vmatpush1.msra.mxu0 %v5180
  %6804 = vmatprep.subr.mxu0 0.0
  %6805 = vmatpush1.msra.mxu0 %v5175
  %6806 = vmatprep.subr.mxu0 0.0
  %6807 = vmatpush1.msra.mxu0 %v5170
  %6808 = vmatprep.subr.mxu0 0.0
  %6809 = vmatpush1.msra.mxu0 %v5165
  %6810 = vmatprep.subr.mxu0 0.0
  %6811 = vmatpush1.msra.mxu0 %v5160
  %6812 = vmatprep.subr.mxu0 0.0
  %6813 = vmatpush1.msra.mxu0 %v5155
  %6814 = vmatprep.subr.mxu0 0.0
  %6815 = vmatpush1.msra.mxu0 %v5150
  %6816 = vmatprep.subr.mxu0 0.0
  %6817 = vmatpush1.msra.mxu0 %v5145
  %6818 = vmatprep.subr.mxu0 0.0
  %6819 = vmatpush1.msra.mxu0 %v5140
  %6820 = vmatprep.subr.mxu0 0.0
  %6821 = vmatpush1.msra.mxu0 %v5135
  %6822 = vmatprep.subr.mxu0 0.0
  %6823 = vmatpush1.msra.mxu0 %v5130
  %6824 = vmatprep.subr.mxu0 0.0
  %6825 = vmatpush1.msra.mxu0 %v5125
  %6826 = vmatprep.subr.mxu0 0.0
  %6827 = vmatpush2.msra.mxu0 0.0
  %6828 = vmatprep.subr.mxu0 0.0
  %6829 = vmatpush2.msra.mxu0 0.0
  %6830 = vmatprep.subr.mxu0 0.0
  %6831 = vmatpush2.msra.mxu0 0.0
  %6832 = vmatprep.subr.mxu0 0.0
  %6833 = vmatpush2.msra.mxu0 0.0
  %6834 = vmatprep.subr.mxu0 0.0
  %6835 = vmatpush2.msra.mxu0 0.0
  %6836 = vmatprep.subr.mxu0 0.0
  %6837 = vmatpush2.msra.mxu0 0.0
  %6838 = vmatprep.subr.mxu0 0.0
  %6839 = vmatpush2.msra.mxu0 0.0
  %6840 = vmatprep.subr.mxu0 0.0
  %6841 = vmatpush2.msra.mxu0 0.0
  %6842 = vmatprep.subr.mxu0 0.0
  %6843 = vmatpush2.msra.mxu0 0.0
  %6844 = vmatprep.subr.mxu0 0.0
  %6845 = vmatpush2.msra.mxu0 0.0
  %6846 = vmatprep.subr.mxu0 0.0
  %6847 = vmatpush2.msra.mxu0 0.0
  %6848 = vmatprep.subr.mxu0 0.0
  %6849 = vmatpush2.msra.mxu0 0.0
  %6850 = vmatprep.subr.mxu0 0.0
  %6851 = vmatpush2.msra.mxu0 0.0
  %6852 = vmatprep.subr.mxu0 0.0
  %6853 = vmatpush2.msra.mxu0 0.0
  %6854 = vmatprep.subr.mxu0 0.0
  %6855 = vmatpush2.msra.mxu0 0.0
  %6856 = vmatprep.subr.mxu0 0.0
  %6857 = vmatpush2.msra.mxu0 0.0
  %6858 = vmatprep.mubr.f32.mxu0 0.0
  %6859 = vmatmul.mubr.f32.gmra.mxu0 %v6339
  %v6860 = vpop.f32.mrf.mxu0
  %v6861 = vadd.f32 %v6761, %v6860
  %v6862 = vpop.f32.mrf.mxu0
  %6863 = vmatprep.mubr.f32.mxu0 0.0
  %6864 = vmatmul.mubr.f32.gmra.mxu0 %v6348
  %v6865 = vpop.f32.mrf.mxu0
  %v6866 = vadd.f32 %v6766, %v6865
  %v6867 = vpop.f32.mrf.mxu0
  %6868 = vmatprep.mubr.f32.mxu0 0.0
  %6869 = vmatmul.mubr.f32.gmra.mxu0 %v6357
  %v6870 = vpop.f32.mrf.mxu0
  %v6871 = vadd.f32 %v6771, %v6870
  %v6872 = vpop.f32.mrf.mxu0
  %6873 = vmatprep.mubr.f32.mxu0 0.0
  %6874 = vmatmul.mubr.f32.gmra.mxu0 %v6366
  %v6875 = vpop.f32.mrf.mxu0
  %v6876 = vadd.f32 %v6776, %v6875
  %v6877 = vpop.f32.mrf.mxu0
  %6878 = vmatprep.mubr.f32.mxu0 0.0
  %6879 = vmatmul.mubr.f32.gmra.mxu0 %v6375
  %v6880 = vpop.f32.mrf.mxu0
  %v6881 = vadd.f32 %v6781, %v6880
  %v6882 = vpop.f32.mrf.mxu0
  %6883 = vmatprep.mubr.f32.mxu0 0.0
  %6884 = vmatmul.mubr.f32.gmra.mxu0 %v6384
  %v6885 = vpop.f32.mrf.mxu0
  %v6886 = vadd.f32 %v6786, %v6885
  %v6887 = vpop.f32.mrf.mxu0
  %6888 = vmatprep.mubr.f32.mxu0 0.0
  %6889 = vmatmul.mubr.f32.gmra.mxu0 %v6393
  %v6890 = vpop.f32.mrf.mxu0
  %v6891 = vadd.f32 %v6791, %v6890
  %v6892 = vpop.f32.mrf.mxu0
  %6893 = vdwg.mxu0
  %s6894 = scalar_lea.vmem %s5, 1512
  %v6895 = vld [vmem:[%s6894] sm:$0xff]
  %v6896 = vld [vmem:[%s6894 + $0x8] sm:$0xff]
  %v6897 = vld [vmem:[%s6894 + $0x10] sm:$0xff]
  %v6898 = vld [vmem:[%s6894 + $0x18] sm:$0xff]
  %v6899 = vld [vmem:[%s6894 + $0x20] sm:$0xff]
  %v6900 = vld [vmem:[%s6894 + $0x28] sm:$0xff]
  %v6901 = vld [vmem:[%s6894 + $0x30] sm:$0xff]
  %v6902 = vld [vmem:[%s6894 + $0x38] sm:$0xff]
  %v6903 = vld [vmem:[%s6894 + $0x40] sm:$0xff]
  %v6904 = vld [vmem:[%s6894 + $0x48] sm:$0xff]
  %v6905 = vld [vmem:[%s6894 + $0x50] sm:$0xff]
  %v6906 = vld [vmem:[%s6894 + $0x58] sm:$0xff]
  %v6907 = vld [vmem:[%s6894 + $0x60] sm:$0xff]
  %v6908 = vld [vmem:[%s6894 + $0x68] sm:$0xff]
  %v6909 = vld [vmem:[%s6894 + $0x70] sm:$0xff]
  %v6910 = vld [vmem:[%s6894 + $0x78] sm:$0xff]
  %v6911 = vld [vmem:[%s6894 + $0x80] sm:$0xff]
  %v6912 = vld [vmem:[%s6894 + $0x88] sm:$0xff]
  %v6913 = vld [vmem:[%s6894 + $0x90] sm:$0xff]
  %v6914 = vld [vmem:[%s6894 + $0x98] sm:$0xff]
  %v6915 = vld [vmem:[%s6894 + $0xa0] sm:$0xff]
  %v6916 = vld [vmem:[%s6894 + $0xa8] sm:$0xff]
  %v6917 = vld [vmem:[%s6894 + $0xb0] sm:$0xff]
  %v6918 = vld [vmem:[%s6894 + $0xb8] sm:$0xff]
  %v6919 = vld [vmem:[%s6894 + $0xc0] sm:$0xff]
  %v6920 = vld [vmem:[%s6894 + $0xc8] sm:$0xff]
  %v6921 = vld [vmem:[%s6894 + $0xd0] sm:$0xff]
  %v6922 = vld [vmem:[%s6894 + $0xd8] sm:$0xff]
  %v6923 = vld [vmem:[%s6894 + $0xe0] sm:$0xff]
  %v6924 = vld [vmem:[%s6894 + $0xe8] sm:$0xff]
  %v6925 = vld [vmem:[%s6894 + $0xf0] sm:$0xff]
  %v6926 = vld [vmem:[%s6894 + $0xf8] sm:$0xff]
  %v6927 = vld [vmem:[%s6894 + $0x100] sm:$0xff]
  %v6928 = vld [vmem:[%s6894 + $0x108] sm:$0xff]
  %v6929 = vld [vmem:[%s6894 + $0x110] sm:$0xff]
  %v6930 = vld [vmem:[%s6894 + $0x118] sm:$0xff]
  %v6931 = vld [vmem:[%s6894 + $0x120] sm:$0xff]
  %v6932 = vld [vmem:[%s6894 + $0x128] sm:$0xff]
  %v6933 = vld [vmem:[%s6894 + $0x130] sm:$0xff]
  %v6934 = vld [vmem:[%s6894 + $0x138] sm:$0xff]
  %v6935 = vld [vmem:[%s6894 + $0x140] sm:$0xff]
  %v6936 = vld [vmem:[%s6894 + $0x148] sm:$0xff]
  %v6937 = vld [vmem:[%s6894 + $0x150] sm:$0xff]
  %v6938 = vld [vmem:[%s6894 + $0x158] sm:$0xff]
  %v6939 = vld [vmem:[%s6894 + $0x160] sm:$0xff]
  %v6940 = vld [vmem:[%s6894 + $0x168] sm:$0xff]
  %v6941 = vld [vmem:[%s6894 + $0x170] sm:$0xff]
  %v6942 = vld [vmem:[%s6894 + $0x178] sm:$0xff]
  %v6943 = vld [vmem:[%s6894 + $0x180] sm:$0xff]
  %v6944 = vld [vmem:[%s6894 + $0x188] sm:$0xff]
  %v6945 = vld [vmem:[%s6894 + $0x190] sm:$0xff]
  %v6946 = vld [vmem:[%s6894 + $0x198] sm:$0xff]
  %v6947 = vld [vmem:[%s6894 + $0x1a0] sm:$0xff]
  %v6948 = vld [vmem:[%s6894 + $0x1a8] sm:$0xff]
  %v6949 = vld [vmem:[%s6894 + $0x1b0] sm:$0x3]
  %v6950 = vld [vmem:[%s6894 + $0x1b8] sm:$0x3]
  %v6951 = vld [vmem:[%s6894 + $0x1c0] sm:$0x3]
  %v6952 = vld [vmem:[%s6894 + $0x1c8] sm:$0x3]
  %v6953 = vld [vmem:[%s6894 + $0x1d0] sm:$0x3]
  %v6954 = vld [vmem:[%s6894 + $0x1d8] sm:$0x3]
  %v6955 = vld [vmem:[%s6894 + $0x1e0] sm:$0x3]
  %v6956 = vld [vmem:[%s6894 + $0x1e8] sm:$0x3]
  %v6957 = vld [vmem:[%s6894 + $0x1f0] sm:$0x3]
  %6958 = vmatprep.subr.mxu0 0.0
  %6959 = vmatpush1.msra.mxu0 %v4016
  %6960 = vmatprep.subr.mxu0 0.0
  %6961 = vmatpush1.msra.mxu0 %v4011
  %6962 = vmatprep.subr.mxu0 0.0
  %6963 = vmatpush1.msra.mxu0 %v4006
  %6964 = vmatprep.subr.mxu0 0.0
  %6965 = vmatpush1.msra.mxu0 %v4001
  %6966 = vmatprep.subr.mxu0 0.0
  %6967 = vmatpush1.msra.mxu0 %v3996
  %6968 = vmatprep.subr.mxu0 0.0
  %6969 = vmatpush1.msra.mxu0 %v3991
  %6970 = vmatprep.subr.mxu0 0.0
  %6971 = vmatpush1.msra.mxu0 %v3986
  %6972 = vmatprep.subr.mxu0 0.0
  %6973 = vmatpush1.msra.mxu0 %v3981
  %6974 = vmatprep.subr.mxu0 0.0
  %6975 = vmatpush1.msra.mxu0 %v3976
  %6976 = vmatprep.subr.mxu0 0.0
  %6977 = vmatpush1.msra.mxu0 %v3971
  %6978 = vmatprep.subr.mxu0 0.0
  %6979 = vmatpush1.msra.mxu0 %v3966
  %6980 = vmatprep.subr.mxu0 0.0
  %6981 = vmatpush1.msra.mxu0 %v3961
  %6982 = vmatprep.subr.mxu0 0.0
  %6983 = vmatpush1.msra.mxu0 %v3956
  %6984 = vmatprep.subr.mxu0 0.0
  %6985 = vmatpush1.msra.mxu0 %v3951
  %6986 = vmatprep.subr.mxu0 0.0
  %6987 = vmatpush1.msra.mxu0 %v3946
  %6988 = vmatprep.subr.mxu0 0.0
  %6989 = vmatpush1.msra.mxu0 %v3941
  %6990 = vmatprep.subr.mxu0 0.0
  %6991 = vmatpush2.msra.mxu0 %v4164
  %6992 = vmatprep.subr.mxu0 0.0
  %6993 = vmatpush2.msra.mxu0 %v4159
  %6994 = vmatprep.subr.mxu0 0.0
  %6995 = vmatpush2.msra.mxu0 %v4154
  %6996 = vmatprep.subr.mxu0 0.0
  %6997 = vmatpush2.msra.mxu0 %v4149
  %6998 = vmatprep.subr.mxu0 0.0
  %6999 = vmatpush2.msra.mxu0 %v4144
  %7000 = vmatprep.subr.mxu0 0.0
  %7001 = vmatpush2.msra.mxu0 %v4139
  %7002 = vmatprep.subr.mxu0 0.0
  %7003 = vmatpush2.msra.mxu0 %v4134
  %7004 = vmatprep.subr.mxu0 0.0
  %7005 = vmatpush2.msra.mxu0 %v4129
  %7006 = vmatprep.subr.mxu0 0.0
  %7007 = vmatpush2.msra.mxu0 %v4124
  %7008 = vmatprep.subr.mxu0 0.0
  %7009 = vmatpush2.msra.mxu0 %v4119
  %7010 = vmatprep.subr.mxu0 0.0
  %7011 = vmatpush2.msra.mxu0 %v4114
  %7012 = vmatprep.subr.mxu0 0.0
  %7013 = vmatpush2.msra.mxu0 %v4109
  %7014 = vmatprep.subr.mxu0 0.0
  %7015 = vmatpush2.msra.mxu0 %v4104
  %7016 = vmatprep.subr.mxu0 0.0
  %7017 = vmatpush2.msra.mxu0 %v4099
  %7018 = vmatprep.subr.mxu0 0.0
  %7019 = vmatpush2.msra.mxu0 %v4094
  %7020 = vmatprep.subr.mxu0 0.0
  %7021 = vmatpush2.msra.mxu0 %v4089
  %7022 = vmatprep.mubr.f32.mxu0 %v6896
  %7023 = vmatmul.mubr.f32.gmra.mxu0 %v6895
  %v7024 = vpop.f32.mrf.mxu0
  %v7025 = vadd.f32 0.0, %v7024
  %v7026 = vpop.f32.mrf.mxu0
  %7027 = vmatprep.mubr.f32.mxu0 %v6905
  %7028 = vmatmul.mubr.f32.gmra.mxu0 %v6904
  %v7029 = vpop.f32.mrf.mxu0
  %v7030 = vadd.f32 0.0, %v7029
  %v7031 = vpop.f32.mrf.mxu0
  %7032 = vmatprep.mubr.f32.mxu0 %v6914
  %7033 = vmatmul.mubr.f32.gmra.mxu0 %v6913
  %v7034 = vpop.f32.mrf.mxu0
  %v7035 = vadd.f32 0.0, %v7034
  %v7036 = vpop.f32.mrf.mxu0
  %7037 = vmatprep.mubr.f32.mxu0 %v6923
  %7038 = vmatmul.mubr.f32.gmra.mxu0 %v6922
  %v7039 = vpop.f32.mrf.mxu0
  %v7040 = vadd.f32 0.0, %v7039
  %v7041 = vpop.f32.mrf.mxu0
  %7042 = vmatprep.mubr.f32.mxu0 %v6932
  %7043 = vmatmul.mubr.f32.gmra.mxu0 %v6931
  %v7044 = vpop.f32.mrf.mxu0
  %v7045 = vadd.f32 0.0, %v7044
  %v7046 = vpop.f32.mrf.mxu0
  %7047 = vmatprep.mubr.f32.mxu0 %v6941
  %7048 = vmatmul.mubr.f32.gmra.mxu0 %v6940
  %v7049 = vpop.f32.mrf.mxu0
  %v7050 = vadd.f32 0.0, %v7049
  %v7051 = vpop.f32.mrf.mxu0
  %7052 = vmatprep.mubr.f32.mxu0 %v6950
  %7053 = vmatmul.mubr.f32.gmra.mxu0 %v6949
  %v7054 = vpop.f32.mrf.mxu0
  %v7055 = vadd.f32 0.0, %v7054
  %v7056 = vpop.f32.mrf.mxu0
  %7057 = vdwg.mxu0
  %7058 = vmatprep.subr.mxu0 0.0
  %7059 = vmatpush1.msra.mxu0 %v4312
  %7060 = vmatprep.subr.mxu0 0.0
  %7061 = vmatpush1.msra.mxu0 %v4307
  %7062 = vmatprep.subr.mxu0 0.0
  %7063 = vmatpush1.msra.mxu0 %v4302
  %7064 = vmatprep.subr.mxu0 0.0
  %7065 = vmatpush1.msra.mxu0 %v4297
  %7066 = vmatprep.subr.mxu0 0.0
  %7067 = vmatpush1.msra.mxu0 %v4292
  %7068 = vmatprep.subr.mxu0 0.0
  %7069 = vmatpush1.msra.mxu0 %v4287
  %7070 = vmatprep.subr.mxu0 0.0
  %7071 = vmatpush1.msra.mxu0 %v4282
  %7072 = vmatprep.subr.mxu0 0.0
  %7073 = vmatpush1.msra.mxu0 %v4277
  %7074 = vmatprep.subr.mxu0 0.0
  %7075 = vmatpush1.msra.mxu0 %v4272
  %7076 = vmatprep.subr.mxu0 0.0
  %7077 = vmatpush1.msra.mxu0 %v4267
  %7078 = vmatprep.subr.mxu0 0.0
  %7079 = vmatpush1.msra.mxu0 %v4262
  %7080 = vmatprep.subr.mxu0 0.0
  %7081 = vmatpush1.msra.mxu0 %v4257
  %7082 = vmatprep.subr.mxu0 0.0
  %7083 = vmatpush1.msra.mxu0 %v4252
  %7084 = vmatprep.subr.mxu0 0.0
  %7085 = vmatpush1.msra.mxu0 %v4247
  %7086 = vmatprep.subr.mxu0 0.0
  %7087 = vmatpush1.msra.mxu0 %v4242
  %7088 = vmatprep.subr.mxu0 0.0
  %7089 = vmatpush1.msra.mxu0 %v4237
  %7090 = vmatprep.subr.mxu0 0.0
  %7091 = vmatpush2.msra.mxu0 %v4460
  %7092 = vmatprep.subr.mxu0 0.0
  %7093 = vmatpush2.msra.mxu0 %v4455
  %7094 = vmatprep.subr.mxu0 0.0
  %7095 = vmatpush2.msra.mxu0 %v4450
  %7096 = vmatprep.subr.mxu0 0.0
  %7097 = vmatpush2.msra.mxu0 %v4445
  %7098 = vmatprep.subr.mxu0 0.0
  %7099 = vmatpush2.msra.mxu0 %v4440
  %7100 = vmatprep.subr.mxu0 0.0
  %7101 = vmatpush2.msra.mxu0 %v4435
  %7102 = vmatprep.subr.mxu0 0.0
  %7103 = vmatpush2.msra.mxu0 %v4430
  %7104 = vmatprep.subr.mxu0 0.0
  %7105 = vmatpush2.msra.mxu0 %v4425
  %7106 = vmatprep.subr.mxu0 0.0
  %7107 = vmatpush2.msra.mxu0 %v4420
  %7108 = vmatprep.subr.mxu0 0.0
  %7109 = vmatpush2.msra.mxu0 %v4415
  %7110 = vmatprep.subr.mxu0 0.0
  %7111 = vmatpush2.msra.mxu0 %v4410
  %7112 = vmatprep.subr.mxu0 0.0
  %7113 = vmatpush2.msra.mxu0 %v4405
  %7114 = vmatprep.subr.mxu0 0.0
  %7115 = vmatpush2.msra.mxu0 %v4400
  %7116 = vmatprep.subr.mxu0 0.0
  %7117 = vmatpush2.msra.mxu0 %v4395
  %7118 = vmatprep.subr.mxu0 0.0
  %7119 = vmatpush2.msra.mxu0 %v4390
  %7120 = vmatprep.subr.mxu0 0.0
  %7121 = vmatpush2.msra.mxu0 %v4385
  %7122 = vmatprep.mubr.f32.mxu0 %v6898
  %7123 = vmatmul.mubr.f32.gmra.mxu0 %v6897
  %v7124 = vpop.f32.mrf.mxu0
  %v7125 = vadd.f32 %v7025, %v7124
  %v7126 = vpop.f32.mrf.mxu0
  %7127 = vmatprep.mubr.f32.mxu0 %v6907
  %7128 = vmatmul.mubr.f32.gmra.mxu0 %v6906
  %v7129 = vpop.f32.mrf.mxu0
  %v7130 = vadd.f32 %v7030, %v7129
  %v7131 = vpop.f32.mrf.mxu0
  %7132 = vmatprep.mubr.f32.mxu0 %v6916
  %7133 = vmatmul.mubr.f32.gmra.mxu0 %v6915
  %v7134 = vpop.f32.mrf.mxu0
  %v7135 = vadd.f32 %v7035, %v7134
  %v7136 = vpop.f32.mrf.mxu0
  %7137 = vmatprep.mubr.f32.mxu0 %v6925
  %7138 = vmatmul.mubr.f32.gmra.mxu0 %v6924
  %v7139 = vpop.f32.mrf.mxu0
  %v7140 = vadd.f32 %v7040, %v7139
  %v7141 = vpop.f32.mrf.mxu0
  %7142 = vmatprep.mubr.f32.mxu0 %v6934
  %7143 = vmatmul.mubr.f32.gmra.mxu0 %v6933
  %v7144 = vpop.f32.mrf.mxu0
  %v7145 = vadd.f32 %v7045, %v7144
  %v7146 = vpop.f32.mrf.mxu0
  %7147 = vmatprep.mubr.f32.mxu0 %v6943
  %7148 = vmatmul.mubr.f32.gmra.mxu0 %v6942
  %v7149 = vpop.f32.mrf.mxu0
  %v7150 = vadd.f32 %v7050, %v7149
  %v7151 = vpop.f32.mrf.mxu0
  %7152 = vmatprep.mubr.f32.mxu0 %v6952
  %7153 = vmatmul.mubr.f32.gmra.mxu0 %v6951
  %v7154 = vpop.f32.mrf.mxu0
  %v7155 = vadd.f32 %v7055, %v7154
  %v7156 = vpop.f32.mrf.mxu0
  %7157 = vdwg.mxu0
  %7158 = vmatprep.subr.mxu0 0.0
  %7159 = vmatpush1.msra.mxu0 %v4608
  %7160 = vmatprep.subr.mxu0 0.0
  %7161 = vmatpush1.msra.mxu0 %v4603
  %7162 = vmatprep.subr.mxu0 0.0
  %7163 = vmatpush1.msra.mxu0 %v4598
  %7164 = vmatprep.subr.mxu0 0.0
  %7165 = vmatpush1.msra.mxu0 %v4593
  %7166 = vmatprep.subr.mxu0 0.0
  %7167 = vmatpush1.msra.mxu0 %v4588
  %7168 = vmatprep.subr.mxu0 0.0
  %7169 = vmatpush1.msra.mxu0 %v4583
  %7170 = vmatprep.subr.mxu0 0.0
  %7171 = vmatpush1.msra.mxu0 %v4578
  %7172 = vmatprep.subr.mxu0 0.0
  %7173 = vmatpush1.msra.mxu0 %v4573
  %7174 = vmatprep.subr.mxu0 0.0
  %7175 = vmatpush1.msra.mxu0 %v4568
  %7176 = vmatprep.subr.mxu0 0.0
  %7177 = vmatpush1.msra.mxu0 %v4563
  %7178 = vmatprep.subr.mxu0 0.0
  %7179 = vmatpush1.msra.mxu0 %v4558
  %7180 = vmatprep.subr.mxu0 0.0
  %7181 = vmatpush1.msra.mxu0 %v4553
  %7182 = vmatprep.subr.mxu0 0.0
  %7183 = vmatpush1.msra.mxu0 %v4548
  %7184 = vmatprep.subr.mxu0 0.0
  %7185 = vmatpush1.msra.mxu0 %v4543
  %7186 = vmatprep.subr.mxu0 0.0
  %7187 = vmatpush1.msra.mxu0 %v4538
  %7188 = vmatprep.subr.mxu0 0.0
  %7189 = vmatpush1.msra.mxu0 %v4533
  %7190 = vmatprep.subr.mxu0 0.0
  %7191 = vmatpush2.msra.mxu0 %v4756
  %7192 = vmatprep.subr.mxu0 0.0
  %7193 = vmatpush2.msra.mxu0 %v4751
  %7194 = vmatprep.subr.mxu0 0.0
  %7195 = vmatpush2.msra.mxu0 %v4746
  %7196 = vmatprep.subr.mxu0 0.0
  %7197 = vmatpush2.msra.mxu0 %v4741
  %7198 = vmatprep.subr.mxu0 0.0
  %7199 = vmatpush2.msra.mxu0 %v4736
  %7200 = vmatprep.subr.mxu0 0.0
  %7201 = vmatpush2.msra.mxu0 %v4731
  %7202 = vmatprep.subr.mxu0 0.0
  %7203 = vmatpush2.msra.mxu0 %v4726
  %7204 = vmatprep.subr.mxu0 0.0
  %7205 = vmatpush2.msra.mxu0 %v4721
  %7206 = vmatprep.subr.mxu0 0.0
  %7207 = vmatpush2.msra.mxu0 %v4716
  %7208 = vmatprep.subr.mxu0 0.0
  %7209 = vmatpush2.msra.mxu0 %v4711
  %7210 = vmatprep.subr.mxu0 0.0
  %7211 = vmatpush2.msra.mxu0 %v4706
  %7212 = vmatprep.subr.mxu0 0.0
  %7213 = vmatpush2.msra.mxu0 %v4701
  %7214 = vmatprep.subr.mxu0 0.0
  %7215 = vmatpush2.msra.mxu0 %v4696
  %7216 = vmatprep.subr.mxu0 0.0
  %7217 = vmatpush2.msra.mxu0 %v4691
  %7218 = vmatprep.subr.mxu0 0.0
  %7219 = vmatpush2.msra.mxu0 %v4686
  %7220 = vmatprep.subr.mxu0 0.0
  %7221 = vmatpush2.msra.mxu0 %v4681
  %7222 = vmatprep.mubr.f32.mxu0 %v6900
  %7223 = vmatmul.mubr.f32.gmra.mxu0 %v6899
  %v7224 = vpop.f32.mrf.mxu0
  %v7225 = vadd.f32 %v7125, %v7224
  %v7226 = vpop.f32.mrf.mxu0
  %7227 = vmatprep.mubr.f32.mxu0 %v6909
  %7228 = vmatmul.mubr.f32.gmra.mxu0 %v6908
  %v7229 = vpop.f32.mrf.mxu0
  %v7230 = vadd.f32 %v7130, %v7229
  %v7231 = vpop.f32.mrf.mxu0
  %7232 = vmatprep.mubr.f32.mxu0 %v6918
  %7233 = vmatmul.mubr.f32.gmra.mxu0 %v6917
  %v7234 = vpop.f32.mrf.mxu0
  %v7235 = vadd.f32 %v7135, %v7234
  %v7236 = vpop.f32.mrf.mxu0
  %7237 = vmatprep.mubr.f32.mxu0 %v6927
  %7238 = vmatmul.mubr.f32.gmra.mxu0 %v6926
  %v7239 = vpop.f32.mrf.mxu0
  %v7240 = vadd.f32 %v7140, %v7239
  %v7241 = vpop.f32.mrf.mxu0
  %7242 = vmatprep.mubr.f32.mxu0 %v6936
  %7243 = vmatmul.mubr.f32.gmra.mxu0 %v6935
  %v7244 = vpop.f32.mrf.mxu0
  %v7245 = vadd.f32 %v7145, %v7244
  %v7246 = vpop.f32.mrf.mxu0
  %7247 = vmatprep.mubr.f32.mxu0 %v6945
  %7248 = vmatmul.mubr.f32.gmra.mxu0 %v6944
  %v7249 = vpop.f32.mrf.mxu0
  %v7250 = vadd.f32 %v7150, %v7249
  %v7251 = vpop.f32.mrf.mxu0
  %7252 = vmatprep.mubr.f32.mxu0 %v6954
  %7253 = vmatmul.mubr.f32.gmra.mxu0 %v6953
  %v7254 = vpop.f32.mrf.mxu0
  %v7255 = vadd.f32 %v7155, %v7254
  %v7256 = vpop.f32.mrf.mxu0
  %7257 = vdwg.mxu0
  %7258 = vmatprep.subr.mxu0 0.0
  %7259 = vmatpush1.msra.mxu0 %v4904
  %7260 = vmatprep.subr.mxu0 0.0
  %7261 = vmatpush1.msra.mxu0 %v4899
  %7262 = vmatprep.subr.mxu0 0.0
  %7263 = vmatpush1.msra.mxu0 %v4894
  %7264 = vmatprep.subr.mxu0 0.0
  %7265 = vmatpush1.msra.mxu0 %v4889
  %7266 = vmatprep.subr.mxu0 0.0
  %7267 = vmatpush1.msra.mxu0 %v4884
  %7268 = vmatprep.subr.mxu0 0.0
  %7269 = vmatpush1.msra.mxu0 %v4879
  %7270 = vmatprep.subr.mxu0 0.0
  %7271 = vmatpush1.msra.mxu0 %v4874
  %7272 = vmatprep.subr.mxu0 0.0
  %7273 = vmatpush1.msra.mxu0 %v4869
  %7274 = vmatprep.subr.mxu0 0.0
  %7275 = vmatpush1.msra.mxu0 %v4864
  %7276 = vmatprep.subr.mxu0 0.0
  %7277 = vmatpush1.msra.mxu0 %v4859
  %7278 = vmatprep.subr.mxu0 0.0
  %7279 = vmatpush1.msra.mxu0 %v4854
  %7280 = vmatprep.subr.mxu0 0.0
  %7281 = vmatpush1.msra.mxu0 %v4849
  %7282 = vmatprep.subr.mxu0 0.0
  %7283 = vmatpush1.msra.mxu0 %v4844
  %7284 = vmatprep.subr.mxu0 0.0
  %7285 = vmatpush1.msra.mxu0 %v4839
  %7286 = vmatprep.subr.mxu0 0.0
  %7287 = vmatpush1.msra.mxu0 %v4834
  %7288 = vmatprep.subr.mxu0 0.0
  %7289 = vmatpush1.msra.mxu0 %v4829
  %7290 = vmatprep.subr.mxu0 0.0
  %7291 = vmatpush2.msra.mxu0 %v5052
  %7292 = vmatprep.subr.mxu0 0.0
  %7293 = vmatpush2.msra.mxu0 %v5047
  %7294 = vmatprep.subr.mxu0 0.0
  %7295 = vmatpush2.msra.mxu0 %v5042
  %7296 = vmatprep.subr.mxu0 0.0
  %7297 = vmatpush2.msra.mxu0 %v5037
  %7298 = vmatprep.subr.mxu0 0.0
  %7299 = vmatpush2.msra.mxu0 %v5032
  %7300 = vmatprep.subr.mxu0 0.0
  %7301 = vmatpush2.msra.mxu0 %v5027
  %7302 = vmatprep.subr.mxu0 0.0
  %7303 = vmatpush2.msra.mxu0 %v5022
  %7304 = vmatprep.subr.mxu0 0.0
  %7305 = vmatpush2.msra.mxu0 %v5017
  %7306 = vmatprep.subr.mxu0 0.0
  %7307 = vmatpush2.msra.mxu0 %v5012
  %7308 = vmatprep.subr.mxu0 0.0
  %7309 = vmatpush2.msra.mxu0 %v5007
  %7310 = vmatprep.subr.mxu0 0.0
  %7311 = vmatpush2.msra.mxu0 %v5002
  %7312 = vmatprep.subr.mxu0 0.0
  %7313 = vmatpush2.msra.mxu0 %v4997
  %7314 = vmatprep.subr.mxu0 0.0
  %7315 = vmatpush2.msra.mxu0 %v4992
  %7316 = vmatprep.subr.mxu0 0.0
  %7317 = vmatpush2.msra.mxu0 %v4987
  %7318 = vmatprep.subr.mxu0 0.0
  %7319 = vmatpush2.msra.mxu0 %v4982
  %7320 = vmatprep.subr.mxu0 0.0
  %7321 = vmatpush2.msra.mxu0 %v4977
  %7322 = vmatprep.mubr.f32.mxu0 %v6902
  %7323 = vmatmul.mubr.f32.gmra.mxu0 %v6901
  %v7324 = vpop.f32.mrf.mxu0
  %v7325 = vadd.f32 %v7225, %v7324
  %v7326 = vpop.f32.mrf.mxu0
  %7327 = vmatprep.mubr.f32.mxu0 %v6911
  %7328 = vmatmul.mubr.f32.gmra.mxu0 %v6910
  %v7329 = vpop.f32.mrf.mxu0
  %v7330 = vadd.f32 %v7230, %v7329
  %v7331 = vpop.f32.mrf.mxu0
  %7332 = vmatprep.mubr.f32.mxu0 %v6920
  %7333 = vmatmul.mubr.f32.gmra.mxu0 %v6919
  %v7334 = vpop.f32.mrf.mxu0
  %v7335 = vadd.f32 %v7235, %v7334
  %v7336 = vpop.f32.mrf.mxu0
  %7337 = vmatprep.mubr.f32.mxu0 %v6929
  %7338 = vmatmul.mubr.f32.gmra.mxu0 %v6928
  %v7339 = vpop.f32.mrf.mxu0
  %v7340 = vadd.f32 %v7240, %v7339
  %v7341 = vpop.f32.mrf.mxu0
  %7342 = vmatprep.mubr.f32.mxu0 %v6938
  %7343 = vmatmul.mubr.f32.gmra.mxu0 %v6937
  %v7344 = vpop.f32.mrf.mxu0
  %v7345 = vadd.f32 %v7245, %v7344
  %v7346 = vpop.f32.mrf.mxu0
  %7347 = vmatprep.mubr.f32.mxu0 %v6947
  %7348 = vmatmul.mubr.f32.gmra.mxu0 %v6946
  %v7349 = vpop.f32.mrf.mxu0
  %v7350 = vadd.f32 %v7250, %v7349
  %v7351 = vpop.f32.mrf.mxu0
  %7352 = vmatprep.mubr.f32.mxu0 %v6956
  %7353 = vmatmul.mubr.f32.gmra.mxu0 %v6955
  %v7354 = vpop.f32.mrf.mxu0
  %v7355 = vadd.f32 %v7255, %v7354
  %v7356 = vpop.f32.mrf.mxu0
  %7357 = vdwg.mxu0
  %7358 = vmatprep.subr.mxu0 0.0
  %7359 = vmatpush1.msra.mxu0 %v5200
  %7360 = vmatprep.subr.mxu0 0.0
  %7361 = vmatpush1.msra.mxu0 %v5195
  %7362 = vmatprep.subr.mxu0 0.0
  %7363 = vmatpush1.msra.mxu0 %v5190
  %7364 = vmatprep.subr.mxu0 0.0
  %7365 = vmatpush1.msra.mxu0 %v5185
  %7366 = vmatprep.subr.mxu0 0.0
  %7367 = vmatpush1.msra.mxu0 %v5180
  %7368 = vmatprep.subr.mxu0 0.0
  %7369 = vmatpush1.msra.mxu0 %v5175
  %7370 = vmatprep.subr.mxu0 0.0
  %7371 = vmatpush1.msra.mxu0 %v5170
  %7372 = vmatprep.subr.mxu0 0.0
  %7373 = vmatpush1.msra.mxu0 %v5165
  %7374 = vmatprep.subr.mxu0 0.0
  %7375 = vmatpush1.msra.mxu0 %v5160
  %7376 = vmatprep.subr.mxu0 0.0
  %7377 = vmatpush1.msra.mxu0 %v5155
  %7378 = vmatprep.subr.mxu0 0.0
  %7379 = vmatpush1.msra.mxu0 %v5150
  %7380 = vmatprep.subr.mxu0 0.0
  %7381 = vmatpush1.msra.mxu0 %v5145
  %7382 = vmatprep.subr.mxu0 0.0
  %7383 = vmatpush1.msra.mxu0 %v5140
  %7384 = vmatprep.subr.mxu0 0.0
  %7385 = vmatpush1.msra.mxu0 %v5135
  %7386 = vmatprep.subr.mxu0 0.0
  %7387 = vmatpush1.msra.mxu0 %v5130
  %7388 = vmatprep.subr.mxu0 0.0
  %7389 = vmatpush1.msra.mxu0 %v5125
  %7390 = vmatprep.subr.mxu0 0.0
  %7391 = vmatpush2.msra.mxu0 0.0
  %7392 = vmatprep.subr.mxu0 0.0
  %7393 = vmatpush2.msra.mxu0 0.0
  %7394 = vmatprep.subr.mxu0 0.0
  %7395 = vmatpush2.msra.mxu0 0.0
  %7396 = vmatprep.subr.mxu0 0.0
  %7397 = vmatpush2.msra.mxu0 0.0
  %7398 = vmatprep.subr.mxu0 0.0
  %7399 = vmatpush2.msra.mxu0 0.0
  %7400 = vmatprep.subr.mxu0 0.0
  %7401 = vmatpush2.msra.mxu0 0.0
  %7402 = vmatprep.subr.mxu0 0.0
  %7403 = vmatpush2.msra.mxu0 0.0
  %7404 = vmatprep.subr.mxu0 0.0
  %7405 = vmatpush2.msra.mxu0 0.0
  %7406 = vmatprep.subr.mxu0 0.0
  %7407 = vmatpush2.msra.mxu0 0.0
  %7408 = vmatprep.subr.mxu0 0.0
  %7409 = vmatpush2.msra.mxu0 0.0
  %7410 = vmatprep.subr.mxu0 0.0
  %7411 = vmatpush2.msra.mxu0 0.0
  %7412 = vmatprep.subr.mxu0 0.0
  %7413 = vmatpush2.msra.mxu0 0.0
  %7414 = vmatprep.subr.mxu0 0.0
  %7415 = vmatpush2.msra.mxu0 0.0
  %7416 = vmatprep.subr.mxu0 0.0
  %7417 = vmatpush2.msra.mxu0 0.0
  %7418 = vmatprep.subr.mxu0 0.0
  %7419 = vmatpush2.msra.mxu0 0.0
  %7420 = vmatprep.subr.mxu0 0.0
  %7421 = vmatpush2.msra.mxu0 0.0
  %7422 = vmatprep.mubr.f32.mxu0 0.0
  %7423 = vmatmul.mubr.f32.gmra.mxu0 %v6903
  %v7424 = vpop.f32.mrf.mxu0
  %v7425 = vadd.f32 %v7325, %v7424
  %v7426 = vpop.f32.mrf.mxu0
  %7427 = vmatprep.mubr.f32.mxu0 0.0
  %7428 = vmatmul.mubr.f32.gmra.mxu0 %v6912
  %v7429 = vpop.f32.mrf.mxu0
  %v7430 = vadd.f32 %v7330, %v7429
  %v7431 = vpop.f32.mrf.mxu0
  %7432 = vmatprep.mubr.f32.mxu0 0.0
  %7433 = vmatmul.mubr.f32.gmra.mxu0 %v6921
  %v7434 = vpop.f32.mrf.mxu0
  %v7435 = vadd.f32 %v7335, %v7434
  %v7436 = vpop.f32.mrf.mxu0
  %7437 = vmatprep.mubr.f32.mxu0 0.0
  %7438 = vmatmul.mubr.f32.gmra.mxu0 %v6930
  %v7439 = vpop.f32.mrf.mxu0
  %v7440 = vadd.f32 %v7340, %v7439
  %v7441 = vpop.f32.mrf.mxu0
  %7442 = vmatprep.mubr.f32.mxu0 0.0
  %7443 = vmatmul.mubr.f32.gmra.mxu0 %v6939
  %v7444 = vpop.f32.mrf.mxu0
  %v7445 = vadd.f32 %v7345, %v7444
  %v7446 = vpop.f32.mrf.mxu0
  %7447 = vmatprep.mubr.f32.mxu0 0.0
  %7448 = vmatmul.mubr.f32.gmra.mxu0 %v6948
  %v7449 = vpop.f32.mrf.mxu0
  %v7450 = vadd.f32 %v7350, %v7449
  %v7451 = vpop.f32.mrf.mxu0
  %7452 = vmatprep.mubr.f32.mxu0 0.0
  %7453 = vmatmul.mubr.f32.gmra.mxu0 %v6957
  %v7454 = vpop.f32.mrf.mxu0
  %v7455 = vadd.f32 %v7355, %v7454
  %v7456 = vpop.f32.mrf.mxu0
  %7457 = vdwg.mxu0
  %v7458 = vsel %vm677, %v5733, 0.0
  %v7459 = vsel %vm677, %v5738, 0.0
  %v7460 = vadd.f32 %v7458, %v7459
  %v7461 = vsel %vm677, %v5743, 0.0
  %v7462 = vadd.f32 %v7460, %v7461
  %v7463 = vsel %vm677, %v5748, 0.0
  %v7464 = vadd.f32 %v7462, %v7463
  %v7465 = vsel %vm677, %v5753, 0.0
  %v7466 = vadd.f32 %v7464, %v7465
  %v7467 = vsel %vm677, %v5758, 0.0
  %v7468 = vadd.f32 %v7466, %v7467
  %vm7469 = vcmask 123904
  %v7470 = vsel %vm7469, %v5763, 0.0
  %v7471 = vadd.f32 %v7468, %v7470
  %v7472 = vrot.slane %v7471, 4
  %v7473 = vadd.f32 %v7471, %v7472
  %v7474 = vrot.slane %v7473, 2
  %v7475 = vadd.f32 %v7473, %v7474
  %v7476 = vrot.slane %v7475, 1
  %v7477 = vadd.f32 %v7475, %v7476
  %v7478 = vrcp.pop 50.0
  %v7479 = vmul.f32 %v7477, %v7478
  %v7480 = vsel %vm677, %v6297, 0.0
  %v7481 = vsel %vm677, %v6302, 0.0
  %v7482 = vadd.f32 %v7480, %v7481
  %v7483 = vsel %vm677, %v6307, 0.0
  %v7484 = vadd.f32 %v7482, %v7483
  %v7485 = vsel %vm677, %v6312, 0.0
  %v7486 = vadd.f32 %v7484, %v7485
  %v7487 = vsel %vm677, %v6317, 0.0
  %v7488 = vadd.f32 %v7486, %v7487
  %v7489 = vsel %vm677, %v6322, 0.0
  %v7490 = vadd.f32 %v7488, %v7489
  %v7491 = vsel %vm7469, %v6327, 0.0
  %v7492 = vadd.f32 %v7490, %v7491
  %v7493 = vrot.slane %v7492, 4
  %v7494 = vadd.f32 %v7492, %v7493
  %v7495 = vrot.slane %v7494, 2
  %v7496 = vadd.f32 %v7494, %v7495
  %v7497 = vrot.slane %v7496, 1
  %v7498 = vadd.f32 %v7496, %v7497
  %v7499 = vmul.f32 %v7498, %v7478
  %v7500 = vadd.f32 %v7479, %v7499
  %v7501 = vsel %vm677, %v6861, 0.0
  %v7502 = vsel %vm677, %v6866, 0.0
  %v7503 = vadd.f32 %v7501, %v7502
  %v7504 = vsel %vm677, %v6871, 0.0
  %v7505 = vadd.f32 %v7503, %v7504
  %v7506 = vsel %vm677, %v6876, 0.0
  %v7507 = vadd.f32 %v7505, %v7506
  %v7508 = vsel %vm677, %v6881, 0.0
  %v7509 = vadd.f32 %v7507, %v7508
  %v7510 = vsel %vm677, %v6886, 0.0
  %v7511 = vadd.f32 %v7509, %v7510
  %v7512 = vsel %vm7469, %v6891, 0.0
  %v7513 = vadd.f32 %v7511, %v7512
  %v7514 = vrot.slane %v7513, 4
  %v7515 = vadd.f32 %v7513, %v7514
  %v7516 = vrot.slane %v7515, 2
  %v7517 = vadd.f32 %v7515, %v7516
  %v7518 = vrot.slane %v7517, 1
  %v7519 = vadd.f32 %v7517, %v7518
  %v7520 = vmul.f32 %v7519, %v7478
  %v7521 = vadd.f32 %v7500, %v7520
  %v7522 = vsel %vm677, %v7425, 0.0
  %v7523 = vsel %vm677, %v7430, 0.0
  %v7524 = vadd.f32 %v7522, %v7523
  %v7525 = vsel %vm677, %v7435, 0.0
  %v7526 = vadd.f32 %v7524, %v7525
  %v7527 = vsel %vm677, %v7440, 0.0
  %v7528 = vadd.f32 %v7526, %v7527
  %v7529 = vsel %vm677, %v7445, 0.0
  %v7530 = vadd.f32 %v7528, %v7529
  %v7531 = vsel %vm677, %v7450, 0.0
  %v7532 = vadd.f32 %v7530, %v7531
  %v7533 = vsel %vm7469, %v7455, 0.0
  %v7534 = vadd.f32 %v7532, %v7533
  %v7535 = vrot.slane %v7534, 4
  %v7536 = vadd.f32 %v7534, %v7535
  %v7537 = vrot.slane %v7536, 2
  %v7538 = vadd.f32 %v7536, %v7537
  %v7539 = vrot.slane %v7538, 1
  %v7540 = vadd.f32 %v7538, %v7539
  %v7541 = vmul.f32 %v7540, %v7478
  %v7542 = vadd.f32 %v7521, %v7541
  %v7543 = vmul.f32 %v7542, 0.25
  %v7544 = vsub.f32 %v5733, %v7543
  %v7545 = vsub.f32 %v5738, %v7543
  %v7546 = vsub.f32 %v5743, %v7543
  %v7547 = vsub.f32 %v5748, %v7543
  %v7548 = vsub.f32 %v5753, %v7543
  %v7549 = vsub.f32 %v5758, %v7543
  %v7550 = vsub.f32 %v5763, %v7543
  %v7551 = vmul.f32 %v7544, %v7544
  %v7552 = vmul.f32 %v7545, %v7545
  %v7553 = vmul.f32 %v7546, %v7546
  %v7554 = vmul.f32 %v7547, %v7547
  %v7555 = vmul.f32 %v7548, %v7548
  %v7556 = vmul.f32 %v7549, %v7549
  %v7557 = vmul.f32 %v7550, %v7550
  %v7558 = vsel %vm677, %v7551, 0.0
  %v7559 = vsel %vm677, %v7552, 0.0
  %v7560 = vadd.f32 %v7558, %v7559
  %v7561 = vsel %vm677, %v7553, 0.0
  %v7562 = vadd.f32 %v7560, %v7561
  %v7563 = vsel %vm677, %v7554, 0.0
  %v7564 = vadd.f32 %v7562, %v7563
  %v7565 = vsel %vm677, %v7555, 0.0
  %v7566 = vadd.f32 %v7564, %v7565
  %v7567 = vsel %vm677, %v7556, 0.0
  %v7568 = vadd.f32 %v7566, %v7567
  %v7569 = vsel %vm7469, %v7557, 0.0
  %v7570 = vadd.f32 %v7568, %v7569
  %v7571 = vrot.slane %v7570, 4
  %v7572 = vadd.f32 %v7570, %v7571
  %v7573 = vrot.slane %v7572, 2
  %v7574 = vadd.f32 %v7572, %v7573
  %v7575 = vrot.slane %v7574, 1
  %v7576 = vadd.f32 %v7574, %v7575
  %v7577 = vmul.f32 %v7576, %v7478
  %v7578 = vsub.f32 %v6297, %v7543
  %v7579 = vsub.f32 %v6302, %v7543
  %v7580 = vsub.f32 %v6307, %v7543
  %v7581 = vsub.f32 %v6312, %v7543
  %v7582 = vsub.f32 %v6317, %v7543
  %v7583 = vsub.f32 %v6322, %v7543
  %v7584 = vsub.f32 %v6327, %v7543
  %v7585 = vmul.f32 %v7578, %v7578
  %v7586 = vmul.f32 %v7579, %v7579
  %v7587 = vmul.f32 %v7580, %v7580
  %v7588 = vmul.f32 %v7581, %v7581
  %v7589 = vmul.f32 %v7582, %v7582
  %v7590 = vmul.f32 %v7583, %v7583
  %v7591 = vmul.f32 %v7584, %v7584
  %v7592 = vsel %vm677, %v7585, 0.0
  %v7593 = vsel %vm677, %v7586, 0.0
  %v7594 = vadd.f32 %v7592, %v7593
  %v7595 = vsel %vm677, %v7587, 0.0
  %v7596 = vadd.f32 %v7594, %v7595
  %v7597 = vsel %vm677, %v7588, 0.0
  %v7598 = vadd.f32 %v7596, %v7597
  %v7599 = vsel %vm677, %v7589, 0.0
  %v7600 = vadd.f32 %v7598, %v7599
  %v7601 = vsel %vm677, %v7590, 0.0
  %v7602 = vadd.f32 %v7600, %v7601
  %v7603 = vsel %vm7469, %v7591, 0.0
  %v7604 = vadd.f32 %v7602, %v7603
  %v7605 = vrot.slane %v7604, 4
  %v7606 = vadd.f32 %v7604, %v7605
  %v7607 = vrot.slane %v7606, 2
  %v7608 = vadd.f32 %v7606, %v7607
  %v7609 = vrot.slane %v7608, 1
  %v7610 = vadd.f32 %v7608, %v7609
  %v7611 = vmul.f32 %v7610, %v7478
  %v7612 = vadd.f32 %v7577, %v7611
  %v7613 = vsub.f32 %v6861, %v7543
  %v7614 = vsub.f32 %v6866, %v7543
  %v7615 = vsub.f32 %v6871, %v7543
  %v7616 = vsub.f32 %v6876, %v7543
  %v7617 = vsub.f32 %v6881, %v7543
  %v7618 = vsub.f32 %v6886, %v7543
  %v7619 = vsub.f32 %v6891, %v7543
  %v7620 = vmul.f32 %v7613, %v7613
  %v7621 = vmul.f32 %v7614, %v7614
  %v7622 = vmul.f32 %v7615, %v7615
  %v7623 = vmul.f32 %v7616, %v7616
  %v7624 = vmul.f32 %v7617, %v7617
  %v7625 = vmul.f32 %v7618, %v7618
  %v7626 = vmul.f32 %v7619, %v7619
  %v7627 = vsel %vm677, %v7620, 0.0
  %v7628 = vsel %vm677, %v7621, 0.0
  %v7629 = vadd.f32 %v7627, %v7628
  %v7630 = vsel %vm677, %v7622, 0.0
  %v7631 = vadd.f32 %v7629, %v7630
  %v7632 = vsel %vm677, %v7623, 0.0
  %v7633 = vadd.f32 %v7631, %v7632
  %v7634 = vsel %vm677, %v7624, 0.0
  %v7635 = vadd.f32 %v7633, %v7634
  %v7636 = vsel %vm677, %v7625, 0.0
  %v7637 = vadd.f32 %v7635, %v7636
  %v7638 = vsel %vm7469, %v7626, 0.0
  %v7639 = vadd.f32 %v7637, %v7638
  %v7640 = vrot.slane %v7639, 4
  %v7641 = vadd.f32 %v7639, %v7640
  %v7642 = vrot.slane %v7641, 2
  %v7643 = vadd.f32 %v7641, %v7642
  %v7644 = vrot.slane %v7643, 1
  %v7645 = vadd.f32 %v7643, %v7644
  %v7646 = vmul.f32 %v7645, %v7478
  %v7647 = vadd.f32 %v7612, %v7646
  %v7648 = vsub.f32 %v7425, %v7543
  %v7649 = vsub.f32 %v7430, %v7543
  %v7650 = vsub.f32 %v7435, %v7543
  %v7651 = vsub.f32 %v7440, %v7543
  %v7652 = vsub.f32 %v7445, %v7543
  %v7653 = vsub.f32 %v7450, %v7543
  %v7654 = vsub.f32 %v7455, %v7543
  %v7655 = vmul.f32 %v7648, %v7648
  %v7656 = vmul.f32 %v7649, %v7649
  %v7657 = vmul.f32 %v7650, %v7650
  %v7658 = vmul.f32 %v7651, %v7651
  %v7659 = vmul.f32 %v7652, %v7652
  %v7660 = vmul.f32 %v7653, %v7653
  %v7661 = vmul.f32 %v7654, %v7654
  %v7662 = vsel %vm677, %v7655, 0.0
  %v7663 = vsel %vm677, %v7656, 0.0
  %v7664 = vadd.f32 %v7662, %v7663
  %v7665 = vsel %vm677, %v7657, 0.0
  %v7666 = vadd.f32 %v7664, %v7665
  %v7667 = vsel %vm677, %v7658, 0.0
  %v7668 = vadd.f32 %v7666, %v7667
  %v7669 = vsel %vm677, %v7659, 0.0
  %v7670 = vadd.f32 %v7668, %v7669
  %v7671 = vsel %vm677, %v7660, 0.0
  %v7672 = vadd.f32 %v7670, %v7671
  %v7673 = vsel %vm7469, %v7661, 0.0
  %v7674 = vadd.f32 %v7672, %v7673
  %v7675 = vrot.slane %v7674, 4
  %v7676 = vadd.f32 %v7674, %v7675
  %v7677 = vrot.slane %v7676, 2
  %v7678 = vadd.f32 %v7676, %v7677
  %v7679 = vrot.slane %v7678, 1
  %v7680 = vadd.f32 %v7678, %v7679
  %v7681 = vmul.f32 %v7680, %v7478
  %v7682 = vadd.f32 %v7647, %v7681
  %v7683 = vmul.f32 %v7682, 0.25
  %v7684 = vadd.f32 %v7683, 1e-05
  %v7685 = vrsqrt.pop %v7684
  %v7686 = vmul.f32 %v7544, %v7685
  %v7687 = vmul.f32 %v7545, %v7685
  %v7688 = vmul.f32 %v7546, %v7685
  %v7689 = vmul.f32 %v7547, %v7685
  %v7690 = vmul.f32 %v7548, %v7685
  %v7691 = vmul.f32 %v7549, %v7685
  %v7692 = vmul.f32 %v7550, %v7685
  %v7693 = vld [vmem:[%s6 + $0x2] sm:$0x1]
  %v7694 = vlaneseq
  %v7695 = vshrl.u32 %v7694, 7
  %v7696 = vsub.s32 0, %v7695
  %v7697 = vrot.slane %v7693, %v7696
  %v7698 = vmul.f32 %v7686, %v7697
  %v7699 = vmul.f32 %v7687, %v7697
  %v7700 = vmul.f32 %v7688, %v7697
  %v7701 = vmul.f32 %v7689, %v7697
  %v7702 = vmul.f32 %v7690, %v7697
  %v7703 = vmul.f32 %v7691, %v7697
  %v7704 = vmul.f32 %v7692, %v7697
  %v7705 = vld [vmem:[%s7 + $0x2] sm:$0x1]
  %v7706 = vlaneseq
  %v7707 = vshrl.u32 %v7706, 7
  %v7708 = vsub.s32 0, %v7707
  %v7709 = vrot.slane %v7705, %v7708
  %v7710 = vadd.f32 %v7698, %v7709
  %v7711 = vadd.f32 %v7699, %v7709
  %v7712 = vadd.f32 %v7700, %v7709
  %v7713 = vadd.f32 %v7701, %v7709
  %v7714 = vadd.f32 %v7702, %v7709
  %v7715 = vadd.f32 %v7703, %v7709
  %v7716 = vadd.f32 %v7704, %v7709
  %v7717 = vmax.f32 %v7710, 0.0
  %v7718 = vmax.f32 %v7711, 0.0
  %v7719 = vmax.f32 %v7712, 0.0
  %v7720 = vmax.f32 %v7713, 0.0
  %v7721 = vmax.f32 %v7714, 0.0
  %v7722 = vmax.f32 %v7715, 0.0
  %v7723 = vmax.f32 %v7716, 0.0
  %v7724 = vmul.f32 %v7578, %v7685
  %v7725 = vmul.f32 %v7579, %v7685
  %v7726 = vmul.f32 %v7580, %v7685
  %v7727 = vmul.f32 %v7581, %v7685
  %v7728 = vmul.f32 %v7582, %v7685
  %v7729 = vmul.f32 %v7583, %v7685
  %v7730 = vmul.f32 %v7584, %v7685
  %v7731 = vmul.f32 %v7724, %v7697
  %v7732 = vmul.f32 %v7725, %v7697
  %v7733 = vmul.f32 %v7726, %v7697
  %v7734 = vmul.f32 %v7727, %v7697
  %v7735 = vmul.f32 %v7728, %v7697
  %v7736 = vmul.f32 %v7729, %v7697
  %v7737 = vmul.f32 %v7730, %v7697
  %v7738 = vadd.f32 %v7731, %v7709
  %v7739 = vadd.f32 %v7732, %v7709
  %v7740 = vadd.f32 %v7733, %v7709
  %v7741 = vadd.f32 %v7734, %v7709
  %v7742 = vadd.f32 %v7735, %v7709
  %v7743 = vadd.f32 %v7736, %v7709
  %v7744 = vadd.f32 %v7737, %v7709
  %v7745 = vmax.f32 %v7738, 0.0
  %v7746 = vmax.f32 %v7739, 0.0
  %v7747 = vmax.f32 %v7740, 0.0
  %v7748 = vmax.f32 %v7741, 0.0
  %v7749 = vmax.f32 %v7742, 0.0
  %v7750 = vmax.f32 %v7743, 0.0
  %v7751 = vmax.f32 %v7744, 0.0
  %v7752 = vmul.f32 %v7613, %v7685
  %v7753 = vmul.f32 %v7614, %v7685
  %v7754 = vmul.f32 %v7615, %v7685
  %v7755 = vmul.f32 %v7616, %v7685
  %v7756 = vmul.f32 %v7617, %v7685
  %v7757 = vmul.f32 %v7618, %v7685
  %v7758 = vmul.f32 %v7619, %v7685
  %v7759 = vmul.f32 %v7752, %v7697
  %v7760 = vmul.f32 %v7753, %v7697
  %v7761 = vmul.f32 %v7754, %v7697
  %v7762 = vmul.f32 %v7755, %v7697
  %v7763 = vmul.f32 %v7756, %v7697
  %v7764 = vmul.f32 %v7757, %v7697
  %v7765 = vmul.f32 %v7758, %v7697
  %v7766 = vadd.f32 %v7759, %v7709
  %v7767 = vadd.f32 %v7760, %v7709
  %v7768 = vadd.f32 %v7761, %v7709
  %v7769 = vadd.f32 %v7762, %v7709
  %v7770 = vadd.f32 %v7763, %v7709
  %v7771 = vadd.f32 %v7764, %v7709
  %v7772 = vadd.f32 %v7765, %v7709
  %v7773 = vmax.f32 %v7766, 0.0
  %v7774 = vmax.f32 %v7767, 0.0
  %v7775 = vmax.f32 %v7768, 0.0
  %v7776 = vmax.f32 %v7769, 0.0
  %v7777 = vmax.f32 %v7770, 0.0
  %v7778 = vmax.f32 %v7771, 0.0
  %v7779 = vmax.f32 %v7772, 0.0
  %v7780 = vmul.f32 %v7648, %v7685
  %v7781 = vmul.f32 %v7649, %v7685
  %v7782 = vmul.f32 %v7650, %v7685
  %v7783 = vmul.f32 %v7651, %v7685
  %v7784 = vmul.f32 %v7652, %v7685
  %v7785 = vmul.f32 %v7653, %v7685
  %v7786 = vmul.f32 %v7654, %v7685
  %v7787 = vmul.f32 %v7780, %v7697
  %v7788 = vmul.f32 %v7781, %v7697
  %v7789 = vmul.f32 %v7782, %v7697
  %v7790 = vmul.f32 %v7783, %v7697
  %v7791 = vmul.f32 %v7784, %v7697
  %v7792 = vmul.f32 %v7785, %v7697
  %v7793 = vmul.f32 %v7786, %v7697
  %v7794 = vadd.f32 %v7787, %v7709
  %v7795 = vadd.f32 %v7788, %v7709
  %v7796 = vadd.f32 %v7789, %v7709
  %v7797 = vadd.f32 %v7790, %v7709
  %v7798 = vadd.f32 %v7791, %v7709
  %v7799 = vadd.f32 %v7792, %v7709
  %v7800 = vadd.f32 %v7793, %v7709
  %v7801 = vmax.f32 %v7794, 0.0
  %v7802 = vmax.f32 %v7795, 0.0
  %v7803 = vmax.f32 %v7796, 0.0
  %v7804 = vmax.f32 %v7797, 0.0
  %v7805 = vmax.f32 %v7798, 0.0
  %v7806 = vmax.f32 %v7799, 0.0
  %v7807 = vmax.f32 %v7800, 0.0
  %v7808 = vmax.f32 %v7717, %v7745
  %v7809 = vmax.f32 %v7718, %v7746
  %v7810 = vmax.f32 %v7719, %v7747
  %v7811 = vmax.f32 %v7720, %v7748
  %v7812 = vmax.f32 %v7721, %v7749
  %v7813 = vmax.f32 %v7722, %v7750
  %v7814 = vmax.f32 %v7723, %v7751
  %v7815 = vmax.f32 %v7773, %v7801
  %v7816 = vmax.f32 %v7774, %v7802
  %v7817 = vmax.f32 %v7775, %v7803
  %v7818 = vmax.f32 %v7776, %v7804
  %v7819 = vmax.f32 %v7777, %v7805
  %v7820 = vmax.f32 %v7778, %v7806
  %v7821 = vmax.f32 %v7779, %v7807
  %v7822 = vmax.f32 %v7808, %v7815
  %v7823 = vmax.f32 %v7809, %v7816
  %v7824 = vmax.f32 %v7810, %v7817
  %v7825 = vmax.f32 %v7811, %v7818
  %v7826 = vmax.f32 %v7812, %v7819
  %v7827 = vmax.f32 %v7813, %v7820
  %v7828 = vmax.f32 %v7814, %v7821
  %7829 = vst.msk [vmem:[%s8] sm:$0xff] %vm677, %v7822
  %7830 = vst.msk [vmem:[%s8 + $0x8] sm:$0xff] %vm677, %v7823
  %7831 = vst.msk [vmem:[%s8 + $0x10] sm:$0xff] %vm677, %v7824
  %7832 = vst.msk [vmem:[%s8 + $0x18] sm:$0xff] %vm677, %v7825
  %7833 = vst.msk [vmem:[%s8 + $0x20] sm:$0xff] %vm677, %v7826
  %7834 = vst.msk [vmem:[%s8 + $0x28] sm:$0xff] %vm677, %v7827
  %7835 = vst.msk [vmem:[%s8 + $0x30] sm:$0x3] %vm7469, %v7828
  // Predicated region
  $region34: #{_lambda_.1} parent=0 // pred_check
    _
  $region35: #{_lambda_.1} parent=0 // pred_check_branch
    %7837 = sbr.rel (0) target = $region37
  $region36: #{_lambda_.1} parent=0 // pred_region
    _
  $region37: #{_lambda_.1} parent=0 // pred_fallthru
    _
  // Predicated region
  $region38: #{_lambda_.1} parent=0 // pred_check
    _
  $region39: #{_lambda_.1} parent=0 // pred_check_branch
    %7839 = sbr.rel (0) target = $region41
  $region40: #{_lambda_.1} parent=0 // pred_region
    _
  $region41: #{_lambda_.1} parent=0 // pred_fallthru
    _

</llo_original>
